<compile_context>
chip_gen: v5e
topology: v5e:2x2
jax: 0.10.0
libtpu: 0.0.40
codegen_flags: <defaults>
</compile_context>

<pallas_src>
import functools

import jax
import jax.numpy as jnp
from jax.experimental import pallas as pl
from jax.experimental.pallas import tpu as pltpu


CP = 128  # padded channel count -> lane-dense activations, weights and stores


# -----------------------------------------------------------------------------
# Pallas kernel: one full Block (+ 2x2 max-pool) per batch element
# -----------------------------------------------------------------------------
def _block_kernel(x_ref, w1_ref, b1_ref, w2_ref, b2_ref,
                  feat_ref, pool_ref, h_ref, y_ref, *, W, Hp, Wp):
    # x_ref   : (H*W, CP)    input image, flat rows (row p = i*W + j)
    # w1_ref  : (9, CP, CP)  conv1 weights (BN1 folded), one (CP,CP) per tap
    # b1_ref  : (1, CP)      conv1 bias + BN1 shift
    # w2_ref  : (9, CP, CP)  conv2 weights (BN2 folded)
    # b2_ref  : (1, CP)      conv2 bias + BN2 shift
    # feat_ref: (L2, CP)     conv2 output (flat, width W, valid cols j < W-4)
    # pool_ref: (Hp*Wp, CP)  2x2/2 max-pooled output (flat, width Wp)
    # h_ref   : (L1, CP) f32 scratch: relu(conv1) intermediate
    # y_ref   : (L2, CP) f32 scratch: conv2 accumulator
    L1 = h_ref.shape[0]
    L2 = y_ref.shape[0]
    C = x_ref.shape[-1]

    # ---- conv1 (+ folded BN1) as 9 accumulated tap matmuls, then ReLU ------
    h_ref[...] = jnp.zeros((L1, C), jnp.float32) + b1_ref[...]
    for t in range(9):
        d = (t // 3) * W + (t % 3)
        h_ref[...] += jnp.dot(x_ref[pl.ds(d, L1), :], w1_ref[t],
                              preferred_element_type=jnp.float32)
    h_ref[...] = jnp.maximum(h_ref[...], 0.0)

    # ---- conv2 (+ folded BN2) ----------------------------------------------
    y_ref[...] = jnp.zeros((L2, C), jnp.float32) + b2_ref[...]
    for t in range(9):
        d = (t // 3) * W + (t % 3)
        y_ref[...] += jnp.dot(h_ref[pl.ds(d, L2), :], w2_ref[t],
                              preferred_element_type=jnp.float32)
    feat_ref[...] = y_ref[...].astype(feat_ref.dtype)

    # ---- fused MaxPool2d(2) epilogue on the VMEM-resident conv2 output -----
    def strided_rows(start):
        if Wp == 1:
            return y_ref[pl.ds(start, 1), :]
        return y_ref[pl.ds(start, Wp, stride=2), :]

    for ip in range(Hp):
        base = 2 * ip * W
        pooled = jnp.maximum(
            jnp.maximum(strided_rows(base), strided_rows(base + 1)),
            jnp.maximum(strided_rows(base + W), strided_rows(base + W + 1)))
        pool_ref[ip * Wp:(ip + 1) * Wp, :] = pooled.astype(pool_ref.dtype)


# -----------------------------------------------------------------------------
# Wrappers
# -----------------------------------------------------------------------------
def _fold_bn_into_conv(bn, conv):
    """Fold eval-mode BatchNorm (over conv input channels) into conv W/b."""
    gamma, beta, mean, var, eps = bn
    w, b = conv                                  # w: (3,3,Cin,Cout), b: (Cout,)
    cin, cout = w.shape[2], w.shape[3]
    scale = gamma / jnp.sqrt(var + eps)          # (Cin,)
    shift = beta - mean * scale                  # (Cin,)
    w_fold = w * scale[None, None, :, None]
    b_fold = b + jnp.einsum("ijco,c->o", w, shift)
    w9 = jnp.zeros((9, CP, CP), jnp.float32).at[:, :cin, :cout].set(
        w_fold.reshape(9, cin, cout))
    b9 = jnp.zeros((1, CP), jnp.float32).at[0, :cout].set(b_fold)
    return w9, b9


def _block_forward(x_flat, H, W, w1, b1, w2, b2):
    """x_flat: (N, H*W, CP). Returns (feat_flat, pool_flat, Hp, Wp)."""
    N = x_flat.shape[0]
    Ho1, Ho2, Wo2 = H - 2, H - 4, W - 4
    assert Ho2 >= 2 and Wo2 >= 2, "feature map too small for this Block"
    L1 = Ho1 * W - 2          # conv1 flat rows (last tap stays in-bounds)
    L2 = Ho2 * W - 4          # conv2 flat rows
    Hp, Wp = Ho2 // 2, Wo2 // 2

    kernel = functools.partial(_block_kernel, W=W, Hp=Hp, Wp=Wp)
    feat, pool = pl.pallas_call(
        kernel,
        out_shape=(jax.ShapeDtypeStruct((N, L2, CP), x_flat.dtype),
                   jax.ShapeDtypeStruct((N, Hp * Wp, CP), x_flat.dtype)),
        grid=(N,),
        in_specs=[
            pl.BlockSpec((None, H * W, CP), lambda n: (n, 0, 0)),
            pl.BlockSpec((9, CP, CP), lambda n: (0, 0, 0)),
            pl.BlockSpec((1, CP), lambda n: (0, 0)),
            pl.BlockSpec((9, CP, CP), lambda n: (0, 0, 0)),
            pl.BlockSpec((1, CP), lambda n: (0, 0)),
        ],
        out_specs=(
            pl.BlockSpec((None, L2, CP), lambda n: (n, 0, 0)),
            pl.BlockSpec((None, Hp * Wp, CP), lambda n: (n, 0, 0)),
        ),
        scratch_shapes=[
            pltpu.VMEM((L1, CP), jnp.float32),
            pltpu.VMEM((L2, CP), jnp.float32),
        ],
        compiler_params=pltpu.CompilerParams(
            dimension_semantics=("parallel",)),   # batch axis -> both TCs on v7x
    )(x_flat, w1, b1, w2, b2)
    return feat, pool, Hp, Wp


def encoder_forward(x_nchw, params):
    """Matches Encoder.forward (eval mode): list of per-block features, NCHW."""
    N, C0, H, W = x_nchw.shape
    assert C0 <= CP
    x = jnp.transpose(x_nchw, (0, 2, 3, 1)).astype(jnp.float32)   # NHWC
    x = jnp.pad(x, ((0, 0), (0, 0), (0, 0), (0, CP - C0)))        # lane pad
    x = x.reshape(N, H * W, CP)                                    # flat rows

    features = []
    for blk in params:
        cout = blk["conv1"][0].shape[-1]
        assert cout <= CP
        w1, b1 = _fold_bn_into_conv(blk["bn1"], blk["conv1"])
        w2, b2 = _fold_bn_into_conv(blk["bn2"], blk["conv2"])
        Ho, Wo = H - 4, W - 4
        feat_flat, pool_flat, Hp, Wp = _block_forward(x, H, W, w1, b1, w2, b2)

        # Un-flatten the feature map: pad the 4 missing trailing rows, reshape
        # to (N, Ho, W, CP), drop the 2 garbage columns and the channel pad.
        feat = jnp.pad(feat_flat,
                       ((0, 0), (0, Ho * W - feat_flat.shape[1]), (0, 0)))
        feat = feat.reshape(N, Ho, W, CP)[:, :, :Wo, :cout]
        features.append(jnp.transpose(feat, (0, 3, 1, 2)))         # NCHW

        x, H, W = pool_flat, Hp, Wp   # pooled output feeds the next block
    return features


# -----------------------------------------------------------------------------
# Pure-JAX reference (eval-mode semantics) for a correctness sanity check
# -----------------------------------------------------------------------------
def _reference_forward(x, params):
    def bn(v, p):
        gamma, beta, mean, var, eps = p
        s = gamma / jnp.sqrt(var + eps)
        return v * s[None, :, None, None] + (beta - mean * s)[None, :, None, None]

    def conv(v, p):
        w, b = p
        y = jax.lax.conv_general_dilated(
            v, w, window_strides=(1, 1), padding="VALID",
            dimension_numbers=("NCHW", "HWIO", "NCHW"))
        return y + b[None, :, None, None]

    feats = []
    for blk in params:
        h = jnp.maximum(conv(bn(x, blk["bn1"]), blk["conv1"]), 0.0)
        y = conv(bn(h, blk["bn2"]), blk["conv2"])
        feats.append(y)
        N, C, Hh, Ww = y.shape
        x = y[:, :, :Hh // 2 * 2, :Ww // 2 * 2].reshape(
            N, C, Hh // 2, 2, Ww // 2, 2).max(axis=(3, 5))
    return feats


# -----------------------------------------------------------------------------
# Deterministic parameter initialization (synthetic, no checkpoint load)
# -----------------------------------------------------------------------------
def _init_bn(key, c):
    k1, k2, k3, k4 = jax.random.split(key, 4)
    gamma = jax.random.uniform(k1, (c,), jnp.float32, 0.5, 1.5)
    beta = 0.1 * jax.random.normal(k2, (c,), jnp.float32)
    mean = 0.1 * jax.random.normal(k3, (c,), jnp.float32)
    var = jax.random.uniform(k4, (c,), jnp.float32, 0.5, 1.5)
    return (gamma, beta, mean, var, 1e-5)


def _init_conv(key, cin, cout):
    k1, k2 = jax.random.split(key)
    w = 0.1 * jax.random.normal(k1, (3, 3, cin, cout), jnp.float32)
    b = 0.1 * jax.random.normal(k2, (cout,), jnp.float32)
    return (w, b)


def init_encoder_params(key, channels):
    params = []
    for i in range(len(channels) - 1):
        cin, cout = channels[i], channels[i + 1]
        key, kb1, kc1, kb2, kc2 = jax.random.split(key, 5)
        params.append({
            "bn1": _init_bn(kb1, cin),
            "conv1": _init_conv(kc1, cin, cout),
            "bn2": _init_bn(kb2, cout),
            "conv2": _init_conv(kc2, cout, cout),
        })
    return params


# -----------------------------------------------------------------------------
if __name__ == "__main__":
    channels = (4, 8, 16)
    key = jax.random.PRNGKey(0)
    kx, kp = jax.random.split(key)

    x = jax.random.normal(kx, (2, channels[0], 16, 16), jnp.float32)  # NCHW
    params = init_encoder_params(kp, channels)

    feats = jax.jit(encoder_forward)(x, params)
    for f in feats:
        jax.block_until_ready(f)

    # Expected feature shapes: (2, 8, 12, 12) and (2, 16, 2, 2)
    assert feats[0].shape == (2, 8, 12, 12)
    assert feats[1].shape == (2, 16, 2, 2)

    # Correctness sanity check against a pure-JAX reference (loose tolerance:
    # both paths use default MXU precision for f32 matmuls/convs).
    ref_feats = _reference_forward(x, params)
    for got, ref in zip(feats, ref_feats):
        err = float(jnp.max(jnp.abs(got - ref)))
        assert err < 1e-1, f"feature mismatch, max abs err = {err}"

    print("KERNEL_OK")
</pallas_src>

<mosaic_0001>
module attributes {stable_mosaic.version = 11 : i64} {
  func.func @_block_kernel(%arg0: i32, %arg1: memref<1x256x128xf32, #tpu.memory_space<vmem>>, %arg2: memref<9x128x128xf32, #tpu.memory_space<vmem>>, %arg3: memref<1x128xf32, #tpu.memory_space<vmem>>, %arg4: memref<9x128x128xf32, #tpu.memory_space<vmem>>, %arg5: memref<1x128xf32, #tpu.memory_space<vmem>>, %arg6: memref<1x188x128xf32, #tpu.memory_space<vmem>>, %arg7: memref<1x36x128xf32, #tpu.memory_space<vmem>>, %arg8: memref<222x128xf32, #tpu.memory_space<vmem>>, %arg9: memref<188x128xf32, #tpu.memory_space<vmem>>) attributes {dimension_semantics = [#tpu.dimension_semantics<parallel>], iteration_bounds = array<i64: 2>, scalar_prefetch = 0 : i64, scratch_operands = 2 : i64, tpu.core_type = #tpu.core_type<tc>, window_params = [{transform_indices = @transform_0, window_bounds = array<i64: 1, 256, 128>}, {pipeline_mode = #tpu.pipeline_mode<synchronous>, transform_indices = @transform_1, window_bounds = array<i64: 9, 128, 128>}, {pipeline_mode = #tpu.pipeline_mode<synchronous>, transform_indices = @transform_2, window_bounds = array<i64: 1, 128>}, {pipeline_mode = #tpu.pipeline_mode<synchronous>, transform_indices = @transform_3, window_bounds = array<i64: 9, 128, 128>}, {pipeline_mode = #tpu.pipeline_mode<synchronous>, transform_indices = @transform_4, window_bounds = array<i64: 1, 128>}, {transform_indices = @transform_5, window_bounds = array<i64: 1, 188, 128>}, {transform_indices = @transform_6, window_bounds = array<i64: 1, 36, 128>}]} {
    %cst = arith.constant 0.000000e+00 : f32
    %0 = vector.broadcast %cst : f32 to vector<222x128xf32>
    %c0 = arith.constant 0 : index
    %c0_0 = arith.constant 0 : index
    %1 = vector.load %arg3[%c0, %c0_0] : memref<1x128xf32, #tpu.memory_space<vmem>>, vector<1x128xf32>
    %2 = vector.broadcast %1 : vector<1x128xf32> to vector<222x128xf32>
    %3 = arith.addf %0, %2 : vector<222x128xf32>
    %c0_1 = arith.constant 0 : index
    %c0_2 = arith.constant 0 : index
    %4 = vector.load %arg8[%c0_1, %c0_2] : memref<222x128xf32, #tpu.memory_space<vmem>>, vector<222x128xf32>
    tpu.vector_store %arg8[%c0_1, %c0_2], %3 {strides = array<i32>} : memref<222x128xf32, #tpu.memory_space<vmem>>, vector<222x128xf32>,
    %c0_3 = arith.constant 0 : index
    %c0_4 = arith.constant 0 : index
    %5 = vector.load %arg8[%c0_3, %c0_4] : memref<222x128xf32, #tpu.memory_space<vmem>>, vector<222x128xf32>
    %c0_5 = arith.constant 0 : index
    %c0_6 = arith.constant 0 : index
    %c0_7 = arith.constant 0 : index
    %6 = vector.load %arg1[%c0_5, %c0_6, %c0_7] : memref<1x256x128xf32, #tpu.memory_space<vmem>>, vector<1x222x128xf32>
    %7 = vector.shape_cast %6 : vector<1x222x128xf32> to vector<222x128xf32>
    %c0_8 = arith.constant 0 : index
    %c0_9 = arith.constant 0 : index
    %c0_10 = arith.constant 0 : index
    %8 = vector.load %arg2[%c0_8, %c0_9, %c0_10] : memref<9x128x128xf32, #tpu.memory_space<vmem>>, vector<1x128x128xf32>
    %9 = vector.shape_cast %8 : vector<1x128x128xf32> to vector<128x128xf32>
    %cst_11 = arith.constant dense<0.000000e+00> : vector<222x128xf32>
    %10 = tpu.matmul %7, %9, %cst_11 {dimension_numbers = #tpu.dot_dimension_numbers<[1], [0], [0], [1], [0, 0, 1, 1], [], []>} : vector<222x128xf32>, vector<128x128xf32>, vector<222x128xf32> -> vector<222x128xf32>
    %11 = arith.addf %5, %10 : vector<222x128xf32>
    %c0_12 = arith.constant 0 : index
    %c0_13 = arith.constant 0 : index
    %12 = vector.load %arg8[%c0_12, %c0_13] : memref<222x128xf32, #tpu.memory_space<vmem>>, vector<222x128xf32>
    tpu.vector_store %arg8[%c0_12, %c0_13], %11 {strides = array<i32>} : memref<222x128xf32, #tpu.memory_space<vmem>>, vector<222x128xf32>,
    %c0_14 = arith.constant 0 : index
    %c0_15 = arith.constant 0 : index
    %13 = vector.load %arg8[%c0_14, %c0_15] : memref<222x128xf32, #tpu.memory_space<vmem>>, vector<222x128xf32>
    %c0_16 = arith.constant 0 : index
    %c1 = arith.constant 1 : index
    %c0_17 = arith.constant 0 : index
    %14 = vector.load %arg1[%c0_16, %c1, %c0_17] : memref<1x256x128xf32, #tpu.memory_space<vmem>>, vector<1x222x128xf32>
    %15 = vector.shape_cast %14 : vector<1x222x128xf32> to vector<222x128xf32>
    %c1_18 = arith.constant 1 : index
    %c0_19 = arith.constant 0 : index
    %c0_20 = arith.constant 0 : index
    %16 = vector.load %arg2[%c1_18, %c0_19, %c0_20] : memref<9x128x128xf32, #tpu.memory_space<vmem>>, vector<1x128x128xf32>
    %17 = vector.shape_cast %16 : vector<1x128x128xf32> to vector<128x128xf32>
    %cst_21 = arith.constant dense<0.000000e+00> : vector<222x128xf32>
    %18 = tpu.matmul %15, %17, %cst_21 {dimension_numbers = #tpu.dot_dimension_numbers<[1], [0], [0], [1], [0, 0, 1, 1], [], []>} : vector<222x128xf32>, vector<128x128xf32>, vector<222x128xf32> -> vector<222x128xf32>
    %19 = arith.addf %13, %18 : vector<222x128xf32>
    %c0_22 = arith.constant 0 : index
    %c0_23 = arith.constant 0 : index
    %20 = vector.load %arg8[%c0_22, %c0_23] : memref<222x128xf32, #tpu.memory_space<vmem>>, vector<222x128xf32>
    tpu.vector_store %arg8[%c0_22, %c0_23], %19 {strides = array<i32>} : memref<222x128xf32, #tpu.memory_space<vmem>>, vector<222x128xf32>,
    %c0_24 = arith.constant 0 : index
    %c0_25 = arith.constant 0 : index
    %21 = vector.load %arg8[%c0_24, %c0_25] : memref<222x128xf32, #tpu.memory_space<vmem>>, vector<222x128xf32>
    %c0_26 = arith.constant 0 : index
    %c2 = arith.constant 2 : index
    %c0_27 = arith.constant 0 : index
    %22 = vector.load %arg1[%c0_26, %c2, %c0_27] : memref<1x256x128xf32, #tpu.memory_space<vmem>>, vector<1x222x128xf32>
    %23 = vector.shape_cast %22 : vector<1x222x128xf32> to vector<222x128xf32>
    %c2_28 = arith.constant 2 : index
    %c0_29 = arith.constant 0 : index
    %c0_30 = arith.constant 0 : index
    %24 = vector.load %arg2[%c2_28, %c0_29, %c0_30] : memref<9x128x128xf32, #tpu.memory_space<vmem>>, vector<1x128x128xf32>
    %25 = vector.shape_cast %24 : vector<1x128x128xf32> to vector<128x128xf32>
    %cst_31 = arith.constant dense<0.000000e+00> : vector<222x128xf32>
    %26 = tpu.matmul %23, %25, %cst_31 {dimension_numbers = #tpu.dot_dimension_numbers<[1], [0], [0], [1], [0, 0, 1, 1], [], []>} : vector<222x128xf32>, vector<128x128xf32>, vector<222x128xf32> -> vector<222x128xf32>
    %27 = arith.addf %21, %26 : vector<222x128xf32>
    %c0_32 = arith.constant 0 : index
    %c0_33 = arith.constant 0 : index
    %28 = vector.load %arg8[%c0_32, %c0_33] : memref<222x128xf32, #tpu.memory_space<vmem>>, vector<222x128xf32>
    tpu.vector_store %arg8[%c0_32, %c0_33], %27 {strides = array<i32>} : memref<222x128xf32, #tpu.memory_space<vmem>>, vector<222x128xf32>,
    %c0_34 = arith.constant 0 : index
    %c0_35 = arith.constant 0 : index
    %29 = vector.load %arg8[%c0_34, %c0_35] : memref<222x128xf32, #tpu.memory_space<vmem>>, vector<222x128xf32>
    %c0_36 = arith.constant 0 : index
    %c16 = arith.constant 16 : index
    %c0_37 = arith.constant 0 : index
    %30 = vector.load %arg1[%c0_36, %c16, %c0_37] : memref<1x256x128xf32, #tpu.memory_space<vmem>>, vector<1x222x128xf32>
    %31 = vector.shape_cast %30 : vector<1x222x128xf32> to vector<222x128xf32>
    %c3 = arith.constant 3 : index
    %c0_38 = arith.constant 0 : index
    %c0_39 = arith.constant 0 : index
    %32 = vector.load %arg2[%c3, %c0_38, %c0_39] : memref<9x128x128xf32, #tpu.memory_space<vmem>>, vector<1x128x128xf32>
    %33 = vector.shape_cast %32 : vector<1x128x128xf32> to vector<128x128xf32>
    %cst_40 = arith.constant dense<0.000000e+00> : vector<222x128xf32>
    %34 = tpu.matmul %31, %33, %cst_40 {dimension_numbers = #tpu.dot_dimension_numbers<[1], [0], [0], [1], [0, 0, 1, 1], [], []>} : vector<222x128xf32>, vector<128x128xf32>, vector<222x128xf32> -> vector<222x128xf32>
    %35 = arith.addf %29, %34 : vector<222x128xf32>
    %c0_41 = arith.constant 0 : index
    %c0_42 = arith.constant 0 : index
    %36 = vector.load %arg8[%c0_41, %c0_42] : memref<222x128xf32, #tpu.memory_space<vmem>>, vector<222x128xf32>
    tpu.vector_store %arg8[%c0_41, %c0_42], %35 {strides = array<i32>} : memref<222x128xf32, #tpu.memory_space<vmem>>, vector<222x128xf32>,
    %c0_43 = arith.constant 0 : index
    %c0_44 = arith.constant 0 : index
    %37 = vector.load %arg8[%c0_43, %c0_44] : memref<222x128xf32, #tpu.memory_space<vmem>>, vector<222x128xf32>
    %c0_45 = arith.constant 0 : index
    %c17 = arith.constant 17 : index
    %c0_46 = arith.constant 0 : index
    %38 = vector.load %arg1[%c0_45, %c17, %c0_46] : memref<1x256x128xf32, #tpu.memory_space<vmem>>, vector<1x222x128xf32>
    %39 = vector.shape_cast %38 : vector<1x222x128xf32> to vector<222x128xf32>
    %c4 = arith.constant 4 : index
    %c0_47 = arith.constant 0 : index
    %c0_48 = arith.constant 0 : index
    %40 = vector.load %arg2[%c4, %c0_47, %c0_48] : memref<9x128x128xf32, #tpu.memory_space<vmem>>, vector<1x128x128xf32>
    %41 = vector.shape_cast %40 : vector<1x128x128xf32> to vector<128x128xf32>
    %cst_49 = arith.constant dense<0.000000e+00> : vector<222x128xf32>
    %42 = tpu.matmul %39, %41, %cst_49 {dimension_numbers = #tpu.dot_dimension_numbers<[1], [0], [0], [1], [0, 0, 1, 1], [], []>} : vector<222x128xf32>, vector<128x128xf32>, vector<222x128xf32> -> vector<222x128xf32>
    %43 = arith.addf %37, %42 : vector<222x128xf32>
    %c0_50 = arith.constant 0 : index
    %c0_51 = arith.constant 0 : index
    %44 = vector.load %arg8[%c0_50, %c0_51] : memref<222x128xf32, #tpu.memory_space<vmem>>, vector<222x128xf32>
    tpu.vector_store %arg8[%c0_50, %c0_51], %43 {strides = array<i32>} : memref<222x128xf32, #tpu.memory_space<vmem>>, vector<222x128xf32>,
    %c0_52 = arith.constant 0 : index
    %c0_53 = arith.constant 0 : index
    %45 = vector.load %arg8[%c0_52, %c0_53] : memref<222x128xf32, #tpu.memory_space<vmem>>, vector<222x128xf32>
    %c0_54 = arith.constant 0 : index
    %c18 = arith.constant 18 : index
    %c0_55 = arith.constant 0 : index
    %46 = vector.load %arg1[%c0_54, %c18, %c0_55] : memref<1x256x128xf32, #tpu.memory_space<vmem>>, vector<1x222x128xf32>
    %47 = vector.shape_cast %46 : vector<1x222x128xf32> to vector<222x128xf32>
    %c5 = arith.constant 5 : index
    %c0_56 = arith.constant 0 : index
    %c0_57 = arith.constant 0 : index
    %48 = vector.load %arg2[%c5, %c0_56, %c0_57] : memref<9x128x128xf32, #tpu.memory_space<vmem>>, vector<1x128x128xf32>
    %49 = vector.shape_cast %48 : vector<1x128x128xf32> to vector<128x128xf32>
    %cst_58 = arith.constant dense<0.000000e+00> : vector<222x128xf32>
    %50 = tpu.matmul %47, %49, %cst_58 {dimension_numbers = #tpu.dot_dimension_numbers<[1], [0], [0], [1], [0, 0, 1, 1], [], []>} : vector<222x128xf32>, vector<128x128xf32>, vector<222x128xf32> -> vector<222x128xf32>
    %51 = arith.addf %45, %50 : vector<222x128xf32>
    %c0_59 = arith.constant 0 : index
    %c0_60 = arith.constant 0 : index
    %52 = vector.load %arg8[%c0_59, %c0_60] : memref<222x128xf32, #tpu.memory_space<vmem>>, vector<222x128xf32>
    tpu.vector_store %arg8[%c0_59, %c0_60], %51 {strides = array<i32>} : memref<222x128xf32, #tpu.memory_space<vmem>>, vector<222x128xf32>,
    %c0_61 = arith.constant 0 : index
    %c0_62 = arith.constant 0 : index
    %53 = vector.load %arg8[%c0_61, %c0_62] : memref<222x128xf32, #tpu.memory_space<vmem>>, vector<222x128xf32>
    %c0_63 = arith.constant 0 : index
    %c32 = arith.constant 32 : index
    %c0_64 = arith.constant 0 : index
    %54 = vector.load %arg1[%c0_63, %c32, %c0_64] : memref<1x256x128xf32, #tpu.memory_space<vmem>>, vector<1x222x128xf32>
    %55 = vector.shape_cast %54 : vector<1x222x128xf32> to vector<222x128xf32>
    %c6 = arith.constant 6 : index
    %c0_65 = arith.constant 0 : index
    %c0_66 = arith.constant 0 : index
    %56 = vector.load %arg2[%c6, %c0_65, %c0_66] : memref<9x128x128xf32, #tpu.memory_space<vmem>>, vector<1x128x128xf32>
    %57 = vector.shape_cast %56 : vector<1x128x128xf32> to vector<128x128xf32>
    %cst_67 = arith.constant dense<0.000000e+00> : vector<222x128xf32>
    %58 = tpu.matmul %55, %57, %cst_67 {dimension_numbers = #tpu.dot_dimension_numbers<[1], [0], [0], [1], [0, 0, 1, 1], [], []>} : vector<222x128xf32>, vector<128x128xf32>, vector<222x128xf32> -> vector<222x128xf32>
    %59 = arith.addf %53, %58 : vector<222x128xf32>
    %c0_68 = arith.constant 0 : index
    %c0_69 = arith.constant 0 : index
    %60 = vector.load %arg8[%c0_68, %c0_69] : memref<222x128xf32, #tpu.memory_space<vmem>>, vector<222x128xf32>
    tpu.vector_store %arg8[%c0_68, %c0_69], %59 {strides = array<i32>} : memref<222x128xf32, #tpu.memory_space<vmem>>, vector<222x128xf32>,
    %c0_70 = arith.constant 0 : index
    %c0_71 = arith.constant 0 : index
    %61 = vector.load %arg8[%c0_70, %c0_71] : memref<222x128xf32, #tpu.memory_space<vmem>>, vector<222x128xf32>
    %c0_72 = arith.constant 0 : index
    %c33 = arith.constant 33 : index
    %c0_73 = arith.constant 0 : index
    %62 = vector.load %arg1[%c0_72, %c33, %c0_73] : memref<1x256x128xf32, #tpu.memory_space<vmem>>, vector<1x222x128xf32>
    %63 = vector.shape_cast %62 : vector<1x222x128xf32> to vector<222x128xf32>
    %c7 = arith.constant 7 : index
    %c0_74 = arith.constant 0 : index
    %c0_75 = arith.constant 0 : index
    %64 = vector.load %arg2[%c7, %c0_74, %c0_75] : memref<9x128x128xf32, #tpu.memory_space<vmem>>, vector<1x128x128xf32>
    %65 = vector.shape_cast %64 : vector<1x128x128xf32> to vector<128x128xf32>
    %cst_76 = arith.constant dense<0.000000e+00> : vector<222x128xf32>
    %66 = tpu.matmul %63, %65, %cst_76 {dimension_numbers = #tpu.dot_dimension_numbers<[1], [0], [0], [1], [0, 0, 1, 1], [], []>} : vector<222x128xf32>, vector<128x128xf32>, vector<222x128xf32> -> vector<222x128xf32>
    %67 = arith.addf %61, %66 : vector<222x128xf32>
    %c0_77 = arith.constant 0 : index
    %c0_78 = arith.constant 0 : index
    %68 = vector.load %arg8[%c0_77, %c0_78] : memref<222x128xf32, #tpu.memory_space<vmem>>, vector<222x128xf32>
    tpu.vector_store %arg8[%c0_77, %c0_78], %67 {strides = array<i32>} : memref<222x128xf32, #tpu.memory_space<vmem>>, vector<222x128xf32>,
    %c0_79 = arith.constant 0 : index
    %c0_80 = arith.constant 0 : index
    %69 = vector.load %arg8[%c0_79, %c0_80] : memref<222x128xf32, #tpu.memory_space<vmem>>, vector<222x128xf32>
    %c0_81 = arith.constant 0 : index
    %c34 = arith.constant 34 : index
    %c0_82 = arith.constant 0 : index
    %70 = vector.load %arg1[%c0_81, %c34, %c0_82] : memref<1x256x128xf32, #tpu.memory_space<vmem>>, vector<1x222x128xf32>
    %71 = vector.shape_cast %70 : vector<1x222x128xf32> to vector<222x128xf32>
    %c8 = arith.constant 8 : index
    %c0_83 = arith.constant 0 : index
    %c0_84 = arith.constant 0 : index
    %72 = vector.load %arg2[%c8, %c0_83, %c0_84] : memref<9x128x128xf32, #tpu.memory_space<vmem>>, vector<1x128x128xf32>
    %73 = vector.shape_cast %72 : vector<1x128x128xf32> to vector<128x128xf32>
    %cst_85 = arith.constant dense<0.000000e+00> : vector<222x128xf32>
    %74 = tpu.matmul %71, %73, %cst_85 {dimension_numbers = #tpu.dot_dimension_numbers<[1], [0], [0], [1], [0, 0, 1, 1], [], []>} : vector<222x128xf32>, vector<128x128xf32>, vector<222x128xf32> -> vector<222x128xf32>
    %75 = arith.addf %69, %74 : vector<222x128xf32>
    %c0_86 = arith.constant 0 : index
    %c0_87 = arith.constant 0 : index
    %76 = vector.load %arg8[%c0_86, %c0_87] : memref<222x128xf32, #tpu.memory_space<vmem>>, vector<222x128xf32>
    tpu.vector_store %arg8[%c0_86, %c0_87], %75 {strides = array<i32>} : memref<222x128xf32, #tpu.memory_space<vmem>>, vector<222x128xf32>,
    %c0_88 = arith.constant 0 : index
    %c0_89 = arith.constant 0 : index
    %77 = vector.load %arg8[%c0_88, %c0_89] : memref<222x128xf32, #tpu.memory_space<vmem>>, vector<222x128xf32>
    %cst_90 = arith.constant 0.000000e+00 : f32
    %78 = vector.broadcast %cst_90 : f32 to vector<222x128xf32>
    %79 = arith.maximumf %77, %78 : vector<222x128xf32>
    %c0_91 = arith.constant 0 : index
    %c0_92 = arith.constant 0 : index
    %80 = vector.load %arg8[%c0_91, %c0_92] : memref<222x128xf32, #tpu.memory_space<vmem>>, vector<222x128xf32>
    tpu.vector_store %arg8[%c0_91, %c0_92], %79 {strides = array<i32>} : memref<222x128xf32, #tpu.memory_space<vmem>>, vector<222x128xf32>,
    %cst_93 = arith.constant 0.000000e+00 : f32
    %81 = vector.broadcast %cst_93 : f32 to vector<188x128xf32>
    %c0_94 = arith.constant 0 : index
    %c0_95 = arith.constant 0 : index
    %82 = vector.load %arg5[%c0_94, %c0_95] : memref<1x128xf32, #tpu.memory_space<vmem>>, vector<1x128xf32>
    %83 = vector.broadcast %82 : vector<1x128xf32> to vector<188x128xf32>
    %84 = arith.addf %81, %83 : vector<188x128xf32>
    %c0_96 = arith.constant 0 : index
    %c0_97 = arith.constant 0 : index
    %85 = vector.load %arg9[%c0_96, %c0_97] : memref<188x128xf32, #tpu.memory_space<vmem>>, vector<188x128xf32>
    tpu.vector_store %arg9[%c0_96, %c0_97], %84 {strides = array<i32>} : memref<188x128xf32, #tpu.memory_space<vmem>>, vector<188x128xf32>,
    %c0_98 = arith.constant 0 : index
    %c0_99 = arith.constant 0 : index
    %86 = vector.load %arg9[%c0_98, %c0_99] : memref<188x128xf32, #tpu.memory_space<vmem>>, vector<188x128xf32>
    %c0_100 = arith.constant 0 : index
    %c0_101 = arith.constant 0 : index
    %87 = vector.load %arg8[%c0_100, %c0_101] : memref<222x128xf32, #tpu.memory_space<vmem>>, vector<188x128xf32>
    %c0_102 = arith.constant 0 : index
    %c0_103 = arith.constant 0 : index
    %c0_104 = arith.constant 0 : index
    %88 = vector.load %arg4[%c0_102, %c0_103, %c0_104] : memref<9x128x128xf32, #tpu.memory_space<vmem>>, vector<1x128x128xf32>
    %89 = vector.shape_cast %88 : vector<1x128x128xf32> to vector<128x128xf32>
    %cst_105 = arith.constant dense<0.000000e+00> : vector<188x128xf32>
    %90 = tpu.matmul %87, %89, %cst_105 {dimension_numbers = #tpu.dot_dimension_numbers<[1], [0], [0], [1], [0, 0, 1, 1], [], []>} : vector<188x128xf32>, vector<128x128xf32>, vector<188x128xf32> -> vector<188x128xf32>
    %91 = arith.addf %86, %90 : vector<188x128xf32>
    %c0_106 = arith.constant 0 : index
    %c0_107 = arith.constant 0 : index
    %92 = vector.load %arg9[%c0_106, %c0_107] : memref<188x128xf32, #tpu.memory_space<vmem>>, vector<188x128xf32>
    tpu.vector_store %arg9[%c0_106, %c0_107], %91 {strides = array<i32>} : memref<188x128xf32, #tpu.memory_space<vmem>>, vector<188x128xf32>,
    %c0_108 = arith.constant 0 : index
    %c0_109 = arith.constant 0 : index
    %93 = vector.load %arg9[%c0_108, %c0_109] : memref<188x128xf32, #tpu.memory_space<vmem>>, vector<188x128xf32>
    %c1_110 = arith.constant 1 : index
    %c0_111 = arith.constant 0 : index
    %94 = vector.load %arg8[%c1_110, %c0_111] : memref<222x128xf32, #tpu.memory_space<vmem>>, vector<188x128xf32>
    %c1_112 = arith.constant 1 : index
    %c0_113 = arith.constant 0 : index
    %c0_114 = arith.constant 0 : index
    %95 = vector.load %arg4[%c1_112, %c0_113, %c0_114] : memref<9x128x128xf32, #tpu.memory_space<vmem>>, vector<1x128x128xf32>
    %96 = vector.shape_cast %95 : vector<1x128x128xf32> to vector<128x128xf32>
    %cst_115 = arith.constant dense<0.000000e+00> : vector<188x128xf32>
    %97 = tpu.matmul %94, %96, %cst_115 {dimension_numbers = #tpu.dot_dimension_numbers<[1], [0], [0], [1], [0, 0, 1, 1], [], []>} : vector<188x128xf32>, vector<128x128xf32>, vector<188x128xf32> -> vector<188x128xf32>
    %98 = arith.addf %93, %97 : vector<188x128xf32>
    %c0_116 = arith.constant 0 : index
    %c0_117 = arith.constant 0 : index
    %99 = vector.load %arg9[%c0_116, %c0_117] : memref<188x128xf32, #tpu.memory_space<vmem>>, vector<188x128xf32>
    tpu.vector_store %arg9[%c0_116, %c0_117], %98 {strides = array<i32>} : memref<188x128xf32, #tpu.memory_space<vmem>>, vector<188x128xf32>,
    %c0_118 = arith.constant 0 : index
    %c0_119 = arith.constant 0 : index
    %100 = vector.load %arg9[%c0_118, %c0_119] : memref<188x128xf32, #tpu.memory_space<vmem>>, vector<188x128xf32>
    %c2_120 = arith.constant 2 : index
    %c0_121 = arith.constant 0 : index
    %101 = vector.load %arg8[%c2_120, %c0_121] : memref<222x128xf32, #tpu.memory_space<vmem>>, vector<188x128xf32>
    %c2_122 = arith.constant 2 : index
    %c0_123 = arith.constant 0 : index
    %c0_124 = arith.constant 0 : index
    %102 = vector.load %arg4[%c2_122, %c0_123, %c0_124] : memref<9x128x128xf32, #tpu.memory_space<vmem>>, vector<1x128x128xf32>
    %103 = vector.shape_cast %102 : vector<1x128x128xf32> to vector<128x128xf32>
    %cst_125 = arith.constant dense<0.000000e+00> : vector<188x128xf32>
    %104 = tpu.matmul %101, %103, %cst_125 {dimension_numbers = #tpu.dot_dimension_numbers<[1], [0], [0], [1], [0, 0, 1, 1], [], []>} : vector<188x128xf32>, vector<128x128xf32>, vector<188x128xf32> -> vector<188x128xf32>
    %105 = arith.addf %100, %104 : vector<188x128xf32>
    %c0_126 = arith.constant 0 : index
    %c0_127 = arith.constant 0 : index
    %106 = vector.load %arg9[%c0_126, %c0_127] : memref<188x128xf32, #tpu.memory_space<vmem>>, vector<188x128xf32>
    tpu.vector_store %arg9[%c0_126, %c0_127], %105 {strides = array<i32>} : memref<188x128xf32, #tpu.memory_space<vmem>>, vector<188x128xf32>,
    %c0_128 = arith.constant 0 : index
    %c0_129 = arith.constant 0 : index
    %107 = vector.load %arg9[%c0_128, %c0_129] : memref<188x128xf32, #tpu.memory_space<vmem>>, vector<188x128xf32>
    %c16_130 = arith.constant 16 : index
    %c0_131 = arith.constant 0 : index
    %108 = vector.load %arg8[%c16_130, %c0_131] : memref<222x128xf32, #tpu.memory_space<vmem>>, vector<188x128xf32>
    %c3_132 = arith.constant 3 : index
    %c0_133 = arith.constant 0 : index
    %c0_134 = arith.constant 0 : index
    %109 = vector.load %arg4[%c3_132, %c0_133, %c0_134] : memref<9x128x128xf32, #tpu.memory_space<vmem>>, vector<1x128x128xf32>
    %110 = vector.shape_cast %109 : vector<1x128x128xf32> to vector<128x128xf32>
    %cst_135 = arith.constant dense<0.000000e+00> : vector<188x128xf32>
    %111 = tpu.matmul %108, %110, %cst_135 {dimension_numbers = #tpu.dot_dimension_numbers<[1], [0], [0], [1], [0, 0, 1, 1], [], []>} : vector<188x128xf32>, vector<128x128xf32>, vector<188x128xf32> -> vector<188x128xf32>
    %112 = arith.addf %107, %111 : vector<188x128xf32>
    %c0_136 = arith.constant 0 : index
    %c0_137 = arith.constant 0 : index
    %113 = vector.load %arg9[%c0_136, %c0_137] : memref<188x128xf32, #tpu.memory_space<vmem>>, vector<188x128xf32>
    tpu.vector_store %arg9[%c0_136, %c0_137], %112 {strides = array<i32>} : memref<188x128xf32, #tpu.memory_space<vmem>>, vector<188x128xf32>,
    %c0_138 = arith.constant 0 : index
    %c0_139 = arith.constant 0 : index
    %114 = vector.load %arg9[%c0_138, %c0_139] : memref<188x128xf32, #tpu.memory_space<vmem>>, vector<188x128xf32>
    %c17_140 = arith.constant 17 : index
    %c0_141 = arith.constant 0 : index
    %115 = vector.load %arg8[%c17_140, %c0_141] : memref<222x128xf32, #tpu.memory_space<vmem>>, vector<188x128xf32>
    %c4_142 = arith.constant 4 : index
    %c0_143 = arith.constant 0 : index
    %c0_144 = arith.constant 0 : index
    %116 = vector.load %arg4[%c4_142, %c0_143, %c0_144] : memref<9x128x128xf32, #tpu.memory_space<vmem>>, vector<1x128x128xf32>
    %117 = vector.shape_cast %116 : vector<1x128x128xf32> to vector<128x128xf32>
    %cst_145 = arith.constant dense<0.000000e+00> : vector<188x128xf32>
    %118 = tpu.matmul %115, %117, %cst_145 {dimension_numbers = #tpu.dot_dimension_numbers<[1], [0], [0], [1], [0, 0, 1, 1], [], []>} : vector<188x128xf32>, vector<128x128xf32>, vector<188x128xf32> -> vector<188x128xf32>
    %119 = arith.addf %114, %118 : vector<188x128xf32>
    %c0_146 = arith.constant 0 : index
    %c0_147 = arith.constant 0 : index
    %120 = vector.load %arg9[%c0_146, %c0_147] : memref<188x128xf32, #tpu.memory_space<vmem>>, vector<188x128xf32>
    tpu.vector_store %arg9[%c0_146, %c0_147], %119 {strides = array<i32>} : memref<188x128xf32, #tpu.memory_space<vmem>>, vector<188x128xf32>,
    %c0_148 = arith.constant 0 : index
    %c0_149 = arith.constant 0 : index
    %121 = vector.load %arg9[%c0_148, %c0_149] : memref<188x128xf32, #tpu.memory_space<vmem>>, vector<188x128xf32>
    %c18_150 = arith.constant 18 : index
    %c0_151 = arith.constant 0 : index
    %122 = vector.load %arg8[%c18_150, %c0_151] : memref<222x128xf32, #tpu.memory_space<vmem>>, vector<188x128xf32>
    %c5_152 = arith.constant 5 : index
    %c0_153 = arith.constant 0 : index
    %c0_154 = arith.constant 0 : index
    %123 = vector.load %arg4[%c5_152, %c0_153, %c0_154] : memref<9x128x128xf32, #tpu.memory_space<vmem>>, vector<1x128x128xf32>
    %124 = vector.shape_cast %123 : vector<1x128x128xf32> to vector<128x128xf32>
    %cst_155 = arith.constant dense<0.000000e+00> : vector<188x128xf32>
    %125 = tpu.matmul %122, %124, %cst_155 {dimension_numbers = #tpu.dot_dimension_numbers<[1], [0], [0], [1], [0, 0, 1, 1], [], []>} : vector<188x128xf32>, vector<128x128xf32>, vector<188x128xf32> -> vector<188x128xf32>
    %126 = arith.addf %121, %125 : vector<188x128xf32>
    %c0_156 = arith.constant 0 : index
    %c0_157 = arith.constant 0 : index
    %127 = vector.load %arg9[%c0_156, %c0_157] : memref<188x128xf32, #tpu.memory_space<vmem>>, vector<188x128xf32>
    tpu.vector_store %arg9[%c0_156, %c0_157], %126 {strides = array<i32>} : memref<188x128xf32, #tpu.memory_space<vmem>>, vector<188x128xf32>,
    %c0_158 = arith.constant 0 : index
    %c0_159 = arith.constant 0 : index
    %128 = vector.load %arg9[%c0_158, %c0_159] : memref<188x128xf32, #tpu.memory_space<vmem>>, vector<188x128xf32>
    %c32_160 = arith.constant 32 : index
    %c0_161 = arith.constant 0 : index
    %129 = vector.load %arg8[%c32_160, %c0_161] : memref<222x128xf32, #tpu.memory_space<vmem>>, vector<188x128xf32>
    %c6_162 = arith.constant 6 : index
    %c0_163 = arith.constant 0 : index
    %c0_164 = arith.constant 0 : index
    %130 = vector.load %arg4[%c6_162, %c0_163, %c0_164] : memref<9x128x128xf32, #tpu.memory_space<vmem>>, vector<1x128x128xf32>
    %131 = vector.shape_cast %130 : vector<1x128x128xf32> to vector<128x128xf32>
    %cst_165 = arith.constant dense<0.000000e+00> : vector<188x128xf32>
    %132 = tpu.matmul %129, %131, %cst_165 {dimension_numbers = #tpu.dot_dimension_numbers<[1], [0], [0], [1], [0, 0, 1, 1], [], []>} : vector<188x128xf32>, vector<128x128xf32>, vector<188x128xf32> -> vector<188x128xf32>
    %133 = arith.addf %128, %132 : vector<188x128xf32>
    %c0_166 = arith.constant 0 : index
    %c0_167 = arith.constant 0 : index
    %134 = vector.load %arg9[%c0_166, %c0_167] : memref<188x128xf32, #tpu.memory_space<vmem>>, vector<188x128xf32>
    tpu.vector_store %arg9[%c0_166, %c0_167], %133 {strides = array<i32>} : memref<188x128xf32, #tpu.memory_space<vmem>>, vector<188x128xf32>,
    %c0_168 = arith.constant 0 : index
    %c0_169 = arith.constant 0 : index
    %135 = vector.load %arg9[%c0_168, %c0_169] : memref<188x128xf32, #tpu.memory_space<vmem>>, vector<188x128xf32>
    %c33_170 = arith.constant 33 : index
    %c0_171 = arith.constant 0 : index
    %136 = vector.load %arg8[%c33_170, %c0_171] : memref<222x128xf32, #tpu.memory_space<vmem>>, vector<188x128xf32>
    %c7_172 = arith.constant 7 : index
    %c0_173 = arith.constant 0 : index
    %c0_174 = arith.constant 0 : index
    %137 = vector.load %arg4[%c7_172, %c0_173, %c0_174] : memref<9x128x128xf32, #tpu.memory_space<vmem>>, vector<1x128x128xf32>
    %138 = vector.shape_cast %137 : vector<1x128x128xf32> to vector<128x128xf32>
    %cst_175 = arith.constant dense<0.000000e+00> : vector<188x128xf32>
    %139 = tpu.matmul %136, %138, %cst_175 {dimension_numbers = #tpu.dot_dimension_numbers<[1], [0], [0], [1], [0, 0, 1, 1], [], []>} : vector<188x128xf32>, vector<128x128xf32>, vector<188x128xf32> -> vector<188x128xf32>
    %140 = arith.addf %135, %139 : vector<188x128xf32>
    %c0_176 = arith.constant 0 : index
    %c0_177 = arith.constant 0 : index
    %141 = vector.load %arg9[%c0_176, %c0_177] : memref<188x128xf32, #tpu.memory_space<vmem>>, vector<188x128xf32>
    tpu.vector_store %arg9[%c0_176, %c0_177], %140 {strides = array<i32>} : memref<188x128xf32, #tpu.memory_space<vmem>>, vector<188x128xf32>,
    %c0_178 = arith.constant 0 : index
    %c0_179 = arith.constant 0 : index
    %142 = vector.load %arg9[%c0_178, %c0_179] : memref<188x128xf32, #tpu.memory_space<vmem>>, vector<188x128xf32>
    %c34_180 = arith.constant 34 : index
    %c0_181 = arith.constant 0 : index
    %143 = vector.load %arg8[%c34_180, %c0_181] : memref<222x128xf32, #tpu.memory_space<vmem>>, vector<188x128xf32>
    %c8_182 = arith.constant 8 : index
    %c0_183 = arith.constant 0 : index
    %c0_184 = arith.constant 0 : index
    %144 = vector.load %arg4[%c8_182, %c0_183, %c0_184] : memref<9x128x128xf32, #tpu.memory_space<vmem>>, vector<1x128x128xf32>
    %145 = vector.shape_cast %144 : vector<1x128x128xf32> to vector<128x128xf32>
    %cst_185 = arith.constant dense<0.000000e+00> : vector<188x128xf32>
    %146 = tpu.matmul %143, %145, %cst_185 {dimension_numbers = #tpu.dot_dimension_numbers<[1], [0], [0], [1], [0, 0, 1, 1], [], []>} : vector<188x128xf32>, vector<128x128xf32>, vector<188x128xf32> -> vector<188x128xf32>
    %147 = arith.addf %142, %146 : vector<188x128xf32>
    %c0_186 = arith.constant 0 : index
    %c0_187 = arith.constant 0 : index
    %148 = vector.load %arg9[%c0_186, %c0_187] : memref<188x128xf32, #tpu.memory_space<vmem>>, vector<188x128xf32>
    tpu.vector_store %arg9[%c0_186, %c0_187], %147 {strides = array<i32>} : memref<188x128xf32, #tpu.memory_space<vmem>>, vector<188x128xf32>,
    %c0_188 = arith.constant 0 : index
    %c0_189 = arith.constant 0 : index
    %149 = vector.load %arg9[%c0_188, %c0_189] : memref<188x128xf32, #tpu.memory_space<vmem>>, vector<188x128xf32>
    %c0_190 = arith.constant 0 : index
    %c0_191 = arith.constant 0 : index
    %c0_192 = arith.constant 0 : index
    %150 = vector.load %arg6[%c0_190, %c0_191, %c0_192] : memref<1x188x128xf32, #tpu.memory_space<vmem>>, vector<1x188x128xf32>
    %151 = vector.shape_cast %150 : vector<1x188x128xf32> to vector<188x128xf32>
    %152 = vector.shape_cast %149 : vector<188x128xf32> to vector<1x188x128xf32>
    tpu.vector_store %arg6[%c0_190, %c0_191, %c0_192], %152 {strides = array<i32>} : memref<1x188x128xf32, #tpu.memory_space<vmem>>, vector<1x188x128xf32>,
    %c0_193 = arith.constant 0 : index
    %c0_194 = arith.constant 0 : index
    %153 = tpu.strided_load %arg9[%c0_193, %c0_194] {strides = array<i32: 2, 1>} : memref<188x128xf32, #tpu.memory_space<vmem>>, vector<6x128xf32>
    %c1_195 = arith.constant 1 : index
    %c0_196 = arith.constant 0 : index
    %154 = tpu.strided_load %arg9[%c1_195, %c0_196] {strides = array<i32: 2, 1>} : memref<188x128xf32, #tpu.memory_space<vmem>>, vector<6x128xf32>
    %155 = arith.maximumf %153, %154 : vector<6x128xf32>
    %c16_197 = arith.constant 16 : index
    %c0_198 = arith.constant 0 : index
    %156 = tpu.strided_load %arg9[%c16_197, %c0_198] {strides = array<i32: 2, 1>} : memref<188x128xf32, #tpu.memory_space<vmem>>, vector<6x128xf32>
    %c17_199 = arith.constant 17 : index
    %c0_200 = arith.constant 0 : index
    %157 = tpu.strided_load %arg9[%c17_199, %c0_200] {strides = array<i32: 2, 1>} : memref<188x128xf32, #tpu.memory_space<vmem>>, vector<6x128xf32>
    %158 = arith.maximumf %156, %157 : vector<6x128xf32>
    %159 = arith.maximumf %155, %158 : vector<6x128xf32>
    %c0_201 = arith.constant 0 : index
    %c0_202 = arith.constant 0 : index
    %c0_203 = arith.constant 0 : index
    %160 = vector.load %arg7[%c0_201, %c0_202, %c0_203] : memref<1x36x128xf32, #tpu.memory_space<vmem>>, vector<1x6x128xf32>
    %161 = vector.shape_cast %160 : vector<1x6x128xf32> to vector<6x128xf32>
    %162 = vector.shape_cast %159 : vector<6x128xf32> to vector<1x6x128xf32>
    tpu.vector_store %arg7[%c0_201, %c0_202, %c0_203], %162 {strides = array<i32>} : memref<1x36x128xf32, #tpu.memory_space<vmem>>, vector<1x6x128xf32>,
    %c32_204 = arith.constant 32 : index
    %c0_205 = arith.constant 0 : index
    %163 = tpu.strided_load %arg9[%c32_204, %c0_205] {strides = array<i32: 2, 1>} : memref<188x128xf32, #tpu.memory_space<vmem>>, vector<6x128xf32>
    %c33_206 = arith.constant 33 : index
    %c0_207 = arith.constant 0 : index
    %164 = tpu.strided_load %arg9[%c33_206, %c0_207] {strides = array<i32: 2, 1>} : memref<188x128xf32, #tpu.memory_space<vmem>>, vector<6x128xf32>
    %165 = arith.maximumf %163, %164 : vector<6x128xf32>
    %c48 = arith.constant 48 : index
    %c0_208 = arith.constant 0 : index
    %166 = tpu.strided_load %arg9[%c48, %c0_208] {strides = array<i32: 2, 1>} : memref<188x128xf32, #tpu.memory_space<vmem>>, vector<6x128xf32>
    %c49 = arith.constant 49 : index
    %c0_209 = arith.constant 0 : index
    %167 = tpu.strided_load %arg9[%c49, %c0_209] {strides = array<i32: 2, 1>} : memref<188x128xf32, #tpu.memory_space<vmem>>, vector<6x128xf32>
    %168 = arith.maximumf %166, %167 : vector<6x128xf32>
    %169 = arith.maximumf %165, %168 : vector<6x128xf32>
    %c0_210 = arith.constant 0 : index
    %c6_211 = arith.constant 6 : index
    %c0_212 = arith.constant 0 : index
    %170 = vector.load %arg7[%c0_210, %c6_211, %c0_212] : memref<1x36x128xf32, #tpu.memory_space<vmem>>, vector<1x6x128xf32>
    %171 = vector.shape_cast %170 : vector<1x6x128xf32> to vector<6x128xf32>
    %172 = vector.shape_cast %169 : vector<6x128xf32> to vector<1x6x128xf32>
    tpu.vector_store %arg7[%c0_210, %c6_211, %c0_212], %172 {strides = array<i32>} : memref<1x36x128xf32, #tpu.memory_space<vmem>>, vector<1x6x128xf32>,
    %c64 = arith.constant 64 : index
    %c0_213 = arith.constant 0 : index
    %173 = tpu.strided_load %arg9[%c64, %c0_213] {strides = array<i32: 2, 1>} : memref<188x128xf32, #tpu.memory_space<vmem>>, vector<6x128xf32>
    %c65 = arith.constant 65 : index
    %c0_214 = arith.constant 0 : index
    %174 = tpu.strided_load %arg9[%c65, %c0_214] {strides = array<i32: 2, 1>} : memref<188x128xf32, #tpu.memory_space<vmem>>, vector<6x128xf32>
    %175 = arith.maximumf %173, %174 : vector<6x128xf32>
    %c80 = arith.constant 80 : index
    %c0_215 = arith.constant 0 : index
    %176 = tpu.strided_load %arg9[%c80, %c0_215] {strides = array<i32: 2, 1>} : memref<188x128xf32, #tpu.memory_space<vmem>>, vector<6x128xf32>
    %c81 = arith.constant 81 : index
    %c0_216 = arith.constant 0 : index
    %177 = tpu.strided_load %arg9[%c81, %c0_216] {strides = array<i32: 2, 1>} : memref<188x128xf32, #tpu.memory_space<vmem>>, vector<6x128xf32>
    %178 = arith.maximumf %176, %177 : vector<6x128xf32>
    %179 = arith.maximumf %175, %178 : vector<6x128xf32>
    %c0_217 = arith.constant 0 : index
    %c12 = arith.constant 12 : index
    %c0_218 = arith.constant 0 : index
    %180 = vector.load %arg7[%c0_217, %c12, %c0_218] : memref<1x36x128xf32, #tpu.memory_space<vmem>>, vector<1x6x128xf32>
    %181 = vector.shape_cast %180 : vector<1x6x128xf32> to vector<6x128xf32>
    %182 = vector.shape_cast %179 : vector<6x128xf32> to vector<1x6x128xf32>
    tpu.vector_store %arg7[%c0_217, %c12, %c0_218], %182 {strides = array<i32>} : memref<1x36x128xf32, #tpu.memory_space<vmem>>, vector<1x6x128xf32>,
    %c96 = arith.constant 96 : index
    %c0_219 = arith.constant 0 : index
    %183 = tpu.strided_load %arg9[%c96, %c0_219] {strides = array<i32: 2, 1>} : memref<188x128xf32, #tpu.memory_space<vmem>>, vector<6x128xf32>
    %c97 = arith.constant 97 : index
    %c0_220 = arith.constant 0 : index
    %184 = tpu.strided_load %arg9[%c97, %c0_220] {strides = array<i32: 2, 1>} : memref<188x128xf32, #tpu.memory_space<vmem>>, vector<6x128xf32>
    %185 = arith.maximumf %183, %184 : vector<6x128xf32>
    %c112 = arith.constant 112 : index
    %c0_221 = arith.constant 0 : index
    %186 = tpu.strided_load %arg9[%c112, %c0_221] {strides = array<i32: 2, 1>} : memref<188x128xf32, #tpu.memory_space<vmem>>, vector<6x128xf32>
    %c113 = arith.constant 113 : index
    %c0_222 = arith.constant 0 : index
    %187 = tpu.strided_load %arg9[%c113, %c0_222] {strides = array<i32: 2, 1>} : memref<188x128xf32, #tpu.memory_space<vmem>>, vector<6x128xf32>
    %188 = arith.maximumf %186, %187 : vector<6x128xf32>
    %189 = arith.maximumf %185, %188 : vector<6x128xf32>
    %c0_223 = arith.constant 0 : index
    %c18_224 = arith.constant 18 : index
    %c0_225 = arith.constant 0 : index
    %190 = vector.load %arg7[%c0_223, %c18_224, %c0_225] : memref<1x36x128xf32, #tpu.memory_space<vmem>>, vector<1x6x128xf32>
    %191 = vector.shape_cast %190 : vector<1x6x128xf32> to vector<6x128xf32>
    %192 = vector.shape_cast %189 : vector<6x128xf32> to vector<1x6x128xf32>
    tpu.vector_store %arg7[%c0_223, %c18_224, %c0_225], %192 {strides = array<i32>} : memref<1x36x128xf32, #tpu.memory_space<vmem>>, vector<1x6x128xf32>,
    %c128 = arith.constant 128 : index
    %c0_226 = arith.constant 0 : index
    %193 = tpu.strided_load %arg9[%c128, %c0_226] {strides = array<i32: 2, 1>} : memref<188x128xf32, #tpu.memory_space<vmem>>, vector<6x128xf32>
    %c129 = arith.constant 129 : index
    %c0_227 = arith.constant 0 : index
    %194 = tpu.strided_load %arg9[%c129, %c0_227] {strides = array<i32: 2, 1>} : memref<188x128xf32, #tpu.memory_space<vmem>>, vector<6x128xf32>
    %195 = arith.maximumf %193, %194 : vector<6x128xf32>
    %c144 = arith.constant 144 : index
    %c0_228 = arith.constant 0 : index
    %196 = tpu.strided_load %arg9[%c144, %c0_228] {strides = array<i32: 2, 1>} : memref<188x128xf32, #tpu.memory_space<vmem>>, vector<6x128xf32>
    %c145 = arith.constant 145 : index
    %c0_229 = arith.constant 0 : index
    %197 = tpu.strided_load %arg9[%c145, %c0_229] {strides = array<i32: 2, 1>} : memref<188x128xf32, #tpu.memory_space<vmem>>, vector<6x128xf32>
    %198 = arith.maximumf %196, %197 : vector<6x128xf32>
    %199 = arith.maximumf %195, %198 : vector<6x128xf32>
    %c0_230 = arith.constant 0 : index
    %c24 = arith.constant 24 : index
    %c0_231 = arith.constant 0 : index
    %200 = vector.load %arg7[%c0_230, %c24, %c0_231] : memref<1x36x128xf32, #tpu.memory_space<vmem>>, vector<1x6x128xf32>
    %201 = vector.shape_cast %200 : vector<1x6x128xf32> to vector<6x128xf32>
    %202 = vector.shape_cast %199 : vector<6x128xf32> to vector<1x6x128xf32>
    tpu.vector_store %arg7[%c0_230, %c24, %c0_231], %202 {strides = array<i32>} : memref<1x36x128xf32, #tpu.memory_space<vmem>>, vector<1x6x128xf32>,
    %c160 = arith.constant 160 : index
    %c0_232 = arith.constant 0 : index
    %203 = tpu.strided_load %arg9[%c160, %c0_232] {strides = array<i32: 2, 1>} : memref<188x128xf32, #tpu.memory_space<vmem>>, vector<6x128xf32>
    %c161 = arith.constant 161 : index
    %c0_233 = arith.constant 0 : index
    %204 = tpu.strided_load %arg9[%c161, %c0_233] {strides = array<i32: 2, 1>} : memref<188x128xf32, #tpu.memory_space<vmem>>, vector<6x128xf32>
    %205 = arith.maximumf %203, %204 : vector<6x128xf32>
    %c176 = arith.constant 176 : index
    %c0_234 = arith.constant 0 : index
    %206 = tpu.strided_load %arg9[%c176, %c0_234] {strides = array<i32: 2, 1>} : memref<188x128xf32, #tpu.memory_space<vmem>>, vector<6x128xf32>
    %c177 = arith.constant 177 : index
    %c0_235 = arith.constant 0 : index
    %207 = tpu.strided_load %arg9[%c177, %c0_235] {strides = array<i32: 2, 1>} : memref<188x128xf32, #tpu.memory_space<vmem>>, vector<6x128xf32>
    %208 = arith.maximumf %206, %207 : vector<6x128xf32>
    %209 = arith.maximumf %205, %208 : vector<6x128xf32>
    %c0_236 = arith.constant 0 : index
    %c30 = arith.constant 30 : index
    %c0_237 = arith.constant 0 : index
    %210 = vector.load %arg7[%c0_236, %c30, %c0_237] : memref<1x36x128xf32, #tpu.memory_space<vmem>>, vector<1x6x128xf32>
    %211 = vector.shape_cast %210 : vector<1x6x128xf32> to vector<6x128xf32>
    %212 = vector.shape_cast %209 : vector<6x128xf32> to vector<1x6x128xf32>
    tpu.vector_store %arg7[%c0_236, %c30, %c0_237], %212 {strides = array<i32>} : memref<1x36x128xf32, #tpu.memory_space<vmem>>, vector<1x6x128xf32>,
    return
  }
  func.func @transform_0(%arg0: i32) -> (i32, i32, i32) {
    %c0_i32 = arith.constant 0 : i32
    %c0_i32_0 = arith.constant 0 : i32
    %c0_i32_1 = arith.constant 0 : i32
    return %arg0, %c0_i32, %c0_i32_0 : i32, i32, i32
  }
  func.func @transform_1(%arg0: i32) -> (i32, i32, i32) {
    %c0_i32 = arith.constant 0 : i32
    %c0_i32_0 = arith.constant 0 : i32
    %c0_i32_1 = arith.constant 0 : i32
    %c0_i32_2 = arith.constant 0 : i32
    return %c0_i32, %c0_i32_0, %c0_i32_1 : i32, i32, i32
  }
  func.func @transform_2(%arg0: i32) -> (i32, i32) {
    %c0_i32 = arith.constant 0 : i32
    %c0_i32_0 = arith.constant 0 : i32
    %c0_i32_1 = arith.constant 0 : i32
    return %c0_i32, %c0_i32_0 : i32, i32
  }
  func.func @transform_3(%arg0: i32) -> (i32, i32, i32) {
    %c0_i32 = arith.constant 0 : i32
    %c0_i32_0 = arith.constant 0 : i32
    %c0_i32_1 = arith.constant 0 : i32
    %c0_i32_2 = arith.constant 0 : i32
    return %c0_i32, %c0_i32_0, %c0_i32_1 : i32, i32, i32
  }
  func.func @transform_4(%arg0: i32) -> (i32, i32) {
    %c0_i32 = arith.constant 0 : i32
    %c0_i32_0 = arith.constant 0 : i32
    %c0_i32_1 = arith.constant 0 : i32
    return %c0_i32, %c0_i32_0 : i32, i32
  }
  func.func @transform_5(%arg0: i32) -> (i32, i32, i32) {
    %c0_i32 = arith.constant 0 : i32
    %c0_i32_0 = arith.constant 0 : i32
    %c0_i32_1 = arith.constant 0 : i32
    return %arg0, %c0_i32, %c0_i32_0 : i32, i32, i32
  }
  func.func @transform_6(%arg0: i32) -> (i32, i32, i32) {
    %c0_i32 = arith.constant 0 : i32
    %c0_i32_0 = arith.constant 0 : i32
    %c0_i32_1 = arith.constant 0 : i32
    return %arg0, %c0_i32, %c0_i32_0 : i32, i32, i32
  }
}

module attributes {stable_mosaic.version = 11 : i64} {
  func.func @_block_kernel(%arg0: i32, %arg1: memref<1x36x128xf32, #tpu.memory_space<vmem>>, %arg2: memref<9x128x128xf32, #tpu.memory_space<vmem>>, %arg3: memref<1x128xf32, #tpu.memory_space<vmem>>, %arg4: memref<9x128x128xf32, #tpu.memory_space<vmem>>, %arg5: memref<1x128xf32, #tpu.memory_space<vmem>>, %arg6: memref<1x8x128xf32, #tpu.memory_space<vmem>>, %arg7: memref<1x1x128xf32, #tpu.memory_space<vmem>>, %arg8: memref<22x128xf32, #tpu.memory_space<vmem>>, %arg9: memref<8x128xf32, #tpu.memory_space<vmem>>) attributes {dimension_semantics = [#tpu.dimension_semantics<parallel>], iteration_bounds = array<i64: 2>, scalar_prefetch = 0 : i64, scratch_operands = 2 : i64, tpu.core_type = #tpu.core_type<tc>, window_params = [{transform_indices = @transform_0, window_bounds = array<i64: 1, 36, 128>}, {pipeline_mode = #tpu.pipeline_mode<synchronous>, transform_indices = @transform_1, window_bounds = array<i64: 9, 128, 128>}, {pipeline_mode = #tpu.pipeline_mode<synchronous>, transform_indices = @transform_2, window_bounds = array<i64: 1, 128>}, {pipeline_mode = #tpu.pipeline_mode<synchronous>, transform_indices = @transform_3, window_bounds = array<i64: 9, 128, 128>}, {pipeline_mode = #tpu.pipeline_mode<synchronous>, transform_indices = @transform_4, window_bounds = array<i64: 1, 128>}, {transform_indices = @transform_5, window_bounds = array<i64: 1, 8, 128>}, {transform_indices = @transform_6, window_bounds = array<i64: 1, 1, 128>}]} {
    %cst = arith.constant 0.000000e+00 : f32
    %0 = vector.broadcast %cst : f32 to vector<22x128xf32>
    %c0 = arith.constant 0 : index
    %c0_0 = arith.constant 0 : index
    %1 = vector.load %arg3[%c0, %c0_0] : memref<1x128xf32, #tpu.memory_space<vmem>>, vector<1x128xf32>
    %2 = vector.broadcast %1 : vector<1x128xf32> to vector<22x128xf32>
    %3 = arith.addf %0, %2 : vector<22x128xf32>
    %c0_1 = arith.constant 0 : index
    %c0_2 = arith.constant 0 : index
    %4 = vector.load %arg8[%c0_1, %c0_2] : memref<22x128xf32, #tpu.memory_space<vmem>>, vector<22x128xf32>
    tpu.vector_store %arg8[%c0_1, %c0_2], %3 {strides = array<i32>} : memref<22x128xf32, #tpu.memory_space<vmem>>, vector<22x128xf32>,
    %c0_3 = arith.constant 0 : index
    %c0_4 = arith.constant 0 : index
    %5 = vector.load %arg8[%c0_3, %c0_4] : memref<22x128xf32, #tpu.memory_space<vmem>>, vector<22x128xf32>
    %c0_5 = arith.constant 0 : index
    %c0_6 = arith.constant 0 : index
    %c0_7 = arith.constant 0 : index
    %6 = vector.load %arg1[%c0_5, %c0_6, %c0_7] : memref<1x36x128xf32, #tpu.memory_space<vmem>>, vector<1x22x128xf32>
    %7 = vector.shape_cast %6 : vector<1x22x128xf32> to vector<22x128xf32>
    %c0_8 = arith.constant 0 : index
    %c0_9 = arith.constant 0 : index
    %c0_10 = arith.constant 0 : index
    %8 = vector.load %arg2[%c0_8, %c0_9, %c0_10] : memref<9x128x128xf32, #tpu.memory_space<vmem>>, vector<1x128x128xf32>
    %9 = vector.shape_cast %8 : vector<1x128x128xf32> to vector<128x128xf32>
    %cst_11 = arith.constant dense<0.000000e+00> : vector<22x128xf32>
    %10 = tpu.matmul %7, %9, %cst_11 {dimension_numbers = #tpu.dot_dimension_numbers<[1], [0], [0], [1], [0, 0, 1, 1], [], []>} : vector<22x128xf32>, vector<128x128xf32>, vector<22x128xf32> -> vector<22x128xf32>
    %11 = arith.addf %5, %10 : vector<22x128xf32>
    %c0_12 = arith.constant 0 : index
    %c0_13 = arith.constant 0 : index
    %12 = vector.load %arg8[%c0_12, %c0_13] : memref<22x128xf32, #tpu.memory_space<vmem>>, vector<22x128xf32>
    tpu.vector_store %arg8[%c0_12, %c0_13], %11 {strides = array<i32>} : memref<22x128xf32, #tpu.memory_space<vmem>>, vector<22x128xf32>,
    %c0_14 = arith.constant 0 : index
    %c0_15 = arith.constant 0 : index
    %13 = vector.load %arg8[%c0_14, %c0_15] : memref<22x128xf32, #tpu.memory_space<vmem>>, vector<22x128xf32>
    %c0_16 = arith.constant 0 : index
    %c1 = arith.constant 1 : index
    %c0_17 = arith.constant 0 : index
    %14 = vector.load %arg1[%c0_16, %c1, %c0_17] : memref<1x36x128xf32, #tpu.memory_space<vmem>>, vector<1x22x128xf32>
    %15 = vector.shape_cast %14 : vector<1x22x128xf32> to vector<22x128xf32>
    %c1_18 = arith.constant 1 : index
    %c0_19 = arith.constant 0 : index
    %c0_20 = arith.constant 0 : index
    %16 = vector.load %arg2[%c1_18, %c0_19, %c0_20] : memref<9x128x128xf32, #tpu.memory_space<vmem>>, vector<1x128x128xf32>
    %17 = vector.shape_cast %16 : vector<1x128x128xf32> to vector<128x128xf32>
    %cst_21 = arith.constant dense<0.000000e+00> : vector<22x128xf32>
    %18 = tpu.matmul %15, %17, %cst_21 {dimension_numbers = #tpu.dot_dimension_numbers<[1], [0], [0], [1], [0, 0, 1, 1], [], []>} : vector<22x128xf32>, vector<128x128xf32>, vector<22x128xf32> -> vector<22x128xf32>
    %19 = arith.addf %13, %18 : vector<22x128xf32>
    %c0_22 = arith.constant 0 : index
    %c0_23 = arith.constant 0 : index
    %20 = vector.load %arg8[%c0_22, %c0_23] : memref<22x128xf32, #tpu.memory_space<vmem>>, vector<22x128xf32>
    tpu.vector_store %arg8[%c0_22, %c0_23], %19 {strides = array<i32>} : memref<22x128xf32, #tpu.memory_space<vmem>>, vector<22x128xf32>,
    %c0_24 = arith.constant 0 : index
    %c0_25 = arith.constant 0 : index
    %21 = vector.load %arg8[%c0_24, %c0_25] : memref<22x128xf32, #tpu.memory_space<vmem>>, vector<22x128xf32>
    %c0_26 = arith.constant 0 : index
    %c2 = arith.constant 2 : index
    %c0_27 = arith.constant 0 : index
    %22 = vector.load %arg1[%c0_26, %c2, %c0_27] : memref<1x36x128xf32, #tpu.memory_space<vmem>>, vector<1x22x128xf32>
    %23 = vector.shape_cast %22 : vector<1x22x128xf32> to vector<22x128xf32>
    %c2_28 = arith.constant 2 : index
    %c0_29 = arith.constant 0 : index
    %c0_30 = arith.constant 0 : index
    %24 = vector.load %arg2[%c2_28, %c0_29, %c0_30] : memref<9x128x128xf32, #tpu.memory_space<vmem>>, vector<1x128x128xf32>
    %25 = vector.shape_cast %24 : vector<1x128x128xf32> to vector<128x128xf32>
    %cst_31 = arith.constant dense<0.000000e+00> : vector<22x128xf32>
    %26 = tpu.matmul %23, %25, %cst_31 {dimension_numbers = #tpu.dot_dimension_numbers<[1], [0], [0], [1], [0, 0, 1, 1], [], []>} : vector<22x128xf32>, vector<128x128xf32>, vector<22x128xf32> -> vector<22x128xf32>
    %27 = arith.addf %21, %26 : vector<22x128xf32>
    %c0_32 = arith.constant 0 : index
    %c0_33 = arith.constant 0 : index
    %28 = vector.load %arg8[%c0_32, %c0_33] : memref<22x128xf32, #tpu.memory_space<vmem>>, vector<22x128xf32>
    tpu.vector_store %arg8[%c0_32, %c0_33], %27 {strides = array<i32>} : memref<22x128xf32, #tpu.memory_space<vmem>>, vector<22x128xf32>,
    %c0_34 = arith.constant 0 : index
    %c0_35 = arith.constant 0 : index
    %29 = vector.load %arg8[%c0_34, %c0_35] : memref<22x128xf32, #tpu.memory_space<vmem>>, vector<22x128xf32>
    %c0_36 = arith.constant 0 : index
    %c6 = arith.constant 6 : index
    %c0_37 = arith.constant 0 : index
    %30 = vector.load %arg1[%c0_36, %c6, %c0_37] : memref<1x36x128xf32, #tpu.memory_space<vmem>>, vector<1x22x128xf32>
    %31 = vector.shape_cast %30 : vector<1x22x128xf32> to vector<22x128xf32>
    %c3 = arith.constant 3 : index
    %c0_38 = arith.constant 0 : index
    %c0_39 = arith.constant 0 : index
    %32 = vector.load %arg2[%c3, %c0_38, %c0_39] : memref<9x128x128xf32, #tpu.memory_space<vmem>>, vector<1x128x128xf32>
    %33 = vector.shape_cast %32 : vector<1x128x128xf32> to vector<128x128xf32>
    %cst_40 = arith.constant dense<0.000000e+00> : vector<22x128xf32>
    %34 = tpu.matmul %31, %33, %cst_40 {dimension_numbers = #tpu.dot_dimension_numbers<[1], [0], [0], [1], [0, 0, 1, 1], [], []>} : vector<22x128xf32>, vector<128x128xf32>, vector<22x128xf32> -> vector<22x128xf32>
    %35 = arith.addf %29, %34 : vector<22x128xf32>
    %c0_41 = arith.constant 0 : index
    %c0_42 = arith.constant 0 : index
    %36 = vector.load %arg8[%c0_41, %c0_42] : memref<22x128xf32, #tpu.memory_space<vmem>>, vector<22x128xf32>
    tpu.vector_store %arg8[%c0_41, %c0_42], %35 {strides = array<i32>} : memref<22x128xf32, #tpu.memory_space<vmem>>, vector<22x128xf32>,
    %c0_43 = arith.constant 0 : index
    %c0_44 = arith.constant 0 : index
    %37 = vector.load %arg8[%c0_43, %c0_44] : memref<22x128xf32, #tpu.memory_space<vmem>>, vector<22x128xf32>
    %c0_45 = arith.constant 0 : index
    %c7 = arith.constant 7 : index
    %c0_46 = arith.constant 0 : index
    %38 = vector.load %arg1[%c0_45, %c7, %c0_46] : memref<1x36x128xf32, #tpu.memory_space<vmem>>, vector<1x22x128xf32>
    %39 = vector.shape_cast %38 : vector<1x22x128xf32> to vector<22x128xf32>
    %c4 = arith.constant 4 : index
    %c0_47 = arith.constant 0 : index
    %c0_48 = arith.constant 0 : index
    %40 = vector.load %arg2[%c4, %c0_47, %c0_48] : memref<9x128x128xf32, #tpu.memory_space<vmem>>, vector<1x128x128xf32>
    %41 = vector.shape_cast %40 : vector<1x128x128xf32> to vector<128x128xf32>
    %cst_49 = arith.constant dense<0.000000e+00> : vector<22x128xf32>
    %42 = tpu.matmul %39, %41, %cst_49 {dimension_numbers = #tpu.dot_dimension_numbers<[1], [0], [0], [1], [0, 0, 1, 1], [], []>} : vector<22x128xf32>, vector<128x128xf32>, vector<22x128xf32> -> vector<22x128xf32>
    %43 = arith.addf %37, %42 : vector<22x128xf32>
    %c0_50 = arith.constant 0 : index
    %c0_51 = arith.constant 0 : index
    %44 = vector.load %arg8[%c0_50, %c0_51] : memref<22x128xf32, #tpu.memory_space<vmem>>, vector<22x128xf32>
    tpu.vector_store %arg8[%c0_50, %c0_51], %43 {strides = array<i32>} : memref<22x128xf32, #tpu.memory_space<vmem>>, vector<22x128xf32>,
    %c0_52 = arith.constant 0 : index
    %c0_53 = arith.constant 0 : index
    %45 = vector.load %arg8[%c0_52, %c0_53] : memref<22x128xf32, #tpu.memory_space<vmem>>, vector<22x128xf32>
    %c0_54 = arith.constant 0 : index
    %c8 = arith.constant 8 : index
    %c0_55 = arith.constant 0 : index
    %46 = vector.load %arg1[%c0_54, %c8, %c0_55] : memref<1x36x128xf32, #tpu.memory_space<vmem>>, vector<1x22x128xf32>
    %47 = vector.shape_cast %46 : vector<1x22x128xf32> to vector<22x128xf32>
    %c5 = arith.constant 5 : index
    %c0_56 = arith.constant 0 : index
    %c0_57 = arith.constant 0 : index
    %48 = vector.load %arg2[%c5, %c0_56, %c0_57] : memref<9x128x128xf32, #tpu.memory_space<vmem>>, vector<1x128x128xf32>
    %49 = vector.shape_cast %48 : vector<1x128x128xf32> to vector<128x128xf32>
    %cst_58 = arith.constant dense<0.000000e+00> : vector<22x128xf32>
    %50 = tpu.matmul %47, %49, %cst_58 {dimension_numbers = #tpu.dot_dimension_numbers<[1], [0], [0], [1], [0, 0, 1, 1], [], []>} : vector<22x128xf32>, vector<128x128xf32>, vector<22x128xf32> -> vector<22x128xf32>
    %51 = arith.addf %45, %50 : vector<22x128xf32>
    %c0_59 = arith.constant 0 : index
    %c0_60 = arith.constant 0 : index
    %52 = vector.load %arg8[%c0_59, %c0_60] : memref<22x128xf32, #tpu.memory_space<vmem>>, vector<22x128xf32>
    tpu.vector_store %arg8[%c0_59, %c0_60], %51 {strides = array<i32>} : memref<22x128xf32, #tpu.memory_space<vmem>>, vector<22x128xf32>,
    %c0_61 = arith.constant 0 : index
    %c0_62 = arith.constant 0 : index
    %53 = vector.load %arg8[%c0_61, %c0_62] : memref<22x128xf32, #tpu.memory_space<vmem>>, vector<22x128xf32>
    %c0_63 = arith.constant 0 : index
    %c12 = arith.constant 12 : index
    %c0_64 = arith.constant 0 : index
    %54 = vector.load %arg1[%c0_63, %c12, %c0_64] : memref<1x36x128xf32, #tpu.memory_space<vmem>>, vector<1x22x128xf32>
    %55 = vector.shape_cast %54 : vector<1x22x128xf32> to vector<22x128xf32>
    %c6_65 = arith.constant 6 : index
    %c0_66 = arith.constant 0 : index
    %c0_67 = arith.constant 0 : index
    %56 = vector.load %arg2[%c6_65, %c0_66, %c0_67] : memref<9x128x128xf32, #tpu.memory_space<vmem>>, vector<1x128x128xf32>
    %57 = vector.shape_cast %56 : vector<1x128x128xf32> to vector<128x128xf32>
    %cst_68 = arith.constant dense<0.000000e+00> : vector<22x128xf32>
    %58 = tpu.matmul %55, %57, %cst_68 {dimension_numbers = #tpu.dot_dimension_numbers<[1], [0], [0], [1], [0, 0, 1, 1], [], []>} : vector<22x128xf32>, vector<128x128xf32>, vector<22x128xf32> -> vector<22x128xf32>
    %59 = arith.addf %53, %58 : vector<22x128xf32>
    %c0_69 = arith.constant 0 : index
    %c0_70 = arith.constant 0 : index
    %60 = vector.load %arg8[%c0_69, %c0_70] : memref<22x128xf32, #tpu.memory_space<vmem>>, vector<22x128xf32>
    tpu.vector_store %arg8[%c0_69, %c0_70], %59 {strides = array<i32>} : memref<22x128xf32, #tpu.memory_space<vmem>>, vector<22x128xf32>,
    %c0_71 = arith.constant 0 : index
    %c0_72 = arith.constant 0 : index
    %61 = vector.load %arg8[%c0_71, %c0_72] : memref<22x128xf32, #tpu.memory_space<vmem>>, vector<22x128xf32>
    %c0_73 = arith.constant 0 : index
    %c13 = arith.constant 13 : index
    %c0_74 = arith.constant 0 : index
    %62 = vector.load %arg1[%c0_73, %c13, %c0_74] : memref<1x36x128xf32, #tpu.memory_space<vmem>>, vector<1x22x128xf32>
    %63 = vector.shape_cast %62 : vector<1x22x128xf32> to vector<22x128xf32>
    %c7_75 = arith.constant 7 : index
    %c0_76 = arith.constant 0 : index
    %c0_77 = arith.constant 0 : index
    %64 = vector.load %arg2[%c7_75, %c0_76, %c0_77] : memref<9x128x128xf32, #tpu.memory_space<vmem>>, vector<1x128x128xf32>
    %65 = vector.shape_cast %64 : vector<1x128x128xf32> to vector<128x128xf32>
    %cst_78 = arith.constant dense<0.000000e+00> : vector<22x128xf32>
    %66 = tpu.matmul %63, %65, %cst_78 {dimension_numbers = #tpu.dot_dimension_numbers<[1], [0], [0], [1], [0, 0, 1, 1], [], []>} : vector<22x128xf32>, vector<128x128xf32>, vector<22x128xf32> -> vector<22x128xf32>
    %67 = arith.addf %61, %66 : vector<22x128xf32>
    %c0_79 = arith.constant 0 : index
    %c0_80 = arith.constant 0 : index
    %68 = vector.load %arg8[%c0_79, %c0_80] : memref<22x128xf32, #tpu.memory_space<vmem>>, vector<22x128xf32>
    tpu.vector_store %arg8[%c0_79, %c0_80], %67 {strides = array<i32>} : memref<22x128xf32, #tpu.memory_space<vmem>>, vector<22x128xf32>,
    %c0_81 = arith.constant 0 : index
    %c0_82 = arith.constant 0 : index
    %69 = vector.load %arg8[%c0_81, %c0_82] : memref<22x128xf32, #tpu.memory_space<vmem>>, vector<22x128xf32>
    %c0_83 = arith.constant 0 : index
    %c14 = arith.constant 14 : index
    %c0_84 = arith.constant 0 : index
    %70 = vector.load %arg1[%c0_83, %c14, %c0_84] : memref<1x36x128xf32, #tpu.memory_space<vmem>>, vector<1x22x128xf32>
    %71 = vector.shape_cast %70 : vector<1x22x128xf32> to vector<22x128xf32>
    %c8_85 = arith.constant 8 : index
    %c0_86 = arith.constant 0 : index
    %c0_87 = arith.constant 0 : index
    %72 = vector.load %arg2[%c8_85, %c0_86, %c0_87] : memref<9x128x128xf32, #tpu.memory_space<vmem>>, vector<1x128x128xf32>
    %73 = vector.shape_cast %72 : vector<1x128x128xf32> to vector<128x128xf32>
    %cst_88 = arith.constant dense<0.000000e+00> : vector<22x128xf32>
    %74 = tpu.matmul %71, %73, %cst_88 {dimension_numbers = #tpu.dot_dimension_numbers<[1], [0], [0], [1], [0, 0, 1, 1], [], []>} : vector<22x128xf32>, vector<128x128xf32>, vector<22x128xf32> -> vector<22x128xf32>
    %75 = arith.addf %69, %74 : vector<22x128xf32>
    %c0_89 = arith.constant 0 : index
    %c0_90 = arith.constant 0 : index
    %76 = vector.load %arg8[%c0_89, %c0_90] : memref<22x128xf32, #tpu.memory_space<vmem>>, vector<22x128xf32>
    tpu.vector_store %arg8[%c0_89, %c0_90], %75 {strides = array<i32>} : memref<22x128xf32, #tpu.memory_space<vmem>>, vector<22x128xf32>,
    %c0_91 = arith.constant 0 : index
    %c0_92 = arith.constant 0 : index
    %77 = vector.load %arg8[%c0_91, %c0_92] : memref<22x128xf32, #tpu.memory_space<vmem>>, vector<22x128xf32>
    %cst_93 = arith.constant 0.000000e+00 : f32
    %78 = vector.broadcast %cst_93 : f32 to vector<22x128xf32>
    %79 = arith.maximumf %77, %78 : vector<22x128xf32>
    %c0_94 = arith.constant 0 : index
    %c0_95 = arith.constant 0 : index
    %80 = vector.load %arg8[%c0_94, %c0_95] : memref<22x128xf32, #tpu.memory_space<vmem>>, vector<22x128xf32>
    tpu.vector_store %arg8[%c0_94, %c0_95], %79 {strides = array<i32>} : memref<22x128xf32, #tpu.memory_space<vmem>>, vector<22x128xf32>,
    %cst_96 = arith.constant 0.000000e+00 : f32
    %81 = vector.broadcast %cst_96 : f32 to vector<8x128xf32>
    %c0_97 = arith.constant 0 : index
    %c0_98 = arith.constant 0 : index
    %82 = vector.load %arg5[%c0_97, %c0_98] : memref<1x128xf32, #tpu.memory_space<vmem>>, vector<1x128xf32>
    %83 = vector.broadcast %82 : vector<1x128xf32> to vector<8x128xf32>
    %84 = arith.addf %81, %83 : vector<8x128xf32>
    %c0_99 = arith.constant 0 : index
    %c0_100 = arith.constant 0 : index
    %85 = vector.load %arg9[%c0_99, %c0_100] : memref<8x128xf32, #tpu.memory_space<vmem>>, vector<8x128xf32>
    tpu.vector_store %arg9[%c0_99, %c0_100], %84 {strides = array<i32>} : memref<8x128xf32, #tpu.memory_space<vmem>>, vector<8x128xf32>,
    %c0_101 = arith.constant 0 : index
    %c0_102 = arith.constant 0 : index
    %86 = vector.load %arg9[%c0_101, %c0_102] : memref<8x128xf32, #tpu.memory_space<vmem>>, vector<8x128xf32>
    %c0_103 = arith.constant 0 : index
    %c0_104 = arith.constant 0 : index
    %87 = vector.load %arg8[%c0_103, %c0_104] : memref<22x128xf32, #tpu.memory_space<vmem>>, vector<8x128xf32>
    %c0_105 = arith.constant 0 : index
    %c0_106 = arith.constant 0 : index
    %c0_107 = arith.constant 0 : index
    %88 = vector.load %arg4[%c0_105, %c0_106, %c0_107] : memref<9x128x128xf32, #tpu.memory_space<vmem>>, vector<1x128x128xf32>
    %89 = vector.shape_cast %88 : vector<1x128x128xf32> to vector<128x128xf32>
    %cst_108 = arith.constant dense<0.000000e+00> : vector<8x128xf32>
    %90 = tpu.matmul %87, %89, %cst_108 {dimension_numbers = #tpu.dot_dimension_numbers<[1], [0], [0], [1], [0, 0, 1, 1], [], []>} : vector<8x128xf32>, vector<128x128xf32>, vector<8x128xf32> -> vector<8x128xf32>
    %91 = arith.addf %86, %90 : vector<8x128xf32>
    %c0_109 = arith.constant 0 : index
    %c0_110 = arith.constant 0 : index
    %92 = vector.load %arg9[%c0_109, %c0_110] : memref<8x128xf32, #tpu.memory_space<vmem>>, vector<8x128xf32>
    tpu.vector_store %arg9[%c0_109, %c0_110], %91 {strides = array<i32>} : memref<8x128xf32, #tpu.memory_space<vmem>>, vector<8x128xf32>,
    %c0_111 = arith.constant 0 : index
    %c0_112 = arith.constant 0 : index
    %93 = vector.load %arg9[%c0_111, %c0_112] : memref<8x128xf32, #tpu.memory_space<vmem>>, vector<8x128xf32>
    %c1_113 = arith.constant 1 : index
    %c0_114 = arith.constant 0 : index
    %94 = vector.load %arg8[%c1_113, %c0_114] : memref<22x128xf32, #tpu.memory_space<vmem>>, vector<8x128xf32>
    %c1_115 = arith.constant 1 : index
    %c0_116 = arith.constant 0 : index
    %c0_117 = arith.constant 0 : index
    %95 = vector.load %arg4[%c1_115, %c0_116, %c0_117] : memref<9x128x128xf32, #tpu.memory_space<vmem>>, vector<1x128x128xf32>
    %96 = vector.shape_cast %95 : vector<1x128x128xf32> to vector<128x128xf32>
    %cst_118 = arith.constant dense<0.000000e+00> : vector<8x128xf32>
    %97 = tpu.matmul %94, %96, %cst_118 {dimension_numbers = #tpu.dot_dimension_numbers<[1], [0], [0], [1], [0, 0, 1, 1], [], []>} : vector<8x128xf32>, vector<128x128xf32>, vector<8x128xf32> -> vector<8x128xf32>
    %98 = arith.addf %93, %97 : vector<8x128xf32>
    %c0_119 = arith.constant 0 : index
    %c0_120 = arith.constant 0 : index
    %99 = vector.load %arg9[%c0_119, %c0_120] : memref<8x128xf32, #tpu.memory_space<vmem>>, vector<8x128xf32>
    tpu.vector_store %arg9[%c0_119, %c0_120], %98 {strides = array<i32>} : memref<8x128xf32, #tpu.memory_space<vmem>>, vector<8x128xf32>,
    %c0_121 = arith.constant 0 : index
    %c0_122 = arith.constant 0 : index
    %100 = vector.load %arg9[%c0_121, %c0_122] : memref<8x128xf32, #tpu.memory_space<vmem>>, vector<8x128xf32>
    %c2_123 = arith.constant 2 : index
    %c0_124 = arith.constant 0 : index
    %101 = vector.load %arg8[%c2_123, %c0_124] : memref<22x128xf32, #tpu.memory_space<vmem>>, vector<8x128xf32>
    %c2_125 = arith.constant 2 : index
    %c0_126 = arith.constant 0 : index
    %c0_127 = arith.constant 0 : index
    %102 = vector.load %arg4[%c2_125, %c0_126, %c0_127] : memref<9x128x128xf32, #tpu.memory_space<vmem>>, vector<1x128x128xf32>
    %103 = vector.shape_cast %102 : vector<1x128x128xf32> to vector<128x128xf32>
    %cst_128 = arith.constant dense<0.000000e+00> : vector<8x128xf32>
    %104 = tpu.matmul %101, %103, %cst_128 {dimension_numbers = #tpu.dot_dimension_numbers<[1], [0], [0], [1], [0, 0, 1, 1], [], []>} : vector<8x128xf32>, vector<128x128xf32>, vector<8x128xf32> -> vector<8x128xf32>
    %105 = arith.addf %100, %104 : vector<8x128xf32>
    %c0_129 = arith.constant 0 : index
    %c0_130 = arith.constant 0 : index
    %106 = vector.load %arg9[%c0_129, %c0_130] : memref<8x128xf32, #tpu.memory_space<vmem>>, vector<8x128xf32>
    tpu.vector_store %arg9[%c0_129, %c0_130], %105 {strides = array<i32>} : memref<8x128xf32, #tpu.memory_space<vmem>>, vector<8x128xf32>,
    %c0_131 = arith.constant 0 : index
    %c0_132 = arith.constant 0 : index
    %107 = vector.load %arg9[%c0_131, %c0_132] : memref<8x128xf32, #tpu.memory_space<vmem>>, vector<8x128xf32>
    %c6_133 = arith.constant 6 : index
    %c0_134 = arith.constant 0 : index
    %108 = vector.load %arg8[%c6_133, %c0_134] : memref<22x128xf32, #tpu.memory_space<vmem>>, vector<8x128xf32>
    %c3_135 = arith.constant 3 : index
    %c0_136 = arith.constant 0 : index
    %c0_137 = arith.constant 0 : index
    %109 = vector.load %arg4[%c3_135, %c0_136, %c0_137] : memref<9x128x128xf32, #tpu.memory_space<vmem>>, vector<1x128x128xf32>
    %110 = vector.shape_cast %109 : vector<1x128x128xf32> to vector<128x128xf32>
    %cst_138 = arith.constant dense<0.000000e+00> : vector<8x128xf32>
    %111 = tpu.matmul %108, %110, %cst_138 {dimension_numbers = #tpu.dot_dimension_numbers<[1], [0], [0], [1], [0, 0, 1, 1], [], []>} : vector<8x128xf32>, vector<128x128xf32>, vector<8x128xf32> -> vector<8x128xf32>
    %112 = arith.addf %107, %111 : vector<8x128xf32>
    %c0_139 = arith.constant 0 : index
    %c0_140 = arith.constant 0 : index
    %113 = vector.load %arg9[%c0_139, %c0_140] : memref<8x128xf32, #tpu.memory_space<vmem>>, vector<8x128xf32>
    tpu.vector_store %arg9[%c0_139, %c0_140], %112 {strides = array<i32>} : memref<8x128xf32, #tpu.memory_space<vmem>>, vector<8x128xf32>,
    %c0_141 = arith.constant 0 : index
    %c0_142 = arith.constant 0 : index
    %114 = vector.load %arg9[%c0_141, %c0_142] : memref<8x128xf32, #tpu.memory_space<vmem>>, vector<8x128xf32>
    %c7_143 = arith.constant 7 : index
    %c0_144 = arith.constant 0 : index
    %115 = vector.load %arg8[%c7_143, %c0_144] : memref<22x128xf32, #tpu.memory_space<vmem>>, vector<8x128xf32>
    %c4_145 = arith.constant 4 : index
    %c0_146 = arith.constant 0 : index
    %c0_147 = arith.constant 0 : index
    %116 = vector.load %arg4[%c4_145, %c0_146, %c0_147] : memref<9x128x128xf32, #tpu.memory_space<vmem>>, vector<1x128x128xf32>
    %117 = vector.shape_cast %116 : vector<1x128x128xf32> to vector<128x128xf32>
    %cst_148 = arith.constant dense<0.000000e+00> : vector<8x128xf32>
    %118 = tpu.matmul %115, %117, %cst_148 {dimension_numbers = #tpu.dot_dimension_numbers<[1], [0], [0], [1], [0, 0, 1, 1], [], []>} : vector<8x128xf32>, vector<128x128xf32>, vector<8x128xf32> -> vector<8x128xf32>
    %119 = arith.addf %114, %118 : vector<8x128xf32>
    %c0_149 = arith.constant 0 : index
    %c0_150 = arith.constant 0 : index
    %120 = vector.load %arg9[%c0_149, %c0_150] : memref<8x128xf32, #tpu.memory_space<vmem>>, vector<8x128xf32>
    tpu.vector_store %arg9[%c0_149, %c0_150], %119 {strides = array<i32>} : memref<8x128xf32, #tpu.memory_space<vmem>>, vector<8x128xf32>,
    %c0_151 = arith.constant 0 : index
    %c0_152 = arith.constant 0 : index
    %121 = vector.load %arg9[%c0_151, %c0_152] : memref<8x128xf32, #tpu.memory_space<vmem>>, vector<8x128xf32>
    %c8_153 = arith.constant 8 : index
    %c0_154 = arith.constant 0 : index
    %122 = vector.load %arg8[%c8_153, %c0_154] : memref<22x128xf32, #tpu.memory_space<vmem>>, vector<8x128xf32>
    %c5_155 = arith.constant 5 : index
    %c0_156 = arith.constant 0 : index
    %c0_157 = arith.constant 0 : index
    %123 = vector.load %arg4[%c5_155, %c0_156, %c0_157] : memref<9x128x128xf32, #tpu.memory_space<vmem>>, vector<1x128x128xf32>
    %124 = vector.shape_cast %123 : vector<1x128x128xf32> to vector<128x128xf32>
    %cst_158 = arith.constant dense<0.000000e+00> : vector<8x128xf32>
    %125 = tpu.matmul %122, %124, %cst_158 {dimension_numbers = #tpu.dot_dimension_numbers<[1], [0], [0], [1], [0, 0, 1, 1], [], []>} : vector<8x128xf32>, vector<128x128xf32>, vector<8x128xf32> -> vector<8x128xf32>
    %126 = arith.addf %121, %125 : vector<8x128xf32>
    %c0_159 = arith.constant 0 : index
    %c0_160 = arith.constant 0 : index
    %127 = vector.load %arg9[%c0_159, %c0_160] : memref<8x128xf32, #tpu.memory_space<vmem>>, vector<8x128xf32>
    tpu.vector_store %arg9[%c0_159, %c0_160], %126 {strides = array<i32>} : memref<8x128xf32, #tpu.memory_space<vmem>>, vector<8x128xf32>,
    %c0_161 = arith.constant 0 : index
    %c0_162 = arith.constant 0 : index
    %128 = vector.load %arg9[%c0_161, %c0_162] : memref<8x128xf32, #tpu.memory_space<vmem>>, vector<8x128xf32>
    %c12_163 = arith.constant 12 : index
    %c0_164 = arith.constant 0 : index
    %129 = vector.load %arg8[%c12_163, %c0_164] : memref<22x128xf32, #tpu.memory_space<vmem>>, vector<8x128xf32>
    %c6_165 = arith.constant 6 : index
    %c0_166 = arith.constant 0 : index
    %c0_167 = arith.constant 0 : index
    %130 = vector.load %arg4[%c6_165, %c0_166, %c0_167] : memref<9x128x128xf32, #tpu.memory_space<vmem>>, vector<1x128x128xf32>
    %131 = vector.shape_cast %130 : vector<1x128x128xf32> to vector<128x128xf32>
    %cst_168 = arith.constant dense<0.000000e+00> : vector<8x128xf32>
    %132 = tpu.matmul %129, %131, %cst_168 {dimension_numbers = #tpu.dot_dimension_numbers<[1], [0], [0], [1], [0, 0, 1, 1], [], []>} : vector<8x128xf32>, vector<128x128xf32>, vector<8x128xf32> -> vector<8x128xf32>
    %133 = arith.addf %128, %132 : vector<8x128xf32>
    %c0_169 = arith.constant 0 : index
    %c0_170 = arith.constant 0 : index
    %134 = vector.load %arg9[%c0_169, %c0_170] : memref<8x128xf32, #tpu.memory_space<vmem>>, vector<8x128xf32>
    tpu.vector_store %arg9[%c0_169, %c0_170], %133 {strides = array<i32>} : memref<8x128xf32, #tpu.memory_space<vmem>>, vector<8x128xf32>,
    %c0_171 = arith.constant 0 : index
    %c0_172 = arith.constant 0 : index
    %135 = vector.load %arg9[%c0_171, %c0_172] : memref<8x128xf32, #tpu.memory_space<vmem>>, vector<8x128xf32>
    %c13_173 = arith.constant 13 : index
    %c0_174 = arith.constant 0 : index
    %136 = vector.load %arg8[%c13_173, %c0_174] : memref<22x128xf32, #tpu.memory_space<vmem>>, vector<8x128xf32>
    %c7_175 = arith.constant 7 : index
    %c0_176 = arith.constant 0 : index
    %c0_177 = arith.constant 0 : index
    %137 = vector.load %arg4[%c7_175, %c0_176, %c0_177] : memref<9x128x128xf32, #tpu.memory_space<vmem>>, vector<1x128x128xf32>
    %138 = vector.shape_cast %137 : vector<1x128x128xf32> to vector<128x128xf32>
    %cst_178 = arith.constant dense<0.000000e+00> : vector<8x128xf32>
    %139 = tpu.matmul %136, %138, %cst_178 {dimension_numbers = #tpu.dot_dimension_numbers<[1], [0], [0], [1], [0, 0, 1, 1], [], []>} : vector<8x128xf32>, vector<128x128xf32>, vector<8x128xf32> -> vector<8x128xf32>
    %140 = arith.addf %135, %139 : vector<8x128xf32>
    %c0_179 = arith.constant 0 : index
    %c0_180 = arith.constant 0 : index
    %141 = vector.load %arg9[%c0_179, %c0_180] : memref<8x128xf32, #tpu.memory_space<vmem>>, vector<8x128xf32>
    tpu.vector_store %arg9[%c0_179, %c0_180], %140 {strides = array<i32>} : memref<8x128xf32, #tpu.memory_space<vmem>>, vector<8x128xf32>,
    %c0_181 = arith.constant 0 : index
    %c0_182 = arith.constant 0 : index
    %142 = vector.load %arg9[%c0_181, %c0_182] : memref<8x128xf32, #tpu.memory_space<vmem>>, vector<8x128xf32>
    %c14_183 = arith.constant 14 : index
    %c0_184 = arith.constant 0 : index
    %143 = vector.load %arg8[%c14_183, %c0_184] : memref<22x128xf32, #tpu.memory_space<vmem>>, vector<8x128xf32>
    %c8_185 = arith.constant 8 : index
    %c0_186 = arith.constant 0 : index
    %c0_187 = arith.constant 0 : index
    %144 = vector.load %arg4[%c8_185, %c0_186, %c0_187] : memref<9x128x128xf32, #tpu.memory_space<vmem>>, vector<1x128x128xf32>
    %145 = vector.shape_cast %144 : vector<1x128x128xf32> to vector<128x128xf32>
    %cst_188 = arith.constant dense<0.000000e+00> : vector<8x128xf32>
    %146 = tpu.matmul %143, %145, %cst_188 {dimension_numbers = #tpu.dot_dimension_numbers<[1], [0], [0], [1], [0, 0, 1, 1], [], []>} : vector<8x128xf32>, vector<128x128xf32>, vector<8x128xf32> -> vector<8x128xf32>
    %147 = arith.addf %142, %146 : vector<8x128xf32>
    %c0_189 = arith.constant 0 : index
    %c0_190 = arith.constant 0 : index
    %148 = vector.load %arg9[%c0_189, %c0_190] : memref<8x128xf32, #tpu.memory_space<vmem>>, vector<8x128xf32>
    tpu.vector_store %arg9[%c0_189, %c0_190], %147 {strides = array<i32>} : memref<8x128xf32, #tpu.memory_space<vmem>>, vector<8x128xf32>,
    %c0_191 = arith.constant 0 : index
    %c0_192 = arith.constant 0 : index
    %149 = vector.load %arg9[%c0_191, %c0_192] : memref<8x128xf32, #tpu.memory_space<vmem>>, vector<8x128xf32>
    %c0_193 = arith.constant 0 : index
    %c0_194 = arith.constant 0 : index
    %c0_195 = arith.constant 0 : index
    %150 = vector.load %arg6[%c0_193, %c0_194, %c0_195] : memref<1x8x128xf32, #tpu.memory_space<vmem>>, vector<1x8x128xf32>
    %151 = vector.shape_cast %150 : vector<1x8x128xf32> to vector<8x128xf32>
    %152 = vector.shape_cast %149 : vector<8x128xf32> to vector<1x8x128xf32>
    tpu.vector_store %arg6[%c0_193, %c0_194, %c0_195], %152 {strides = array<i32>} : memref<1x8x128xf32, #tpu.memory_space<vmem>>, vector<1x8x128xf32>,
    %c0_196 = arith.constant 0 : index
    %c0_197 = arith.constant 0 : index
    %153 = vector.load %arg9[%c0_196, %c0_197] : memref<8x128xf32, #tpu.memory_space<vmem>>, vector<1x128xf32>
    %c1_198 = arith.constant 1 : index
    %c0_199 = arith.constant 0 : index
    %154 = vector.load %arg9[%c1_198, %c0_199] : memref<8x128xf32, #tpu.memory_space<vmem>>, vector<1x128xf32>
    %155 = arith.maximumf %153, %154 : vector<1x128xf32>
    %c6_200 = arith.constant 6 : index
    %c0_201 = arith.constant 0 : index
    %156 = vector.load %arg9[%c6_200, %c0_201] : memref<8x128xf32, #tpu.memory_space<vmem>>, vector<1x128xf32>
    %c7_202 = arith.constant 7 : index
    %c0_203 = arith.constant 0 : index
    %157 = vector.load %arg9[%c7_202, %c0_203] : memref<8x128xf32, #tpu.memory_space<vmem>>, vector<1x128xf32>
    %158 = arith.maximumf %156, %157 : vector<1x128xf32>
    %159 = arith.maximumf %155, %158 : vector<1x128xf32>
    %c0_204 = arith.constant 0 : index
    %c0_205 = arith.constant 0 : index
    %c0_206 = arith.constant 0 : index
    %160 = vector.load %arg7[%c0_204, %c0_205, %c0_206] : memref<1x1x128xf32, #tpu.memory_space<vmem>>, vector<1x1x128xf32>
    %161 = vector.shape_cast %160 : vector<1x1x128xf32> to vector<1x128xf32>
    %162 = vector.shape_cast %159 : vector<1x128xf32> to vector<1x1x128xf32>
    tpu.vector_store %arg7[%c0_204, %c0_205, %c0_206], %162 {strides = array<i32>} : memref<1x1x128xf32, #tpu.memory_space<vmem>>, vector<1x1x128xf32>,
    return
  }
  func.func @transform_0(%arg0: i32) -> (i32, i32, i32) {
    %c0_i32 = arith.constant 0 : i32
    %c0_i32_0 = arith.constant 0 : i32
    %c0_i32_1 = arith.constant 0 : i32
    return %arg0, %c0_i32, %c0_i32_0 : i32, i32, i32
  }
  func.func @transform_1(%arg0: i32) -> (i32, i32, i32) {
    %c0_i32 = arith.constant 0 : i32
    %c0_i32_0 = arith.constant 0 : i32
    %c0_i32_1 = arith.constant 0 : i32
    %c0_i32_2 = arith.constant 0 : i32
    return %c0_i32, %c0_i32_0, %c0_i32_1 : i32, i32, i32
  }
  func.func @transform_2(%arg0: i32) -> (i32, i32) {
    %c0_i32 = arith.constant 0 : i32
    %c0_i32_0 = arith.constant 0 : i32
    %c0_i32_1 = arith.constant 0 : i32
    return %c0_i32, %c0_i32_0 : i32, i32
  }
  func.func @transform_3(%arg0: i32) -> (i32, i32, i32) {
    %c0_i32 = arith.constant 0 : i32
    %c0_i32_0 = arith.constant 0 : i32
    %c0_i32_1 = arith.constant 0 : i32
    %c0_i32_2 = arith.constant 0 : i32
    return %c0_i32, %c0_i32_0, %c0_i32_1 : i32, i32, i32
  }
  func.func @transform_4(%arg0: i32) -> (i32, i32) {
    %c0_i32 = arith.constant 0 : i32
    %c0_i32_0 = arith.constant 0 : i32
    %c0_i32_1 = arith.constant 0 : i32
    return %c0_i32, %c0_i32_0 : i32, i32
  }
  func.func @transform_5(%arg0: i32) -> (i32, i32, i32) {
    %c0_i32 = arith.constant 0 : i32
    %c0_i32_0 = arith.constant 0 : i32
    %c0_i32_1 = arith.constant 0 : i32
    return %arg0, %c0_i32, %c0_i32_0 : i32, i32, i32
  }
  func.func @transform_6(%arg0: i32) -> (i32, i32, i32) {
    %c0_i32 = arith.constant 0 : i32
    %c0_i32_0 = arith.constant 0 : i32
    %c0_i32_1 = arith.constant 0 : i32
    return %arg0, %c0_i32, %c0_i32_0 : i32, i32, i32
  }
}

</mosaic_0001>

<llo_original>
// kernel: encoder_forward.3
$region0: #{encoder_forward.3}
  #allocation0 [shape = 'u32[]', space=smem, size = 0x4, offset = 0x4, fixed_abs, tag = 'smem constant byte address 0x4 - core index']
  #allocation1 [shape = 'u32[72,128]{1,0:T(1,128)}', space=vmem, size = 0x9000, scoped, tag = 'internal scratch']
  #allocation2 [shape = 'f32[22,128]{1,0:T(8,128)}', space=vmem, size = 0x3000, scoped, tag = 'scratch operand']
  #allocation3 [shape = 'f32[8,128]{1,0:T(8,128)}', space=vmem, size = 0x1000, scoped, tag = 'scratch operand']
  %s0 = inlined_call_operand.vmem [shape: f32[2,36,128], index: 0, kind: input, shape index: {}]
  %s1 = inlined_call_operand.vmem [shape: f32[9,128,128], index: 1, kind: input, shape index: {}]
  %s2 = inlined_call_operand.vmem [shape: f32[1,128], index: 2, kind: input, shape index: {}]
  %s3 = inlined_call_operand.vmem [shape: f32[9,128,128], index: 3, kind: input, shape index: {}]
  %s4 = inlined_call_operand.vmem [shape: f32[1,128], index: 4, kind: input, shape index: {}]
  %s5 = inlined_call_operand.vmem [shape: f32[2,8,128], index: 5, kind: output, shape index: {0}]
  %s6 = inlined_call_operand.hbm [shape: f32[2,1,128], index: 6, kind: output, shape index: {1}]
  %7 = xla_tuple %s5, %s6
  %s8 = sld [smem:[#allocation0]]
  $region61: #{encoder_forward.3} parent=0
    _
  %s10 = ssub.s32 1, %s8
  %s11 = scalar_select 0, %s10, %s8
  $region1: #{encoder_forward.3} parent=0
    #allocation4 [shape = 'u8[1024]{0}', space=vmem, size = 0x400, scoped, tag = 'output window, operand 1']
    #allocation5 [shape = 's32[2]{0}', space=sflag, size = 0x8, scoped, tag = 'scoped memory for encoder_forward.3']
    %12 = vsyncpa [#allocation5], 0
    %s13 = scalar_lea.sflag [#allocation5], 1
    %14 = vsyncpa %s13, 0
    loop: start=0, step=1, limit=4
    $region2: #{encoder_forward.3} parent=1 // loop_pre_header
      _
    $region3: #{encoder_forward.3} parent=1 // loop_header
      %s16 = sphi 0, %s20
      %p17 = scmp.ge.s32.totalorder %s16, 4
      %s26 = sphi 0, %s28
      %s29 = sphi 0, %s26
      %s30 = sphi 0, %s29
      %s46 = sphi 0, %s30
      %s50 = sphi 0, %s50
      %s52 = sphi 0, %s50
      %s53 = sphi 0, %s52
      %s67 = sphi 0, %s53
      %s71 = sphi 0, %s71
      %s73 = sphi 0, %s71
      %s74 = sphi 0, %s73
      %s88 = sphi 0, %s74
      %s92 = sphi 0, %s92
      %s94 = sphi 0, %s92
      %s95 = sphi 0, %s94
      %s109 = sphi 0, %s95
      %s113 = sphi 0, %s113
      %s115 = sphi 0, %s113
      %s116 = sphi 0, %s115
      %s130 = sphi 0, %s116
      %s136 = sphi 0, %s138
      %s139 = sphi 0, %s136
      %s140 = sphi 0, %s139
      %s156 = sphi 0, %s140
      %s162 = sphi 0, %s164
      %s165 = sphi 0, %s162
      %s166 = sphi 0, %s165
      %s182 = sphi 0, %s166
    $region4: #{encoder_forward.3} parent=1 // loop_header_branch
      %19 = sbr.rel (%p17) target = $region8
    $region5: #{encoder_forward.3} parent=1 // loop_body
      %s21 = ssub.s32 %s16, 1
      %s22 = ssub.s32 %s16, 2
      %s23 = sadd.s32 %s16, 1
      %s24 = ssub.s32 %s16, %s23
      %p25 = scmp.eq.s32.totalorder %s24, 0
      %s27 = sadd.s32 %s26, 1
      %s28 = scalar_select %p25, %s26, %s27
      %p31 = pneg %p25
      %p32 = scmp.eq.s32.totalorder %s16, 1
      %p33 = por %p31, %p32
      %p34 = scmp.ne.s32.totalorder %s26, %s29
      %p35 = scmp.eq.s32.totalorder %s16, 0
      %p36 = por %p34, %p35
      %p37 = scmp.ne.s32.totalorder %s26, %s29
      %p38 = scmp.eq.s32.totalorder %s21, 1
      %p39 = por %p37, %p38
      %p40 = scmp.ne.s32.totalorder %s29, %s30
      %p41 = scmp.eq.s32.totalorder %s21, 0
      %p42 = por %p40, %p41
      %p43 = scmp.ne.s32.totalorder %s29, %s30
      %p44 = scmp.eq.s32.totalorder %s22, 1
      %p45 = por %p43, %p44
      %p47 = scmp.ne.s32.totalorder %s30, %s46
      %p48 = scmp.eq.s32.totalorder %s22, 0
      %p49 = por %p47, %p48
      %s51 = sadd.s32 %s50, 1
      %p54 = scmp.eq.s32.totalorder %s16, 1
      %p55 = scmp.ne.s32.totalorder %s50, %s52
      %p56 = scmp.eq.s32.totalorder %s16, 0
      %p57 = por %p55, %p56
      %p58 = scmp.ne.s32.totalorder %s50, %s52
      %p59 = scmp.eq.s32.totalorder %s21, 1
      %p60 = por %p58, %p59
      %p61 = scmp.ne.s32.totalorder %s52, %s53
      %p62 = scmp.eq.s32.totalorder %s21, 0
      %p63 = por %p61, %p62
      %p64 = scmp.ne.s32.totalorder %s52, %s53
      %p65 = scmp.eq.s32.totalorder %s22, 1
      %p66 = por %p64, %p65
      %p68 = scmp.ne.s32.totalorder %s53, %s67
      %p69 = scmp.eq.s32.totalorder %s22, 0
      %p70 = por %p68, %p69
      %s72 = sadd.s32 %s71, 1
      %p75 = scmp.eq.s32.totalorder %s16, 1
      %p76 = scmp.ne.s32.totalorder %s71, %s73
      %p77 = scmp.eq.s32.totalorder %s16, 0
      %p78 = por %p76, %p77
      %p79 = scmp.ne.s32.totalorder %s71, %s73
      %p80 = scmp.eq.s32.totalorder %s21, 1
      %p81 = por %p79, %p80
      %p82 = scmp.ne.s32.totalorder %s73, %s74
      %p83 = scmp.eq.s32.totalorder %s21, 0
      %p84 = por %p82, %p83
      %p85 = scmp.ne.s32.totalorder %s73, %s74
      %p86 = scmp.eq.s32.totalorder %s22, 1
      %p87 = por %p85, %p86
      %p89 = scmp.ne.s32.totalorder %s74, %s88
      %p90 = scmp.eq.s32.totalorder %s22, 0
      %p91 = por %p89, %p90
      %s93 = sadd.s32 %s92, 1
      %p96 = scmp.eq.s32.totalorder %s16, 1
      %p97 = scmp.ne.s32.totalorder %s92, %s94
      %p98 = scmp.eq.s32.totalorder %s16, 0
      %p99 = por %p97, %p98
      %p100 = scmp.ne.s32.totalorder %s92, %s94
      %p101 = scmp.eq.s32.totalorder %s21, 1
      %p102 = por %p100, %p101
      %p103 = scmp.ne.s32.totalorder %s94, %s95
      %p104 = scmp.eq.s32.totalorder %s21, 0
      %p105 = por %p103, %p104
      %p106 = scmp.ne.s32.totalorder %s94, %s95
      %p107 = scmp.eq.s32.totalorder %s22, 1
      %p108 = por %p106, %p107
      %p110 = scmp.ne.s32.totalorder %s95, %s109
      %p111 = scmp.eq.s32.totalorder %s22, 0
      %p112 = por %p110, %p111
      %s114 = sadd.s32 %s113, 1
      %p117 = scmp.eq.s32.totalorder %s16, 1
      %p118 = scmp.ne.s32.totalorder %s113, %s115
      %p119 = scmp.eq.s32.totalorder %s16, 0
      %p120 = por %p118, %p119
      %p121 = scmp.ne.s32.totalorder %s113, %s115
      %p122 = scmp.eq.s32.totalorder %s21, 1
      %p123 = por %p121, %p122
      %p124 = scmp.ne.s32.totalorder %s115, %s116
      %p125 = scmp.eq.s32.totalorder %s21, 0
      %p126 = por %p124, %p125
      %p127 = scmp.ne.s32.totalorder %s115, %s116
      %p128 = scmp.eq.s32.totalorder %s22, 1
      %p129 = por %p127, %p128
      %p131 = scmp.ne.s32.totalorder %s116, %s130
      %p132 = scmp.eq.s32.totalorder %s22, 0
      %p133 = por %p131, %p132
      %s134 = ssub.s32 %s16, %s23
      %p135 = scmp.eq.s32.totalorder %s134, 0
      %s137 = sadd.s32 %s136, 1
      %s138 = scalar_select %p135, %s136, %s137
      %p141 = pneg %p135
      %p142 = scmp.eq.s32.totalorder %s16, 1
      %p143 = por %p141, %p142
      %p144 = scmp.ne.s32.totalorder %s136, %s139
      %p145 = scmp.eq.s32.totalorder %s16, 0
      %p146 = por %p144, %p145
      %p147 = scmp.ne.s32.totalorder %s136, %s139
      %p148 = scmp.eq.s32.totalorder %s21, 1
      %p149 = por %p147, %p148
      %p150 = scmp.ne.s32.totalorder %s139, %s140
      %p151 = scmp.eq.s32.totalorder %s21, 0
      %p152 = por %p150, %p151
      %p153 = scmp.ne.s32.totalorder %s139, %s140
      %p154 = scmp.eq.s32.totalorder %s22, 1
      %p155 = por %p153, %p154
      %p157 = scmp.ne.s32.totalorder %s140, %s156
      %p158 = scmp.eq.s32.totalorder %s22, 0
      %p159 = por %p157, %p158
      %s160 = ssub.s32 %s16, %s23
      %p161 = scmp.eq.s32.totalorder %s160, 0
      %s163 = sadd.s32 %s162, 1
      %s164 = scalar_select %p161, %s162, %s163
      %p167 = pneg %p161
      %p168 = scmp.eq.s32.totalorder %s16, 1
      %p169 = por %p167, %p168
      %p170 = scmp.ne.s32.totalorder %s162, %s165
      %p171 = scmp.eq.s32.totalorder %s16, 0
      %p172 = por %p170, %p171
      %p173 = scmp.ne.s32.totalorder %s162, %s165
      %p174 = scmp.eq.s32.totalorder %s21, 1
      %p175 = por %p173, %p174
      %p176 = scmp.ne.s32.totalorder %s165, %s166
      %p177 = scmp.eq.s32.totalorder %s21, 0
      %p178 = por %p176, %p177
      %p179 = scmp.ne.s32.totalorder %s165, %s166
      %p180 = scmp.eq.s32.totalorder %s22, 1
      %p181 = por %p179, %p180
      %p183 = scmp.ne.s32.totalorder %s166, %s182
      %p184 = scmp.eq.s32.totalorder %s22, 0
      %p185 = por %p183, %p184
      %p186 = scmp.le.s32.totalorder 1, %s16
      %p187 = scmp.lt.s32.totalorder %s16, 3
      %p188 = pnand %p186, %p187
      %p189 = pneg %p188
      // Predicated region
      $region9: #{encoder_forward.3} parent=5 // pred_check
        _
      $region10: #{encoder_forward.3} parent=5 // pred_check_branch
        %191 = sbr.rel (%p188) target = $region12
      $region11: #{encoder_forward.3} parent=5 // pred_region
        %s192 = ssub.s32 %s16, 1
        // Predicated region
        $region13: #{encoder_forward.3} parent=11 // pred_check
          %p193 = pneg %p63
        $region14: #{encoder_forward.3} parent=11 // pred_check_branch
          %195 = sbr.rel (%p193) target = $region16
        $region15: #{encoder_forward.3} parent=11 // pred_region
          _
        $region16: #{encoder_forward.3} parent=11 // pred_fallthru
          _
        // Predicated region
        $region17: #{encoder_forward.3} parent=11 // pred_check
          %p196 = pneg %p84
        $region18: #{encoder_forward.3} parent=11 // pred_check_branch
          %198 = sbr.rel (%p196) target = $region20
        $region19: #{encoder_forward.3} parent=11 // pred_region
          _
        $region20: #{encoder_forward.3} parent=11 // pred_fallthru
          _
        // Predicated region
        $region21: #{encoder_forward.3} parent=11 // pred_check
          %p199 = pneg %p105
        $region22: #{encoder_forward.3} parent=11 // pred_check_branch
          %201 = sbr.rel (%p199) target = $region24
        $region23: #{encoder_forward.3} parent=11 // pred_region
          _
        $region24: #{encoder_forward.3} parent=11 // pred_fallthru
          _
        // Predicated region
        $region25: #{encoder_forward.3} parent=11 // pred_check
          %p202 = pneg %p126
        $region26: #{encoder_forward.3} parent=11 // pred_check_branch
          %204 = sbr.rel (%p202) target = $region28
        $region27: #{encoder_forward.3} parent=11 // pred_region
          _
        $region28: #{encoder_forward.3} parent=11 // pred_fallthru
          _
      $region12: #{encoder_forward.3} parent=5 // pred_fallthru
        _
      %p205 = scmp.lt.s32.totalorder %s16, 2
      // Predicated region
      $region29: #{encoder_forward.3} parent=5 // pred_check
        %p206 = pneg %p205
      $region30: #{encoder_forward.3} parent=5 // pred_check_branch
        %208 = sbr.rel (%p206) target = $region32
      $region31: #{encoder_forward.3} parent=5 // pred_region
        // Predicated region
        $region33: #{encoder_forward.3} parent=31 // pred_check
          %p209 = pneg %p36
        $region34: #{encoder_forward.3} parent=31 // pred_check_branch
          %211 = sbr.rel (%p209) target = $region36
        $region35: #{encoder_forward.3} parent=31 // pred_region
          %p212 = scmp.lt.s32.totalorder %s16, 1
          %s213 = scalar_select %p212, %s16, 1
          %s214 = smul.addr %s213, 5
          %s215 = smul.addr %s214, 8
          %s216 = scalar_lea.vmem %s0, %s215
        $region36: #{encoder_forward.3} parent=31 // pred_fallthru
          _
      $region32: #{encoder_forward.3} parent=5 // pred_fallthru
        _
      %p217 = scmp.le.s32.totalorder 1, %s16
      %p218 = scmp.lt.s32.totalorder %s16, 3
      %p219 = pnand %p217, %p218
      %p220 = pneg %p219
      // Predicated region
      $region37: #{encoder_forward.3} parent=5 // pred_check
        _
      $region38: #{encoder_forward.3} parent=5 // pred_check_branch
        %222 = sbr.rel (%p219) target = $region40
      $region39: #{encoder_forward.3} parent=5 // pred_region
        %s223 = ssub.s32 %s16, 1
        %p224 = scmp.lt.s32.totalorder %s21, 1
        %s225 = scalar_select %p224, %s21, 1
        %s226 = smul.addr %s225, 5
        %s227 = smul.addr %s226, 8
        %s228 = scalar_lea.vmem %s0, %s227
        %p229 = pneg %p42
        %p230 = pneg %p39
        %p231 = pneg %p63
        %p232 = pneg %p60
        %p233 = pneg %p84
        %p234 = pneg %p81
        %p235 = pneg %p105
        %p236 = pneg %p102
        %p237 = pneg %p126
        %p238 = pneg %p123
        %p239 = pneg %p152
        %p240 = pneg %p149
        %p241 = scmp.lt.s32.totalorder %s21, 1
        %s242 = scalar_select %p241, %s21, 1
        %s243 = smul.addr %s242, 8
        %s244 = scalar_lea.vmem %s5, %s243
        %p245 = pneg %p178
        %p246 = pneg %p175
        %s247 = sand.u32 %s165, 1
        %s248 = scalar_lea.sflag [#allocation5], %s247
        %s249 = sand.u32 %s165, 1
        %s250 = scalar_lea.vmem [#allocation4], %s249
        %p251 = scmp.lt.s32.totalorder %s21, 1
        %s252 = scalar_select %p251, %s21, 1
        %s253 = smul.addr %s252, 5
        %s254 = smul.addr %s253, 8
        %s255 = scalar_lea.vmem %s0, %s254
        %p256 = scmp.lt.s32.totalorder %s21, 1
        %s257 = scalar_select %p256, %s21, 1
        %s258 = smul.addr %s257, 8
        %s259 = scalar_lea.vmem %s5, %s258
        %v260 = vld [vmem:[%s2] sm:$0x1]
        %v262 = vperm.slane %v260, 0
        %v264 = vadd.f32 %v262, 0.0
        %265 = vst [vmem:[#allocation2] sm:$0xff] %v264
        %266 = vst [vmem:[#allocation2 + $0x8] sm:$0xff] %v264
        %267 = vst [vmem:[#allocation2 + $0x10] sm:$0x3f] %v264
        %v268 = vld [vmem:[#allocation2] sm:$0xff]
        %v269 = vld [vmem:[#allocation2 + $0x8] sm:$0xff]
        %v270 = vld [vmem:[#allocation2 + $0x10] sm:$0x3f]
        %v271 = vld [vmem:[%s255] sm:$0xff]
        %v272 = vld [vmem:[%s255 + $0x8] sm:$0xff]
        %v273 = vld [vmem:[%s255 + $0x10] sm:$0x3f]
        %v274 = vld [vmem:[%s1] sm:$0xff]
        %v275 = vld [vmem:[%s1 + $0x8] sm:$0xff]
        %v276 = vld [vmem:[%s1 + $0x10] sm:$0xff]
        %v277 = vld [vmem:[%s1 + $0x18] sm:$0xff]
        %v278 = vld [vmem:[%s1 + $0x20] sm:$0xff]
        %v279 = vld [vmem:[%s1 + $0x28] sm:$0xff]
        %v280 = vld [vmem:[%s1 + $0x30] sm:$0xff]
        %v281 = vld [vmem:[%s1 + $0x38] sm:$0xff]
        %v282 = vld [vmem:[%s1 + $0x40] sm:$0xff]
        %v283 = vld [vmem:[%s1 + $0x48] sm:$0xff]
        %v284 = vld [vmem:[%s1 + $0x50] sm:$0xff]
        %v285 = vld [vmem:[%s1 + $0x58] sm:$0xff]
        %v286 = vld [vmem:[%s1 + $0x60] sm:$0xff]
        %v287 = vld [vmem:[%s1 + $0x68] sm:$0xff]
        %v288 = vld [vmem:[%s1 + $0x70] sm:$0xff]
        %v289 = vld [vmem:[%s1 + $0x78] sm:$0xff]
        %290 = vmatpush.msra.mxu0 %v289
        %291 = vmatpush.msra.mxu0 %v288
        %292 = vmatpush.msra.mxu0 %v287
        %293 = vmatpush.msra.mxu0 %v286
        %294 = vmatpush.msra.mxu0 %v285
        %295 = vmatpush.msra.mxu0 %v284
        %296 = vmatpush.msra.mxu0 %v283
        %297 = vmatpush.msra.mxu0 %v282
        %298 = vmatpush.msra.mxu0 %v281
        %299 = vmatpush.msra.mxu0 %v280
        %300 = vmatpush.msra.mxu0 %v279
        %301 = vmatpush.msra.mxu0 %v278
        %302 = vmatpush.msra.mxu0 %v277
        %303 = vmatpush.msra.mxu0 %v276
        %304 = vmatpush.msra.mxu0 %v275
        %305 = vmatpush.msra.mxu0 %v274
        %306 = vmatmul.f32.gmra.mxu0 %v271
        %v307 = vpop.f32.mrf.mxu0
        %v308 = vadd.f32 0.0, %v307
        %309 = vmatmul.f32.gmra.mxu0 %v272
        %v310 = vpop.f32.mrf.mxu0
        %v311 = vadd.f32 0.0, %v310
        %312 = vmatmul.f32.gmra.mxu0 %v273
        %v313 = vpop.f32.mrf.mxu0
        %v314 = vadd.f32 0.0, %v313
        %315 = vdwg.mxu0
        %v316 = vadd.f32 %v268, %v308
        %v317 = vadd.f32 %v269, %v311
        %v318 = vadd.f32 %v270, %v314
        %319 = vst [vmem:[#allocation2] sm:$0xff] %v316
        %320 = vst [vmem:[#allocation2 + $0x8] sm:$0xff] %v317
        %321 = vst [vmem:[#allocation2 + $0x10] sm:$0x3f] %v318
        %v322 = vld [vmem:[#allocation2] sm:$0xff]
        %v323 = vld [vmem:[#allocation2 + $0x8] sm:$0xff]
        %v324 = vld [vmem:[#allocation2 + $0x10] sm:$0x3f]
        %v325 = vld [vmem:[%s255 + $0x1] sm:$0xff]
        %v326 = vld [vmem:[%s255 + $0x9] sm:$0xff]
        %v327 = vld [vmem:[%s255 + $0x11] sm:$0x3f]
        %s328 = scalar_lea.vmem %s1, 128
        %v329 = vld [vmem:[%s328] sm:$0xff]
        %v330 = vld [vmem:[%s328 + $0x8] sm:$0xff]
        %v331 = vld [vmem:[%s328 + $0x10] sm:$0xff]
        %v332 = vld [vmem:[%s328 + $0x18] sm:$0xff]
        %v333 = vld [vmem:[%s328 + $0x20] sm:$0xff]
        %v334 = vld [vmem:[%s328 + $0x28] sm:$0xff]
        %v335 = vld [vmem:[%s328 + $0x30] sm:$0xff]
        %v336 = vld [vmem:[%s328 + $0x38] sm:$0xff]
        %v337 = vld [vmem:[%s328 + $0x40] sm:$0xff]
        %v338 = vld [vmem:[%s328 + $0x48] sm:$0xff]
        %v339 = vld [vmem:[%s328 + $0x50] sm:$0xff]
        %v340 = vld [vmem:[%s328 + $0x58] sm:$0xff]
        %v341 = vld [vmem:[%s328 + $0x60] sm:$0xff]
        %v342 = vld [vmem:[%s328 + $0x68] sm:$0xff]
        %v343 = vld [vmem:[%s328 + $0x70] sm:$0xff]
        %v344 = vld [vmem:[%s328 + $0x78] sm:$0xff]
        %345 = vmatpush.msra.mxu0 %v344
        %346 = vmatpush.msra.mxu0 %v343
        %347 = vmatpush.msra.mxu0 %v342
        %348 = vmatpush.msra.mxu0 %v341
        %349 = vmatpush.msra.mxu0 %v340
        %350 = vmatpush.msra.mxu0 %v339
        %351 = vmatpush.msra.mxu0 %v338
        %352 = vmatpush.msra.mxu0 %v337
        %353 = vmatpush.msra.mxu0 %v336
        %354 = vmatpush.msra.mxu0 %v335
        %355 = vmatpush.msra.mxu0 %v334
        %356 = vmatpush.msra.mxu0 %v333
        %357 = vmatpush.msra.mxu0 %v332
        %358 = vmatpush.msra.mxu0 %v331
        %359 = vmatpush.msra.mxu0 %v330
        %360 = vmatpush.msra.mxu0 %v329
        %361 = vmatmul.f32.gmra.mxu0 %v325
        %v362 = vpop.f32.mrf.mxu0
        %v363 = vadd.f32 0.0, %v362
        %364 = vmatmul.f32.gmra.mxu0 %v326
        %v365 = vpop.f32.mrf.mxu0
        %v366 = vadd.f32 0.0, %v365
        %367 = vmatmul.f32.gmra.mxu0 %v327
        %v368 = vpop.f32.mrf.mxu0
        %v369 = vadd.f32 0.0, %v368
        %370 = vdwg.mxu0
        %v371 = vadd.f32 %v322, %v363
        %v372 = vadd.f32 %v323, %v366
        %v373 = vadd.f32 %v324, %v369
        %374 = vst [vmem:[#allocation2] sm:$0xff] %v371
        %375 = vst [vmem:[#allocation2 + $0x8] sm:$0xff] %v372
        %376 = vst [vmem:[#allocation2 + $0x10] sm:$0x3f] %v373
        %v377 = vld [vmem:[#allocation2] sm:$0xff]
        %v378 = vld [vmem:[#allocation2 + $0x8] sm:$0xff]
        %v379 = vld [vmem:[#allocation2 + $0x10] sm:$0x3f]
        %v380 = vld [vmem:[%s255 + $0x2] sm:$0xff]
        %v381 = vld [vmem:[%s255 + $0xa] sm:$0xff]
        %v382 = vld [vmem:[%s255 + $0x12] sm:$0x3f]
        %s383 = scalar_lea.vmem %s1, 256
        %v384 = vld [vmem:[%s383] sm:$0xff]
        %v385 = vld [vmem:[%s383 + $0x8] sm:$0xff]
        %v386 = vld [vmem:[%s383 + $0x10] sm:$0xff]
        %v387 = vld [vmem:[%s383 + $0x18] sm:$0xff]
        %v388 = vld [vmem:[%s383 + $0x20] sm:$0xff]
        %v389 = vld [vmem:[%s383 + $0x28] sm:$0xff]
        %v390 = vld [vmem:[%s383 + $0x30] sm:$0xff]
        %v391 = vld [vmem:[%s383 + $0x38] sm:$0xff]
        %v392 = vld [vmem:[%s383 + $0x40] sm:$0xff]
        %v393 = vld [vmem:[%s383 + $0x48] sm:$0xff]
        %v394 = vld [vmem:[%s383 + $0x50] sm:$0xff]
        %v395 = vld [vmem:[%s383 + $0x58] sm:$0xff]
        %v396 = vld [vmem:[%s383 + $0x60] sm:$0xff]
        %v397 = vld [vmem:[%s383 + $0x68] sm:$0xff]
        %v398 = vld [vmem:[%s383 + $0x70] sm:$0xff]
        %v399 = vld [vmem:[%s383 + $0x78] sm:$0xff]
        %400 = vmatpush.msra.mxu0 %v399
        %401 = vmatpush.msra.mxu0 %v398
        %402 = vmatpush.msra.mxu0 %v397
        %403 = vmatpush.msra.mxu0 %v396
        %404 = vmatpush.msra.mxu0 %v395
        %405 = vmatpush.msra.mxu0 %v394
        %406 = vmatpush.msra.mxu0 %v393
        %407 = vmatpush.msra.mxu0 %v392
        %408 = vmatpush.msra.mxu0 %v391
        %409 = vmatpush.msra.mxu0 %v390
        %410 = vmatpush.msra.mxu0 %v389
        %411 = vmatpush.msra.mxu0 %v388
        %412 = vmatpush.msra.mxu0 %v387
        %413 = vmatpush.msra.mxu0 %v386
        %414 = vmatpush.msra.mxu0 %v385
        %415 = vmatpush.msra.mxu0 %v384
        %416 = vmatmul.f32.gmra.mxu0 %v380
        %v417 = vpop.f32.mrf.mxu0
        %v418 = vadd.f32 0.0, %v417
        %419 = vmatmul.f32.gmra.mxu0 %v381
        %v420 = vpop.f32.mrf.mxu0
        %v421 = vadd.f32 0.0, %v420
        %422 = vmatmul.f32.gmra.mxu0 %v382
        %v423 = vpop.f32.mrf.mxu0
        %v424 = vadd.f32 0.0, %v423
        %425 = vdwg.mxu0
        %v426 = vadd.f32 %v377, %v418
        %v427 = vadd.f32 %v378, %v421
        %v428 = vadd.f32 %v379, %v424
        %429 = vst [vmem:[#allocation2] sm:$0xff] %v426
        %430 = vst [vmem:[#allocation2 + $0x8] sm:$0xff] %v427
        %431 = vst [vmem:[#allocation2 + $0x10] sm:$0x3f] %v428
        %v432 = vld [vmem:[#allocation2] sm:$0xff]
        %v433 = vld [vmem:[#allocation2 + $0x8] sm:$0xff]
        %v434 = vld [vmem:[#allocation2 + $0x10] sm:$0x3f]
        %v435 = vld [vmem:[%s255 + $0x6] sm:$0xff]
        %v436 = vld [vmem:[%s255 + $0xe] sm:$0xff]
        %v437 = vld [vmem:[%s255 + $0x16] sm:$0x3f]
        %s438 = scalar_lea.vmem %s1, 384
        %v439 = vld [vmem:[%s438] sm:$0xff]
        %v440 = vld [vmem:[%s438 + $0x8] sm:$0xff]
        %v441 = vld [vmem:[%s438 + $0x10] sm:$0xff]
        %v442 = vld [vmem:[%s438 + $0x18] sm:$0xff]
        %v443 = vld [vmem:[%s438 + $0x20] sm:$0xff]
        %v444 = vld [vmem:[%s438 + $0x28] sm:$0xff]
        %v445 = vld [vmem:[%s438 + $0x30] sm:$0xff]
        %v446 = vld [vmem:[%s438 + $0x38] sm:$0xff]
        %v447 = vld [vmem:[%s438 + $0x40] sm:$0xff]
        %v448 = vld [vmem:[%s438 + $0x48] sm:$0xff]
        %v449 = vld [vmem:[%s438 + $0x50] sm:$0xff]
        %v450 = vld [vmem:[%s438 + $0x58] sm:$0xff]
        %v451 = vld [vmem:[%s438 + $0x60] sm:$0xff]
        %v452 = vld [vmem:[%s438 + $0x68] sm:$0xff]
        %v453 = vld [vmem:[%s438 + $0x70] sm:$0xff]
        %v454 = vld [vmem:[%s438 + $0x78] sm:$0xff]
        %455 = vmatpush.msra.mxu0 %v454
        %456 = vmatpush.msra.mxu0 %v453
        %457 = vmatpush.msra.mxu0 %v452
        %458 = vmatpush.msra.mxu0 %v451
        %459 = vmatpush.msra.mxu0 %v450
        %460 = vmatpush.msra.mxu0 %v449
        %461 = vmatpush.msra.mxu0 %v448
        %462 = vmatpush.msra.mxu0 %v447
        %463 = vmatpush.msra.mxu0 %v446
        %464 = vmatpush.msra.mxu0 %v445
        %465 = vmatpush.msra.mxu0 %v444
        %466 = vmatpush.msra.mxu0 %v443
        %467 = vmatpush.msra.mxu0 %v442
        %468 = vmatpush.msra.mxu0 %v441
        %469 = vmatpush.msra.mxu0 %v440
        %470 = vmatpush.msra.mxu0 %v439
        %471 = vmatmul.f32.gmra.mxu0 %v435
        %v472 = vpop.f32.mrf.mxu0
        %v473 = vadd.f32 0.0, %v472
        %474 = vmatmul.f32.gmra.mxu0 %v436
        %v475 = vpop.f32.mrf.mxu0
        %v476 = vadd.f32 0.0, %v475
        %477 = vmatmul.f32.gmra.mxu0 %v437
        %v478 = vpop.f32.mrf.mxu0
        %v479 = vadd.f32 0.0, %v478
        %480 = vdwg.mxu0
        %v481 = vadd.f32 %v432, %v473
        %v482 = vadd.f32 %v433, %v476
        %v483 = vadd.f32 %v434, %v479
        %484 = vst [vmem:[#allocation2] sm:$0xff] %v481
        %485 = vst [vmem:[#allocation2 + $0x8] sm:$0xff] %v482
        %486 = vst [vmem:[#allocation2 + $0x10] sm:$0x3f] %v483
        %v487 = vld [vmem:[#allocation2] sm:$0xff]
        %v488 = vld [vmem:[#allocation2 + $0x8] sm:$0xff]
        %v489 = vld [vmem:[#allocation2 + $0x10] sm:$0x3f]
        %v490 = vld [vmem:[%s255 + $0x7] sm:$0xff]
        %v491 = vld [vmem:[%s255 + $0xf] sm:$0xff]
        %v492 = vld [vmem:[%s255 + $0x17] sm:$0x3f]
        %s493 = scalar_lea.vmem %s1, 512
        %v494 = vld [vmem:[%s493] sm:$0xff]
        %v495 = vld [vmem:[%s493 + $0x8] sm:$0xff]
        %v496 = vld [vmem:[%s493 + $0x10] sm:$0xff]
        %v497 = vld [vmem:[%s493 + $0x18] sm:$0xff]
        %v498 = vld [vmem:[%s493 + $0x20] sm:$0xff]
        %v499 = vld [vmem:[%s493 + $0x28] sm:$0xff]
        %v500 = vld [vmem:[%s493 + $0x30] sm:$0xff]
        %v501 = vld [vmem:[%s493 + $0x38] sm:$0xff]
        %v502 = vld [vmem:[%s493 + $0x40] sm:$0xff]
        %v503 = vld [vmem:[%s493 + $0x48] sm:$0xff]
        %v504 = vld [vmem:[%s493 + $0x50] sm:$0xff]
        %v505 = vld [vmem:[%s493 + $0x58] sm:$0xff]
        %v506 = vld [vmem:[%s493 + $0x60] sm:$0xff]
        %v507 = vld [vmem:[%s493 + $0x68] sm:$0xff]
        %v508 = vld [vmem:[%s493 + $0x70] sm:$0xff]
        %v509 = vld [vmem:[%s493 + $0x78] sm:$0xff]
        %510 = vmatpush.msra.mxu0 %v509
        %511 = vmatpush.msra.mxu0 %v508
        %512 = vmatpush.msra.mxu0 %v507
        %513 = vmatpush.msra.mxu0 %v506
        %514 = vmatpush.msra.mxu0 %v505
        %515 = vmatpush.msra.mxu0 %v504
        %516 = vmatpush.msra.mxu0 %v503
        %517 = vmatpush.msra.mxu0 %v502
        %518 = vmatpush.msra.mxu0 %v501
        %519 = vmatpush.msra.mxu0 %v500
        %520 = vmatpush.msra.mxu0 %v499
        %521 = vmatpush.msra.mxu0 %v498
        %522 = vmatpush.msra.mxu0 %v497
        %523 = vmatpush.msra.mxu0 %v496
        %524 = vmatpush.msra.mxu0 %v495
        %525 = vmatpush.msra.mxu0 %v494
        %526 = vmatmul.f32.gmra.mxu0 %v490
        %v527 = vpop.f32.mrf.mxu0
        %v528 = vadd.f32 0.0, %v527
        %529 = vmatmul.f32.gmra.mxu0 %v491
        %v530 = vpop.f32.mrf.mxu0
        %v531 = vadd.f32 0.0, %v530
        %532 = vmatmul.f32.gmra.mxu0 %v492
        %v533 = vpop.f32.mrf.mxu0
        %v534 = vadd.f32 0.0, %v533
        %535 = vdwg.mxu0
        %v536 = vadd.f32 %v487, %v528
        %v537 = vadd.f32 %v488, %v531
        %v538 = vadd.f32 %v489, %v534
        %539 = vst [vmem:[#allocation2] sm:$0xff] %v536
        %540 = vst [vmem:[#allocation2 + $0x8] sm:$0xff] %v537
        %541 = vst [vmem:[#allocation2 + $0x10] sm:$0x3f] %v538
        %v542 = vld [vmem:[#allocation2] sm:$0xff]
        %v543 = vld [vmem:[#allocation2 + $0x8] sm:$0xff]
        %v544 = vld [vmem:[#allocation2 + $0x10] sm:$0x3f]
        %v545 = vld [vmem:[%s255 + $0x8] sm:$0xff]
        %v546 = vld [vmem:[%s255 + $0x10] sm:$0xff]
        %v547 = vld [vmem:[%s255 + $0x18] sm:$0x3f]
        %s548 = scalar_lea.vmem %s1, 640
        %v549 = vld [vmem:[%s548] sm:$0xff]
        %v550 = vld [vmem:[%s548 + $0x8] sm:$0xff]
        %v551 = vld [vmem:[%s548 + $0x10] sm:$0xff]
        %v552 = vld [vmem:[%s548 + $0x18] sm:$0xff]
        %v553 = vld [vmem:[%s548 + $0x20] sm:$0xff]
        %v554 = vld [vmem:[%s548 + $0x28] sm:$0xff]
        %v555 = vld [vmem:[%s548 + $0x30] sm:$0xff]
        %v556 = vld [vmem:[%s548 + $0x38] sm:$0xff]
        %v557 = vld [vmem:[%s548 + $0x40] sm:$0xff]
        %v558 = vld [vmem:[%s548 + $0x48] sm:$0xff]
        %v559 = vld [vmem:[%s548 + $0x50] sm:$0xff]
        %v560 = vld [vmem:[%s548 + $0x58] sm:$0xff]
        %v561 = vld [vmem:[%s548 + $0x60] sm:$0xff]
        %v562 = vld [vmem:[%s548 + $0x68] sm:$0xff]
        %v563 = vld [vmem:[%s548 + $0x70] sm:$0xff]
        %v564 = vld [vmem:[%s548 + $0x78] sm:$0xff]
        %565 = vmatpush.msra.mxu0 %v564
        %566 = vmatpush.msra.mxu0 %v563
        %567 = vmatpush.msra.mxu0 %v562
        %568 = vmatpush.msra.mxu0 %v561
        %569 = vmatpush.msra.mxu0 %v560
        %570 = vmatpush.msra.mxu0 %v559
        %571 = vmatpush.msra.mxu0 %v558
        %572 = vmatpush.msra.mxu0 %v557
        %573 = vmatpush.msra.mxu0 %v556
        %574 = vmatpush.msra.mxu0 %v555
        %575 = vmatpush.msra.mxu0 %v554
        %576 = vmatpush.msra.mxu0 %v553
        %577 = vmatpush.msra.mxu0 %v552
        %578 = vmatpush.msra.mxu0 %v551
        %579 = vmatpush.msra.mxu0 %v550
        %580 = vmatpush.msra.mxu0 %v549
        %581 = vmatmul.f32.gmra.mxu0 %v545
        %v582 = vpop.f32.mrf.mxu0
        %v583 = vadd.f32 0.0, %v582
        %584 = vmatmul.f32.gmra.mxu0 %v546
        %v585 = vpop.f32.mrf.mxu0
        %v586 = vadd.f32 0.0, %v585
        %587 = vmatmul.f32.gmra.mxu0 %v547
        %v588 = vpop.f32.mrf.mxu0
        %v589 = vadd.f32 0.0, %v588
        %590 = vdwg.mxu0
        %v591 = vadd.f32 %v542, %v583
        %v592 = vadd.f32 %v543, %v586
        %v593 = vadd.f32 %v544, %v589
        %594 = vst [vmem:[#allocation2] sm:$0xff] %v591
        %595 = vst [vmem:[#allocation2 + $0x8] sm:$0xff] %v592
        %596 = vst [vmem:[#allocation2 + $0x10] sm:$0x3f] %v593
        %v597 = vld [vmem:[#allocation2] sm:$0xff]
        %v598 = vld [vmem:[#allocation2 + $0x8] sm:$0xff]
        %v599 = vld [vmem:[#allocation2 + $0x10] sm:$0x3f]
        %v600 = vld [vmem:[%s255 + $0xc] sm:$0xff]
        %v601 = vld [vmem:[%s255 + $0x14] sm:$0xff]
        %v602 = vld [vmem:[%s255 + $0x1c] sm:$0x3f]
        %s603 = scalar_lea.vmem %s1, 768
        %v604 = vld [vmem:[%s603] sm:$0xff]
        %v605 = vld [vmem:[%s603 + $0x8] sm:$0xff]
        %v606 = vld [vmem:[%s603 + $0x10] sm:$0xff]
        %v607 = vld [vmem:[%s603 + $0x18] sm:$0xff]
        %v608 = vld [vmem:[%s603 + $0x20] sm:$0xff]
        %v609 = vld [vmem:[%s603 + $0x28] sm:$0xff]
        %v610 = vld [vmem:[%s603 + $0x30] sm:$0xff]
        %v611 = vld [vmem:[%s603 + $0x38] sm:$0xff]
        %v612 = vld [vmem:[%s603 + $0x40] sm:$0xff]
        %v613 = vld [vmem:[%s603 + $0x48] sm:$0xff]
        %v614 = vld [vmem:[%s603 + $0x50] sm:$0xff]
        %v615 = vld [vmem:[%s603 + $0x58] sm:$0xff]
        %v616 = vld [vmem:[%s603 + $0x60] sm:$0xff]
        %v617 = vld [vmem:[%s603 + $0x68] sm:$0xff]
        %v618 = vld [vmem:[%s603 + $0x70] sm:$0xff]
        %v619 = vld [vmem:[%s603 + $0x78] sm:$0xff]
        %620 = vmatpush.msra.mxu0 %v619
        %621 = vmatpush.msra.mxu0 %v618
        %622 = vmatpush.msra.mxu0 %v617
        %623 = vmatpush.msra.mxu0 %v616
        %624 = vmatpush.msra.mxu0 %v615
        %625 = vmatpush.msra.mxu0 %v614
        %626 = vmatpush.msra.mxu0 %v613
        %627 = vmatpush.msra.mxu0 %v612
        %628 = vmatpush.msra.mxu0 %v611
        %629 = vmatpush.msra.mxu0 %v610
        %630 = vmatpush.msra.mxu0 %v609
        %631 = vmatpush.msra.mxu0 %v608
        %632 = vmatpush.msra.mxu0 %v607
        %633 = vmatpush.msra.mxu0 %v606
        %634 = vmatpush.msra.mxu0 %v605
        %635 = vmatpush.msra.mxu0 %v604
        %636 = vmatmul.f32.gmra.mxu0 %v600
        %v637 = vpop.f32.mrf.mxu0
        %v638 = vadd.f32 0.0, %v637
        %639 = vmatmul.f32.gmra.mxu0 %v601
        %v640 = vpop.f32.mrf.mxu0
        %v641 = vadd.f32 0.0, %v640
        %642 = vmatmul.f32.gmra.mxu0 %v602
        %v643 = vpop.f32.mrf.mxu0
        %v644 = vadd.f32 0.0, %v643
        %645 = vdwg.mxu0
        %v646 = vadd.f32 %v597, %v638
        %v647 = vadd.f32 %v598, %v641
        %v648 = vadd.f32 %v599, %v644
        %649 = vst [vmem:[#allocation2] sm:$0xff] %v646
        %650 = vst [vmem:[#allocation2 + $0x8] sm:$0xff] %v647
        %651 = vst [vmem:[#allocation2 + $0x10] sm:$0x3f] %v648
        %v652 = vld [vmem:[#allocation2] sm:$0xff]
        %v653 = vld [vmem:[#allocation2 + $0x8] sm:$0xff]
        %v654 = vld [vmem:[#allocation2 + $0x10] sm:$0x3f]
        %v655 = vld [vmem:[%s255 + $0xd] sm:$0xff]
        %v656 = vld [vmem:[%s255 + $0x15] sm:$0xff]
        %v657 = vld [vmem:[%s255 + $0x1d] sm:$0x3f]
        %s658 = scalar_lea.vmem %s1, 896
        %v659 = vld [vmem:[%s658] sm:$0xff]
        %v660 = vld [vmem:[%s658 + $0x8] sm:$0xff]
        %v661 = vld [vmem:[%s658 + $0x10] sm:$0xff]
        %v662 = vld [vmem:[%s658 + $0x18] sm:$0xff]
        %v663 = vld [vmem:[%s658 + $0x20] sm:$0xff]
        %v664 = vld [vmem:[%s658 + $0x28] sm:$0xff]
        %v665 = vld [vmem:[%s658 + $0x30] sm:$0xff]
        %v666 = vld [vmem:[%s658 + $0x38] sm:$0xff]
        %v667 = vld [vmem:[%s658 + $0x40] sm:$0xff]
        %v668 = vld [vmem:[%s658 + $0x48] sm:$0xff]
        %v669 = vld [vmem:[%s658 + $0x50] sm:$0xff]
        %v670 = vld [vmem:[%s658 + $0x58] sm:$0xff]
        %v671 = vld [vmem:[%s658 + $0x60] sm:$0xff]
        %v672 = vld [vmem:[%s658 + $0x68] sm:$0xff]
        %v673 = vld [vmem:[%s658 + $0x70] sm:$0xff]
        %v674 = vld [vmem:[%s658 + $0x78] sm:$0xff]
        %675 = vmatpush.msra.mxu0 %v674
        %676 = vmatpush.msra.mxu0 %v673
        %677 = vmatpush.msra.mxu0 %v672
        %678 = vmatpush.msra.mxu0 %v671
        %679 = vmatpush.msra.mxu0 %v670
        %680 = vmatpush.msra.mxu0 %v669
        %681 = vmatpush.msra.mxu0 %v668
        %682 = vmatpush.msra.mxu0 %v667
        %683 = vmatpush.msra.mxu0 %v666
        %684 = vmatpush.msra.mxu0 %v665
        %685 = vmatpush.msra.mxu0 %v664
        %686 = vmatpush.msra.mxu0 %v663
        %687 = vmatpush.msra.mxu0 %v662
        %688 = vmatpush.msra.mxu0 %v661
        %689 = vmatpush.msra.mxu0 %v660
        %690 = vmatpush.msra.mxu0 %v659
        %691 = vmatmul.f32.gmra.mxu0 %v655
        %v692 = vpop.f32.mrf.mxu0
        %v693 = vadd.f32 0.0, %v692
        %694 = vmatmul.f32.gmra.mxu0 %v656
        %v695 = vpop.f32.mrf.mxu0
        %v696 = vadd.f32 0.0, %v695
        %697 = vmatmul.f32.gmra.mxu0 %v657
        %v698 = vpop.f32.mrf.mxu0
        %v699 = vadd.f32 0.0, %v698
        %700 = vdwg.mxu0
        %v701 = vadd.f32 %v652, %v693
        %v702 = vadd.f32 %v653, %v696
        %v703 = vadd.f32 %v654, %v699
        %704 = vst [vmem:[#allocation2] sm:$0xff] %v701
        %705 = vst [vmem:[#allocation2 + $0x8] sm:$0xff] %v702
        %706 = vst [vmem:[#allocation2 + $0x10] sm:$0x3f] %v703
        %v707 = vld [vmem:[#allocation2] sm:$0xff]
        %v708 = vld [vmem:[#allocation2 + $0x8] sm:$0xff]
        %v709 = vld [vmem:[#allocation2 + $0x10] sm:$0x3f]
        %v710 = vld [vmem:[%s255 + $0xe] sm:$0xff]
        %v711 = vld [vmem:[%s255 + $0x16] sm:$0xff]
        %v712 = vld [vmem:[%s255 + $0x1e] sm:$0x3f]
        %s713 = scalar_lea.vmem %s1, 1024
        %v714 = vld [vmem:[%s713] sm:$0xff]
        %v715 = vld [vmem:[%s713 + $0x8] sm:$0xff]
        %v716 = vld [vmem:[%s713 + $0x10] sm:$0xff]
        %v717 = vld [vmem:[%s713 + $0x18] sm:$0xff]
        %v718 = vld [vmem:[%s713 + $0x20] sm:$0xff]
        %v719 = vld [vmem:[%s713 + $0x28] sm:$0xff]
        %v720 = vld [vmem:[%s713 + $0x30] sm:$0xff]
        %v721 = vld [vmem:[%s713 + $0x38] sm:$0xff]
        %v722 = vld [vmem:[%s713 + $0x40] sm:$0xff]
        %v723 = vld [vmem:[%s713 + $0x48] sm:$0xff]
        %v724 = vld [vmem:[%s713 + $0x50] sm:$0xff]
        %v725 = vld [vmem:[%s713 + $0x58] sm:$0xff]
        %v726 = vld [vmem:[%s713 + $0x60] sm:$0xff]
        %v727 = vld [vmem:[%s713 + $0x68] sm:$0xff]
        %v728 = vld [vmem:[%s713 + $0x70] sm:$0xff]
        %v729 = vld [vmem:[%s713 + $0x78] sm:$0xff]
        %730 = vmatpush.msra.mxu0 %v729
        %731 = vmatpush.msra.mxu0 %v728
        %732 = vmatpush.msra.mxu0 %v727
        %733 = vmatpush.msra.mxu0 %v726
        %734 = vmatpush.msra.mxu0 %v725
        %735 = vmatpush.msra.mxu0 %v724
        %736 = vmatpush.msra.mxu0 %v723
        %737 = vmatpush.msra.mxu0 %v722
        %738 = vmatpush.msra.mxu0 %v721
        %739 = vmatpush.msra.mxu0 %v720
        %740 = vmatpush.msra.mxu0 %v719
        %741 = vmatpush.msra.mxu0 %v718
        %742 = vmatpush.msra.mxu0 %v717
        %743 = vmatpush.msra.mxu0 %v716
        %744 = vmatpush.msra.mxu0 %v715
        %745 = vmatpush.msra.mxu0 %v714
        %746 = vmatmul.f32.gmra.mxu0 %v710
        %v747 = vpop.f32.mrf.mxu0
        %v748 = vadd.f32 0.0, %v747
        %749 = vmatmul.f32.gmra.mxu0 %v711
        %v750 = vpop.f32.mrf.mxu0
        %v751 = vadd.f32 0.0, %v750
        %752 = vmatmul.f32.gmra.mxu0 %v712
        %v753 = vpop.f32.mrf.mxu0
        %v754 = vadd.f32 0.0, %v753
        %755 = vdwg.mxu0
        %v756 = vadd.f32 %v707, %v748
        %v757 = vadd.f32 %v708, %v751
        %v758 = vadd.f32 %v709, %v754
        %759 = vst [vmem:[#allocation2] sm:$0xff] %v756
        %760 = vst [vmem:[#allocation2 + $0x8] sm:$0xff] %v757
        %761 = vst [vmem:[#allocation2 + $0x10] sm:$0x3f] %v758
        %v762 = vld [vmem:[#allocation2] sm:$0xff]
        %v763 = vld [vmem:[#allocation2 + $0x8] sm:$0xff]
        %v764 = vld [vmem:[#allocation2 + $0x10] sm:$0x3f]
        %v765 = vmax.f32 %v762, 0.0
        %v766 = vmax.f32 %v763, 0.0
        %v767 = vmax.f32 %v764, 0.0
        %768 = vst [vmem:[#allocation2] sm:$0xff] %v765
        %769 = vst [vmem:[#allocation2 + $0x8] sm:$0xff] %v766
        %770 = vst [vmem:[#allocation2 + $0x10] sm:$0x3f] %v767
        %v771 = vld [vmem:[%s4] sm:$0x1]
        %v773 = vperm.slane %v771, 0
        %v775 = vadd.f32 %v773, 0.0
        %776 = vst [vmem:[#allocation3] sm:$0xff] %v775
        %v777 = vld [vmem:[#allocation3] sm:$0xff]
        %v778 = vld [vmem:[#allocation2] sm:$0xff]
        %v779 = vld [vmem:[%s3] sm:$0xff]
        %v780 = vld [vmem:[%s3 + $0x8] sm:$0xff]
        %v781 = vld [vmem:[%s3 + $0x10] sm:$0xff]
        %v782 = vld [vmem:[%s3 + $0x18] sm:$0xff]
        %v783 = vld [vmem:[%s3 + $0x20] sm:$0xff]
        %v784 = vld [vmem:[%s3 + $0x28] sm:$0xff]
        %v785 = vld [vmem:[%s3 + $0x30] sm:$0xff]
        %v786 = vld [vmem:[%s3 + $0x38] sm:$0xff]
        %v787 = vld [vmem:[%s3 + $0x40] sm:$0xff]
        %v788 = vld [vmem:[%s3 + $0x48] sm:$0xff]
        %v789 = vld [vmem:[%s3 + $0x50] sm:$0xff]
        %v790 = vld [vmem:[%s3 + $0x58] sm:$0xff]
        %v791 = vld [vmem:[%s3 + $0x60] sm:$0xff]
        %v792 = vld [vmem:[%s3 + $0x68] sm:$0xff]
        %v793 = vld [vmem:[%s3 + $0x70] sm:$0xff]
        %v794 = vld [vmem:[%s3 + $0x78] sm:$0xff]
        %795 = vmatpush.msra.mxu0 %v794
        %796 = vmatpush.msra.mxu0 %v793
        %797 = vmatpush.msra.mxu0 %v792
        %798 = vmatpush.msra.mxu0 %v791
        %799 = vmatpush.msra.mxu0 %v790
        %800 = vmatpush.msra.mxu0 %v789
        %801 = vmatpush.msra.mxu0 %v788
        %802 = vmatpush.msra.mxu0 %v787
        %803 = vmatpush.msra.mxu0 %v786
        %804 = vmatpush.msra.mxu0 %v785
        %805 = vmatpush.msra.mxu0 %v784
        %806 = vmatpush.msra.mxu0 %v783
        %807 = vmatpush.msra.mxu0 %v782
        %808 = vmatpush.msra.mxu0 %v781
        %809 = vmatpush.msra.mxu0 %v780
        %810 = vmatpush.msra.mxu0 %v779
        %811 = vmatmul.f32.gmra.mxu0 %v778
        %v812 = vpop.f32.mrf.mxu0
        %v813 = vadd.f32 0.0, %v812
        %814 = vdwg.mxu0
        %v815 = vadd.f32 %v777, %v813
        %816 = vst [vmem:[#allocation3] sm:$0xff] %v815
        %v817 = vld [vmem:[#allocation3] sm:$0xff]
        %v818 = vld [vmem:[#allocation2 + $0x1] sm:$0xff]
        %s819 = scalar_lea.vmem %s3, 128
        %v820 = vld [vmem:[%s819] sm:$0xff]
        %v821 = vld [vmem:[%s819 + $0x8] sm:$0xff]
        %v822 = vld [vmem:[%s819 + $0x10] sm:$0xff]
        %v823 = vld [vmem:[%s819 + $0x18] sm:$0xff]
        %v824 = vld [vmem:[%s819 + $0x20] sm:$0xff]
        %v825 = vld [vmem:[%s819 + $0x28] sm:$0xff]
        %v826 = vld [vmem:[%s819 + $0x30] sm:$0xff]
        %v827 = vld [vmem:[%s819 + $0x38] sm:$0xff]
        %v828 = vld [vmem:[%s819 + $0x40] sm:$0xff]
        %v829 = vld [vmem:[%s819 + $0x48] sm:$0xff]
        %v830 = vld [vmem:[%s819 + $0x50] sm:$0xff]
        %v831 = vld [vmem:[%s819 + $0x58] sm:$0xff]
        %v832 = vld [vmem:[%s819 + $0x60] sm:$0xff]
        %v833 = vld [vmem:[%s819 + $0x68] sm:$0xff]
        %v834 = vld [vmem:[%s819 + $0x70] sm:$0xff]
        %v835 = vld [vmem:[%s819 + $0x78] sm:$0xff]
        %836 = vmatpush.msra.mxu0 %v835
        %837 = vmatpush.msra.mxu0 %v834
        %838 = vmatpush.msra.mxu0 %v833
        %839 = vmatpush.msra.mxu0 %v832
        %840 = vmatpush.msra.mxu0 %v831
        %841 = vmatpush.msra.mxu0 %v830
        %842 = vmatpush.msra.mxu0 %v829
        %843 = vmatpush.msra.mxu0 %v828
        %844 = vmatpush.msra.mxu0 %v827
        %845 = vmatpush.msra.mxu0 %v826
        %846 = vmatpush.msra.mxu0 %v825
        %847 = vmatpush.msra.mxu0 %v824
        %848 = vmatpush.msra.mxu0 %v823
        %849 = vmatpush.msra.mxu0 %v822
        %850 = vmatpush.msra.mxu0 %v821
        %851 = vmatpush.msra.mxu0 %v820
        %852 = vmatmul.f32.gmra.mxu0 %v818
        %v853 = vpop.f32.mrf.mxu0
        %v854 = vadd.f32 0.0, %v853
        %855 = vdwg.mxu0
        %v856 = vadd.f32 %v817, %v854
        %857 = vst [vmem:[#allocation3] sm:$0xff] %v856
        %v858 = vld [vmem:[#allocation3] sm:$0xff]
        %v859 = vld [vmem:[#allocation2 + $0x2] sm:$0xff]
        %s860 = scalar_lea.vmem %s3, 256
        %v861 = vld [vmem:[%s860] sm:$0xff]
        %v862 = vld [vmem:[%s860 + $0x8] sm:$0xff]
        %v863 = vld [vmem:[%s860 + $0x10] sm:$0xff]
        %v864 = vld [vmem:[%s860 + $0x18] sm:$0xff]
        %v865 = vld [vmem:[%s860 + $0x20] sm:$0xff]
        %v866 = vld [vmem:[%s860 + $0x28] sm:$0xff]
        %v867 = vld [vmem:[%s860 + $0x30] sm:$0xff]
        %v868 = vld [vmem:[%s860 + $0x38] sm:$0xff]
        %v869 = vld [vmem:[%s860 + $0x40] sm:$0xff]
        %v870 = vld [vmem:[%s860 + $0x48] sm:$0xff]
        %v871 = vld [vmem:[%s860 + $0x50] sm:$0xff]
        %v872 = vld [vmem:[%s860 + $0x58] sm:$0xff]
        %v873 = vld [vmem:[%s860 + $0x60] sm:$0xff]
        %v874 = vld [vmem:[%s860 + $0x68] sm:$0xff]
        %v875 = vld [vmem:[%s860 + $0x70] sm:$0xff]
        %v876 = vld [vmem:[%s860 + $0x78] sm:$0xff]
        %877 = vmatpush.msra.mxu0 %v876
        %878 = vmatpush.msra.mxu0 %v875
        %879 = vmatpush.msra.mxu0 %v874
        %880 = vmatpush.msra.mxu0 %v873
        %881 = vmatpush.msra.mxu0 %v872
        %882 = vmatpush.msra.mxu0 %v871
        %883 = vmatpush.msra.mxu0 %v870
        %884 = vmatpush.msra.mxu0 %v869
        %885 = vmatpush.msra.mxu0 %v868
        %886 = vmatpush.msra.mxu0 %v867
        %887 = vmatpush.msra.mxu0 %v866
        %888 = vmatpush.msra.mxu0 %v865
        %889 = vmatpush.msra.mxu0 %v864
        %890 = vmatpush.msra.mxu0 %v863
        %891 = vmatpush.msra.mxu0 %v862
        %892 = vmatpush.msra.mxu0 %v861
        %893 = vmatmul.f32.gmra.mxu0 %v859
        %v894 = vpop.f32.mrf.mxu0
        %v895 = vadd.f32 0.0, %v894
        %896 = vdwg.mxu0
        %v897 = vadd.f32 %v858, %v895
        %898 = vst [vmem:[#allocation3] sm:$0xff] %v897
        %v899 = vld [vmem:[#allocation3] sm:$0xff]
        %v900 = vld [vmem:[#allocation2 + $0x6] sm:$0xff]
        %s901 = scalar_lea.vmem %s3, 384
        %v902 = vld [vmem:[%s901] sm:$0xff]
        %v903 = vld [vmem:[%s901 + $0x8] sm:$0xff]
        %v904 = vld [vmem:[%s901 + $0x10] sm:$0xff]
        %v905 = vld [vmem:[%s901 + $0x18] sm:$0xff]
        %v906 = vld [vmem:[%s901 + $0x20] sm:$0xff]
        %v907 = vld [vmem:[%s901 + $0x28] sm:$0xff]
        %v908 = vld [vmem:[%s901 + $0x30] sm:$0xff]
        %v909 = vld [vmem:[%s901 + $0x38] sm:$0xff]
        %v910 = vld [vmem:[%s901 + $0x40] sm:$0xff]
        %v911 = vld [vmem:[%s901 + $0x48] sm:$0xff]
        %v912 = vld [vmem:[%s901 + $0x50] sm:$0xff]
        %v913 = vld [vmem:[%s901 + $0x58] sm:$0xff]
        %v914 = vld [vmem:[%s901 + $0x60] sm:$0xff]
        %v915 = vld [vmem:[%s901 + $0x68] sm:$0xff]
        %v916 = vld [vmem:[%s901 + $0x70] sm:$0xff]
        %v917 = vld [vmem:[%s901 + $0x78] sm:$0xff]
        %918 = vmatpush.msra.mxu0 %v917
        %919 = vmatpush.msra.mxu0 %v916
        %920 = vmatpush.msra.mxu0 %v915
        %921 = vmatpush.msra.mxu0 %v914
        %922 = vmatpush.msra.mxu0 %v913
        %923 = vmatpush.msra.mxu0 %v912
        %924 = vmatpush.msra.mxu0 %v911
        %925 = vmatpush.msra.mxu0 %v910
        %926 = vmatpush.msra.mxu0 %v909
        %927 = vmatpush.msra.mxu0 %v908
        %928 = vmatpush.msra.mxu0 %v907
        %929 = vmatpush.msra.mxu0 %v906
        %930 = vmatpush.msra.mxu0 %v905
        %931 = vmatpush.msra.mxu0 %v904
        %932 = vmatpush.msra.mxu0 %v903
        %933 = vmatpush.msra.mxu0 %v902
        %934 = vmatmul.f32.gmra.mxu0 %v900
        %v935 = vpop.f32.mrf.mxu0
        %v936 = vadd.f32 0.0, %v935
        %937 = vdwg.mxu0
        %v938 = vadd.f32 %v899, %v936
        %939 = vst [vmem:[#allocation3] sm:$0xff] %v938
        %v940 = vld [vmem:[#allocation3] sm:$0xff]
        %v941 = vld [vmem:[#allocation2 + $0x7] sm:$0xff]
        %s942 = scalar_lea.vmem %s3, 512
        %v943 = vld [vmem:[%s942] sm:$0xff]
        %v944 = vld [vmem:[%s942 + $0x8] sm:$0xff]
        %v945 = vld [vmem:[%s942 + $0x10] sm:$0xff]
        %v946 = vld [vmem:[%s942 + $0x18] sm:$0xff]
        %v947 = vld [vmem:[%s942 + $0x20] sm:$0xff]
        %v948 = vld [vmem:[%s942 + $0x28] sm:$0xff]
        %v949 = vld [vmem:[%s942 + $0x30] sm:$0xff]
        %v950 = vld [vmem:[%s942 + $0x38] sm:$0xff]
        %v951 = vld [vmem:[%s942 + $0x40] sm:$0xff]
        %v952 = vld [vmem:[%s942 + $0x48] sm:$0xff]
        %v953 = vld [vmem:[%s942 + $0x50] sm:$0xff]
        %v954 = vld [vmem:[%s942 + $0x58] sm:$0xff]
        %v955 = vld [vmem:[%s942 + $0x60] sm:$0xff]
        %v956 = vld [vmem:[%s942 + $0x68] sm:$0xff]
        %v957 = vld [vmem:[%s942 + $0x70] sm:$0xff]
        %v958 = vld [vmem:[%s942 + $0x78] sm:$0xff]
        %959 = vmatpush.msra.mxu0 %v958
        %960 = vmatpush.msra.mxu0 %v957
        %961 = vmatpush.msra.mxu0 %v956
        %962 = vmatpush.msra.mxu0 %v955
        %963 = vmatpush.msra.mxu0 %v954
        %964 = vmatpush.msra.mxu0 %v953
        %965 = vmatpush.msra.mxu0 %v952
        %966 = vmatpush.msra.mxu0 %v951
        %967 = vmatpush.msra.mxu0 %v950
        %968 = vmatpush.msra.mxu0 %v949
        %969 = vmatpush.msra.mxu0 %v948
        %970 = vmatpush.msra.mxu0 %v947
        %971 = vmatpush.msra.mxu0 %v946
        %972 = vmatpush.msra.mxu0 %v945
        %973 = vmatpush.msra.mxu0 %v944
        %974 = vmatpush.msra.mxu0 %v943
        %975 = vmatmul.f32.gmra.mxu0 %v941
        %v976 = vpop.f32.mrf.mxu0
        %v977 = vadd.f32 0.0, %v976
        %978 = vdwg.mxu0
        %v979 = vadd.f32 %v940, %v977
        %980 = vst [vmem:[#allocation3] sm:$0xff] %v979
        %v981 = vld [vmem:[#allocation3] sm:$0xff]
        %v982 = vld [vmem:[#allocation2 + $0x8] sm:$0xff]
        %s983 = scalar_lea.vmem %s3, 640
        %v984 = vld [vmem:[%s983] sm:$0xff]
        %v985 = vld [vmem:[%s983 + $0x8] sm:$0xff]
        %v986 = vld [vmem:[%s983 + $0x10] sm:$0xff]
        %v987 = vld [vmem:[%s983 + $0x18] sm:$0xff]
        %v988 = vld [vmem:[%s983 + $0x20] sm:$0xff]
        %v989 = vld [vmem:[%s983 + $0x28] sm:$0xff]
        %v990 = vld [vmem:[%s983 + $0x30] sm:$0xff]
        %v991 = vld [vmem:[%s983 + $0x38] sm:$0xff]
        %v992 = vld [vmem:[%s983 + $0x40] sm:$0xff]
        %v993 = vld [vmem:[%s983 + $0x48] sm:$0xff]
        %v994 = vld [vmem:[%s983 + $0x50] sm:$0xff]
        %v995 = vld [vmem:[%s983 + $0x58] sm:$0xff]
        %v996 = vld [vmem:[%s983 + $0x60] sm:$0xff]
        %v997 = vld [vmem:[%s983 + $0x68] sm:$0xff]
        %v998 = vld [vmem:[%s983 + $0x70] sm:$0xff]
        %v999 = vld [vmem:[%s983 + $0x78] sm:$0xff]
        %1000 = vmatpush.msra.mxu0 %v999
        %1001 = vmatpush.msra.mxu0 %v998
        %1002 = vmatpush.msra.mxu0 %v997
        %1003 = vmatpush.msra.mxu0 %v996
        %1004 = vmatpush.msra.mxu0 %v995
        %1005 = vmatpush.msra.mxu0 %v994
        %1006 = vmatpush.msra.mxu0 %v993
        %1007 = vmatpush.msra.mxu0 %v992
        %1008 = vmatpush.msra.mxu0 %v991
        %1009 = vmatpush.msra.mxu0 %v990
        %1010 = vmatpush.msra.mxu0 %v989
        %1011 = vmatpush.msra.mxu0 %v988
        %1012 = vmatpush.msra.mxu0 %v987
        %1013 = vmatpush.msra.mxu0 %v986
        %1014 = vmatpush.msra.mxu0 %v985
        %1015 = vmatpush.msra.mxu0 %v984
        %1016 = vmatmul.f32.gmra.mxu0 %v982
        %v1017 = vpop.f32.mrf.mxu0
        %v1018 = vadd.f32 0.0, %v1017
        %1019 = vdwg.mxu0
        %v1020 = vadd.f32 %v981, %v1018
        %1021 = vst [vmem:[#allocation3] sm:$0xff] %v1020
        %v1022 = vld [vmem:[#allocation3] sm:$0xff]
        %v1023 = vld [vmem:[#allocation2 + $0xc] sm:$0xff]
        %s1024 = scalar_lea.vmem %s3, 768
        %v1025 = vld [vmem:[%s1024] sm:$0xff]
        %v1026 = vld [vmem:[%s1024 + $0x8] sm:$0xff]
        %v1027 = vld [vmem:[%s1024 + $0x10] sm:$0xff]
        %v1028 = vld [vmem:[%s1024 + $0x18] sm:$0xff]
        %v1029 = vld [vmem:[%s1024 + $0x20] sm:$0xff]
        %v1030 = vld [vmem:[%s1024 + $0x28] sm:$0xff]
        %v1031 = vld [vmem:[%s1024 + $0x30] sm:$0xff]
        %v1032 = vld [vmem:[%s1024 + $0x38] sm:$0xff]
        %v1033 = vld [vmem:[%s1024 + $0x40] sm:$0xff]
        %v1034 = vld [vmem:[%s1024 + $0x48] sm:$0xff]
        %v1035 = vld [vmem:[%s1024 + $0x50] sm:$0xff]
        %v1036 = vld [vmem:[%s1024 + $0x58] sm:$0xff]
        %v1037 = vld [vmem:[%s1024 + $0x60] sm:$0xff]
        %v1038 = vld [vmem:[%s1024 + $0x68] sm:$0xff]
        %v1039 = vld [vmem:[%s1024 + $0x70] sm:$0xff]
        %v1040 = vld [vmem:[%s1024 + $0x78] sm:$0xff]
        %1041 = vmatpush.msra.mxu0 %v1040
        %1042 = vmatpush.msra.mxu0 %v1039
        %1043 = vmatpush.msra.mxu0 %v1038
        %1044 = vmatpush.msra.mxu0 %v1037
        %1045 = vmatpush.msra.mxu0 %v1036
        %1046 = vmatpush.msra.mxu0 %v1035
        %1047 = vmatpush.msra.mxu0 %v1034
        %1048 = vmatpush.msra.mxu0 %v1033
        %1049 = vmatpush.msra.mxu0 %v1032
        %1050 = vmatpush.msra.mxu0 %v1031
        %1051 = vmatpush.msra.mxu0 %v1030
        %1052 = vmatpush.msra.mxu0 %v1029
        %1053 = vmatpush.msra.mxu0 %v1028
        %1054 = vmatpush.msra.mxu0 %v1027
        %1055 = vmatpush.msra.mxu0 %v1026
        %1056 = vmatpush.msra.mxu0 %v1025
        %1057 = vmatmul.f32.gmra.mxu0 %v1023
        %v1058 = vpop.f32.mrf.mxu0
        %v1059 = vadd.f32 0.0, %v1058
        %1060 = vdwg.mxu0
        %v1061 = vadd.f32 %v1022, %v1059
        %1062 = vst [vmem:[#allocation3] sm:$0xff] %v1061
        %v1063 = vld [vmem:[#allocation3] sm:$0xff]
        %v1064 = vld [vmem:[#allocation2 + $0xd] sm:$0xff]
        %s1065 = scalar_lea.vmem %s3, 896
        %v1066 = vld [vmem:[%s1065] sm:$0xff]
        %v1067 = vld [vmem:[%s1065 + $0x8] sm:$0xff]
        %v1068 = vld [vmem:[%s1065 + $0x10] sm:$0xff]
        %v1069 = vld [vmem:[%s1065 + $0x18] sm:$0xff]
        %v1070 = vld [vmem:[%s1065 + $0x20] sm:$0xff]
        %v1071 = vld [vmem:[%s1065 + $0x28] sm:$0xff]
        %v1072 = vld [vmem:[%s1065 + $0x30] sm:$0xff]
        %v1073 = vld [vmem:[%s1065 + $0x38] sm:$0xff]
        %v1074 = vld [vmem:[%s1065 + $0x40] sm:$0xff]
        %v1075 = vld [vmem:[%s1065 + $0x48] sm:$0xff]
        %v1076 = vld [vmem:[%s1065 + $0x50] sm:$0xff]
        %v1077 = vld [vmem:[%s1065 + $0x58] sm:$0xff]
        %v1078 = vld [vmem:[%s1065 + $0x60] sm:$0xff]
        %v1079 = vld [vmem:[%s1065 + $0x68] sm:$0xff]
        %v1080 = vld [vmem:[%s1065 + $0x70] sm:$0xff]
        %v1081 = vld [vmem:[%s1065 + $0x78] sm:$0xff]
        %1082 = vmatpush.msra.mxu0 %v1081
        %1083 = vmatpush.msra.mxu0 %v1080
        %1084 = vmatpush.msra.mxu0 %v1079
        %1085 = vmatpush.msra.mxu0 %v1078
        %1086 = vmatpush.msra.mxu0 %v1077
        %1087 = vmatpush.msra.mxu0 %v1076
        %1088 = vmatpush.msra.mxu0 %v1075
        %1089 = vmatpush.msra.mxu0 %v1074
        %1090 = vmatpush.msra.mxu0 %v1073
        %1091 = vmatpush.msra.mxu0 %v1072
        %1092 = vmatpush.msra.mxu0 %v1071
        %1093 = vmatpush.msra.mxu0 %v1070
        %1094 = vmatpush.msra.mxu0 %v1069
        %1095 = vmatpush.msra.mxu0 %v1068
        %1096 = vmatpush.msra.mxu0 %v1067
        %1097 = vmatpush.msra.mxu0 %v1066
        %1098 = vmatmul.f32.gmra.mxu0 %v1064
        %v1099 = vpop.f32.mrf.mxu0
        %v1100 = vadd.f32 0.0, %v1099
        %1101 = vdwg.mxu0
        %v1102 = vadd.f32 %v1063, %v1100
        %1103 = vst [vmem:[#allocation3] sm:$0xff] %v1102
        %v1104 = vld [vmem:[#allocation3] sm:$0xff]
        %v1105 = vld [vmem:[#allocation2 + $0xe] sm:$0xff]
        %s1106 = scalar_lea.vmem %s3, 1024
        %v1107 = vld [vmem:[%s1106] sm:$0xff]
        %v1108 = vld [vmem:[%s1106 + $0x8] sm:$0xff]
        %v1109 = vld [vmem:[%s1106 + $0x10] sm:$0xff]
        %v1110 = vld [vmem:[%s1106 + $0x18] sm:$0xff]
        %v1111 = vld [vmem:[%s1106 + $0x20] sm:$0xff]
        %v1112 = vld [vmem:[%s1106 + $0x28] sm:$0xff]
        %v1113 = vld [vmem:[%s1106 + $0x30] sm:$0xff]
        %v1114 = vld [vmem:[%s1106 + $0x38] sm:$0xff]
        %v1115 = vld [vmem:[%s1106 + $0x40] sm:$0xff]
        %v1116 = vld [vmem:[%s1106 + $0x48] sm:$0xff]
        %v1117 = vld [vmem:[%s1106 + $0x50] sm:$0xff]
        %v1118 = vld [vmem:[%s1106 + $0x58] sm:$0xff]
        %v1119 = vld [vmem:[%s1106 + $0x60] sm:$0xff]
        %v1120 = vld [vmem:[%s1106 + $0x68] sm:$0xff]
        %v1121 = vld [vmem:[%s1106 + $0x70] sm:$0xff]
        %v1122 = vld [vmem:[%s1106 + $0x78] sm:$0xff]
        %1123 = vmatpush.msra.mxu0 %v1122
        %1124 = vmatpush.msra.mxu0 %v1121
        %1125 = vmatpush.msra.mxu0 %v1120
        %1126 = vmatpush.msra.mxu0 %v1119
        %1127 = vmatpush.msra.mxu0 %v1118
        %1128 = vmatpush.msra.mxu0 %v1117
        %1129 = vmatpush.msra.mxu0 %v1116
        %1130 = vmatpush.msra.mxu0 %v1115
        %1131 = vmatpush.msra.mxu0 %v1114
        %1132 = vmatpush.msra.mxu0 %v1113
        %1133 = vmatpush.msra.mxu0 %v1112
        %1134 = vmatpush.msra.mxu0 %v1111
        %1135 = vmatpush.msra.mxu0 %v1110
        %1136 = vmatpush.msra.mxu0 %v1109
        %1137 = vmatpush.msra.mxu0 %v1108
        %1138 = vmatpush.msra.mxu0 %v1107
        %1139 = vmatmul.f32.gmra.mxu0 %v1105
        %v1140 = vpop.f32.mrf.mxu0
        %v1141 = vadd.f32 0.0, %v1140
        %1142 = vdwg.mxu0
        %v1143 = vadd.f32 %v1104, %v1141
        %1144 = vst [vmem:[#allocation3] sm:$0xff] %v1143
        %v1145 = vld [vmem:[#allocation3] sm:$0xff]
        %1146 = vst [vmem:[%s259] sm:$0xff] %v1145
        %v1147 = vld [vmem:[#allocation3] sm:$0x1]
        %v1148 = vld [vmem:[#allocation3 + $0x1] sm:$0x1]
        %v1149 = vmax.f32 %v1147, %v1148
        %v1150 = vld [vmem:[#allocation3 + $0x6] sm:$0x1]
        %v1151 = vld [vmem:[#allocation3 + $0x7] sm:$0x1]
        %v1152 = vmax.f32 %v1150, %v1151
        %v1153 = vmax.f32 %v1149, %v1152
        %1154 = vst [vmem:[%s250] sm:$0x1] %v1153
        %p1155 = scmp.lt.s32.totalorder %s21, 1
        %s1156 = scalar_select %p1155, %s21, 1
        %s1157 = smul.addr %s1156, 8
        %s1158 = scalar_lea.vmem %s5, %s1157
        %s1159 = sand.u32 %s165, 1
        %s1160 = scalar_lea.sflag [#allocation5], %s1159
        %s1161 = sand.u32 %s165, 1
        %s1162 = scalar_lea.vmem [#allocation4], %s1161
        // Predicated region
        $region41: #{encoder_forward.3} parent=39 // pred_check
          %p1163 = pneg %p149
        $region42: #{encoder_forward.3} parent=39 // pred_check_branch
          %1165 = sbr.rel (%p1163) target = $region44
        $region43: #{encoder_forward.3} parent=39 // pred_region
          _
        $region44: #{encoder_forward.3} parent=39 // pred_fallthru
          _
        // Predicated region
        $region45: #{encoder_forward.3} parent=39 // pred_check
          %p1166 = pneg %p175
        $region46: #{encoder_forward.3} parent=39 // pred_check_branch
          %1168 = sbr.rel (%p1166) target = $region48
        $region47: #{encoder_forward.3} parent=39 // pred_region
          %1170 = vsyncadd %s1160, 0
          %s1171 = scalar_lea.hbm %s6, %s21
          %s1173 = sshll.u32 %s1162, 4
          %s1174 = int_to_ptr.vmem [resolvable:$true] %s1173
          %s1175 = sshll.u32 %s1171, 4
          %s1176 = int_to_ptr.hbm [resolvable:$true] %s1175
          %1178 = dma.vmem_to_hbm [thread:$0]  %s1174, 16, %s1176, %s1160
        $region48: #{encoder_forward.3} parent=39 // pred_fallthru
          _
      $region40: #{encoder_forward.3} parent=5 // pred_fallthru
        _
      %p1179 = scmp.le.s32.totalorder 2, %s16
      // Predicated region
      $region49: #{encoder_forward.3} parent=5 // pred_check
        %p1180 = pneg %p1179
      $region50: #{encoder_forward.3} parent=5 // pred_check_branch
        %1182 = sbr.rel (%p1180) target = $region52
      $region51: #{encoder_forward.3} parent=5 // pred_region
        %s1183 = ssub.s32 %s16, 2
        // Predicated region
        $region53: #{encoder_forward.3} parent=51 // pred_check
          %p1184 = pneg %p155
        $region54: #{encoder_forward.3} parent=51 // pred_check_branch
          %1186 = sbr.rel (%p1184) target = $region56
        $region55: #{encoder_forward.3} parent=51 // pred_region
          %p1187 = scmp.lt.s32.totalorder %s22, 1
          %s1188 = scalar_select %p1187, %s22, 1
          %s1189 = smul.addr %s1188, 8
          %s1190 = scalar_lea.vmem %s5, %s1189
        $region56: #{encoder_forward.3} parent=51 // pred_fallthru
          _
        // Predicated region
        $region57: #{encoder_forward.3} parent=51 // pred_check
          %p1191 = pneg %p181
        $region58: #{encoder_forward.3} parent=51 // pred_check_branch
          %1193 = sbr.rel (%p1191) target = $region60
        $region59: #{encoder_forward.3} parent=51 // pred_region
          %s1194 = sand.u32 %s166, 1
          %s1195 = scalar_lea.sflag [#allocation5], %s1194
          %s1196 = sand.u32 %s166, 1
          %s1197 = scalar_lea.vmem [#allocation4], %s1196
          %1199 = dma.done %s1195, 16
        $region60: #{encoder_forward.3} parent=51 // pred_fallthru
          _
      $region52: #{encoder_forward.3} parent=5 // pred_fallthru
        _
    $region6: #{encoder_forward.3} parent=1 // loop_footer
      %s20 = sadd.s32 1, %s16
    $region7: #{encoder_forward.3} parent=1 // loop_footer_branch
      %15 = sbr.rel target = $region3
    $region8: #{encoder_forward.3} parent=1 // loop_exit
      _
    %1200 = vsyncpa [#allocation5], 1
    %s1201 = scalar_lea.sflag [#allocation5], 1
    %1202 = vsyncpa %s1201, 1

// kernel: encoder_forward.2
$region0: #{encoder_forward.2}
  #allocation0 [shape = 'u32[]', space=smem, size = 0x4, offset = 0x4, fixed_abs, tag = 'smem constant byte address 0x4 - core index']
  #allocation1 [shape = 'u32[72,128]{1,0:T(1,128)}', space=vmem, size = 0x9000, scoped, tag = 'internal scratch']
  #allocation2 [shape = 'f32[222,128]{1,0:T(8,128)}', space=vmem, size = 0x1c000, scoped, tag = 'scratch operand']
  #allocation3 [shape = 'f32[188,128]{1,0:T(8,128)}', space=vmem, size = 0x18000, scoped, tag = 'scratch operand']
  %s0 = inlined_call_operand.vmem [shape: f32[2,256,128], index: 0, kind: input, shape index: {}]
  %s1 = inlined_call_operand.vmem [shape: f32[9,128,128], index: 1, kind: input, shape index: {}]
  %s2 = inlined_call_operand.vmem [shape: f32[1,128], index: 2, kind: input, shape index: {}]
  %s3 = inlined_call_operand.vmem [shape: f32[9,128,128], index: 3, kind: input, shape index: {}]
  %s4 = inlined_call_operand.vmem [shape: f32[1,128], index: 4, kind: input, shape index: {}]
  %s5 = inlined_call_operand.vmem [shape: f32[2,188,128], index: 5, kind: output, shape index: {0}]
  %s6 = inlined_call_operand.vmem [shape: f32[2,36,128], index: 6, kind: output, shape index: {1}]
  %7 = xla_tuple %s5, %s6
  %s8 = sld [smem:[#allocation0]]
  $region61: #{encoder_forward.2} parent=0
    _
  %s10 = ssub.s32 1, %s8
  %s11 = scalar_select 0, %s10, %s8
  loop: start=0, step=1, limit=4
  $region2: #{encoder_forward.2} parent=0 // loop_pre_header
    _
  $region3: #{encoder_forward.2} parent=0 // loop_header
    %s13 = sphi 0, %s17
    %p14 = scmp.ge.s32.totalorder %s13, 4
    %s23 = sphi 0, %s25
    %s26 = sphi 0, %s23
    %s27 = sphi 0, %s26
    %s43 = sphi 0, %s27
    %s47 = sphi 0, %s47
    %s49 = sphi 0, %s47
    %s50 = sphi 0, %s49
    %s64 = sphi 0, %s50
    %s68 = sphi 0, %s68
    %s70 = sphi 0, %s68
    %s71 = sphi 0, %s70
    %s85 = sphi 0, %s71
    %s89 = sphi 0, %s89
    %s91 = sphi 0, %s89
    %s92 = sphi 0, %s91
    %s106 = sphi 0, %s92
    %s110 = sphi 0, %s110
    %s112 = sphi 0, %s110
    %s113 = sphi 0, %s112
    %s127 = sphi 0, %s113
    %s133 = sphi 0, %s135
    %s136 = sphi 0, %s133
    %s137 = sphi 0, %s136
    %s153 = sphi 0, %s137
    %s159 = sphi 0, %s161
    %s162 = sphi 0, %s159
    %s163 = sphi 0, %s162
    %s179 = sphi 0, %s163
  $region4: #{encoder_forward.2} parent=0 // loop_header_branch
    %16 = sbr.rel (%p14) target = $region8
  $region5: #{encoder_forward.2} parent=0 // loop_body
    %s18 = ssub.s32 %s13, 1
    %s19 = ssub.s32 %s13, 2
    %s20 = sadd.s32 %s13, 1
    %s21 = ssub.s32 %s13, %s20
    %p22 = scmp.eq.s32.totalorder %s21, 0
    %s24 = sadd.s32 %s23, 1
    %s25 = scalar_select %p22, %s23, %s24
    %p28 = pneg %p22
    %p29 = scmp.eq.s32.totalorder %s13, 1
    %p30 = por %p28, %p29
    %p31 = scmp.ne.s32.totalorder %s23, %s26
    %p32 = scmp.eq.s32.totalorder %s13, 0
    %p33 = por %p31, %p32
    %p34 = scmp.ne.s32.totalorder %s23, %s26
    %p35 = scmp.eq.s32.totalorder %s18, 1
    %p36 = por %p34, %p35
    %p37 = scmp.ne.s32.totalorder %s26, %s27
    %p38 = scmp.eq.s32.totalorder %s18, 0
    %p39 = por %p37, %p38
    %p40 = scmp.ne.s32.totalorder %s26, %s27
    %p41 = scmp.eq.s32.totalorder %s19, 1
    %p42 = por %p40, %p41
    %p44 = scmp.ne.s32.totalorder %s27, %s43
    %p45 = scmp.eq.s32.totalorder %s19, 0
    %p46 = por %p44, %p45
    %s48 = sadd.s32 %s47, 1
    %p51 = scmp.eq.s32.totalorder %s13, 1
    %p52 = scmp.ne.s32.totalorder %s47, %s49
    %p53 = scmp.eq.s32.totalorder %s13, 0
    %p54 = por %p52, %p53
    %p55 = scmp.ne.s32.totalorder %s47, %s49
    %p56 = scmp.eq.s32.totalorder %s18, 1
    %p57 = por %p55, %p56
    %p58 = scmp.ne.s32.totalorder %s49, %s50
    %p59 = scmp.eq.s32.totalorder %s18, 0
    %p60 = por %p58, %p59
    %p61 = scmp.ne.s32.totalorder %s49, %s50
    %p62 = scmp.eq.s32.totalorder %s19, 1
    %p63 = por %p61, %p62
    %p65 = scmp.ne.s32.totalorder %s50, %s64
    %p66 = scmp.eq.s32.totalorder %s19, 0
    %p67 = por %p65, %p66
    %s69 = sadd.s32 %s68, 1
    %p72 = scmp.eq.s32.totalorder %s13, 1
    %p73 = scmp.ne.s32.totalorder %s68, %s70
    %p74 = scmp.eq.s32.totalorder %s13, 0
    %p75 = por %p73, %p74
    %p76 = scmp.ne.s32.totalorder %s68, %s70
    %p77 = scmp.eq.s32.totalorder %s18, 1
    %p78 = por %p76, %p77
    %p79 = scmp.ne.s32.totalorder %s70, %s71
    %p80 = scmp.eq.s32.totalorder %s18, 0
    %p81 = por %p79, %p80
    %p82 = scmp.ne.s32.totalorder %s70, %s71
    %p83 = scmp.eq.s32.totalorder %s19, 1
    %p84 = por %p82, %p83
    %p86 = scmp.ne.s32.totalorder %s71, %s85
    %p87 = scmp.eq.s32.totalorder %s19, 0
    %p88 = por %p86, %p87
    %s90 = sadd.s32 %s89, 1
    %p93 = scmp.eq.s32.totalorder %s13, 1
    %p94 = scmp.ne.s32.totalorder %s89, %s91
    %p95 = scmp.eq.s32.totalorder %s13, 0
    %p96 = por %p94, %p95
    %p97 = scmp.ne.s32.totalorder %s89, %s91
    %p98 = scmp.eq.s32.totalorder %s18, 1
    %p99 = por %p97, %p98
    %p100 = scmp.ne.s32.totalorder %s91, %s92
    %p101 = scmp.eq.s32.totalorder %s18, 0
    %p102 = por %p100, %p101
    %p103 = scmp.ne.s32.totalorder %s91, %s92
    %p104 = scmp.eq.s32.totalorder %s19, 1
    %p105 = por %p103, %p104
    %p107 = scmp.ne.s32.totalorder %s92, %s106
    %p108 = scmp.eq.s32.totalorder %s19, 0
    %p109 = por %p107, %p108
    %s111 = sadd.s32 %s110, 1
    %p114 = scmp.eq.s32.totalorder %s13, 1
    %p115 = scmp.ne.s32.totalorder %s110, %s112
    %p116 = scmp.eq.s32.totalorder %s13, 0
    %p117 = por %p115, %p116
    %p118 = scmp.ne.s32.totalorder %s110, %s112
    %p119 = scmp.eq.s32.totalorder %s18, 1
    %p120 = por %p118, %p119
    %p121 = scmp.ne.s32.totalorder %s112, %s113
    %p122 = scmp.eq.s32.totalorder %s18, 0
    %p123 = por %p121, %p122
    %p124 = scmp.ne.s32.totalorder %s112, %s113
    %p125 = scmp.eq.s32.totalorder %s19, 1
    %p126 = por %p124, %p125
    %p128 = scmp.ne.s32.totalorder %s113, %s127
    %p129 = scmp.eq.s32.totalorder %s19, 0
    %p130 = por %p128, %p129
    %s131 = ssub.s32 %s13, %s20
    %p132 = scmp.eq.s32.totalorder %s131, 0
    %s134 = sadd.s32 %s133, 1
    %s135 = scalar_select %p132, %s133, %s134
    %p138 = pneg %p132
    %p139 = scmp.eq.s32.totalorder %s13, 1
    %p140 = por %p138, %p139
    %p141 = scmp.ne.s32.totalorder %s133, %s136
    %p142 = scmp.eq.s32.totalorder %s13, 0
    %p143 = por %p141, %p142
    %p144 = scmp.ne.s32.totalorder %s133, %s136
    %p145 = scmp.eq.s32.totalorder %s18, 1
    %p146 = por %p144, %p145
    %p147 = scmp.ne.s32.totalorder %s136, %s137
    %p148 = scmp.eq.s32.totalorder %s18, 0
    %p149 = por %p147, %p148
    %p150 = scmp.ne.s32.totalorder %s136, %s137
    %p151 = scmp.eq.s32.totalorder %s19, 1
    %p152 = por %p150, %p151
    %p154 = scmp.ne.s32.totalorder %s137, %s153
    %p155 = scmp.eq.s32.totalorder %s19, 0
    %p156 = por %p154, %p155
    %s157 = ssub.s32 %s13, %s20
    %p158 = scmp.eq.s32.totalorder %s157, 0
    %s160 = sadd.s32 %s159, 1
    %s161 = scalar_select %p158, %s159, %s160
    %p164 = pneg %p158
    %p165 = scmp.eq.s32.totalorder %s13, 1
    %p166 = por %p164, %p165
    %p167 = scmp.ne.s32.totalorder %s159, %s162
    %p168 = scmp.eq.s32.totalorder %s13, 0
    %p169 = por %p167, %p168
    %p170 = scmp.ne.s32.totalorder %s159, %s162
    %p171 = scmp.eq.s32.totalorder %s18, 1
    %p172 = por %p170, %p171
    %p173 = scmp.ne.s32.totalorder %s162, %s163
    %p174 = scmp.eq.s32.totalorder %s18, 0
    %p175 = por %p173, %p174
    %p176 = scmp.ne.s32.totalorder %s162, %s163
    %p177 = scmp.eq.s32.totalorder %s19, 1
    %p178 = por %p176, %p177
    %p180 = scmp.ne.s32.totalorder %s163, %s179
    %p181 = scmp.eq.s32.totalorder %s19, 0
    %p182 = por %p180, %p181
    %p183 = scmp.le.s32.totalorder 1, %s13
    %p184 = scmp.lt.s32.totalorder %s13, 3
    %p185 = pnand %p183, %p184
    %p186 = pneg %p185
    // Predicated region
    $region9: #{encoder_forward.2} parent=5 // pred_check
      _
    $region10: #{encoder_forward.2} parent=5 // pred_check_branch
      %188 = sbr.rel (%p185) target = $region12
    $region11: #{encoder_forward.2} parent=5 // pred_region
      %s189 = ssub.s32 %s13, 1
      // Predicated region
      $region13: #{encoder_forward.2} parent=11 // pred_check
        %p190 = pneg %p60
      $region14: #{encoder_forward.2} parent=11 // pred_check_branch
        %192 = sbr.rel (%p190) target = $region16
      $region15: #{encoder_forward.2} parent=11 // pred_region
        _
      $region16: #{encoder_forward.2} parent=11 // pred_fallthru
        _
      // Predicated region
      $region17: #{encoder_forward.2} parent=11 // pred_check
        %p193 = pneg %p81
      $region18: #{encoder_forward.2} parent=11 // pred_check_branch
        %195 = sbr.rel (%p193) target = $region20
      $region19: #{encoder_forward.2} parent=11 // pred_region
        _
      $region20: #{encoder_forward.2} parent=11 // pred_fallthru
        _
      // Predicated region
      $region21: #{encoder_forward.2} parent=11 // pred_check
        %p196 = pneg %p102
      $region22: #{encoder_forward.2} parent=11 // pred_check_branch
        %198 = sbr.rel (%p196) target = $region24
      $region23: #{encoder_forward.2} parent=11 // pred_region
        _
      $region24: #{encoder_forward.2} parent=11 // pred_fallthru
        _
      // Predicated region
      $region25: #{encoder_forward.2} parent=11 // pred_check
        %p199 = pneg %p123
      $region26: #{encoder_forward.2} parent=11 // pred_check_branch
        %201 = sbr.rel (%p199) target = $region28
      $region27: #{encoder_forward.2} parent=11 // pred_region
        _
      $region28: #{encoder_forward.2} parent=11 // pred_fallthru
        _
    $region12: #{encoder_forward.2} parent=5 // pred_fallthru
      _
    %p202 = scmp.lt.s32.totalorder %s13, 2
    // Predicated region
    $region29: #{encoder_forward.2} parent=5 // pred_check
      %p203 = pneg %p202
    $region30: #{encoder_forward.2} parent=5 // pred_check_branch
      %205 = sbr.rel (%p203) target = $region32
    $region31: #{encoder_forward.2} parent=5 // pred_region
      // Predicated region
      $region33: #{encoder_forward.2} parent=31 // pred_check
        %p206 = pneg %p33
      $region34: #{encoder_forward.2} parent=31 // pred_check_branch
        %208 = sbr.rel (%p206) target = $region36
      $region35: #{encoder_forward.2} parent=31 // pred_region
        %p209 = scmp.lt.s32.totalorder %s13, 1
        %s210 = scalar_select %p209, %s13, 1
        %s211 = smul.addr %s210, 32
        %s212 = smul.addr %s211, 8
        %s213 = scalar_lea.vmem %s0, %s212
      $region36: #{encoder_forward.2} parent=31 // pred_fallthru
        _
    $region32: #{encoder_forward.2} parent=5 // pred_fallthru
      _
    %p214 = scmp.le.s32.totalorder 1, %s13
    %p215 = scmp.lt.s32.totalorder %s13, 3
    %p216 = pnand %p214, %p215
    %p217 = pneg %p216
    // Predicated region
    $region37: #{encoder_forward.2} parent=5 // pred_check
      _
    $region38: #{encoder_forward.2} parent=5 // pred_check_branch
      %219 = sbr.rel (%p216) target = $region40
    $region39: #{encoder_forward.2} parent=5 // pred_region
      %s220 = ssub.s32 %s13, 1
      %p221 = scmp.lt.s32.totalorder %s18, 1
      %s222 = scalar_select %p221, %s18, 1
      %s223 = smul.addr %s222, 32
      %s224 = smul.addr %s223, 8
      %s225 = scalar_lea.vmem %s0, %s224
      %p226 = pneg %p39
      %p227 = pneg %p36
      %p228 = pneg %p60
      %p229 = pneg %p57
      %p230 = pneg %p81
      %p231 = pneg %p78
      %p232 = pneg %p102
      %p233 = pneg %p99
      %p234 = pneg %p123
      %p235 = pneg %p120
      %p236 = pneg %p149
      %p237 = pneg %p146
      %p238 = scmp.lt.s32.totalorder %s18, 1
      %s239 = scalar_select %p238, %s18, 1
      %s240 = smul.addr %s239, 24
      %s241 = smul.addr %s240, 8
      %s242 = scalar_lea.vmem %s5, %s241
      %p243 = pneg %p175
      %p244 = pneg %p172
      %p245 = scmp.lt.s32.totalorder %s18, 1
      %s246 = scalar_select %p245, %s18, 1
      %s247 = smul.addr %s246, 5
      %s248 = smul.addr %s247, 8
      %s249 = scalar_lea.vmem %s6, %s248
      %p250 = scmp.lt.s32.totalorder %s18, 1
      %s251 = scalar_select %p250, %s18, 1
      %s252 = smul.addr %s251, 32
      %s253 = smul.addr %s252, 8
      %s254 = scalar_lea.vmem %s0, %s253
      %p255 = scmp.lt.s32.totalorder %s18, 1
      %s256 = scalar_select %p255, %s18, 1
      %s257 = smul.addr %s256, 24
      %s258 = smul.addr %s257, 8
      %s259 = scalar_lea.vmem %s5, %s258
      %p260 = scmp.lt.s32.totalorder %s18, 1
      %s261 = scalar_select %p260, %s18, 1
      %s262 = smul.addr %s261, 5
      %s263 = smul.addr %s262, 8
      %s264 = scalar_lea.vmem %s6, %s263
      %v265 = vld [vmem:[%s2] sm:$0x1]
      %v267 = vperm.slane %v265, 0
      %v269 = vadd.f32 %v267, 0.0
      %270 = vst [vmem:[#allocation2] sm:$0xff] %v269
      %271 = vst [vmem:[#allocation2 + $0x8] sm:$0xff] %v269
      %272 = vst [vmem:[#allocation2 + $0x10] sm:$0xff] %v269
      %273 = vst [vmem:[#allocation2 + $0x18] sm:$0xff] %v269
      %274 = vst [vmem:[#allocation2 + $0x20] sm:$0xff] %v269
      %275 = vst [vmem:[#allocation2 + $0x28] sm:$0xff] %v269
      %276 = vst [vmem:[#allocation2 + $0x30] sm:$0xff] %v269
      %277 = vst [vmem:[#allocation2 + $0x38] sm:$0xff] %v269
      %278 = vst [vmem:[#allocation2 + $0x40] sm:$0xff] %v269
      %279 = vst [vmem:[#allocation2 + $0x48] sm:$0xff] %v269
      %280 = vst [vmem:[#allocation2 + $0x50] sm:$0xff] %v269
      %281 = vst [vmem:[#allocation2 + $0x58] sm:$0xff] %v269
      %282 = vst [vmem:[#allocation2 + $0x60] sm:$0xff] %v269
      %283 = vst [vmem:[#allocation2 + $0x68] sm:$0xff] %v269
      %284 = vst [vmem:[#allocation2 + $0x70] sm:$0xff] %v269
      %285 = vst [vmem:[#allocation2 + $0x78] sm:$0xff] %v269
      %286 = vst [vmem:[#allocation2 + $0x80] sm:$0xff] %v269
      %287 = vst [vmem:[#allocation2 + $0x88] sm:$0xff] %v269
      %288 = vst [vmem:[#allocation2 + $0x90] sm:$0xff] %v269
      %289 = vst [vmem:[#allocation2 + $0x98] sm:$0xff] %v269
      %290 = vst [vmem:[#allocation2 + $0xa0] sm:$0xff] %v269
      %291 = vst [vmem:[#allocation2 + $0xa8] sm:$0xff] %v269
      %292 = vst [vmem:[#allocation2 + $0xb0] sm:$0xff] %v269
      %293 = vst [vmem:[#allocation2 + $0xb8] sm:$0xff] %v269
      %294 = vst [vmem:[#allocation2 + $0xc0] sm:$0xff] %v269
      %295 = vst [vmem:[#allocation2 + $0xc8] sm:$0xff] %v269
      %296 = vst [vmem:[#allocation2 + $0xd0] sm:$0xff] %v269
      %297 = vst [vmem:[#allocation2 + $0xd8] sm:$0x3f] %v269
      %v298 = vld [vmem:[#allocation2] sm:$0xff]
      %v299 = vld [vmem:[#allocation2 + $0x8] sm:$0xff]
      %v300 = vld [vmem:[#allocation2 + $0x10] sm:$0xff]
      %v301 = vld [vmem:[#allocation2 + $0x18] sm:$0xff]
      %v302 = vld [vmem:[#allocation2 + $0x20] sm:$0xff]
      %v303 = vld [vmem:[#allocation2 + $0x28] sm:$0xff]
      %v304 = vld [vmem:[#allocation2 + $0x30] sm:$0xff]
      %v305 = vld [vmem:[#allocation2 + $0x38] sm:$0xff]
      %v306 = vld [vmem:[#allocation2 + $0x40] sm:$0xff]
      %v307 = vld [vmem:[#allocation2 + $0x48] sm:$0xff]
      %v308 = vld [vmem:[#allocation2 + $0x50] sm:$0xff]
      %v309 = vld [vmem:[#allocation2 + $0x58] sm:$0xff]
      %v310 = vld [vmem:[#allocation2 + $0x60] sm:$0xff]
      %v311 = vld [vmem:[#allocation2 + $0x68] sm:$0xff]
      %v312 = vld [vmem:[#allocation2 + $0x70] sm:$0xff]
      %v313 = vld [vmem:[#allocation2 + $0x78] sm:$0xff]
      %v314 = vld [vmem:[#allocation2 + $0x80] sm:$0xff]
      %v315 = vld [vmem:[#allocation2 + $0x88] sm:$0xff]
      %v316 = vld [vmem:[#allocation2 + $0x90] sm:$0xff]
      %v317 = vld [vmem:[#allocation2 + $0x98] sm:$0xff]
      %v318 = vld [vmem:[#allocation2 + $0xa0] sm:$0xff]
      %v319 = vld [vmem:[#allocation2 + $0xa8] sm:$0xff]
      %v320 = vld [vmem:[#allocation2 + $0xb0] sm:$0xff]
      %v321 = vld [vmem:[#allocation2 + $0xb8] sm:$0xff]
      %v322 = vld [vmem:[#allocation2 + $0xc0] sm:$0xff]
      %v323 = vld [vmem:[#allocation2 + $0xc8] sm:$0xff]
      %v324 = vld [vmem:[#allocation2 + $0xd0] sm:$0xff]
      %v325 = vld [vmem:[#allocation2 + $0xd8] sm:$0x3f]
      %v326 = vld [vmem:[%s254] sm:$0xff]
      %v327 = vld [vmem:[%s254 + $0x8] sm:$0xff]
      %v328 = vld [vmem:[%s254 + $0x10] sm:$0xff]
      %v329 = vld [vmem:[%s254 + $0x18] sm:$0xff]
      %v330 = vld [vmem:[%s254 + $0x20] sm:$0xff]
      %v331 = vld [vmem:[%s254 + $0x28] sm:$0xff]
      %v332 = vld [vmem:[%s254 + $0x30] sm:$0xff]
      %v333 = vld [vmem:[%s254 + $0x38] sm:$0xff]
      %v334 = vld [vmem:[%s254 + $0x40] sm:$0xff]
      %v335 = vld [vmem:[%s254 + $0x48] sm:$0xff]
      %v336 = vld [vmem:[%s254 + $0x50] sm:$0xff]
      %v337 = vld [vmem:[%s254 + $0x58] sm:$0xff]
      %v338 = vld [vmem:[%s254 + $0x60] sm:$0xff]
      %v339 = vld [vmem:[%s254 + $0x68] sm:$0xff]
      %v340 = vld [vmem:[%s254 + $0x70] sm:$0xff]
      %v341 = vld [vmem:[%s254 + $0x78] sm:$0xff]
      %v342 = vld [vmem:[%s254 + $0x80] sm:$0xff]
      %v343 = vld [vmem:[%s254 + $0x88] sm:$0xff]
      %v344 = vld [vmem:[%s254 + $0x90] sm:$0xff]
      %v345 = vld [vmem:[%s254 + $0x98] sm:$0xff]
      %v346 = vld [vmem:[%s254 + $0xa0] sm:$0xff]
      %v347 = vld [vmem:[%s254 + $0xa8] sm:$0xff]
      %v348 = vld [vmem:[%s254 + $0xb0] sm:$0xff]
      %v349 = vld [vmem:[%s254 + $0xb8] sm:$0xff]
      %v350 = vld [vmem:[%s254 + $0xc0] sm:$0xff]
      %v351 = vld [vmem:[%s254 + $0xc8] sm:$0xff]
      %v352 = vld [vmem:[%s254 + $0xd0] sm:$0xff]
      %v353 = vld [vmem:[%s254 + $0xd8] sm:$0x3f]
      %v354 = vld [vmem:[%s1] sm:$0xff]
      %v355 = vld [vmem:[%s1 + $0x8] sm:$0xff]
      %v356 = vld [vmem:[%s1 + $0x10] sm:$0xff]
      %v357 = vld [vmem:[%s1 + $0x18] sm:$0xff]
      %v358 = vld [vmem:[%s1 + $0x20] sm:$0xff]
      %v359 = vld [vmem:[%s1 + $0x28] sm:$0xff]
      %v360 = vld [vmem:[%s1 + $0x30] sm:$0xff]
      %v361 = vld [vmem:[%s1 + $0x38] sm:$0xff]
      %v362 = vld [vmem:[%s1 + $0x40] sm:$0xff]
      %v363 = vld [vmem:[%s1 + $0x48] sm:$0xff]
      %v364 = vld [vmem:[%s1 + $0x50] sm:$0xff]
      %v365 = vld [vmem:[%s1 + $0x58] sm:$0xff]
      %v366 = vld [vmem:[%s1 + $0x60] sm:$0xff]
      %v367 = vld [vmem:[%s1 + $0x68] sm:$0xff]
      %v368 = vld [vmem:[%s1 + $0x70] sm:$0xff]
      %v369 = vld [vmem:[%s1 + $0x78] sm:$0xff]
      %370 = vmatpush.msra.mxu0 %v369
      %371 = vmatpush.msra.mxu0 %v368
      %372 = vmatpush.msra.mxu0 %v367
      %373 = vmatpush.msra.mxu0 %v366
      %374 = vmatpush.msra.mxu0 %v365
      %375 = vmatpush.msra.mxu0 %v364
      %376 = vmatpush.msra.mxu0 %v363
      %377 = vmatpush.msra.mxu0 %v362
      %378 = vmatpush.msra.mxu0 %v361
      %379 = vmatpush.msra.mxu0 %v360
      %380 = vmatpush.msra.mxu0 %v359
      %381 = vmatpush.msra.mxu0 %v358
      %382 = vmatpush.msra.mxu0 %v357
      %383 = vmatpush.msra.mxu0 %v356
      %384 = vmatpush.msra.mxu0 %v355
      %385 = vmatpush.msra.mxu0 %v354
      %386 = vmatmul.f32.gmra.mxu0 %v326
      %v387 = vpop.f32.mrf.mxu0
      %v388 = vadd.f32 0.0, %v387
      %389 = vmatmul.f32.gmra.mxu0 %v327
      %v390 = vpop.f32.mrf.mxu0
      %v391 = vadd.f32 0.0, %v390
      %392 = vmatmul.f32.gmra.mxu0 %v328
      %v393 = vpop.f32.mrf.mxu0
      %v394 = vadd.f32 0.0, %v393
      %395 = vmatmul.f32.gmra.mxu0 %v329
      %v396 = vpop.f32.mrf.mxu0
      %v397 = vadd.f32 0.0, %v396
      %398 = vmatmul.f32.gmra.mxu0 %v330
      %v399 = vpop.f32.mrf.mxu0
      %v400 = vadd.f32 0.0, %v399
      %401 = vmatmul.f32.gmra.mxu0 %v331
      %v402 = vpop.f32.mrf.mxu0
      %v403 = vadd.f32 0.0, %v402
      %404 = vmatmul.f32.gmra.mxu0 %v332
      %v405 = vpop.f32.mrf.mxu0
      %v406 = vadd.f32 0.0, %v405
      %407 = vmatmul.f32.gmra.mxu0 %v333
      %v408 = vpop.f32.mrf.mxu0
      %v409 = vadd.f32 0.0, %v408
      %410 = vmatmul.f32.gmra.mxu0 %v334
      %v411 = vpop.f32.mrf.mxu0
      %v412 = vadd.f32 0.0, %v411
      %413 = vmatmul.f32.gmra.mxu0 %v335
      %v414 = vpop.f32.mrf.mxu0
      %v415 = vadd.f32 0.0, %v414
      %416 = vmatmul.f32.gmra.mxu0 %v336
      %v417 = vpop.f32.mrf.mxu0
      %v418 = vadd.f32 0.0, %v417
      %419 = vmatmul.f32.gmra.mxu0 %v337
      %v420 = vpop.f32.mrf.mxu0
      %v421 = vadd.f32 0.0, %v420
      %422 = vmatmul.f32.gmra.mxu0 %v338
      %v423 = vpop.f32.mrf.mxu0
      %v424 = vadd.f32 0.0, %v423
      %425 = vmatmul.f32.gmra.mxu0 %v339
      %v426 = vpop.f32.mrf.mxu0
      %v427 = vadd.f32 0.0, %v426
      %428 = vmatmul.f32.gmra.mxu0 %v340
      %v429 = vpop.f32.mrf.mxu0
      %v430 = vadd.f32 0.0, %v429
      %431 = vmatmul.f32.gmra.mxu0 %v341
      %v432 = vpop.f32.mrf.mxu0
      %v433 = vadd.f32 0.0, %v432
      %434 = vmatmul.f32.gmra.mxu0 %v342
      %v435 = vpop.f32.mrf.mxu0
      %v436 = vadd.f32 0.0, %v435
      %437 = vmatmul.f32.gmra.mxu0 %v343
      %v438 = vpop.f32.mrf.mxu0
      %v439 = vadd.f32 0.0, %v438
      %440 = vmatmul.f32.gmra.mxu0 %v344
      %v441 = vpop.f32.mrf.mxu0
      %v442 = vadd.f32 0.0, %v441
      %443 = vmatmul.f32.gmra.mxu0 %v345
      %v444 = vpop.f32.mrf.mxu0
      %v445 = vadd.f32 0.0, %v444
      %446 = vmatmul.f32.gmra.mxu0 %v346
      %v447 = vpop.f32.mrf.mxu0
      %v448 = vadd.f32 0.0, %v447
      %449 = vmatmul.f32.gmra.mxu0 %v347
      %v450 = vpop.f32.mrf.mxu0
      %v451 = vadd.f32 0.0, %v450
      %452 = vmatmul.f32.gmra.mxu0 %v348
      %v453 = vpop.f32.mrf.mxu0
      %v454 = vadd.f32 0.0, %v453
      %455 = vmatmul.f32.gmra.mxu0 %v349
      %v456 = vpop.f32.mrf.mxu0
      %v457 = vadd.f32 0.0, %v456
      %458 = vmatmul.f32.gmra.mxu0 %v350
      %v459 = vpop.f32.mrf.mxu0
      %v460 = vadd.f32 0.0, %v459
      %461 = vmatmul.f32.gmra.mxu0 %v351
      %v462 = vpop.f32.mrf.mxu0
      %v463 = vadd.f32 0.0, %v462
      %464 = vmatmul.f32.gmra.mxu0 %v352
      %v465 = vpop.f32.mrf.mxu0
      %v466 = vadd.f32 0.0, %v465
      %467 = vmatmul.f32.gmra.mxu0 %v353
      %v468 = vpop.f32.mrf.mxu0
      %v469 = vadd.f32 0.0, %v468
      %470 = vdwg.mxu0
      %v471 = vadd.f32 %v298, %v388
      %v472 = vadd.f32 %v299, %v391
      %v473 = vadd.f32 %v300, %v394
      %v474 = vadd.f32 %v301, %v397
      %v475 = vadd.f32 %v302, %v400
      %v476 = vadd.f32 %v303, %v403
      %v477 = vadd.f32 %v304, %v406
      %v478 = vadd.f32 %v305, %v409
      %v479 = vadd.f32 %v306, %v412
      %v480 = vadd.f32 %v307, %v415
      %v481 = vadd.f32 %v308, %v418
      %v482 = vadd.f32 %v309, %v421
      %v483 = vadd.f32 %v310, %v424
      %v484 = vadd.f32 %v311, %v427
      %v485 = vadd.f32 %v312, %v430
      %v486 = vadd.f32 %v313, %v433
      %v487 = vadd.f32 %v314, %v436
      %v488 = vadd.f32 %v315, %v439
      %v489 = vadd.f32 %v316, %v442
      %v490 = vadd.f32 %v317, %v445
      %v491 = vadd.f32 %v318, %v448
      %v492 = vadd.f32 %v319, %v451
      %v493 = vadd.f32 %v320, %v454
      %v494 = vadd.f32 %v321, %v457
      %v495 = vadd.f32 %v322, %v460
      %v496 = vadd.f32 %v323, %v463
      %v497 = vadd.f32 %v324, %v466
      %v498 = vadd.f32 %v325, %v469
      %499 = vst [vmem:[#allocation2] sm:$0xff] %v471
      %500 = vst [vmem:[#allocation2 + $0x8] sm:$0xff] %v472
      %501 = vst [vmem:[#allocation2 + $0x10] sm:$0xff] %v473
      %502 = vst [vmem:[#allocation2 + $0x18] sm:$0xff] %v474
      %503 = vst [vmem:[#allocation2 + $0x20] sm:$0xff] %v475
      %504 = vst [vmem:[#allocation2 + $0x28] sm:$0xff] %v476
      %505 = vst [vmem:[#allocation2 + $0x30] sm:$0xff] %v477
      %506 = vst [vmem:[#allocation2 + $0x38] sm:$0xff] %v478
      %507 = vst [vmem:[#allocation2 + $0x40] sm:$0xff] %v479
      %508 = vst [vmem:[#allocation2 + $0x48] sm:$0xff] %v480
      %509 = vst [vmem:[#allocation2 + $0x50] sm:$0xff] %v481
      %510 = vst [vmem:[#allocation2 + $0x58] sm:$0xff] %v482
      %511 = vst [vmem:[#allocation2 + $0x60] sm:$0xff] %v483
      %512 = vst [vmem:[#allocation2 + $0x68] sm:$0xff] %v484
      %513 = vst [vmem:[#allocation2 + $0x70] sm:$0xff] %v485
      %514 = vst [vmem:[#allocation2 + $0x78] sm:$0xff] %v486
      %515 = vst [vmem:[#allocation2 + $0x80] sm:$0xff] %v487
      %516 = vst [vmem:[#allocation2 + $0x88] sm:$0xff] %v488
      %517 = vst [vmem:[#allocation2 + $0x90] sm:$0xff] %v489
      %518 = vst [vmem:[#allocation2 + $0x98] sm:$0xff] %v490
      %519 = vst [vmem:[#allocation2 + $0xa0] sm:$0xff] %v491
      %520 = vst [vmem:[#allocation2 + $0xa8] sm:$0xff] %v492
      %521 = vst [vmem:[#allocation2 + $0xb0] sm:$0xff] %v493
      %522 = vst [vmem:[#allocation2 + $0xb8] sm:$0xff] %v494
      %523 = vst [vmem:[#allocation2 + $0xc0] sm:$0xff] %v495
      %524 = vst [vmem:[#allocation2 + $0xc8] sm:$0xff] %v496
      %525 = vst [vmem:[#allocation2 + $0xd0] sm:$0xff] %v497
      %526 = vst [vmem:[#allocation2 + $0xd8] sm:$0x3f] %v498
      %v527 = vld [vmem:[#allocation2] sm:$0xff]
      %v528 = vld [vmem:[#allocation2 + $0x8] sm:$0xff]
      %v529 = vld [vmem:[#allocation2 + $0x10] sm:$0xff]
      %v530 = vld [vmem:[#allocation2 + $0x18] sm:$0xff]
      %v531 = vld [vmem:[#allocation2 + $0x20] sm:$0xff]
      %v532 = vld [vmem:[#allocation2 + $0x28] sm:$0xff]
      %v533 = vld [vmem:[#allocation2 + $0x30] sm:$0xff]
      %v534 = vld [vmem:[#allocation2 + $0x38] sm:$0xff]
      %v535 = vld [vmem:[#allocation2 + $0x40] sm:$0xff]
      %v536 = vld [vmem:[#allocation2 + $0x48] sm:$0xff]
      %v537 = vld [vmem:[#allocation2 + $0x50] sm:$0xff]
      %v538 = vld [vmem:[#allocation2 + $0x58] sm:$0xff]
      %v539 = vld [vmem:[#allocation2 + $0x60] sm:$0xff]
      %v540 = vld [vmem:[#allocation2 + $0x68] sm:$0xff]
      %v541 = vld [vmem:[#allocation2 + $0x70] sm:$0xff]
      %v542 = vld [vmem:[#allocation2 + $0x78] sm:$0xff]
      %v543 = vld [vmem:[#allocation2 + $0x80] sm:$0xff]
      %v544 = vld [vmem:[#allocation2 + $0x88] sm:$0xff]
      %v545 = vld [vmem:[#allocation2 + $0x90] sm:$0xff]
      %v546 = vld [vmem:[#allocation2 + $0x98] sm:$0xff]
      %v547 = vld [vmem:[#allocation2 + $0xa0] sm:$0xff]
      %v548 = vld [vmem:[#allocation2 + $0xa8] sm:$0xff]
      %v549 = vld [vmem:[#allocation2 + $0xb0] sm:$0xff]
      %v550 = vld [vmem:[#allocation2 + $0xb8] sm:$0xff]
      %v551 = vld [vmem:[#allocation2 + $0xc0] sm:$0xff]
      %v552 = vld [vmem:[#allocation2 + $0xc8] sm:$0xff]
      %v553 = vld [vmem:[#allocation2 + $0xd0] sm:$0xff]
      %v554 = vld [vmem:[#allocation2 + $0xd8] sm:$0x3f]
      %v555 = vld [vmem:[%s254 + $0x1] sm:$0xff]
      %v556 = vld [vmem:[%s254 + $0x9] sm:$0xff]
      %v557 = vld [vmem:[%s254 + $0x11] sm:$0xff]
      %v558 = vld [vmem:[%s254 + $0x19] sm:$0xff]
      %v559 = vld [vmem:[%s254 + $0x21] sm:$0xff]
      %v560 = vld [vmem:[%s254 + $0x29] sm:$0xff]
      %v561 = vld [vmem:[%s254 + $0x31] sm:$0xff]
      %v562 = vld [vmem:[%s254 + $0x39] sm:$0xff]
      %v563 = vld [vmem:[%s254 + $0x41] sm:$0xff]
      %v564 = vld [vmem:[%s254 + $0x49] sm:$0xff]
      %v565 = vld [vmem:[%s254 + $0x51] sm:$0xff]
      %v566 = vld [vmem:[%s254 + $0x59] sm:$0xff]
      %v567 = vld [vmem:[%s254 + $0x61] sm:$0xff]
      %v568 = vld [vmem:[%s254 + $0x69] sm:$0xff]
      %v569 = vld [vmem:[%s254 + $0x71] sm:$0xff]
      %v570 = vld [vmem:[%s254 + $0x79] sm:$0xff]
      %v571 = vld [vmem:[%s254 + $0x81] sm:$0xff]
      %v572 = vld [vmem:[%s254 + $0x89] sm:$0xff]
      %v573 = vld [vmem:[%s254 + $0x91] sm:$0xff]
      %v574 = vld [vmem:[%s254 + $0x99] sm:$0xff]
      %v575 = vld [vmem:[%s254 + $0xa1] sm:$0xff]
      %v576 = vld [vmem:[%s254 + $0xa9] sm:$0xff]
      %v577 = vld [vmem:[%s254 + $0xb1] sm:$0xff]
      %v578 = vld [vmem:[%s254 + $0xb9] sm:$0xff]
      %v579 = vld [vmem:[%s254 + $0xc1] sm:$0xff]
      %v580 = vld [vmem:[%s254 + $0xc9] sm:$0xff]
      %v581 = vld [vmem:[%s254 + $0xd1] sm:$0xff]
      %v582 = vld [vmem:[%s254 + $0xd9] sm:$0x3f]
      %s583 = scalar_lea.vmem %s1, 128
      %v584 = vld [vmem:[%s583] sm:$0xff]
      %v585 = vld [vmem:[%s583 + $0x8] sm:$0xff]
      %v586 = vld [vmem:[%s583 + $0x10] sm:$0xff]
      %v587 = vld [vmem:[%s583 + $0x18] sm:$0xff]
      %v588 = vld [vmem:[%s583 + $0x20] sm:$0xff]
      %v589 = vld [vmem:[%s583 + $0x28] sm:$0xff]
      %v590 = vld [vmem:[%s583 + $0x30] sm:$0xff]
      %v591 = vld [vmem:[%s583 + $0x38] sm:$0xff]
      %v592 = vld [vmem:[%s583 + $0x40] sm:$0xff]
      %v593 = vld [vmem:[%s583 + $0x48] sm:$0xff]
      %v594 = vld [vmem:[%s583 + $0x50] sm:$0xff]
      %v595 = vld [vmem:[%s583 + $0x58] sm:$0xff]
      %v596 = vld [vmem:[%s583 + $0x60] sm:$0xff]
      %v597 = vld [vmem:[%s583 + $0x68] sm:$0xff]
      %v598 = vld [vmem:[%s583 + $0x70] sm:$0xff]
      %v599 = vld [vmem:[%s583 + $0x78] sm:$0xff]
      %600 = vmatpush.msra.mxu0 %v599
      %601 = vmatpush.msra.mxu0 %v598
      %602 = vmatpush.msra.mxu0 %v597
      %603 = vmatpush.msra.mxu0 %v596
      %604 = vmatpush.msra.mxu0 %v595
      %605 = vmatpush.msra.mxu0 %v594
      %606 = vmatpush.msra.mxu0 %v593
      %607 = vmatpush.msra.mxu0 %v592
      %608 = vmatpush.msra.mxu0 %v591
      %609 = vmatpush.msra.mxu0 %v590
      %610 = vmatpush.msra.mxu0 %v589
      %611 = vmatpush.msra.mxu0 %v588
      %612 = vmatpush.msra.mxu0 %v587
      %613 = vmatpush.msra.mxu0 %v586
      %614 = vmatpush.msra.mxu0 %v585
      %615 = vmatpush.msra.mxu0 %v584
      %616 = vmatmul.f32.gmra.mxu0 %v555
      %v617 = vpop.f32.mrf.mxu0
      %v618 = vadd.f32 0.0, %v617
      %619 = vmatmul.f32.gmra.mxu0 %v556
      %v620 = vpop.f32.mrf.mxu0
      %v621 = vadd.f32 0.0, %v620
      %622 = vmatmul.f32.gmra.mxu0 %v557
      %v623 = vpop.f32.mrf.mxu0
      %v624 = vadd.f32 0.0, %v623
      %625 = vmatmul.f32.gmra.mxu0 %v558
      %v626 = vpop.f32.mrf.mxu0
      %v627 = vadd.f32 0.0, %v626
      %628 = vmatmul.f32.gmra.mxu0 %v559
      %v629 = vpop.f32.mrf.mxu0
      %v630 = vadd.f32 0.0, %v629
      %631 = vmatmul.f32.gmra.mxu0 %v560
      %v632 = vpop.f32.mrf.mxu0
      %v633 = vadd.f32 0.0, %v632
      %634 = vmatmul.f32.gmra.mxu0 %v561
      %v635 = vpop.f32.mrf.mxu0
      %v636 = vadd.f32 0.0, %v635
      %637 = vmatmul.f32.gmra.mxu0 %v562
      %v638 = vpop.f32.mrf.mxu0
      %v639 = vadd.f32 0.0, %v638
      %640 = vmatmul.f32.gmra.mxu0 %v563
      %v641 = vpop.f32.mrf.mxu0
      %v642 = vadd.f32 0.0, %v641
      %643 = vmatmul.f32.gmra.mxu0 %v564
      %v644 = vpop.f32.mrf.mxu0
      %v645 = vadd.f32 0.0, %v644
      %646 = vmatmul.f32.gmra.mxu0 %v565
      %v647 = vpop.f32.mrf.mxu0
      %v648 = vadd.f32 0.0, %v647
      %649 = vmatmul.f32.gmra.mxu0 %v566
      %v650 = vpop.f32.mrf.mxu0
      %v651 = vadd.f32 0.0, %v650
      %652 = vmatmul.f32.gmra.mxu0 %v567
      %v653 = vpop.f32.mrf.mxu0
      %v654 = vadd.f32 0.0, %v653
      %655 = vmatmul.f32.gmra.mxu0 %v568
      %v656 = vpop.f32.mrf.mxu0
      %v657 = vadd.f32 0.0, %v656
      %658 = vmatmul.f32.gmra.mxu0 %v569
      %v659 = vpop.f32.mrf.mxu0
      %v660 = vadd.f32 0.0, %v659
      %661 = vmatmul.f32.gmra.mxu0 %v570
      %v662 = vpop.f32.mrf.mxu0
      %v663 = vadd.f32 0.0, %v662
      %664 = vmatmul.f32.gmra.mxu0 %v571
      %v665 = vpop.f32.mrf.mxu0
      %v666 = vadd.f32 0.0, %v665
      %667 = vmatmul.f32.gmra.mxu0 %v572
      %v668 = vpop.f32.mrf.mxu0
      %v669 = vadd.f32 0.0, %v668
      %670 = vmatmul.f32.gmra.mxu0 %v573
      %v671 = vpop.f32.mrf.mxu0
      %v672 = vadd.f32 0.0, %v671
      %673 = vmatmul.f32.gmra.mxu0 %v574
      %v674 = vpop.f32.mrf.mxu0
      %v675 = vadd.f32 0.0, %v674
      %676 = vmatmul.f32.gmra.mxu0 %v575
      %v677 = vpop.f32.mrf.mxu0
      %v678 = vadd.f32 0.0, %v677
      %679 = vmatmul.f32.gmra.mxu0 %v576
      %v680 = vpop.f32.mrf.mxu0
      %v681 = vadd.f32 0.0, %v680
      %682 = vmatmul.f32.gmra.mxu0 %v577
      %v683 = vpop.f32.mrf.mxu0
      %v684 = vadd.f32 0.0, %v683
      %685 = vmatmul.f32.gmra.mxu0 %v578
      %v686 = vpop.f32.mrf.mxu0
      %v687 = vadd.f32 0.0, %v686
      %688 = vmatmul.f32.gmra.mxu0 %v579
      %v689 = vpop.f32.mrf.mxu0
      %v690 = vadd.f32 0.0, %v689
      %691 = vmatmul.f32.gmra.mxu0 %v580
      %v692 = vpop.f32.mrf.mxu0
      %v693 = vadd.f32 0.0, %v692
      %694 = vmatmul.f32.gmra.mxu0 %v581
      %v695 = vpop.f32.mrf.mxu0
      %v696 = vadd.f32 0.0, %v695
      %697 = vmatmul.f32.gmra.mxu0 %v582
      %v698 = vpop.f32.mrf.mxu0
      %v699 = vadd.f32 0.0, %v698
      %700 = vdwg.mxu0
      %v701 = vadd.f32 %v527, %v618
      %v702 = vadd.f32 %v528, %v621
      %v703 = vadd.f32 %v529, %v624
      %v704 = vadd.f32 %v530, %v627
      %v705 = vadd.f32 %v531, %v630
      %v706 = vadd.f32 %v532, %v633
      %v707 = vadd.f32 %v533, %v636
      %v708 = vadd.f32 %v534, %v639
      %v709 = vadd.f32 %v535, %v642
      %v710 = vadd.f32 %v536, %v645
      %v711 = vadd.f32 %v537, %v648
      %v712 = vadd.f32 %v538, %v651
      %v713 = vadd.f32 %v539, %v654
      %v714 = vadd.f32 %v540, %v657
      %v715 = vadd.f32 %v541, %v660
      %v716 = vadd.f32 %v542, %v663
      %v717 = vadd.f32 %v543, %v666
      %v718 = vadd.f32 %v544, %v669
      %v719 = vadd.f32 %v545, %v672
      %v720 = vadd.f32 %v546, %v675
      %v721 = vadd.f32 %v547, %v678
      %v722 = vadd.f32 %v548, %v681
      %v723 = vadd.f32 %v549, %v684
      %v724 = vadd.f32 %v550, %v687
      %v725 = vadd.f32 %v551, %v690
      %v726 = vadd.f32 %v552, %v693
      %v727 = vadd.f32 %v553, %v696
      %v728 = vadd.f32 %v554, %v699
      %729 = vst [vmem:[#allocation2] sm:$0xff] %v701
      %730 = vst [vmem:[#allocation2 + $0x8] sm:$0xff] %v702
      %731 = vst [vmem:[#allocation2 + $0x10] sm:$0xff] %v703
      %732 = vst [vmem:[#allocation2 + $0x18] sm:$0xff] %v704
      %733 = vst [vmem:[#allocation2 + $0x20] sm:$0xff] %v705
      %734 = vst [vmem:[#allocation2 + $0x28] sm:$0xff] %v706
      %735 = vst [vmem:[#allocation2 + $0x30] sm:$0xff] %v707
      %736 = vst [vmem:[#allocation2 + $0x38] sm:$0xff] %v708
      %737 = vst [vmem:[#allocation2 + $0x40] sm:$0xff] %v709
      %738 = vst [vmem:[#allocation2 + $0x48] sm:$0xff] %v710
      %739 = vst [vmem:[#allocation2 + $0x50] sm:$0xff] %v711
      %740 = vst [vmem:[#allocation2 + $0x58] sm:$0xff] %v712
      %741 = vst [vmem:[#allocation2 + $0x60] sm:$0xff] %v713
      %742 = vst [vmem:[#allocation2 + $0x68] sm:$0xff] %v714
      %743 = vst [vmem:[#allocation2 + $0x70] sm:$0xff] %v715
      %744 = vst [vmem:[#allocation2 + $0x78] sm:$0xff] %v716
      %745 = vst [vmem:[#allocation2 + $0x80] sm:$0xff] %v717
      %746 = vst [vmem:[#allocation2 + $0x88] sm:$0xff] %v718
      %747 = vst [vmem:[#allocation2 + $0x90] sm:$0xff] %v719
      %748 = vst [vmem:[#allocation2 + $0x98] sm:$0xff] %v720
      %749 = vst [vmem:[#allocation2 + $0xa0] sm:$0xff] %v721
      %750 = vst [vmem:[#allocation2 + $0xa8] sm:$0xff] %v722
      %751 = vst [vmem:[#allocation2 + $0xb0] sm:$0xff] %v723
      %752 = vst [vmem:[#allocation2 + $0xb8] sm:$0xff] %v724
      %753 = vst [vmem:[#allocation2 + $0xc0] sm:$0xff] %v725
      %754 = vst [vmem:[#allocation2 + $0xc8] sm:$0xff] %v726
      %755 = vst [vmem:[#allocation2 + $0xd0] sm:$0xff] %v727
      %756 = vst [vmem:[#allocation2 + $0xd8] sm:$0x3f] %v728
      %v757 = vld [vmem:[#allocation2] sm:$0xff]
      %v758 = vld [vmem:[#allocation2 + $0x8] sm:$0xff]
      %v759 = vld [vmem:[#allocation2 + $0x10] sm:$0xff]
      %v760 = vld [vmem:[#allocation2 + $0x18] sm:$0xff]
      %v761 = vld [vmem:[#allocation2 + $0x20] sm:$0xff]
      %v762 = vld [vmem:[#allocation2 + $0x28] sm:$0xff]
      %v763 = vld [vmem:[#allocation2 + $0x30] sm:$0xff]
      %v764 = vld [vmem:[#allocation2 + $0x38] sm:$0xff]
      %v765 = vld [vmem:[#allocation2 + $0x40] sm:$0xff]
      %v766 = vld [vmem:[#allocation2 + $0x48] sm:$0xff]
      %v767 = vld [vmem:[#allocation2 + $0x50] sm:$0xff]
      %v768 = vld [vmem:[#allocation2 + $0x58] sm:$0xff]
      %v769 = vld [vmem:[#allocation2 + $0x60] sm:$0xff]
      %v770 = vld [vmem:[#allocation2 + $0x68] sm:$0xff]
      %v771 = vld [vmem:[#allocation2 + $0x70] sm:$0xff]
      %v772 = vld [vmem:[#allocation2 + $0x78] sm:$0xff]
      %v773 = vld [vmem:[#allocation2 + $0x80] sm:$0xff]
      %v774 = vld [vmem:[#allocation2 + $0x88] sm:$0xff]
      %v775 = vld [vmem:[#allocation2 + $0x90] sm:$0xff]
      %v776 = vld [vmem:[#allocation2 + $0x98] sm:$0xff]
      %v777 = vld [vmem:[#allocation2 + $0xa0] sm:$0xff]
      %v778 = vld [vmem:[#allocation2 + $0xa8] sm:$0xff]
      %v779 = vld [vmem:[#allocation2 + $0xb0] sm:$0xff]
      %v780 = vld [vmem:[#allocation2 + $0xb8] sm:$0xff]
      %v781 = vld [vmem:[#allocation2 + $0xc0] sm:$0xff]
      %v782 = vld [vmem:[#allocation2 + $0xc8] sm:$0xff]
      %v783 = vld [vmem:[#allocation2 + $0xd0] sm:$0xff]
      %v784 = vld [vmem:[#allocation2 + $0xd8] sm:$0x3f]
      %v785 = vld [vmem:[%s254 + $0x2] sm:$0xff]
      %v786 = vld [vmem:[%s254 + $0xa] sm:$0xff]
      %v787 = vld [vmem:[%s254 + $0x12] sm:$0xff]
      %v788 = vld [vmem:[%s254 + $0x1a] sm:$0xff]
      %v789 = vld [vmem:[%s254 + $0x22] sm:$0xff]
      %v790 = vld [vmem:[%s254 + $0x2a] sm:$0xff]
      %v791 = vld [vmem:[%s254 + $0x32] sm:$0xff]
      %v792 = vld [vmem:[%s254 + $0x3a] sm:$0xff]
      %v793 = vld [vmem:[%s254 + $0x42] sm:$0xff]
      %v794 = vld [vmem:[%s254 + $0x4a] sm:$0xff]
      %v795 = vld [vmem:[%s254 + $0x52] sm:$0xff]
      %v796 = vld [vmem:[%s254 + $0x5a] sm:$0xff]
      %v797 = vld [vmem:[%s254 + $0x62] sm:$0xff]
      %v798 = vld [vmem:[%s254 + $0x6a] sm:$0xff]
      %v799 = vld [vmem:[%s254 + $0x72] sm:$0xff]
      %v800 = vld [vmem:[%s254 + $0x7a] sm:$0xff]
      %v801 = vld [vmem:[%s254 + $0x82] sm:$0xff]
      %v802 = vld [vmem:[%s254 + $0x8a] sm:$0xff]
      %v803 = vld [vmem:[%s254 + $0x92] sm:$0xff]
      %v804 = vld [vmem:[%s254 + $0x9a] sm:$0xff]
      %v805 = vld [vmem:[%s254 + $0xa2] sm:$0xff]
      %v806 = vld [vmem:[%s254 + $0xaa] sm:$0xff]
      %v807 = vld [vmem:[%s254 + $0xb2] sm:$0xff]
      %v808 = vld [vmem:[%s254 + $0xba] sm:$0xff]
      %v809 = vld [vmem:[%s254 + $0xc2] sm:$0xff]
      %v810 = vld [vmem:[%s254 + $0xca] sm:$0xff]
      %v811 = vld [vmem:[%s254 + $0xd2] sm:$0xff]
      %v812 = vld [vmem:[%s254 + $0xda] sm:$0x3f]
      %s813 = scalar_lea.vmem %s1, 256
      %v814 = vld [vmem:[%s813] sm:$0xff]
      %v815 = vld [vmem:[%s813 + $0x8] sm:$0xff]
      %v816 = vld [vmem:[%s813 + $0x10] sm:$0xff]
      %v817 = vld [vmem:[%s813 + $0x18] sm:$0xff]
      %v818 = vld [vmem:[%s813 + $0x20] sm:$0xff]
      %v819 = vld [vmem:[%s813 + $0x28] sm:$0xff]
      %v820 = vld [vmem:[%s813 + $0x30] sm:$0xff]
      %v821 = vld [vmem:[%s813 + $0x38] sm:$0xff]
      %v822 = vld [vmem:[%s813 + $0x40] sm:$0xff]
      %v823 = vld [vmem:[%s813 + $0x48] sm:$0xff]
      %v824 = vld [vmem:[%s813 + $0x50] sm:$0xff]
      %v825 = vld [vmem:[%s813 + $0x58] sm:$0xff]
      %v826 = vld [vmem:[%s813 + $0x60] sm:$0xff]
      %v827 = vld [vmem:[%s813 + $0x68] sm:$0xff]
      %v828 = vld [vmem:[%s813 + $0x70] sm:$0xff]
      %v829 = vld [vmem:[%s813 + $0x78] sm:$0xff]
      %830 = vmatpush.msra.mxu0 %v829
      %831 = vmatpush.msra.mxu0 %v828
      %832 = vmatpush.msra.mxu0 %v827
      %833 = vmatpush.msra.mxu0 %v826
      %834 = vmatpush.msra.mxu0 %v825
      %835 = vmatpush.msra.mxu0 %v824
      %836 = vmatpush.msra.mxu0 %v823
      %837 = vmatpush.msra.mxu0 %v822
      %838 = vmatpush.msra.mxu0 %v821
      %839 = vmatpush.msra.mxu0 %v820
      %840 = vmatpush.msra.mxu0 %v819
      %841 = vmatpush.msra.mxu0 %v818
      %842 = vmatpush.msra.mxu0 %v817
      %843 = vmatpush.msra.mxu0 %v816
      %844 = vmatpush.msra.mxu0 %v815
      %845 = vmatpush.msra.mxu0 %v814
      %846 = vmatmul.f32.gmra.mxu0 %v785
      %v847 = vpop.f32.mrf.mxu0
      %v848 = vadd.f32 0.0, %v847
      %849 = vmatmul.f32.gmra.mxu0 %v786
      %v850 = vpop.f32.mrf.mxu0
      %v851 = vadd.f32 0.0, %v850
      %852 = vmatmul.f32.gmra.mxu0 %v787
      %v853 = vpop.f32.mrf.mxu0
      %v854 = vadd.f32 0.0, %v853
      %855 = vmatmul.f32.gmra.mxu0 %v788
      %v856 = vpop.f32.mrf.mxu0
      %v857 = vadd.f32 0.0, %v856
      %858 = vmatmul.f32.gmra.mxu0 %v789
      %v859 = vpop.f32.mrf.mxu0
      %v860 = vadd.f32 0.0, %v859
      %861 = vmatmul.f32.gmra.mxu0 %v790
      %v862 = vpop.f32.mrf.mxu0
      %v863 = vadd.f32 0.0, %v862
      %864 = vmatmul.f32.gmra.mxu0 %v791
      %v865 = vpop.f32.mrf.mxu0
      %v866 = vadd.f32 0.0, %v865
      %867 = vmatmul.f32.gmra.mxu0 %v792
      %v868 = vpop.f32.mrf.mxu0
      %v869 = vadd.f32 0.0, %v868
      %870 = vmatmul.f32.gmra.mxu0 %v793
      %v871 = vpop.f32.mrf.mxu0
      %v872 = vadd.f32 0.0, %v871
      %873 = vmatmul.f32.gmra.mxu0 %v794
      %v874 = vpop.f32.mrf.mxu0
      %v875 = vadd.f32 0.0, %v874
      %876 = vmatmul.f32.gmra.mxu0 %v795
      %v877 = vpop.f32.mrf.mxu0
      %v878 = vadd.f32 0.0, %v877
      %879 = vmatmul.f32.gmra.mxu0 %v796
      %v880 = vpop.f32.mrf.mxu0
      %v881 = vadd.f32 0.0, %v880
      %882 = vmatmul.f32.gmra.mxu0 %v797
      %v883 = vpop.f32.mrf.mxu0
      %v884 = vadd.f32 0.0, %v883
      %885 = vmatmul.f32.gmra.mxu0 %v798
      %v886 = vpop.f32.mrf.mxu0
      %v887 = vadd.f32 0.0, %v886
      %888 = vmatmul.f32.gmra.mxu0 %v799
      %v889 = vpop.f32.mrf.mxu0
      %v890 = vadd.f32 0.0, %v889
      %891 = vmatmul.f32.gmra.mxu0 %v800
      %v892 = vpop.f32.mrf.mxu0
      %v893 = vadd.f32 0.0, %v892
      %894 = vmatmul.f32.gmra.mxu0 %v801
      %v895 = vpop.f32.mrf.mxu0
      %v896 = vadd.f32 0.0, %v895
      %897 = vmatmul.f32.gmra.mxu0 %v802
      %v898 = vpop.f32.mrf.mxu0
      %v899 = vadd.f32 0.0, %v898
      %900 = vmatmul.f32.gmra.mxu0 %v803
      %v901 = vpop.f32.mrf.mxu0
      %v902 = vadd.f32 0.0, %v901
      %903 = vmatmul.f32.gmra.mxu0 %v804
      %v904 = vpop.f32.mrf.mxu0
      %v905 = vadd.f32 0.0, %v904
      %906 = vmatmul.f32.gmra.mxu0 %v805
      %v907 = vpop.f32.mrf.mxu0
      %v908 = vadd.f32 0.0, %v907
      %909 = vmatmul.f32.gmra.mxu0 %v806
      %v910 = vpop.f32.mrf.mxu0
      %v911 = vadd.f32 0.0, %v910
      %912 = vmatmul.f32.gmra.mxu0 %v807
      %v913 = vpop.f32.mrf.mxu0
      %v914 = vadd.f32 0.0, %v913
      %915 = vmatmul.f32.gmra.mxu0 %v808
      %v916 = vpop.f32.mrf.mxu0
      %v917 = vadd.f32 0.0, %v916
      %918 = vmatmul.f32.gmra.mxu0 %v809
      %v919 = vpop.f32.mrf.mxu0
      %v920 = vadd.f32 0.0, %v919
      %921 = vmatmul.f32.gmra.mxu0 %v810
      %v922 = vpop.f32.mrf.mxu0
      %v923 = vadd.f32 0.0, %v922
      %924 = vmatmul.f32.gmra.mxu0 %v811
      %v925 = vpop.f32.mrf.mxu0
      %v926 = vadd.f32 0.0, %v925
      %927 = vmatmul.f32.gmra.mxu0 %v812
      %v928 = vpop.f32.mrf.mxu0
      %v929 = vadd.f32 0.0, %v928
      %930 = vdwg.mxu0
      %v931 = vadd.f32 %v757, %v848
      %v932 = vadd.f32 %v758, %v851
      %v933 = vadd.f32 %v759, %v854
      %v934 = vadd.f32 %v760, %v857
      %v935 = vadd.f32 %v761, %v860
      %v936 = vadd.f32 %v762, %v863
      %v937 = vadd.f32 %v763, %v866
      %v938 = vadd.f32 %v764, %v869
      %v939 = vadd.f32 %v765, %v872
      %v940 = vadd.f32 %v766, %v875
      %v941 = vadd.f32 %v767, %v878
      %v942 = vadd.f32 %v768, %v881
      %v943 = vadd.f32 %v769, %v884
      %v944 = vadd.f32 %v770, %v887
      %v945 = vadd.f32 %v771, %v890
      %v946 = vadd.f32 %v772, %v893
      %v947 = vadd.f32 %v773, %v896
      %v948 = vadd.f32 %v774, %v899
      %v949 = vadd.f32 %v775, %v902
      %v950 = vadd.f32 %v776, %v905
      %v951 = vadd.f32 %v777, %v908
      %v952 = vadd.f32 %v778, %v911
      %v953 = vadd.f32 %v779, %v914
      %v954 = vadd.f32 %v780, %v917
      %v955 = vadd.f32 %v781, %v920
      %v956 = vadd.f32 %v782, %v923
      %v957 = vadd.f32 %v783, %v926
      %v958 = vadd.f32 %v784, %v929
      %959 = vst [vmem:[#allocation2] sm:$0xff] %v931
      %960 = vst [vmem:[#allocation2 + $0x8] sm:$0xff] %v932
      %961 = vst [vmem:[#allocation2 + $0x10] sm:$0xff] %v933
      %962 = vst [vmem:[#allocation2 + $0x18] sm:$0xff] %v934
      %963 = vst [vmem:[#allocation2 + $0x20] sm:$0xff] %v935
      %964 = vst [vmem:[#allocation2 + $0x28] sm:$0xff] %v936
      %965 = vst [vmem:[#allocation2 + $0x30] sm:$0xff] %v937
      %966 = vst [vmem:[#allocation2 + $0x38] sm:$0xff] %v938
      %967 = vst [vmem:[#allocation2 + $0x40] sm:$0xff] %v939
      %968 = vst [vmem:[#allocation2 + $0x48] sm:$0xff] %v940
      %969 = vst [vmem:[#allocation2 + $0x50] sm:$0xff] %v941
      %970 = vst [vmem:[#allocation2 + $0x58] sm:$0xff] %v942
      %971 = vst [vmem:[#allocation2 + $0x60] sm:$0xff] %v943
      %972 = vst [vmem:[#allocation2 + $0x68] sm:$0xff] %v944
      %973 = vst [vmem:[#allocation2 + $0x70] sm:$0xff] %v945
      %974 = vst [vmem:[#allocation2 + $0x78] sm:$0xff] %v946
      %975 = vst [vmem:[#allocation2 + $0x80] sm:$0xff] %v947
      %976 = vst [vmem:[#allocation2 + $0x88] sm:$0xff] %v948
      %977 = vst [vmem:[#allocation2 + $0x90] sm:$0xff] %v949
      %978 = vst [vmem:[#allocation2 + $0x98] sm:$0xff] %v950
      %979 = vst [vmem:[#allocation2 + $0xa0] sm:$0xff] %v951
      %980 = vst [vmem:[#allocation2 + $0xa8] sm:$0xff] %v952
      %981 = vst [vmem:[#allocation2 + $0xb0] sm:$0xff] %v953
      %982 = vst [vmem:[#allocation2 + $0xb8] sm:$0xff] %v954
      %983 = vst [vmem:[#allocation2 + $0xc0] sm:$0xff] %v955
      %984 = vst [vmem:[#allocation2 + $0xc8] sm:$0xff] %v956
      %985 = vst [vmem:[#allocation2 + $0xd0] sm:$0xff] %v957
      %986 = vst [vmem:[#allocation2 + $0xd8] sm:$0x3f] %v958
      %v987 = vld [vmem:[#allocation2] sm:$0xff]
      %v988 = vld [vmem:[#allocation2 + $0x8] sm:$0xff]
      %v989 = vld [vmem:[#allocation2 + $0x10] sm:$0xff]
      %v990 = vld [vmem:[#allocation2 + $0x18] sm:$0xff]
      %v991 = vld [vmem:[#allocation2 + $0x20] sm:$0xff]
      %v992 = vld [vmem:[#allocation2 + $0x28] sm:$0xff]
      %v993 = vld [vmem:[#allocation2 + $0x30] sm:$0xff]
      %v994 = vld [vmem:[#allocation2 + $0x38] sm:$0xff]
      %v995 = vld [vmem:[#allocation2 + $0x40] sm:$0xff]
      %v996 = vld [vmem:[#allocation2 + $0x48] sm:$0xff]
      %v997 = vld [vmem:[#allocation2 + $0x50] sm:$0xff]
      %v998 = vld [vmem:[#allocation2 + $0x58] sm:$0xff]
      %v999 = vld [vmem:[#allocation2 + $0x60] sm:$0xff]
      %v1000 = vld [vmem:[#allocation2 + $0x68] sm:$0xff]
      %v1001 = vld [vmem:[#allocation2 + $0x70] sm:$0xff]
      %v1002 = vld [vmem:[#allocation2 + $0x78] sm:$0xff]
      %v1003 = vld [vmem:[#allocation2 + $0x80] sm:$0xff]
      %v1004 = vld [vmem:[#allocation2 + $0x88] sm:$0xff]
      %v1005 = vld [vmem:[#allocation2 + $0x90] sm:$0xff]
      %v1006 = vld [vmem:[#allocation2 + $0x98] sm:$0xff]
      %v1007 = vld [vmem:[#allocation2 + $0xa0] sm:$0xff]
      %v1008 = vld [vmem:[#allocation2 + $0xa8] sm:$0xff]
      %v1009 = vld [vmem:[#allocation2 + $0xb0] sm:$0xff]
      %v1010 = vld [vmem:[#allocation2 + $0xb8] sm:$0xff]
      %v1011 = vld [vmem:[#allocation2 + $0xc0] sm:$0xff]
      %v1012 = vld [vmem:[#allocation2 + $0xc8] sm:$0xff]
      %v1013 = vld [vmem:[#allocation2 + $0xd0] sm:$0xff]
      %v1014 = vld [vmem:[#allocation2 + $0xd8] sm:$0x3f]
      %v1015 = vld [vmem:[%s254 + $0x10] sm:$0xff]
      %v1016 = vld [vmem:[%s254 + $0x18] sm:$0xff]
      %v1017 = vld [vmem:[%s254 + $0x20] sm:$0xff]
      %v1018 = vld [vmem:[%s254 + $0x28] sm:$0xff]
      %v1019 = vld [vmem:[%s254 + $0x30] sm:$0xff]
      %v1020 = vld [vmem:[%s254 + $0x38] sm:$0xff]
      %v1021 = vld [vmem:[%s254 + $0x40] sm:$0xff]
      %v1022 = vld [vmem:[%s254 + $0x48] sm:$0xff]
      %v1023 = vld [vmem:[%s254 + $0x50] sm:$0xff]
      %v1024 = vld [vmem:[%s254 + $0x58] sm:$0xff]
      %v1025 = vld [vmem:[%s254 + $0x60] sm:$0xff]
      %v1026 = vld [vmem:[%s254 + $0x68] sm:$0xff]
      %v1027 = vld [vmem:[%s254 + $0x70] sm:$0xff]
      %v1028 = vld [vmem:[%s254 + $0x78] sm:$0xff]
      %v1029 = vld [vmem:[%s254 + $0x80] sm:$0xff]
      %v1030 = vld [vmem:[%s254 + $0x88] sm:$0xff]
      %v1031 = vld [vmem:[%s254 + $0x90] sm:$0xff]
      %v1032 = vld [vmem:[%s254 + $0x98] sm:$0xff]
      %v1033 = vld [vmem:[%s254 + $0xa0] sm:$0xff]
      %v1034 = vld [vmem:[%s254 + $0xa8] sm:$0xff]
      %v1035 = vld [vmem:[%s254 + $0xb0] sm:$0xff]
      %v1036 = vld [vmem:[%s254 + $0xb8] sm:$0xff]
      %v1037 = vld [vmem:[%s254 + $0xc0] sm:$0xff]
      %v1038 = vld [vmem:[%s254 + $0xc8] sm:$0xff]
      %v1039 = vld [vmem:[%s254 + $0xd0] sm:$0xff]
      %v1040 = vld [vmem:[%s254 + $0xd8] sm:$0xff]
      %v1041 = vld [vmem:[%s254 + $0xe0] sm:$0xff]
      %v1042 = vld [vmem:[%s254 + $0xe8] sm:$0x3f]
      %s1043 = scalar_lea.vmem %s1, 384
      %v1044 = vld [vmem:[%s1043] sm:$0xff]
      %v1045 = vld [vmem:[%s1043 + $0x8] sm:$0xff]
      %v1046 = vld [vmem:[%s1043 + $0x10] sm:$0xff]
      %v1047 = vld [vmem:[%s1043 + $0x18] sm:$0xff]
      %v1048 = vld [vmem:[%s1043 + $0x20] sm:$0xff]
      %v1049 = vld [vmem:[%s1043 + $0x28] sm:$0xff]
      %v1050 = vld [vmem:[%s1043 + $0x30] sm:$0xff]
      %v1051 = vld [vmem:[%s1043 + $0x38] sm:$0xff]
      %v1052 = vld [vmem:[%s1043 + $0x40] sm:$0xff]
      %v1053 = vld [vmem:[%s1043 + $0x48] sm:$0xff]
      %v1054 = vld [vmem:[%s1043 + $0x50] sm:$0xff]
      %v1055 = vld [vmem:[%s1043 + $0x58] sm:$0xff]
      %v1056 = vld [vmem:[%s1043 + $0x60] sm:$0xff]
      %v1057 = vld [vmem:[%s1043 + $0x68] sm:$0xff]
      %v1058 = vld [vmem:[%s1043 + $0x70] sm:$0xff]
      %v1059 = vld [vmem:[%s1043 + $0x78] sm:$0xff]
      %1060 = vmatpush.msra.mxu0 %v1059
      %1061 = vmatpush.msra.mxu0 %v1058
      %1062 = vmatpush.msra.mxu0 %v1057
      %1063 = vmatpush.msra.mxu0 %v1056
      %1064 = vmatpush.msra.mxu0 %v1055
      %1065 = vmatpush.msra.mxu0 %v1054
      %1066 = vmatpush.msra.mxu0 %v1053
      %1067 = vmatpush.msra.mxu0 %v1052
      %1068 = vmatpush.msra.mxu0 %v1051
      %1069 = vmatpush.msra.mxu0 %v1050
      %1070 = vmatpush.msra.mxu0 %v1049
      %1071 = vmatpush.msra.mxu0 %v1048
      %1072 = vmatpush.msra.mxu0 %v1047
      %1073 = vmatpush.msra.mxu0 %v1046
      %1074 = vmatpush.msra.mxu0 %v1045
      %1075 = vmatpush.msra.mxu0 %v1044
      %1076 = vmatmul.f32.gmra.mxu0 %v1015
      %v1077 = vpop.f32.mrf.mxu0
      %v1078 = vadd.f32 0.0, %v1077
      %1079 = vmatmul.f32.gmra.mxu0 %v1016
      %v1080 = vpop.f32.mrf.mxu0
      %v1081 = vadd.f32 0.0, %v1080
      %1082 = vmatmul.f32.gmra.mxu0 %v1017
      %v1083 = vpop.f32.mrf.mxu0
      %v1084 = vadd.f32 0.0, %v1083
      %1085 = vmatmul.f32.gmra.mxu0 %v1018
      %v1086 = vpop.f32.mrf.mxu0
      %v1087 = vadd.f32 0.0, %v1086
      %1088 = vmatmul.f32.gmra.mxu0 %v1019
      %v1089 = vpop.f32.mrf.mxu0
      %v1090 = vadd.f32 0.0, %v1089
      %1091 = vmatmul.f32.gmra.mxu0 %v1020
      %v1092 = vpop.f32.mrf.mxu0
      %v1093 = vadd.f32 0.0, %v1092
      %1094 = vmatmul.f32.gmra.mxu0 %v1021
      %v1095 = vpop.f32.mrf.mxu0
      %v1096 = vadd.f32 0.0, %v1095
      %1097 = vmatmul.f32.gmra.mxu0 %v1022
      %v1098 = vpop.f32.mrf.mxu0
      %v1099 = vadd.f32 0.0, %v1098
      %1100 = vmatmul.f32.gmra.mxu0 %v1023
      %v1101 = vpop.f32.mrf.mxu0
      %v1102 = vadd.f32 0.0, %v1101
      %1103 = vmatmul.f32.gmra.mxu0 %v1024
      %v1104 = vpop.f32.mrf.mxu0
      %v1105 = vadd.f32 0.0, %v1104
      %1106 = vmatmul.f32.gmra.mxu0 %v1025
      %v1107 = vpop.f32.mrf.mxu0
      %v1108 = vadd.f32 0.0, %v1107
      %1109 = vmatmul.f32.gmra.mxu0 %v1026
      %v1110 = vpop.f32.mrf.mxu0
      %v1111 = vadd.f32 0.0, %v1110
      %1112 = vmatmul.f32.gmra.mxu0 %v1027
      %v1113 = vpop.f32.mrf.mxu0
      %v1114 = vadd.f32 0.0, %v1113
      %1115 = vmatmul.f32.gmra.mxu0 %v1028
      %v1116 = vpop.f32.mrf.mxu0
      %v1117 = vadd.f32 0.0, %v1116
      %1118 = vmatmul.f32.gmra.mxu0 %v1029
      %v1119 = vpop.f32.mrf.mxu0
      %v1120 = vadd.f32 0.0, %v1119
      %1121 = vmatmul.f32.gmra.mxu0 %v1030
      %v1122 = vpop.f32.mrf.mxu0
      %v1123 = vadd.f32 0.0, %v1122
      %1124 = vmatmul.f32.gmra.mxu0 %v1031
      %v1125 = vpop.f32.mrf.mxu0
      %v1126 = vadd.f32 0.0, %v1125
      %1127 = vmatmul.f32.gmra.mxu0 %v1032
      %v1128 = vpop.f32.mrf.mxu0
      %v1129 = vadd.f32 0.0, %v1128
      %1130 = vmatmul.f32.gmra.mxu0 %v1033
      %v1131 = vpop.f32.mrf.mxu0
      %v1132 = vadd.f32 0.0, %v1131
      %1133 = vmatmul.f32.gmra.mxu0 %v1034
      %v1134 = vpop.f32.mrf.mxu0
      %v1135 = vadd.f32 0.0, %v1134
      %1136 = vmatmul.f32.gmra.mxu0 %v1035
      %v1137 = vpop.f32.mrf.mxu0
      %v1138 = vadd.f32 0.0, %v1137
      %1139 = vmatmul.f32.gmra.mxu0 %v1036
      %v1140 = vpop.f32.mrf.mxu0
      %v1141 = vadd.f32 0.0, %v1140
      %1142 = vmatmul.f32.gmra.mxu0 %v1037
      %v1143 = vpop.f32.mrf.mxu0
      %v1144 = vadd.f32 0.0, %v1143
      %1145 = vmatmul.f32.gmra.mxu0 %v1038
      %v1146 = vpop.f32.mrf.mxu0
      %v1147 = vadd.f32 0.0, %v1146
      %1148 = vmatmul.f32.gmra.mxu0 %v1039
      %v1149 = vpop.f32.mrf.mxu0
      %v1150 = vadd.f32 0.0, %v1149
      %1151 = vmatmul.f32.gmra.mxu0 %v1040
      %v1152 = vpop.f32.mrf.mxu0
      %v1153 = vadd.f32 0.0, %v1152
      %1154 = vmatmul.f32.gmra.mxu0 %v1041
      %v1155 = vpop.f32.mrf.mxu0
      %v1156 = vadd.f32 0.0, %v1155
      %1157 = vmatmul.f32.gmra.mxu0 %v1042
      %v1158 = vpop.f32.mrf.mxu0
      %v1159 = vadd.f32 0.0, %v1158
      %1160 = vdwg.mxu0
      %v1161 = vadd.f32 %v987, %v1078
      %v1162 = vadd.f32 %v988, %v1081
      %v1163 = vadd.f32 %v989, %v1084
      %v1164 = vadd.f32 %v990, %v1087
      %v1165 = vadd.f32 %v991, %v1090
      %v1166 = vadd.f32 %v992, %v1093
      %v1167 = vadd.f32 %v993, %v1096
      %v1168 = vadd.f32 %v994, %v1099
      %v1169 = vadd.f32 %v995, %v1102
      %v1170 = vadd.f32 %v996, %v1105
      %v1171 = vadd.f32 %v997, %v1108
      %v1172 = vadd.f32 %v998, %v1111
      %v1173 = vadd.f32 %v999, %v1114
      %v1174 = vadd.f32 %v1000, %v1117
      %v1175 = vadd.f32 %v1001, %v1120
      %v1176 = vadd.f32 %v1002, %v1123
      %v1177 = vadd.f32 %v1003, %v1126
      %v1178 = vadd.f32 %v1004, %v1129
      %v1179 = vadd.f32 %v1005, %v1132
      %v1180 = vadd.f32 %v1006, %v1135
      %v1181 = vadd.f32 %v1007, %v1138
      %v1182 = vadd.f32 %v1008, %v1141
      %v1183 = vadd.f32 %v1009, %v1144
      %v1184 = vadd.f32 %v1010, %v1147
      %v1185 = vadd.f32 %v1011, %v1150
      %v1186 = vadd.f32 %v1012, %v1153
      %v1187 = vadd.f32 %v1013, %v1156
      %v1188 = vadd.f32 %v1014, %v1159
      %1189 = vst [vmem:[#allocation2] sm:$0xff] %v1161
      %1190 = vst [vmem:[#allocation2 + $0x8] sm:$0xff] %v1162
      %1191 = vst [vmem:[#allocation2 + $0x10] sm:$0xff] %v1163
      %1192 = vst [vmem:[#allocation2 + $0x18] sm:$0xff] %v1164
      %1193 = vst [vmem:[#allocation2 + $0x20] sm:$0xff] %v1165
      %1194 = vst [vmem:[#allocation2 + $0x28] sm:$0xff] %v1166
      %1195 = vst [vmem:[#allocation2 + $0x30] sm:$0xff] %v1167
      %1196 = vst [vmem:[#allocation2 + $0x38] sm:$0xff] %v1168
      %1197 = vst [vmem:[#allocation2 + $0x40] sm:$0xff] %v1169
      %1198 = vst [vmem:[#allocation2 + $0x48] sm:$0xff] %v1170
      %1199 = vst [vmem:[#allocation2 + $0x50] sm:$0xff] %v1171
      %1200 = vst [vmem:[#allocation2 + $0x58] sm:$0xff] %v1172
      %1201 = vst [vmem:[#allocation2 + $0x60] sm:$0xff] %v1173
      %1202 = vst [vmem:[#allocation2 + $0x68] sm:$0xff] %v1174
      %1203 = vst [vmem:[#allocation2 + $0x70] sm:$0xff] %v1175
      %1204 = vst [vmem:[#allocation2 + $0x78] sm:$0xff] %v1176
      %1205 = vst [vmem:[#allocation2 + $0x80] sm:$0xff] %v1177
      %1206 = vst [vmem:[#allocation2 + $0x88] sm:$0xff] %v1178
      %1207 = vst [vmem:[#allocation2 + $0x90] sm:$0xff] %v1179
      %1208 = vst [vmem:[#allocation2 + $0x98] sm:$0xff] %v1180
      %1209 = vst [vmem:[#allocation2 + $0xa0] sm:$0xff] %v1181
      %1210 = vst [vmem:[#allocation2 + $0xa8] sm:$0xff] %v1182
      %1211 = vst [vmem:[#allocation2 + $0xb0] sm:$0xff] %v1183
      %1212 = vst [vmem:[#allocation2 + $0xb8] sm:$0xff] %v1184
      %1213 = vst [vmem:[#allocation2 + $0xc0] sm:$0xff] %v1185
      %1214 = vst [vmem:[#allocation2 + $0xc8] sm:$0xff] %v1186
      %1215 = vst [vmem:[#allocation2 + $0xd0] sm:$0xff] %v1187
      %1216 = vst [vmem:[#allocation2 + $0xd8] sm:$0x3f] %v1188
      %v1217 = vld [vmem:[#allocation2] sm:$0xff]
      %v1218 = vld [vmem:[#allocation2 + $0x8] sm:$0xff]
      %v1219 = vld [vmem:[#allocation2 + $0x10] sm:$0xff]
      %v1220 = vld [vmem:[#allocation2 + $0x18] sm:$0xff]
      %v1221 = vld [vmem:[#allocation2 + $0x20] sm:$0xff]
      %v1222 = vld [vmem:[#allocation2 + $0x28] sm:$0xff]
      %v1223 = vld [vmem:[#allocation2 + $0x30] sm:$0xff]
      %v1224 = vld [vmem:[#allocation2 + $0x38] sm:$0xff]
      %v1225 = vld [vmem:[#allocation2 + $0x40] sm:$0xff]
      %v1226 = vld [vmem:[#allocation2 + $0x48] sm:$0xff]
      %v1227 = vld [vmem:[#allocation2 + $0x50] sm:$0xff]
      %v1228 = vld [vmem:[#allocation2 + $0x58] sm:$0xff]
      %v1229 = vld [vmem:[#allocation2 + $0x60] sm:$0xff]
      %v1230 = vld [vmem:[#allocation2 + $0x68] sm:$0xff]
      %v1231 = vld [vmem:[#allocation2 + $0x70] sm:$0xff]
      %v1232 = vld [vmem:[#allocation2 + $0x78] sm:$0xff]
      %v1233 = vld [vmem:[#allocation2 + $0x80] sm:$0xff]
      %v1234 = vld [vmem:[#allocation2 + $0x88] sm:$0xff]
      %v1235 = vld [vmem:[#allocation2 + $0x90] sm:$0xff]
      %v1236 = vld [vmem:[#allocation2 + $0x98] sm:$0xff]
      %v1237 = vld [vmem:[#allocation2 + $0xa0] sm:$0xff]
      %v1238 = vld [vmem:[#allocation2 + $0xa8] sm:$0xff]
      %v1239 = vld [vmem:[#allocation2 + $0xb0] sm:$0xff]
      %v1240 = vld [vmem:[#allocation2 + $0xb8] sm:$0xff]
      %v1241 = vld [vmem:[#allocation2 + $0xc0] sm:$0xff]
      %v1242 = vld [vmem:[#allocation2 + $0xc8] sm:$0xff]
      %v1243 = vld [vmem:[#allocation2 + $0xd0] sm:$0xff]
      %v1244 = vld [vmem:[#allocation2 + $0xd8] sm:$0x3f]
      %v1245 = vld [vmem:[%s254 + $0x11] sm:$0xff]
      %v1246 = vld [vmem:[%s254 + $0x19] sm:$0xff]
      %v1247 = vld [vmem:[%s254 + $0x21] sm:$0xff]
      %v1248 = vld [vmem:[%s254 + $0x29] sm:$0xff]
      %v1249 = vld [vmem:[%s254 + $0x31] sm:$0xff]
      %v1250 = vld [vmem:[%s254 + $0x39] sm:$0xff]
      %v1251 = vld [vmem:[%s254 + $0x41] sm:$0xff]
      %v1252 = vld [vmem:[%s254 + $0x49] sm:$0xff]
      %v1253 = vld [vmem:[%s254 + $0x51] sm:$0xff]
      %v1254 = vld [vmem:[%s254 + $0x59] sm:$0xff]
      %v1255 = vld [vmem:[%s254 + $0x61] sm:$0xff]
      %v1256 = vld [vmem:[%s254 + $0x69] sm:$0xff]
      %v1257 = vld [vmem:[%s254 + $0x71] sm:$0xff]
      %v1258 = vld [vmem:[%s254 + $0x79] sm:$0xff]
      %v1259 = vld [vmem:[%s254 + $0x81] sm:$0xff]
      %v1260 = vld [vmem:[%s254 + $0x89] sm:$0xff]
      %v1261 = vld [vmem:[%s254 + $0x91] sm:$0xff]
      %v1262 = vld [vmem:[%s254 + $0x99] sm:$0xff]
      %v1263 = vld [vmem:[%s254 + $0xa1] sm:$0xff]
      %v1264 = vld [vmem:[%s254 + $0xa9] sm:$0xff]
      %v1265 = vld [vmem:[%s254 + $0xb1] sm:$0xff]
      %v1266 = vld [vmem:[%s254 + $0xb9] sm:$0xff]
      %v1267 = vld [vmem:[%s254 + $0xc1] sm:$0xff]
      %v1268 = vld [vmem:[%s254 + $0xc9] sm:$0xff]
      %v1269 = vld [vmem:[%s254 + $0xd1] sm:$0xff]
      %v1270 = vld [vmem:[%s254 + $0xd9] sm:$0xff]
      %v1271 = vld [vmem:[%s254 + $0xe1] sm:$0xff]
      %v1272 = vld [vmem:[%s254 + $0xe9] sm:$0x3f]
      %s1273 = scalar_lea.vmem %s1, 512
      %v1274 = vld [vmem:[%s1273] sm:$0xff]
      %v1275 = vld [vmem:[%s1273 + $0x8] sm:$0xff]
      %v1276 = vld [vmem:[%s1273 + $0x10] sm:$0xff]
      %v1277 = vld [vmem:[%s1273 + $0x18] sm:$0xff]
      %v1278 = vld [vmem:[%s1273 + $0x20] sm:$0xff]
      %v1279 = vld [vmem:[%s1273 + $0x28] sm:$0xff]
      %v1280 = vld [vmem:[%s1273 + $0x30] sm:$0xff]
      %v1281 = vld [vmem:[%s1273 + $0x38] sm:$0xff]
      %v1282 = vld [vmem:[%s1273 + $0x40] sm:$0xff]
      %v1283 = vld [vmem:[%s1273 + $0x48] sm:$0xff]
      %v1284 = vld [vmem:[%s1273 + $0x50] sm:$0xff]
      %v1285 = vld [vmem:[%s1273 + $0x58] sm:$0xff]
      %v1286 = vld [vmem:[%s1273 + $0x60] sm:$0xff]
      %v1287 = vld [vmem:[%s1273 + $0x68] sm:$0xff]
      %v1288 = vld [vmem:[%s1273 + $0x70] sm:$0xff]
      %v1289 = vld [vmem:[%s1273 + $0x78] sm:$0xff]
      %1290 = vmatpush.msra.mxu0 %v1289
      %1291 = vmatpush.msra.mxu0 %v1288
      %1292 = vmatpush.msra.mxu0 %v1287
      %1293 = vmatpush.msra.mxu0 %v1286
      %1294 = vmatpush.msra.mxu0 %v1285
      %1295 = vmatpush.msra.mxu0 %v1284
      %1296 = vmatpush.msra.mxu0 %v1283
      %1297 = vmatpush.msra.mxu0 %v1282
      %1298 = vmatpush.msra.mxu0 %v1281
      %1299 = vmatpush.msra.mxu0 %v1280
      %1300 = vmatpush.msra.mxu0 %v1279
      %1301 = vmatpush.msra.mxu0 %v1278
      %1302 = vmatpush.msra.mxu0 %v1277
      %1303 = vmatpush.msra.mxu0 %v1276
      %1304 = vmatpush.msra.mxu0 %v1275
      %1305 = vmatpush.msra.mxu0 %v1274
      %1306 = vmatmul.f32.gmra.mxu0 %v1245
      %v1307 = vpop.f32.mrf.mxu0
      %v1308 = vadd.f32 0.0, %v1307
      %1309 = vmatmul.f32.gmra.mxu0 %v1246
      %v1310 = vpop.f32.mrf.mxu0
      %v1311 = vadd.f32 0.0, %v1310
      %1312 = vmatmul.f32.gmra.mxu0 %v1247
      %v1313 = vpop.f32.mrf.mxu0
      %v1314 = vadd.f32 0.0, %v1313
      %1315 = vmatmul.f32.gmra.mxu0 %v1248
      %v1316 = vpop.f32.mrf.mxu0
      %v1317 = vadd.f32 0.0, %v1316
      %1318 = vmatmul.f32.gmra.mxu0 %v1249
      %v1319 = vpop.f32.mrf.mxu0
      %v1320 = vadd.f32 0.0, %v1319
      %1321 = vmatmul.f32.gmra.mxu0 %v1250
      %v1322 = vpop.f32.mrf.mxu0
      %v1323 = vadd.f32 0.0, %v1322
      %1324 = vmatmul.f32.gmra.mxu0 %v1251
      %v1325 = vpop.f32.mrf.mxu0
      %v1326 = vadd.f32 0.0, %v1325
      %1327 = vmatmul.f32.gmra.mxu0 %v1252
      %v1328 = vpop.f32.mrf.mxu0
      %v1329 = vadd.f32 0.0, %v1328
      %1330 = vmatmul.f32.gmra.mxu0 %v1253
      %v1331 = vpop.f32.mrf.mxu0
      %v1332 = vadd.f32 0.0, %v1331
      %1333 = vmatmul.f32.gmra.mxu0 %v1254
      %v1334 = vpop.f32.mrf.mxu0
      %v1335 = vadd.f32 0.0, %v1334
      %1336 = vmatmul.f32.gmra.mxu0 %v1255
      %v1337 = vpop.f32.mrf.mxu0
      %v1338 = vadd.f32 0.0, %v1337
      %1339 = vmatmul.f32.gmra.mxu0 %v1256
      %v1340 = vpop.f32.mrf.mxu0
      %v1341 = vadd.f32 0.0, %v1340
      %1342 = vmatmul.f32.gmra.mxu0 %v1257
      %v1343 = vpop.f32.mrf.mxu0
      %v1344 = vadd.f32 0.0, %v1343
      %1345 = vmatmul.f32.gmra.mxu0 %v1258
      %v1346 = vpop.f32.mrf.mxu0
      %v1347 = vadd.f32 0.0, %v1346
      %1348 = vmatmul.f32.gmra.mxu0 %v1259
      %v1349 = vpop.f32.mrf.mxu0
      %v1350 = vadd.f32 0.0, %v1349
      %1351 = vmatmul.f32.gmra.mxu0 %v1260
      %v1352 = vpop.f32.mrf.mxu0
      %v1353 = vadd.f32 0.0, %v1352
      %1354 = vmatmul.f32.gmra.mxu0 %v1261
      %v1355 = vpop.f32.mrf.mxu0
      %v1356 = vadd.f32 0.0, %v1355
      %1357 = vmatmul.f32.gmra.mxu0 %v1262
      %v1358 = vpop.f32.mrf.mxu0
      %v1359 = vadd.f32 0.0, %v1358
      %1360 = vmatmul.f32.gmra.mxu0 %v1263
      %v1361 = vpop.f32.mrf.mxu0
      %v1362 = vadd.f32 0.0, %v1361
      %1363 = vmatmul.f32.gmra.mxu0 %v1264
      %v1364 = vpop.f32.mrf.mxu0
      %v1365 = vadd.f32 0.0, %v1364
      %1366 = vmatmul.f32.gmra.mxu0 %v1265
      %v1367 = vpop.f32.mrf.mxu0
      %v1368 = vadd.f32 0.0, %v1367
      %1369 = vmatmul.f32.gmra.mxu0 %v1266
      %v1370 = vpop.f32.mrf.mxu0
      %v1371 = vadd.f32 0.0, %v1370
      %1372 = vmatmul.f32.gmra.mxu0 %v1267
      %v1373 = vpop.f32.mrf.mxu0
      %v1374 = vadd.f32 0.0, %v1373
      %1375 = vmatmul.f32.gmra.mxu0 %v1268
      %v1376 = vpop.f32.mrf.mxu0
      %v1377 = vadd.f32 0.0, %v1376
      %1378 = vmatmul.f32.gmra.mxu0 %v1269
      %v1379 = vpop.f32.mrf.mxu0
      %v1380 = vadd.f32 0.0, %v1379
      %1381 = vmatmul.f32.gmra.mxu0 %v1270
      %v1382 = vpop.f32.mrf.mxu0
      %v1383 = vadd.f32 0.0, %v1382
      %1384 = vmatmul.f32.gmra.mxu0 %v1271
      %v1385 = vpop.f32.mrf.mxu0
      %v1386 = vadd.f32 0.0, %v1385
      %1387 = vmatmul.f32.gmra.mxu0 %v1272
      %v1388 = vpop.f32.mrf.mxu0
      %v1389 = vadd.f32 0.0, %v1388
      %1390 = vdwg.mxu0
      %v1391 = vadd.f32 %v1217, %v1308
      %v1392 = vadd.f32 %v1218, %v1311
      %v1393 = vadd.f32 %v1219, %v1314
      %v1394 = vadd.f32 %v1220, %v1317
      %v1395 = vadd.f32 %v1221, %v1320
      %v1396 = vadd.f32 %v1222, %v1323
      %v1397 = vadd.f32 %v1223, %v1326
      %v1398 = vadd.f32 %v1224, %v1329
      %v1399 = vadd.f32 %v1225, %v1332
      %v1400 = vadd.f32 %v1226, %v1335
      %v1401 = vadd.f32 %v1227, %v1338
      %v1402 = vadd.f32 %v1228, %v1341
      %v1403 = vadd.f32 %v1229, %v1344
      %v1404 = vadd.f32 %v1230, %v1347
      %v1405 = vadd.f32 %v1231, %v1350
      %v1406 = vadd.f32 %v1232, %v1353
      %v1407 = vadd.f32 %v1233, %v1356
      %v1408 = vadd.f32 %v1234, %v1359
      %v1409 = vadd.f32 %v1235, %v1362
      %v1410 = vadd.f32 %v1236, %v1365
      %v1411 = vadd.f32 %v1237, %v1368
      %v1412 = vadd.f32 %v1238, %v1371
      %v1413 = vadd.f32 %v1239, %v1374
      %v1414 = vadd.f32 %v1240, %v1377
      %v1415 = vadd.f32 %v1241, %v1380
      %v1416 = vadd.f32 %v1242, %v1383
      %v1417 = vadd.f32 %v1243, %v1386
      %v1418 = vadd.f32 %v1244, %v1389
      %1419 = vst [vmem:[#allocation2] sm:$0xff] %v1391
      %1420 = vst [vmem:[#allocation2 + $0x8] sm:$0xff] %v1392
      %1421 = vst [vmem:[#allocation2 + $0x10] sm:$0xff] %v1393
      %1422 = vst [vmem:[#allocation2 + $0x18] sm:$0xff] %v1394
      %1423 = vst [vmem:[#allocation2 + $0x20] sm:$0xff] %v1395
      %1424 = vst [vmem:[#allocation2 + $0x28] sm:$0xff] %v1396
      %1425 = vst [vmem:[#allocation2 + $0x30] sm:$0xff] %v1397
      %1426 = vst [vmem:[#allocation2 + $0x38] sm:$0xff] %v1398
      %1427 = vst [vmem:[#allocation2 + $0x40] sm:$0xff] %v1399
      %1428 = vst [vmem:[#allocation2 + $0x48] sm:$0xff] %v1400
      %1429 = vst [vmem:[#allocation2 + $0x50] sm:$0xff] %v1401
      %1430 = vst [vmem:[#allocation2 + $0x58] sm:$0xff] %v1402
      %1431 = vst [vmem:[#allocation2 + $0x60] sm:$0xff] %v1403
      %1432 = vst [vmem:[#allocation2 + $0x68] sm:$0xff] %v1404
      %1433 = vst [vmem:[#allocation2 + $0x70] sm:$0xff] %v1405
      %1434 = vst [vmem:[#allocation2 + $0x78] sm:$0xff] %v1406
      %1435 = vst [vmem:[#allocation2 + $0x80] sm:$0xff] %v1407
      %1436 = vst [vmem:[#allocation2 + $0x88] sm:$0xff] %v1408
      %1437 = vst [vmem:[#allocation2 + $0x90] sm:$0xff] %v1409
      %1438 = vst [vmem:[#allocation2 + $0x98] sm:$0xff] %v1410
      %1439 = vst [vmem:[#allocation2 + $0xa0] sm:$0xff] %v1411
      %1440 = vst [vmem:[#allocation2 + $0xa8] sm:$0xff] %v1412
      %1441 = vst [vmem:[#allocation2 + $0xb0] sm:$0xff] %v1413
      %1442 = vst [vmem:[#allocation2 + $0xb8] sm:$0xff] %v1414
      %1443 = vst [vmem:[#allocation2 + $0xc0] sm:$0xff] %v1415
      %1444 = vst [vmem:[#allocation2 + $0xc8] sm:$0xff] %v1416
      %1445 = vst [vmem:[#allocation2 + $0xd0] sm:$0xff] %v1417
      %1446 = vst [vmem:[#allocation2 + $0xd8] sm:$0x3f] %v1418
      %v1447 = vld [vmem:[#allocation2] sm:$0xff]
      %v1448 = vld [vmem:[#allocation2 + $0x8] sm:$0xff]
      %v1449 = vld [vmem:[#allocation2 + $0x10] sm:$0xff]
      %v1450 = vld [vmem:[#allocation2 + $0x18] sm:$0xff]
      %v1451 = vld [vmem:[#allocation2 + $0x20] sm:$0xff]
      %v1452 = vld [vmem:[#allocation2 + $0x28] sm:$0xff]
      %v1453 = vld [vmem:[#allocation2 + $0x30] sm:$0xff]
      %v1454 = vld [vmem:[#allocation2 + $0x38] sm:$0xff]
      %v1455 = vld [vmem:[#allocation2 + $0x40] sm:$0xff]
      %v1456 = vld [vmem:[#allocation2 + $0x48] sm:$0xff]
      %v1457 = vld [vmem:[#allocation2 + $0x50] sm:$0xff]
      %v1458 = vld [vmem:[#allocation2 + $0x58] sm:$0xff]
      %v1459 = vld [vmem:[#allocation2 + $0x60] sm:$0xff]
      %v1460 = vld [vmem:[#allocation2 + $0x68] sm:$0xff]
      %v1461 = vld [vmem:[#allocation2 + $0x70] sm:$0xff]
      %v1462 = vld [vmem:[#allocation2 + $0x78] sm:$0xff]
      %v1463 = vld [vmem:[#allocation2 + $0x80] sm:$0xff]
      %v1464 = vld [vmem:[#allocation2 + $0x88] sm:$0xff]
      %v1465 = vld [vmem:[#allocation2 + $0x90] sm:$0xff]
      %v1466 = vld [vmem:[#allocation2 + $0x98] sm:$0xff]
      %v1467 = vld [vmem:[#allocation2 + $0xa0] sm:$0xff]
      %v1468 = vld [vmem:[#allocation2 + $0xa8] sm:$0xff]
      %v1469 = vld [vmem:[#allocation2 + $0xb0] sm:$0xff]
      %v1470 = vld [vmem:[#allocation2 + $0xb8] sm:$0xff]
      %v1471 = vld [vmem:[#allocation2 + $0xc0] sm:$0xff]
      %v1472 = vld [vmem:[#allocation2 + $0xc8] sm:$0xff]
      %v1473 = vld [vmem:[#allocation2 + $0xd0] sm:$0xff]
      %v1474 = vld [vmem:[#allocation2 + $0xd8] sm:$0x3f]
      %v1475 = vld [vmem:[%s254 + $0x12] sm:$0xff]
      %v1476 = vld [vmem:[%s254 + $0x1a] sm:$0xff]
      %v1477 = vld [vmem:[%s254 + $0x22] sm:$0xff]
      %v1478 = vld [vmem:[%s254 + $0x2a] sm:$0xff]
      %v1479 = vld [vmem:[%s254 + $0x32] sm:$0xff]
      %v1480 = vld [vmem:[%s254 + $0x3a] sm:$0xff]
      %v1481 = vld [vmem:[%s254 + $0x42] sm:$0xff]
      %v1482 = vld [vmem:[%s254 + $0x4a] sm:$0xff]
      %v1483 = vld [vmem:[%s254 + $0x52] sm:$0xff]
      %v1484 = vld [vmem:[%s254 + $0x5a] sm:$0xff]
      %v1485 = vld [vmem:[%s254 + $0x62] sm:$0xff]
      %v1486 = vld [vmem:[%s254 + $0x6a] sm:$0xff]
      %v1487 = vld [vmem:[%s254 + $0x72] sm:$0xff]
      %v1488 = vld [vmem:[%s254 + $0x7a] sm:$0xff]
      %v1489 = vld [vmem:[%s254 + $0x82] sm:$0xff]
      %v1490 = vld [vmem:[%s254 + $0x8a] sm:$0xff]
      %v1491 = vld [vmem:[%s254 + $0x92] sm:$0xff]
      %v1492 = vld [vmem:[%s254 + $0x9a] sm:$0xff]
      %v1493 = vld [vmem:[%s254 + $0xa2] sm:$0xff]
      %v1494 = vld [vmem:[%s254 + $0xaa] sm:$0xff]
      %v1495 = vld [vmem:[%s254 + $0xb2] sm:$0xff]
      %v1496 = vld [vmem:[%s254 + $0xba] sm:$0xff]
      %v1497 = vld [vmem:[%s254 + $0xc2] sm:$0xff]
      %v1498 = vld [vmem:[%s254 + $0xca] sm:$0xff]
      %v1499 = vld [vmem:[%s254 + $0xd2] sm:$0xff]
      %v1500 = vld [vmem:[%s254 + $0xda] sm:$0xff]
      %v1501 = vld [vmem:[%s254 + $0xe2] sm:$0xff]
      %v1502 = vld [vmem:[%s254 + $0xea] sm:$0x3f]
      %s1503 = scalar_lea.vmem %s1, 640
      %v1504 = vld [vmem:[%s1503] sm:$0xff]
      %v1505 = vld [vmem:[%s1503 + $0x8] sm:$0xff]
      %v1506 = vld [vmem:[%s1503 + $0x10] sm:$0xff]
      %v1507 = vld [vmem:[%s1503 + $0x18] sm:$0xff]
      %v1508 = vld [vmem:[%s1503 + $0x20] sm:$0xff]
      %v1509 = vld [vmem:[%s1503 + $0x28] sm:$0xff]
      %v1510 = vld [vmem:[%s1503 + $0x30] sm:$0xff]
      %v1511 = vld [vmem:[%s1503 + $0x38] sm:$0xff]
      %v1512 = vld [vmem:[%s1503 + $0x40] sm:$0xff]
      %v1513 = vld [vmem:[%s1503 + $0x48] sm:$0xff]
      %v1514 = vld [vmem:[%s1503 + $0x50] sm:$0xff]
      %v1515 = vld [vmem:[%s1503 + $0x58] sm:$0xff]
      %v1516 = vld [vmem:[%s1503 + $0x60] sm:$0xff]
      %v1517 = vld [vmem:[%s1503 + $0x68] sm:$0xff]
      %v1518 = vld [vmem:[%s1503 + $0x70] sm:$0xff]
      %v1519 = vld [vmem:[%s1503 + $0x78] sm:$0xff]
      %1520 = vmatpush.msra.mxu0 %v1519
      %1521 = vmatpush.msra.mxu0 %v1518
      %1522 = vmatpush.msra.mxu0 %v1517
      %1523 = vmatpush.msra.mxu0 %v1516
      %1524 = vmatpush.msra.mxu0 %v1515
      %1525 = vmatpush.msra.mxu0 %v1514
      %1526 = vmatpush.msra.mxu0 %v1513
      %1527 = vmatpush.msra.mxu0 %v1512
      %1528 = vmatpush.msra.mxu0 %v1511
      %1529 = vmatpush.msra.mxu0 %v1510
      %1530 = vmatpush.msra.mxu0 %v1509
      %1531 = vmatpush.msra.mxu0 %v1508
      %1532 = vmatpush.msra.mxu0 %v1507
      %1533 = vmatpush.msra.mxu0 %v1506
      %1534 = vmatpush.msra.mxu0 %v1505
      %1535 = vmatpush.msra.mxu0 %v1504
      %1536 = vmatmul.f32.gmra.mxu0 %v1475
      %v1537 = vpop.f32.mrf.mxu0
      %v1538 = vadd.f32 0.0, %v1537
      %1539 = vmatmul.f32.gmra.mxu0 %v1476
      %v1540 = vpop.f32.mrf.mxu0
      %v1541 = vadd.f32 0.0, %v1540
      %1542 = vmatmul.f32.gmra.mxu0 %v1477
      %v1543 = vpop.f32.mrf.mxu0
      %v1544 = vadd.f32 0.0, %v1543
      %1545 = vmatmul.f32.gmra.mxu0 %v1478
      %v1546 = vpop.f32.mrf.mxu0
      %v1547 = vadd.f32 0.0, %v1546
      %1548 = vmatmul.f32.gmra.mxu0 %v1479
      %v1549 = vpop.f32.mrf.mxu0
      %v1550 = vadd.f32 0.0, %v1549
      %1551 = vmatmul.f32.gmra.mxu0 %v1480
      %v1552 = vpop.f32.mrf.mxu0
      %v1553 = vadd.f32 0.0, %v1552
      %1554 = vmatmul.f32.gmra.mxu0 %v1481
      %v1555 = vpop.f32.mrf.mxu0
      %v1556 = vadd.f32 0.0, %v1555
      %1557 = vmatmul.f32.gmra.mxu0 %v1482
      %v1558 = vpop.f32.mrf.mxu0
      %v1559 = vadd.f32 0.0, %v1558
      %1560 = vmatmul.f32.gmra.mxu0 %v1483
      %v1561 = vpop.f32.mrf.mxu0
      %v1562 = vadd.f32 0.0, %v1561
      %1563 = vmatmul.f32.gmra.mxu0 %v1484
      %v1564 = vpop.f32.mrf.mxu0
      %v1565 = vadd.f32 0.0, %v1564
      %1566 = vmatmul.f32.gmra.mxu0 %v1485
      %v1567 = vpop.f32.mrf.mxu0
      %v1568 = vadd.f32 0.0, %v1567
      %1569 = vmatmul.f32.gmra.mxu0 %v1486
      %v1570 = vpop.f32.mrf.mxu0
      %v1571 = vadd.f32 0.0, %v1570
      %1572 = vmatmul.f32.gmra.mxu0 %v1487
      %v1573 = vpop.f32.mrf.mxu0
      %v1574 = vadd.f32 0.0, %v1573
      %1575 = vmatmul.f32.gmra.mxu0 %v1488
      %v1576 = vpop.f32.mrf.mxu0
      %v1577 = vadd.f32 0.0, %v1576
      %1578 = vmatmul.f32.gmra.mxu0 %v1489
      %v1579 = vpop.f32.mrf.mxu0
      %v1580 = vadd.f32 0.0, %v1579
      %1581 = vmatmul.f32.gmra.mxu0 %v1490
      %v1582 = vpop.f32.mrf.mxu0
      %v1583 = vadd.f32 0.0, %v1582
      %1584 = vmatmul.f32.gmra.mxu0 %v1491
      %v1585 = vpop.f32.mrf.mxu0
      %v1586 = vadd.f32 0.0, %v1585
      %1587 = vmatmul.f32.gmra.mxu0 %v1492
      %v1588 = vpop.f32.mrf.mxu0
      %v1589 = vadd.f32 0.0, %v1588
      %1590 = vmatmul.f32.gmra.mxu0 %v1493
      %v1591 = vpop.f32.mrf.mxu0
      %v1592 = vadd.f32 0.0, %v1591
      %1593 = vmatmul.f32.gmra.mxu0 %v1494
      %v1594 = vpop.f32.mrf.mxu0
      %v1595 = vadd.f32 0.0, %v1594
      %1596 = vmatmul.f32.gmra.mxu0 %v1495
      %v1597 = vpop.f32.mrf.mxu0
      %v1598 = vadd.f32 0.0, %v1597
      %1599 = vmatmul.f32.gmra.mxu0 %v1496
      %v1600 = vpop.f32.mrf.mxu0
      %v1601 = vadd.f32 0.0, %v1600
      %1602 = vmatmul.f32.gmra.mxu0 %v1497
      %v1603 = vpop.f32.mrf.mxu0
      %v1604 = vadd.f32 0.0, %v1603
      %1605 = vmatmul.f32.gmra.mxu0 %v1498
      %v1606 = vpop.f32.mrf.mxu0
      %v1607 = vadd.f32 0.0, %v1606
      %1608 = vmatmul.f32.gmra.mxu0 %v1499
      %v1609 = vpop.f32.mrf.mxu0
      %v1610 = vadd.f32 0.0, %v1609
      %1611 = vmatmul.f32.gmra.mxu0 %v1500
      %v1612 = vpop.f32.mrf.mxu0
      %v1613 = vadd.f32 0.0, %v1612
      %1614 = vmatmul.f32.gmra.mxu0 %v1501
      %v1615 = vpop.f32.mrf.mxu0
      %v1616 = vadd.f32 0.0, %v1615
      %1617 = vmatmul.f32.gmra.mxu0 %v1502
      %v1618 = vpop.f32.mrf.mxu0
      %v1619 = vadd.f32 0.0, %v1618
      %1620 = vdwg.mxu0
      %v1621 = vadd.f32 %v1447, %v1538
      %v1622 = vadd.f32 %v1448, %v1541
      %v1623 = vadd.f32 %v1449, %v1544
      %v1624 = vadd.f32 %v1450, %v1547
      %v1625 = vadd.f32 %v1451, %v1550
      %v1626 = vadd.f32 %v1452, %v1553
      %v1627 = vadd.f32 %v1453, %v1556
      %v1628 = vadd.f32 %v1454, %v1559
      %v1629 = vadd.f32 %v1455, %v1562
      %v1630 = vadd.f32 %v1456, %v1565
      %v1631 = vadd.f32 %v1457, %v1568
      %v1632 = vadd.f32 %v1458, %v1571
      %v1633 = vadd.f32 %v1459, %v1574
      %v1634 = vadd.f32 %v1460, %v1577
      %v1635 = vadd.f32 %v1461, %v1580
      %v1636 = vadd.f32 %v1462, %v1583
      %v1637 = vadd.f32 %v1463, %v1586
      %v1638 = vadd.f32 %v1464, %v1589
      %v1639 = vadd.f32 %v1465, %v1592
      %v1640 = vadd.f32 %v1466, %v1595
      %v1641 = vadd.f32 %v1467, %v1598
      %v1642 = vadd.f32 %v1468, %v1601
      %v1643 = vadd.f32 %v1469, %v1604
      %v1644 = vadd.f32 %v1470, %v1607
      %v1645 = vadd.f32 %v1471, %v1610
      %v1646 = vadd.f32 %v1472, %v1613
      %v1647 = vadd.f32 %v1473, %v1616
      %v1648 = vadd.f32 %v1474, %v1619
      %1649 = vst [vmem:[#allocation2] sm:$0xff] %v1621
      %1650 = vst [vmem:[#allocation2 + $0x8] sm:$0xff] %v1622
      %1651 = vst [vmem:[#allocation2 + $0x10] sm:$0xff] %v1623
      %1652 = vst [vmem:[#allocation2 + $0x18] sm:$0xff] %v1624
      %1653 = vst [vmem:[#allocation2 + $0x20] sm:$0xff] %v1625
      %1654 = vst [vmem:[#allocation2 + $0x28] sm:$0xff] %v1626
      %1655 = vst [vmem:[#allocation2 + $0x30] sm:$0xff] %v1627
      %1656 = vst [vmem:[#allocation2 + $0x38] sm:$0xff] %v1628
      %1657 = vst [vmem:[#allocation2 + $0x40] sm:$0xff] %v1629
      %1658 = vst [vmem:[#allocation2 + $0x48] sm:$0xff] %v1630
      %1659 = vst [vmem:[#allocation2 + $0x50] sm:$0xff] %v1631
      %1660 = vst [vmem:[#allocation2 + $0x58] sm:$0xff] %v1632
      %1661 = vst [vmem:[#allocation2 + $0x60] sm:$0xff] %v1633
      %1662 = vst [vmem:[#allocation2 + $0x68] sm:$0xff] %v1634
      %1663 = vst [vmem:[#allocation2 + $0x70] sm:$0xff] %v1635
      %1664 = vst [vmem:[#allocation2 + $0x78] sm:$0xff] %v1636
      %1665 = vst [vmem:[#allocation2 + $0x80] sm:$0xff] %v1637
      %1666 = vst [vmem:[#allocation2 + $0x88] sm:$0xff] %v1638
      %1667 = vst [vmem:[#allocation2 + $0x90] sm:$0xff] %v1639
      %1668 = vst [vmem:[#allocation2 + $0x98] sm:$0xff] %v1640
      %1669 = vst [vmem:[#allocation2 + $0xa0] sm:$0xff] %v1641
      %1670 = vst [vmem:[#allocation2 + $0xa8] sm:$0xff] %v1642
      %1671 = vst [vmem:[#allocation2 + $0xb0] sm:$0xff] %v1643
      %1672 = vst [vmem:[#allocation2 + $0xb8] sm:$0xff] %v1644
      %1673 = vst [vmem:[#allocation2 + $0xc0] sm:$0xff] %v1645
      %1674 = vst [vmem:[#allocation2 + $0xc8] sm:$0xff] %v1646
      %1675 = vst [vmem:[#allocation2 + $0xd0] sm:$0xff] %v1647
      %1676 = vst [vmem:[#allocation2 + $0xd8] sm:$0x3f] %v1648
      %v1677 = vld [vmem:[#allocation2] sm:$0xff]
      %v1678 = vld [vmem:[#allocation2 + $0x8] sm:$0xff]
      %v1679 = vld [vmem:[#allocation2 + $0x10] sm:$0xff]
      %v1680 = vld [vmem:[#allocation2 + $0x18] sm:$0xff]
      %v1681 = vld [vmem:[#allocation2 + $0x20] sm:$0xff]
      %v1682 = vld [vmem:[#allocation2 + $0x28] sm:$0xff]
      %v1683 = vld [vmem:[#allocation2 + $0x30] sm:$0xff]
      %v1684 = vld [vmem:[#allocation2 + $0x38] sm:$0xff]
      %v1685 = vld [vmem:[#allocation2 + $0x40] sm:$0xff]
      %v1686 = vld [vmem:[#allocation2 + $0x48] sm:$0xff]
      %v1687 = vld [vmem:[#allocation2 + $0x50] sm:$0xff]
      %v1688 = vld [vmem:[#allocation2 + $0x58] sm:$0xff]
      %v1689 = vld [vmem:[#allocation2 + $0x60] sm:$0xff]
      %v1690 = vld [vmem:[#allocation2 + $0x68] sm:$0xff]
      %v1691 = vld [vmem:[#allocation2 + $0x70] sm:$0xff]
      %v1692 = vld [vmem:[#allocation2 + $0x78] sm:$0xff]
      %v1693 = vld [vmem:[#allocation2 + $0x80] sm:$0xff]
      %v1694 = vld [vmem:[#allocation2 + $0x88] sm:$0xff]
      %v1695 = vld [vmem:[#allocation2 + $0x90] sm:$0xff]
      %v1696 = vld [vmem:[#allocation2 + $0x98] sm:$0xff]
      %v1697 = vld [vmem:[#allocation2 + $0xa0] sm:$0xff]
      %v1698 = vld [vmem:[#allocation2 + $0xa8] sm:$0xff]
      %v1699 = vld [vmem:[#allocation2 + $0xb0] sm:$0xff]
      %v1700 = vld [vmem:[#allocation2 + $0xb8] sm:$0xff]
      %v1701 = vld [vmem:[#allocation2 + $0xc0] sm:$0xff]
      %v1702 = vld [vmem:[#allocation2 + $0xc8] sm:$0xff]
      %v1703 = vld [vmem:[#allocation2 + $0xd0] sm:$0xff]
      %v1704 = vld [vmem:[#allocation2 + $0xd8] sm:$0x3f]
      %v1705 = vld [vmem:[%s254 + $0x20] sm:$0xff]
      %v1706 = vld [vmem:[%s254 + $0x28] sm:$0xff]
      %v1707 = vld [vmem:[%s254 + $0x30] sm:$0xff]
      %v1708 = vld [vmem:[%s254 + $0x38] sm:$0xff]
      %v1709 = vld [vmem:[%s254 + $0x40] sm:$0xff]
      %v1710 = vld [vmem:[%s254 + $0x48] sm:$0xff]
      %v1711 = vld [vmem:[%s254 + $0x50] sm:$0xff]
      %v1712 = vld [vmem:[%s254 + $0x58] sm:$0xff]
      %v1713 = vld [vmem:[%s254 + $0x60] sm:$0xff]
      %v1714 = vld [vmem:[%s254 + $0x68] sm:$0xff]
      %v1715 = vld [vmem:[%s254 + $0x70] sm:$0xff]
      %v1716 = vld [vmem:[%s254 + $0x78] sm:$0xff]
      %v1717 = vld [vmem:[%s254 + $0x80] sm:$0xff]
      %v1718 = vld [vmem:[%s254 + $0x88] sm:$0xff]
      %v1719 = vld [vmem:[%s254 + $0x90] sm:$0xff]
      %v1720 = vld [vmem:[%s254 + $0x98] sm:$0xff]
      %v1721 = vld [vmem:[%s254 + $0xa0] sm:$0xff]
      %v1722 = vld [vmem:[%s254 + $0xa8] sm:$0xff]
      %v1723 = vld [vmem:[%s254 + $0xb0] sm:$0xff]
      %v1724 = vld [vmem:[%s254 + $0xb8] sm:$0xff]
      %v1725 = vld [vmem:[%s254 + $0xc0] sm:$0xff]
      %v1726 = vld [vmem:[%s254 + $0xc8] sm:$0xff]
      %v1727 = vld [vmem:[%s254 + $0xd0] sm:$0xff]
      %v1728 = vld [vmem:[%s254 + $0xd8] sm:$0xff]
      %v1729 = vld [vmem:[%s254 + $0xe0] sm:$0xff]
      %v1730 = vld [vmem:[%s254 + $0xe8] sm:$0xff]
      %v1731 = vld [vmem:[%s254 + $0xf0] sm:$0xff]
      %v1732 = vld [vmem:[%s254 + $0xf8] sm:$0x3f]
      %s1733 = scalar_lea.vmem %s1, 768
      %v1734 = vld [vmem:[%s1733] sm:$0xff]
      %v1735 = vld [vmem:[%s1733 + $0x8] sm:$0xff]
      %v1736 = vld [vmem:[%s1733 + $0x10] sm:$0xff]
      %v1737 = vld [vmem:[%s1733 + $0x18] sm:$0xff]
      %v1738 = vld [vmem:[%s1733 + $0x20] sm:$0xff]
      %v1739 = vld [vmem:[%s1733 + $0x28] sm:$0xff]
      %v1740 = vld [vmem:[%s1733 + $0x30] sm:$0xff]
      %v1741 = vld [vmem:[%s1733 + $0x38] sm:$0xff]
      %v1742 = vld [vmem:[%s1733 + $0x40] sm:$0xff]
      %v1743 = vld [vmem:[%s1733 + $0x48] sm:$0xff]
      %v1744 = vld [vmem:[%s1733 + $0x50] sm:$0xff]
      %v1745 = vld [vmem:[%s1733 + $0x58] sm:$0xff]
      %v1746 = vld [vmem:[%s1733 + $0x60] sm:$0xff]
      %v1747 = vld [vmem:[%s1733 + $0x68] sm:$0xff]
      %v1748 = vld [vmem:[%s1733 + $0x70] sm:$0xff]
      %v1749 = vld [vmem:[%s1733 + $0x78] sm:$0xff]
      %1750 = vmatpush.msra.mxu0 %v1749
      %1751 = vmatpush.msra.mxu0 %v1748
      %1752 = vmatpush.msra.mxu0 %v1747
      %1753 = vmatpush.msra.mxu0 %v1746
      %1754 = vmatpush.msra.mxu0 %v1745
      %1755 = vmatpush.msra.mxu0 %v1744
      %1756 = vmatpush.msra.mxu0 %v1743
      %1757 = vmatpush.msra.mxu0 %v1742
      %1758 = vmatpush.msra.mxu0 %v1741
      %1759 = vmatpush.msra.mxu0 %v1740
      %1760 = vmatpush.msra.mxu0 %v1739
      %1761 = vmatpush.msra.mxu0 %v1738
      %1762 = vmatpush.msra.mxu0 %v1737
      %1763 = vmatpush.msra.mxu0 %v1736
      %1764 = vmatpush.msra.mxu0 %v1735
      %1765 = vmatpush.msra.mxu0 %v1734
      %1766 = vmatmul.f32.gmra.mxu0 %v1705
      %v1767 = vpop.f32.mrf.mxu0
      %v1768 = vadd.f32 0.0, %v1767
      %1769 = vmatmul.f32.gmra.mxu0 %v1706
      %v1770 = vpop.f32.mrf.mxu0
      %v1771 = vadd.f32 0.0, %v1770
      %1772 = vmatmul.f32.gmra.mxu0 %v1707
      %v1773 = vpop.f32.mrf.mxu0
      %v1774 = vadd.f32 0.0, %v1773
      %1775 = vmatmul.f32.gmra.mxu0 %v1708
      %v1776 = vpop.f32.mrf.mxu0
      %v1777 = vadd.f32 0.0, %v1776
      %1778 = vmatmul.f32.gmra.mxu0 %v1709
      %v1779 = vpop.f32.mrf.mxu0
      %v1780 = vadd.f32 0.0, %v1779
      %1781 = vmatmul.f32.gmra.mxu0 %v1710
      %v1782 = vpop.f32.mrf.mxu0
      %v1783 = vadd.f32 0.0, %v1782
      %1784 = vmatmul.f32.gmra.mxu0 %v1711
      %v1785 = vpop.f32.mrf.mxu0
      %v1786 = vadd.f32 0.0, %v1785
      %1787 = vmatmul.f32.gmra.mxu0 %v1712
      %v1788 = vpop.f32.mrf.mxu0
      %v1789 = vadd.f32 0.0, %v1788
      %1790 = vmatmul.f32.gmra.mxu0 %v1713
      %v1791 = vpop.f32.mrf.mxu0
      %v1792 = vadd.f32 0.0, %v1791
      %1793 = vmatmul.f32.gmra.mxu0 %v1714
      %v1794 = vpop.f32.mrf.mxu0
      %v1795 = vadd.f32 0.0, %v1794
      %1796 = vmatmul.f32.gmra.mxu0 %v1715
      %v1797 = vpop.f32.mrf.mxu0
      %v1798 = vadd.f32 0.0, %v1797
      %1799 = vmatmul.f32.gmra.mxu0 %v1716
      %v1800 = vpop.f32.mrf.mxu0
      %v1801 = vadd.f32 0.0, %v1800
      %1802 = vmatmul.f32.gmra.mxu0 %v1717
      %v1803 = vpop.f32.mrf.mxu0
      %v1804 = vadd.f32 0.0, %v1803
      %1805 = vmatmul.f32.gmra.mxu0 %v1718
      %v1806 = vpop.f32.mrf.mxu0
      %v1807 = vadd.f32 0.0, %v1806
      %1808 = vmatmul.f32.gmra.mxu0 %v1719
      %v1809 = vpop.f32.mrf.mxu0
      %v1810 = vadd.f32 0.0, %v1809
      %1811 = vmatmul.f32.gmra.mxu0 %v1720
      %v1812 = vpop.f32.mrf.mxu0
      %v1813 = vadd.f32 0.0, %v1812
      %1814 = vmatmul.f32.gmra.mxu0 %v1721
      %v1815 = vpop.f32.mrf.mxu0
      %v1816 = vadd.f32 0.0, %v1815
      %1817 = vmatmul.f32.gmra.mxu0 %v1722
      %v1818 = vpop.f32.mrf.mxu0
      %v1819 = vadd.f32 0.0, %v1818
      %1820 = vmatmul.f32.gmra.mxu0 %v1723
      %v1821 = vpop.f32.mrf.mxu0
      %v1822 = vadd.f32 0.0, %v1821
      %1823 = vmatmul.f32.gmra.mxu0 %v1724
      %v1824 = vpop.f32.mrf.mxu0
      %v1825 = vadd.f32 0.0, %v1824
      %1826 = vmatmul.f32.gmra.mxu0 %v1725
      %v1827 = vpop.f32.mrf.mxu0
      %v1828 = vadd.f32 0.0, %v1827
      %1829 = vmatmul.f32.gmra.mxu0 %v1726
      %v1830 = vpop.f32.mrf.mxu0
      %v1831 = vadd.f32 0.0, %v1830
      %1832 = vmatmul.f32.gmra.mxu0 %v1727
      %v1833 = vpop.f32.mrf.mxu0
      %v1834 = vadd.f32 0.0, %v1833
      %1835 = vmatmul.f32.gmra.mxu0 %v1728
      %v1836 = vpop.f32.mrf.mxu0
      %v1837 = vadd.f32 0.0, %v1836
      %1838 = vmatmul.f32.gmra.mxu0 %v1729
      %v1839 = vpop.f32.mrf.mxu0
      %v1840 = vadd.f32 0.0, %v1839
      %1841 = vmatmul.f32.gmra.mxu0 %v1730
      %v1842 = vpop.f32.mrf.mxu0
      %v1843 = vadd.f32 0.0, %v1842
      %1844 = vmatmul.f32.gmra.mxu0 %v1731
      %v1845 = vpop.f32.mrf.mxu0
      %v1846 = vadd.f32 0.0, %v1845
      %1847 = vmatmul.f32.gmra.mxu0 %v1732
      %v1848 = vpop.f32.mrf.mxu0
      %v1849 = vadd.f32 0.0, %v1848
      %1850 = vdwg.mxu0
      %v1851 = vadd.f32 %v1677, %v1768
      %v1852 = vadd.f32 %v1678, %v1771
      %v1853 = vadd.f32 %v1679, %v1774
      %v1854 = vadd.f32 %v1680, %v1777
      %v1855 = vadd.f32 %v1681, %v1780
      %v1856 = vadd.f32 %v1682, %v1783
      %v1857 = vadd.f32 %v1683, %v1786
      %v1858 = vadd.f32 %v1684, %v1789
      %v1859 = vadd.f32 %v1685, %v1792
      %v1860 = vadd.f32 %v1686, %v1795
      %v1861 = vadd.f32 %v1687, %v1798
      %v1862 = vadd.f32 %v1688, %v1801
      %v1863 = vadd.f32 %v1689, %v1804
      %v1864 = vadd.f32 %v1690, %v1807
      %v1865 = vadd.f32 %v1691, %v1810
      %v1866 = vadd.f32 %v1692, %v1813
      %v1867 = vadd.f32 %v1693, %v1816
      %v1868 = vadd.f32 %v1694, %v1819
      %v1869 = vadd.f32 %v1695, %v1822
      %v1870 = vadd.f32 %v1696, %v1825
      %v1871 = vadd.f32 %v1697, %v1828
      %v1872 = vadd.f32 %v1698, %v1831
      %v1873 = vadd.f32 %v1699, %v1834
      %v1874 = vadd.f32 %v1700, %v1837
      %v1875 = vadd.f32 %v1701, %v1840
      %v1876 = vadd.f32 %v1702, %v1843
      %v1877 = vadd.f32 %v1703, %v1846
      %v1878 = vadd.f32 %v1704, %v1849
      %1879 = vst [vmem:[#allocation2] sm:$0xff] %v1851
      %1880 = vst [vmem:[#allocation2 + $0x8] sm:$0xff] %v1852
      %1881 = vst [vmem:[#allocation2 + $0x10] sm:$0xff] %v1853
      %1882 = vst [vmem:[#allocation2 + $0x18] sm:$0xff] %v1854
      %1883 = vst [vmem:[#allocation2 + $0x20] sm:$0xff] %v1855
      %1884 = vst [vmem:[#allocation2 + $0x28] sm:$0xff] %v1856
      %1885 = vst [vmem:[#allocation2 + $0x30] sm:$0xff] %v1857
      %1886 = vst [vmem:[#allocation2 + $0x38] sm:$0xff] %v1858
      %1887 = vst [vmem:[#allocation2 + $0x40] sm:$0xff] %v1859
      %1888 = vst [vmem:[#allocation2 + $0x48] sm:$0xff] %v1860
      %1889 = vst [vmem:[#allocation2 + $0x50] sm:$0xff] %v1861
      %1890 = vst [vmem:[#allocation2 + $0x58] sm:$0xff] %v1862
      %1891 = vst [vmem:[#allocation2 + $0x60] sm:$0xff] %v1863
      %1892 = vst [vmem:[#allocation2 + $0x68] sm:$0xff] %v1864
      %1893 = vst [vmem:[#allocation2 + $0x70] sm:$0xff] %v1865
      %1894 = vst [vmem:[#allocation2 + $0x78] sm:$0xff] %v1866
      %1895 = vst [vmem:[#allocation2 + $0x80] sm:$0xff] %v1867
      %1896 = vst [vmem:[#allocation2 + $0x88] sm:$0xff] %v1868
      %1897 = vst [vmem:[#allocation2 + $0x90] sm:$0xff] %v1869
      %1898 = vst [vmem:[#allocation2 + $0x98] sm:$0xff] %v1870
      %1899 = vst [vmem:[#allocation2 + $0xa0] sm:$0xff] %v1871
      %1900 = vst [vmem:[#allocation2 + $0xa8] sm:$0xff] %v1872
      %1901 = vst [vmem:[#allocation2 + $0xb0] sm:$0xff] %v1873
      %1902 = vst [vmem:[#allocation2 + $0xb8] sm:$0xff] %v1874
      %1903 = vst [vmem:[#allocation2 + $0xc0] sm:$0xff] %v1875
      %1904 = vst [vmem:[#allocation2 + $0xc8] sm:$0xff] %v1876
      %1905 = vst [vmem:[#allocation2 + $0xd0] sm:$0xff] %v1877
      %1906 = vst [vmem:[#allocation2 + $0xd8] sm:$0x3f] %v1878
      %v1907 = vld [vmem:[#allocation2] sm:$0xff]
      %v1908 = vld [vmem:[#allocation2 + $0x8] sm:$0xff]
      %v1909 = vld [vmem:[#allocation2 + $0x10] sm:$0xff]
      %v1910 = vld [vmem:[#allocation2 + $0x18] sm:$0xff]
      %v1911 = vld [vmem:[#allocation2 + $0x20] sm:$0xff]
      %v1912 = vld [vmem:[#allocation2 + $0x28] sm:$0xff]
      %v1913 = vld [vmem:[#allocation2 + $0x30] sm:$0xff]
      %v1914 = vld [vmem:[#allocation2 + $0x38] sm:$0xff]
      %v1915 = vld [vmem:[#allocation2 + $0x40] sm:$0xff]
      %v1916 = vld [vmem:[#allocation2 + $0x48] sm:$0xff]
      %v1917 = vld [vmem:[#allocation2 + $0x50] sm:$0xff]
      %v1918 = vld [vmem:[#allocation2 + $0x58] sm:$0xff]
      %v1919 = vld [vmem:[#allocation2 + $0x60] sm:$0xff]
      %v1920 = vld [vmem:[#allocation2 + $0x68] sm:$0xff]
      %v1921 = vld [vmem:[#allocation2 + $0x70] sm:$0xff]
      %v1922 = vld [vmem:[#allocation2 + $0x78] sm:$0xff]
      %v1923 = vld [vmem:[#allocation2 + $0x80] sm:$0xff]
      %v1924 = vld [vmem:[#allocation2 + $0x88] sm:$0xff]
      %v1925 = vld [vmem:[#allocation2 + $0x90] sm:$0xff]
      %v1926 = vld [vmem:[#allocation2 + $0x98] sm:$0xff]
      %v1927 = vld [vmem:[#allocation2 + $0xa0] sm:$0xff]
      %v1928 = vld [vmem:[#allocation2 + $0xa8] sm:$0xff]
      %v1929 = vld [vmem:[#allocation2 + $0xb0] sm:$0xff]
      %v1930 = vld [vmem:[#allocation2 + $0xb8] sm:$0xff]
      %v1931 = vld [vmem:[#allocation2 + $0xc0] sm:$0xff]
      %v1932 = vld [vmem:[#allocation2 + $0xc8] sm:$0xff]
      %v1933 = vld [vmem:[#allocation2 + $0xd0] sm:$0xff]
      %v1934 = vld [vmem:[#allocation2 + $0xd8] sm:$0x3f]
      %v1935 = vld [vmem:[%s254 + $0x21] sm:$0xff]
      %v1936 = vld [vmem:[%s254 + $0x29] sm:$0xff]
      %v1937 = vld [vmem:[%s254 + $0x31] sm:$0xff]
      %v1938 = vld [vmem:[%s254 + $0x39] sm:$0xff]
      %v1939 = vld [vmem:[%s254 + $0x41] sm:$0xff]
      %v1940 = vld [vmem:[%s254 + $0x49] sm:$0xff]
      %v1941 = vld [vmem:[%s254 + $0x51] sm:$0xff]
      %v1942 = vld [vmem:[%s254 + $0x59] sm:$0xff]
      %v1943 = vld [vmem:[%s254 + $0x61] sm:$0xff]
      %v1944 = vld [vmem:[%s254 + $0x69] sm:$0xff]
      %v1945 = vld [vmem:[%s254 + $0x71] sm:$0xff]
      %v1946 = vld [vmem:[%s254 + $0x79] sm:$0xff]
      %v1947 = vld [vmem:[%s254 + $0x81] sm:$0xff]
      %v1948 = vld [vmem:[%s254 + $0x89] sm:$0xff]
      %v1949 = vld [vmem:[%s254 + $0x91] sm:$0xff]
      %v1950 = vld [vmem:[%s254 + $0x99] sm:$0xff]
      %v1951 = vld [vmem:[%s254 + $0xa1] sm:$0xff]
      %v1952 = vld [vmem:[%s254 + $0xa9] sm:$0xff]
      %v1953 = vld [vmem:[%s254 + $0xb1] sm:$0xff]
      %v1954 = vld [vmem:[%s254 + $0xb9] sm:$0xff]
      %v1955 = vld [vmem:[%s254 + $0xc1] sm:$0xff]
      %v1956 = vld [vmem:[%s254 + $0xc9] sm:$0xff]
      %v1957 = vld [vmem:[%s254 + $0xd1] sm:$0xff]
      %v1958 = vld [vmem:[%s254 + $0xd9] sm:$0xff]
      %v1959 = vld [vmem:[%s254 + $0xe1] sm:$0xff]
      %v1960 = vld [vmem:[%s254 + $0xe9] sm:$0xff]
      %v1961 = vld [vmem:[%s254 + $0xf1] sm:$0xff]
      %v1962 = vld [vmem:[%s254 + $0xf9] sm:$0x3f]
      %s1963 = scalar_lea.vmem %s1, 896
      %v1964 = vld [vmem:[%s1963] sm:$0xff]
      %v1965 = vld [vmem:[%s1963 + $0x8] sm:$0xff]
      %v1966 = vld [vmem:[%s1963 + $0x10] sm:$0xff]
      %v1967 = vld [vmem:[%s1963 + $0x18] sm:$0xff]
      %v1968 = vld [vmem:[%s1963 + $0x20] sm:$0xff]
      %v1969 = vld [vmem:[%s1963 + $0x28] sm:$0xff]
      %v1970 = vld [vmem:[%s1963 + $0x30] sm:$0xff]
      %v1971 = vld [vmem:[%s1963 + $0x38] sm:$0xff]
      %v1972 = vld [vmem:[%s1963 + $0x40] sm:$0xff]
      %v1973 = vld [vmem:[%s1963 + $0x48] sm:$0xff]
      %v1974 = vld [vmem:[%s1963 + $0x50] sm:$0xff]
      %v1975 = vld [vmem:[%s1963 + $0x58] sm:$0xff]
      %v1976 = vld [vmem:[%s1963 + $0x60] sm:$0xff]
      %v1977 = vld [vmem:[%s1963 + $0x68] sm:$0xff]
      %v1978 = vld [vmem:[%s1963 + $0x70] sm:$0xff]
      %v1979 = vld [vmem:[%s1963 + $0x78] sm:$0xff]
      %1980 = vmatpush.msra.mxu0 %v1979
      %1981 = vmatpush.msra.mxu0 %v1978
      %1982 = vmatpush.msra.mxu0 %v1977
      %1983 = vmatpush.msra.mxu0 %v1976
      %1984 = vmatpush.msra.mxu0 %v1975
      %1985 = vmatpush.msra.mxu0 %v1974
      %1986 = vmatpush.msra.mxu0 %v1973
      %1987 = vmatpush.msra.mxu0 %v1972
      %1988 = vmatpush.msra.mxu0 %v1971
      %1989 = vmatpush.msra.mxu0 %v1970
      %1990 = vmatpush.msra.mxu0 %v1969
      %1991 = vmatpush.msra.mxu0 %v1968
      %1992 = vmatpush.msra.mxu0 %v1967
      %1993 = vmatpush.msra.mxu0 %v1966
      %1994 = vmatpush.msra.mxu0 %v1965
      %1995 = vmatpush.msra.mxu0 %v1964
      %1996 = vmatmul.f32.gmra.mxu0 %v1935
      %v1997 = vpop.f32.mrf.mxu0
      %v1998 = vadd.f32 0.0, %v1997
      %1999 = vmatmul.f32.gmra.mxu0 %v1936
      %v2000 = vpop.f32.mrf.mxu0
      %v2001 = vadd.f32 0.0, %v2000
      %2002 = vmatmul.f32.gmra.mxu0 %v1937
      %v2003 = vpop.f32.mrf.mxu0
      %v2004 = vadd.f32 0.0, %v2003
      %2005 = vmatmul.f32.gmra.mxu0 %v1938
      %v2006 = vpop.f32.mrf.mxu0
      %v2007 = vadd.f32 0.0, %v2006
      %2008 = vmatmul.f32.gmra.mxu0 %v1939
      %v2009 = vpop.f32.mrf.mxu0
      %v2010 = vadd.f32 0.0, %v2009
      %2011 = vmatmul.f32.gmra.mxu0 %v1940
      %v2012 = vpop.f32.mrf.mxu0
      %v2013 = vadd.f32 0.0, %v2012
      %2014 = vmatmul.f32.gmra.mxu0 %v1941
      %v2015 = vpop.f32.mrf.mxu0
      %v2016 = vadd.f32 0.0, %v2015
      %2017 = vmatmul.f32.gmra.mxu0 %v1942
      %v2018 = vpop.f32.mrf.mxu0
      %v2019 = vadd.f32 0.0, %v2018
      %2020 = vmatmul.f32.gmra.mxu0 %v1943
      %v2021 = vpop.f32.mrf.mxu0
      %v2022 = vadd.f32 0.0, %v2021
      %2023 = vmatmul.f32.gmra.mxu0 %v1944
      %v2024 = vpop.f32.mrf.mxu0
      %v2025 = vadd.f32 0.0, %v2024
      %2026 = vmatmul.f32.gmra.mxu0 %v1945
      %v2027 = vpop.f32.mrf.mxu0
      %v2028 = vadd.f32 0.0, %v2027
      %2029 = vmatmul.f32.gmra.mxu0 %v1946
      %v2030 = vpop.f32.mrf.mxu0
      %v2031 = vadd.f32 0.0, %v2030
      %2032 = vmatmul.f32.gmra.mxu0 %v1947
      %v2033 = vpop.f32.mrf.mxu0
      %v2034 = vadd.f32 0.0, %v2033
      %2035 = vmatmul.f32.gmra.mxu0 %v1948
      %v2036 = vpop.f32.mrf.mxu0
      %v2037 = vadd.f32 0.0, %v2036
      %2038 = vmatmul.f32.gmra.mxu0 %v1949
      %v2039 = vpop.f32.mrf.mxu0
      %v2040 = vadd.f32 0.0, %v2039
      %2041 = vmatmul.f32.gmra.mxu0 %v1950
      %v2042 = vpop.f32.mrf.mxu0
      %v2043 = vadd.f32 0.0, %v2042
      %2044 = vmatmul.f32.gmra.mxu0 %v1951
      %v2045 = vpop.f32.mrf.mxu0
      %v2046 = vadd.f32 0.0, %v2045
      %2047 = vmatmul.f32.gmra.mxu0 %v1952
      %v2048 = vpop.f32.mrf.mxu0
      %v2049 = vadd.f32 0.0, %v2048
      %2050 = vmatmul.f32.gmra.mxu0 %v1953
      %v2051 = vpop.f32.mrf.mxu0
      %v2052 = vadd.f32 0.0, %v2051
      %2053 = vmatmul.f32.gmra.mxu0 %v1954
      %v2054 = vpop.f32.mrf.mxu0
      %v2055 = vadd.f32 0.0, %v2054
      %2056 = vmatmul.f32.gmra.mxu0 %v1955
      %v2057 = vpop.f32.mrf.mxu0
      %v2058 = vadd.f32 0.0, %v2057
      %2059 = vmatmul.f32.gmra.mxu0 %v1956
      %v2060 = vpop.f32.mrf.mxu0
      %v2061 = vadd.f32 0.0, %v2060
      %2062 = vmatmul.f32.gmra.mxu0 %v1957
      %v2063 = vpop.f32.mrf.mxu0
      %v2064 = vadd.f32 0.0, %v2063
      %2065 = vmatmul.f32.gmra.mxu0 %v1958
      %v2066 = vpop.f32.mrf.mxu0
      %v2067 = vadd.f32 0.0, %v2066
      %2068 = vmatmul.f32.gmra.mxu0 %v1959
      %v2069 = vpop.f32.mrf.mxu0
      %v2070 = vadd.f32 0.0, %v2069
      %2071 = vmatmul.f32.gmra.mxu0 %v1960
      %v2072 = vpop.f32.mrf.mxu0
      %v2073 = vadd.f32 0.0, %v2072
      %2074 = vmatmul.f32.gmra.mxu0 %v1961
      %v2075 = vpop.f32.mrf.mxu0
      %v2076 = vadd.f32 0.0, %v2075
      %2077 = vmatmul.f32.gmra.mxu0 %v1962
      %v2078 = vpop.f32.mrf.mxu0
      %v2079 = vadd.f32 0.0, %v2078
      %2080 = vdwg.mxu0
      %v2081 = vadd.f32 %v1907, %v1998
      %v2082 = vadd.f32 %v1908, %v2001
      %v2083 = vadd.f32 %v1909, %v2004
      %v2084 = vadd.f32 %v1910, %v2007
      %v2085 = vadd.f32 %v1911, %v2010
      %v2086 = vadd.f32 %v1912, %v2013
      %v2087 = vadd.f32 %v1913, %v2016
      %v2088 = vadd.f32 %v1914, %v2019
      %v2089 = vadd.f32 %v1915, %v2022
      %v2090 = vadd.f32 %v1916, %v2025
      %v2091 = vadd.f32 %v1917, %v2028
      %v2092 = vadd.f32 %v1918, %v2031
      %v2093 = vadd.f32 %v1919, %v2034
      %v2094 = vadd.f32 %v1920, %v2037
      %v2095 = vadd.f32 %v1921, %v2040
      %v2096 = vadd.f32 %v1922, %v2043
      %v2097 = vadd.f32 %v1923, %v2046
      %v2098 = vadd.f32 %v1924, %v2049
      %v2099 = vadd.f32 %v1925, %v2052
      %v2100 = vadd.f32 %v1926, %v2055
      %v2101 = vadd.f32 %v1927, %v2058
      %v2102 = vadd.f32 %v1928, %v2061
      %v2103 = vadd.f32 %v1929, %v2064
      %v2104 = vadd.f32 %v1930, %v2067
      %v2105 = vadd.f32 %v1931, %v2070
      %v2106 = vadd.f32 %v1932, %v2073
      %v2107 = vadd.f32 %v1933, %v2076
      %v2108 = vadd.f32 %v1934, %v2079
      %2109 = vst [vmem:[#allocation2] sm:$0xff] %v2081
      %2110 = vst [vmem:[#allocation2 + $0x8] sm:$0xff] %v2082
      %2111 = vst [vmem:[#allocation2 + $0x10] sm:$0xff] %v2083
      %2112 = vst [vmem:[#allocation2 + $0x18] sm:$0xff] %v2084
      %2113 = vst [vmem:[#allocation2 + $0x20] sm:$0xff] %v2085
      %2114 = vst [vmem:[#allocation2 + $0x28] sm:$0xff] %v2086
      %2115 = vst [vmem:[#allocation2 + $0x30] sm:$0xff] %v2087
      %2116 = vst [vmem:[#allocation2 + $0x38] sm:$0xff] %v2088
      %2117 = vst [vmem:[#allocation2 + $0x40] sm:$0xff] %v2089
      %2118 = vst [vmem:[#allocation2 + $0x48] sm:$0xff] %v2090
      %2119 = vst [vmem:[#allocation2 + $0x50] sm:$0xff] %v2091
      %2120 = vst [vmem:[#allocation2 + $0x58] sm:$0xff] %v2092
      %2121 = vst [vmem:[#allocation2 + $0x60] sm:$0xff] %v2093
      %2122 = vst [vmem:[#allocation2 + $0x68] sm:$0xff] %v2094
      %2123 = vst [vmem:[#allocation2 + $0x70] sm:$0xff] %v2095
      %2124 = vst [vmem:[#allocation2 + $0x78] sm:$0xff] %v2096
      %2125 = vst [vmem:[#allocation2 + $0x80] sm:$0xff] %v2097
      %2126 = vst [vmem:[#allocation2 + $0x88] sm:$0xff] %v2098
      %2127 = vst [vmem:[#allocation2 + $0x90] sm:$0xff] %v2099
      %2128 = vst [vmem:[#allocation2 + $0x98] sm:$0xff] %v2100
      %2129 = vst [vmem:[#allocation2 + $0xa0] sm:$0xff] %v2101
      %2130 = vst [vmem:[#allocation2 + $0xa8] sm:$0xff] %v2102
      %2131 = vst [vmem:[#allocation2 + $0xb0] sm:$0xff] %v2103
      %2132 = vst [vmem:[#allocation2 + $0xb8] sm:$0xff] %v2104
      %2133 = vst [vmem:[#allocation2 + $0xc0] sm:$0xff] %v2105
      %2134 = vst [vmem:[#allocation2 + $0xc8] sm:$0xff] %v2106
      %2135 = vst [vmem:[#allocation2 + $0xd0] sm:$0xff] %v2107
      %2136 = vst [vmem:[#allocation2 + $0xd8] sm:$0x3f] %v2108
      %v2137 = vld [vmem:[#allocation2] sm:$0xff]
      %v2138 = vld [vmem:[#allocation2 + $0x8] sm:$0xff]
      %v2139 = vld [vmem:[#allocation2 + $0x10] sm:$0xff]
      %v2140 = vld [vmem:[#allocation2 + $0x18] sm:$0xff]
      %v2141 = vld [vmem:[#allocation2 + $0x20] sm:$0xff]
      %v2142 = vld [vmem:[#allocation2 + $0x28] sm:$0xff]
      %v2143 = vld [vmem:[#allocation2 + $0x30] sm:$0xff]
      %v2144 = vld [vmem:[#allocation2 + $0x38] sm:$0xff]
      %v2145 = vld [vmem:[#allocation2 + $0x40] sm:$0xff]
      %v2146 = vld [vmem:[#allocation2 + $0x48] sm:$0xff]
      %v2147 = vld [vmem:[#allocation2 + $0x50] sm:$0xff]
      %v2148 = vld [vmem:[#allocation2 + $0x58] sm:$0xff]
      %v2149 = vld [vmem:[#allocation2 + $0x60] sm:$0xff]
      %v2150 = vld [vmem:[#allocation2 + $0x68] sm:$0xff]
      %v2151 = vld [vmem:[#allocation2 + $0x70] sm:$0xff]
      %v2152 = vld [vmem:[#allocation2 + $0x78] sm:$0xff]
      %v2153 = vld [vmem:[#allocation2 + $0x80] sm:$0xff]
      %v2154 = vld [vmem:[#allocation2 + $0x88] sm:$0xff]
      %v2155 = vld [vmem:[#allocation2 + $0x90] sm:$0xff]
      %v2156 = vld [vmem:[#allocation2 + $0x98] sm:$0xff]
      %v2157 = vld [vmem:[#allocation2 + $0xa0] sm:$0xff]
      %v2158 = vld [vmem:[#allocation2 + $0xa8] sm:$0xff]
      %v2159 = vld [vmem:[#allocation2 + $0xb0] sm:$0xff]
      %v2160 = vld [vmem:[#allocation2 + $0xb8] sm:$0xff]
      %v2161 = vld [vmem:[#allocation2 + $0xc0] sm:$0xff]
      %v2162 = vld [vmem:[#allocation2 + $0xc8] sm:$0xff]
      %v2163 = vld [vmem:[#allocation2 + $0xd0] sm:$0xff]
      %v2164 = vld [vmem:[#allocation2 + $0xd8] sm:$0x3f]
      %v2165 = vld [vmem:[%s254 + $0x22] sm:$0xff]
      %v2166 = vld [vmem:[%s254 + $0x2a] sm:$0xff]
      %v2167 = vld [vmem:[%s254 + $0x32] sm:$0xff]
      %v2168 = vld [vmem:[%s254 + $0x3a] sm:$0xff]
      %v2169 = vld [vmem:[%s254 + $0x42] sm:$0xff]
      %v2170 = vld [vmem:[%s254 + $0x4a] sm:$0xff]
      %v2171 = vld [vmem:[%s254 + $0x52] sm:$0xff]
      %v2172 = vld [vmem:[%s254 + $0x5a] sm:$0xff]
      %v2173 = vld [vmem:[%s254 + $0x62] sm:$0xff]
      %v2174 = vld [vmem:[%s254 + $0x6a] sm:$0xff]
      %v2175 = vld [vmem:[%s254 + $0x72] sm:$0xff]
      %v2176 = vld [vmem:[%s254 + $0x7a] sm:$0xff]
      %v2177 = vld [vmem:[%s254 + $0x82] sm:$0xff]
      %v2178 = vld [vmem:[%s254 + $0x8a] sm:$0xff]
      %v2179 = vld [vmem:[%s254 + $0x92] sm:$0xff]
      %v2180 = vld [vmem:[%s254 + $0x9a] sm:$0xff]
      %v2181 = vld [vmem:[%s254 + $0xa2] sm:$0xff]
      %v2182 = vld [vmem:[%s254 + $0xaa] sm:$0xff]
      %v2183 = vld [vmem:[%s254 + $0xb2] sm:$0xff]
      %v2184 = vld [vmem:[%s254 + $0xba] sm:$0xff]
      %v2185 = vld [vmem:[%s254 + $0xc2] sm:$0xff]
      %v2186 = vld [vmem:[%s254 + $0xca] sm:$0xff]
      %v2187 = vld [vmem:[%s254 + $0xd2] sm:$0xff]
      %v2188 = vld [vmem:[%s254 + $0xda] sm:$0xff]
      %v2189 = vld [vmem:[%s254 + $0xe2] sm:$0xff]
      %v2190 = vld [vmem:[%s254 + $0xea] sm:$0xff]
      %v2191 = vld [vmem:[%s254 + $0xf2] sm:$0xff]
      %v2192 = vld [vmem:[%s254 + $0xfa] sm:$0x3f]
      %s2193 = scalar_lea.vmem %s1, 1024
      %v2194 = vld [vmem:[%s2193] sm:$0xff]
      %v2195 = vld [vmem:[%s2193 + $0x8] sm:$0xff]
      %v2196 = vld [vmem:[%s2193 + $0x10] sm:$0xff]
      %v2197 = vld [vmem:[%s2193 + $0x18] sm:$0xff]
      %v2198 = vld [vmem:[%s2193 + $0x20] sm:$0xff]
      %v2199 = vld [vmem:[%s2193 + $0x28] sm:$0xff]
      %v2200 = vld [vmem:[%s2193 + $0x30] sm:$0xff]
      %v2201 = vld [vmem:[%s2193 + $0x38] sm:$0xff]
      %v2202 = vld [vmem:[%s2193 + $0x40] sm:$0xff]
      %v2203 = vld [vmem:[%s2193 + $0x48] sm:$0xff]
      %v2204 = vld [vmem:[%s2193 + $0x50] sm:$0xff]
      %v2205 = vld [vmem:[%s2193 + $0x58] sm:$0xff]
      %v2206 = vld [vmem:[%s2193 + $0x60] sm:$0xff]
      %v2207 = vld [vmem:[%s2193 + $0x68] sm:$0xff]
      %v2208 = vld [vmem:[%s2193 + $0x70] sm:$0xff]
      %v2209 = vld [vmem:[%s2193 + $0x78] sm:$0xff]
      %2210 = vmatpush.msra.mxu0 %v2209
      %2211 = vmatpush.msra.mxu0 %v2208
      %2212 = vmatpush.msra.mxu0 %v2207
      %2213 = vmatpush.msra.mxu0 %v2206
      %2214 = vmatpush.msra.mxu0 %v2205
      %2215 = vmatpush.msra.mxu0 %v2204
      %2216 = vmatpush.msra.mxu0 %v2203
      %2217 = vmatpush.msra.mxu0 %v2202
      %2218 = vmatpush.msra.mxu0 %v2201
      %2219 = vmatpush.msra.mxu0 %v2200
      %2220 = vmatpush.msra.mxu0 %v2199
      %2221 = vmatpush.msra.mxu0 %v2198
      %2222 = vmatpush.msra.mxu0 %v2197
      %2223 = vmatpush.msra.mxu0 %v2196
      %2224 = vmatpush.msra.mxu0 %v2195
      %2225 = vmatpush.msra.mxu0 %v2194
      %2226 = vmatmul.f32.gmra.mxu0 %v2165
      %v2227 = vpop.f32.mrf.mxu0
      %v2228 = vadd.f32 0.0, %v2227
      %2229 = vmatmul.f32.gmra.mxu0 %v2166
      %v2230 = vpop.f32.mrf.mxu0
      %v2231 = vadd.f32 0.0, %v2230
      %2232 = vmatmul.f32.gmra.mxu0 %v2167
      %v2233 = vpop.f32.mrf.mxu0
      %v2234 = vadd.f32 0.0, %v2233
      %2235 = vmatmul.f32.gmra.mxu0 %v2168
      %v2236 = vpop.f32.mrf.mxu0
      %v2237 = vadd.f32 0.0, %v2236
      %2238 = vmatmul.f32.gmra.mxu0 %v2169
      %v2239 = vpop.f32.mrf.mxu0
      %v2240 = vadd.f32 0.0, %v2239
      %2241 = vmatmul.f32.gmra.mxu0 %v2170
      %v2242 = vpop.f32.mrf.mxu0
      %v2243 = vadd.f32 0.0, %v2242
      %2244 = vmatmul.f32.gmra.mxu0 %v2171
      %v2245 = vpop.f32.mrf.mxu0
      %v2246 = vadd.f32 0.0, %v2245
      %2247 = vmatmul.f32.gmra.mxu0 %v2172
      %v2248 = vpop.f32.mrf.mxu0
      %v2249 = vadd.f32 0.0, %v2248
      %2250 = vmatmul.f32.gmra.mxu0 %v2173
      %v2251 = vpop.f32.mrf.mxu0
      %v2252 = vadd.f32 0.0, %v2251
      %2253 = vmatmul.f32.gmra.mxu0 %v2174
      %v2254 = vpop.f32.mrf.mxu0
      %v2255 = vadd.f32 0.0, %v2254
      %2256 = vmatmul.f32.gmra.mxu0 %v2175
      %v2257 = vpop.f32.mrf.mxu0
      %v2258 = vadd.f32 0.0, %v2257
      %2259 = vmatmul.f32.gmra.mxu0 %v2176
      %v2260 = vpop.f32.mrf.mxu0
      %v2261 = vadd.f32 0.0, %v2260
      %2262 = vmatmul.f32.gmra.mxu0 %v2177
      %v2263 = vpop.f32.mrf.mxu0
      %v2264 = vadd.f32 0.0, %v2263
      %2265 = vmatmul.f32.gmra.mxu0 %v2178
      %v2266 = vpop.f32.mrf.mxu0
      %v2267 = vadd.f32 0.0, %v2266
      %2268 = vmatmul.f32.gmra.mxu0 %v2179
      %v2269 = vpop.f32.mrf.mxu0
      %v2270 = vadd.f32 0.0, %v2269
      %2271 = vmatmul.f32.gmra.mxu0 %v2180
      %v2272 = vpop.f32.mrf.mxu0
      %v2273 = vadd.f32 0.0, %v2272
      %2274 = vmatmul.f32.gmra.mxu0 %v2181
      %v2275 = vpop.f32.mrf.mxu0
      %v2276 = vadd.f32 0.0, %v2275
      %2277 = vmatmul.f32.gmra.mxu0 %v2182
      %v2278 = vpop.f32.mrf.mxu0
      %v2279 = vadd.f32 0.0, %v2278
      %2280 = vmatmul.f32.gmra.mxu0 %v2183
      %v2281 = vpop.f32.mrf.mxu0
      %v2282 = vadd.f32 0.0, %v2281
      %2283 = vmatmul.f32.gmra.mxu0 %v2184
      %v2284 = vpop.f32.mrf.mxu0
      %v2285 = vadd.f32 0.0, %v2284
      %2286 = vmatmul.f32.gmra.mxu0 %v2185
      %v2287 = vpop.f32.mrf.mxu0
      %v2288 = vadd.f32 0.0, %v2287
      %2289 = vmatmul.f32.gmra.mxu0 %v2186
      %v2290 = vpop.f32.mrf.mxu0
      %v2291 = vadd.f32 0.0, %v2290
      %2292 = vmatmul.f32.gmra.mxu0 %v2187
      %v2293 = vpop.f32.mrf.mxu0
      %v2294 = vadd.f32 0.0, %v2293
      %2295 = vmatmul.f32.gmra.mxu0 %v2188
      %v2296 = vpop.f32.mrf.mxu0
      %v2297 = vadd.f32 0.0, %v2296
      %2298 = vmatmul.f32.gmra.mxu0 %v2189
      %v2299 = vpop.f32.mrf.mxu0
      %v2300 = vadd.f32 0.0, %v2299
      %2301 = vmatmul.f32.gmra.mxu0 %v2190
      %v2302 = vpop.f32.mrf.mxu0
      %v2303 = vadd.f32 0.0, %v2302
      %2304 = vmatmul.f32.gmra.mxu0 %v2191
      %v2305 = vpop.f32.mrf.mxu0
      %v2306 = vadd.f32 0.0, %v2305
      %2307 = vmatmul.f32.gmra.mxu0 %v2192
      %v2308 = vpop.f32.mrf.mxu0
      %v2309 = vadd.f32 0.0, %v2308
      %2310 = vdwg.mxu0
      %v2311 = vadd.f32 %v2137, %v2228
      %v2312 = vadd.f32 %v2138, %v2231
      %v2313 = vadd.f32 %v2139, %v2234
      %v2314 = vadd.f32 %v2140, %v2237
      %v2315 = vadd.f32 %v2141, %v2240
      %v2316 = vadd.f32 %v2142, %v2243
      %v2317 = vadd.f32 %v2143, %v2246
      %v2318 = vadd.f32 %v2144, %v2249
      %v2319 = vadd.f32 %v2145, %v2252
      %v2320 = vadd.f32 %v2146, %v2255
      %v2321 = vadd.f32 %v2147, %v2258
      %v2322 = vadd.f32 %v2148, %v2261
      %v2323 = vadd.f32 %v2149, %v2264
      %v2324 = vadd.f32 %v2150, %v2267
      %v2325 = vadd.f32 %v2151, %v2270
      %v2326 = vadd.f32 %v2152, %v2273
      %v2327 = vadd.f32 %v2153, %v2276
      %v2328 = vadd.f32 %v2154, %v2279
      %v2329 = vadd.f32 %v2155, %v2282
      %v2330 = vadd.f32 %v2156, %v2285
      %v2331 = vadd.f32 %v2157, %v2288
      %v2332 = vadd.f32 %v2158, %v2291
      %v2333 = vadd.f32 %v2159, %v2294
      %v2334 = vadd.f32 %v2160, %v2297
      %v2335 = vadd.f32 %v2161, %v2300
      %v2336 = vadd.f32 %v2162, %v2303
      %v2337 = vadd.f32 %v2163, %v2306
      %v2338 = vadd.f32 %v2164, %v2309
      %2339 = vst [vmem:[#allocation2] sm:$0xff] %v2311
      %2340 = vst [vmem:[#allocation2 + $0x8] sm:$0xff] %v2312
      %2341 = vst [vmem:[#allocation2 + $0x10] sm:$0xff] %v2313
      %2342 = vst [vmem:[#allocation2 + $0x18] sm:$0xff] %v2314
      %2343 = vst [vmem:[#allocation2 + $0x20] sm:$0xff] %v2315
      %2344 = vst [vmem:[#allocation2 + $0x28] sm:$0xff] %v2316
      %2345 = vst [vmem:[#allocation2 + $0x30] sm:$0xff] %v2317
      %2346 = vst [vmem:[#allocation2 + $0x38] sm:$0xff] %v2318
      %2347 = vst [vmem:[#allocation2 + $0x40] sm:$0xff] %v2319
      %2348 = vst [vmem:[#allocation2 + $0x48] sm:$0xff] %v2320
      %2349 = vst [vmem:[#allocation2 + $0x50] sm:$0xff] %v2321
      %2350 = vst [vmem:[#allocation2 + $0x58] sm:$0xff] %v2322
      %2351 = vst [vmem:[#allocation2 + $0x60] sm:$0xff] %v2323
      %2352 = vst [vmem:[#allocation2 + $0x68] sm:$0xff] %v2324
      %2353 = vst [vmem:[#allocation2 + $0x70] sm:$0xff] %v2325
      %2354 = vst [vmem:[#allocation2 + $0x78] sm:$0xff] %v2326
      %2355 = vst [vmem:[#allocation2 + $0x80] sm:$0xff] %v2327
      %2356 = vst [vmem:[#allocation2 + $0x88] sm:$0xff] %v2328
      %2357 = vst [vmem:[#allocation2 + $0x90] sm:$0xff] %v2329
      %2358 = vst [vmem:[#allocation2 + $0x98] sm:$0xff] %v2330
      %2359 = vst [vmem:[#allocation2 + $0xa0] sm:$0xff] %v2331
      %2360 = vst [vmem:[#allocation2 + $0xa8] sm:$0xff] %v2332
      %2361 = vst [vmem:[#allocation2 + $0xb0] sm:$0xff] %v2333
      %2362 = vst [vmem:[#allocation2 + $0xb8] sm:$0xff] %v2334
      %2363 = vst [vmem:[#allocation2 + $0xc0] sm:$0xff] %v2335
      %2364 = vst [vmem:[#allocation2 + $0xc8] sm:$0xff] %v2336
      %2365 = vst [vmem:[#allocation2 + $0xd0] sm:$0xff] %v2337
      %2366 = vst [vmem:[#allocation2 + $0xd8] sm:$0x3f] %v2338
      %v2367 = vld [vmem:[#allocation2] sm:$0xff]
      %v2368 = vld [vmem:[#allocation2 + $0x8] sm:$0xff]
      %v2369 = vld [vmem:[#allocation2 + $0x10] sm:$0xff]
      %v2370 = vld [vmem:[#allocation2 + $0x18] sm:$0xff]
      %v2371 = vld [vmem:[#allocation2 + $0x20] sm:$0xff]
      %v2372 = vld [vmem:[#allocation2 + $0x28] sm:$0xff]
      %v2373 = vld [vmem:[#allocation2 + $0x30] sm:$0xff]
      %v2374 = vld [vmem:[#allocation2 + $0x38] sm:$0xff]
      %v2375 = vld [vmem:[#allocation2 + $0x40] sm:$0xff]
      %v2376 = vld [vmem:[#allocation2 + $0x48] sm:$0xff]
      %v2377 = vld [vmem:[#allocation2 + $0x50] sm:$0xff]
      %v2378 = vld [vmem:[#allocation2 + $0x58] sm:$0xff]
      %v2379 = vld [vmem:[#allocation2 + $0x60] sm:$0xff]
      %v2380 = vld [vmem:[#allocation2 + $0x68] sm:$0xff]
      %v2381 = vld [vmem:[#allocation2 + $0x70] sm:$0xff]
      %v2382 = vld [vmem:[#allocation2 + $0x78] sm:$0xff]
      %v2383 = vld [vmem:[#allocation2 + $0x80] sm:$0xff]
      %v2384 = vld [vmem:[#allocation2 + $0x88] sm:$0xff]
      %v2385 = vld [vmem:[#allocation2 + $0x90] sm:$0xff]
      %v2386 = vld [vmem:[#allocation2 + $0x98] sm:$0xff]
      %v2387 = vld [vmem:[#allocation2 + $0xa0] sm:$0xff]
      %v2388 = vld [vmem:[#allocation2 + $0xa8] sm:$0xff]
      %v2389 = vld [vmem:[#allocation2 + $0xb0] sm:$0xff]
      %v2390 = vld [vmem:[#allocation2 + $0xb8] sm:$0xff]
      %v2391 = vld [vmem:[#allocation2 + $0xc0] sm:$0xff]
      %v2392 = vld [vmem:[#allocation2 + $0xc8] sm:$0xff]
      %v2393 = vld [vmem:[#allocation2 + $0xd0] sm:$0xff]
      %v2394 = vld [vmem:[#allocation2 + $0xd8] sm:$0x3f]
      %v2395 = vmax.f32 %v2367, 0.0
      %v2396 = vmax.f32 %v2368, 0.0
      %v2397 = vmax.f32 %v2369, 0.0
      %v2398 = vmax.f32 %v2370, 0.0
      %v2399 = vmax.f32 %v2371, 0.0
      %v2400 = vmax.f32 %v2372, 0.0
      %v2401 = vmax.f32 %v2373, 0.0
      %v2402 = vmax.f32 %v2374, 0.0
      %v2403 = vmax.f32 %v2375, 0.0
      %v2404 = vmax.f32 %v2376, 0.0
      %v2405 = vmax.f32 %v2377, 0.0
      %v2406 = vmax.f32 %v2378, 0.0
      %v2407 = vmax.f32 %v2379, 0.0
      %v2408 = vmax.f32 %v2380, 0.0
      %v2409 = vmax.f32 %v2381, 0.0
      %v2410 = vmax.f32 %v2382, 0.0
      %v2411 = vmax.f32 %v2383, 0.0
      %v2412 = vmax.f32 %v2384, 0.0
      %v2413 = vmax.f32 %v2385, 0.0
      %v2414 = vmax.f32 %v2386, 0.0
      %v2415 = vmax.f32 %v2387, 0.0
      %v2416 = vmax.f32 %v2388, 0.0
      %v2417 = vmax.f32 %v2389, 0.0
      %v2418 = vmax.f32 %v2390, 0.0
      %v2419 = vmax.f32 %v2391, 0.0
      %v2420 = vmax.f32 %v2392, 0.0
      %v2421 = vmax.f32 %v2393, 0.0
      %v2422 = vmax.f32 %v2394, 0.0
      %2423 = vst [vmem:[#allocation2] sm:$0xff] %v2395
      %2424 = vst [vmem:[#allocation2 + $0x8] sm:$0xff] %v2396
      %2425 = vst [vmem:[#allocation2 + $0x10] sm:$0xff] %v2397
      %2426 = vst [vmem:[#allocation2 + $0x18] sm:$0xff] %v2398
      %2427 = vst [vmem:[#allocation2 + $0x20] sm:$0xff] %v2399
      %2428 = vst [vmem:[#allocation2 + $0x28] sm:$0xff] %v2400
      %2429 = vst [vmem:[#allocation2 + $0x30] sm:$0xff] %v2401
      %2430 = vst [vmem:[#allocation2 + $0x38] sm:$0xff] %v2402
      %2431 = vst [vmem:[#allocation2 + $0x40] sm:$0xff] %v2403
      %2432 = vst [vmem:[#allocation2 + $0x48] sm:$0xff] %v2404
      %2433 = vst [vmem:[#allocation2 + $0x50] sm:$0xff] %v2405
      %2434 = vst [vmem:[#allocation2 + $0x58] sm:$0xff] %v2406
      %2435 = vst [vmem:[#allocation2 + $0x60] sm:$0xff] %v2407
      %2436 = vst [vmem:[#allocation2 + $0x68] sm:$0xff] %v2408
      %2437 = vst [vmem:[#allocation2 + $0x70] sm:$0xff] %v2409
      %2438 = vst [vmem:[#allocation2 + $0x78] sm:$0xff] %v2410
      %2439 = vst [vmem:[#allocation2 + $0x80] sm:$0xff] %v2411
      %2440 = vst [vmem:[#allocation2 + $0x88] sm:$0xff] %v2412
      %2441 = vst [vmem:[#allocation2 + $0x90] sm:$0xff] %v2413
      %2442 = vst [vmem:[#allocation2 + $0x98] sm:$0xff] %v2414
      %2443 = vst [vmem:[#allocation2 + $0xa0] sm:$0xff] %v2415
      %2444 = vst [vmem:[#allocation2 + $0xa8] sm:$0xff] %v2416
      %2445 = vst [vmem:[#allocation2 + $0xb0] sm:$0xff] %v2417
      %2446 = vst [vmem:[#allocation2 + $0xb8] sm:$0xff] %v2418
      %2447 = vst [vmem:[#allocation2 + $0xc0] sm:$0xff] %v2419
      %2448 = vst [vmem:[#allocation2 + $0xc8] sm:$0xff] %v2420
      %2449 = vst [vmem:[#allocation2 + $0xd0] sm:$0xff] %v2421
      %2450 = vst [vmem:[#allocation2 + $0xd8] sm:$0x3f] %v2422
      %v2451 = vld [vmem:[%s4] sm:$0x1]
      %v2453 = vperm.slane %v2451, 0
      %v2455 = vadd.f32 %v2453, 0.0
      %2456 = vst [vmem:[#allocation3] sm:$0xff] %v2455
      %2457 = vst [vmem:[#allocation3 + $0x8] sm:$0xff] %v2455
      %2458 = vst [vmem:[#allocation3 + $0x10] sm:$0xff] %v2455
      %2459 = vst [vmem:[#allocation3 + $0x18] sm:$0xff] %v2455
      %2460 = vst [vmem:[#allocation3 + $0x20] sm:$0xff] %v2455
      %2461 = vst [vmem:[#allocation3 + $0x28] sm:$0xff] %v2455
      %2462 = vst [vmem:[#allocation3 + $0x30] sm:$0xff] %v2455
      %2463 = vst [vmem:[#allocation3 + $0x38] sm:$0xff] %v2455
      %2464 = vst [vmem:[#allocation3 + $0x40] sm:$0xff] %v2455
      %2465 = vst [vmem:[#allocation3 + $0x48] sm:$0xff] %v2455
      %2466 = vst [vmem:[#allocation3 + $0x50] sm:$0xff] %v2455
      %2467 = vst [vmem:[#allocation3 + $0x58] sm:$0xff] %v2455
      %2468 = vst [vmem:[#allocation3 + $0x60] sm:$0xff] %v2455
      %2469 = vst [vmem:[#allocation3 + $0x68] sm:$0xff] %v2455
      %2470 = vst [vmem:[#allocation3 + $0x70] sm:$0xff] %v2455
      %2471 = vst [vmem:[#allocation3 + $0x78] sm:$0xff] %v2455
      %2472 = vst [vmem:[#allocation3 + $0x80] sm:$0xff] %v2455
      %2473 = vst [vmem:[#allocation3 + $0x88] sm:$0xff] %v2455
      %2474 = vst [vmem:[#allocation3 + $0x90] sm:$0xff] %v2455
      %2475 = vst [vmem:[#allocation3 + $0x98] sm:$0xff] %v2455
      %2476 = vst [vmem:[#allocation3 + $0xa0] sm:$0xff] %v2455
      %2477 = vst [vmem:[#allocation3 + $0xa8] sm:$0xff] %v2455
      %2478 = vst [vmem:[#allocation3 + $0xb0] sm:$0xff] %v2455
      %2479 = vst [vmem:[#allocation3 + $0xb8] sm:$0xf] %v2455
      %v2480 = vld [vmem:[#allocation3] sm:$0xff]
      %v2481 = vld [vmem:[#allocation3 + $0x8] sm:$0xff]
      %v2482 = vld [vmem:[#allocation3 + $0x10] sm:$0xff]
      %v2483 = vld [vmem:[#allocation3 + $0x18] sm:$0xff]
      %v2484 = vld [vmem:[#allocation3 + $0x20] sm:$0xff]
      %v2485 = vld [vmem:[#allocation3 + $0x28] sm:$0xff]
      %v2486 = vld [vmem:[#allocation3 + $0x30] sm:$0xff]
      %v2487 = vld [vmem:[#allocation3 + $0x38] sm:$0xff]
      %v2488 = vld [vmem:[#allocation3 + $0x40] sm:$0xff]
      %v2489 = vld [vmem:[#allocation3 + $0x48] sm:$0xff]
      %v2490 = vld [vmem:[#allocation3 + $0x50] sm:$0xff]
      %v2491 = vld [vmem:[#allocation3 + $0x58] sm:$0xff]
      %v2492 = vld [vmem:[#allocation3 + $0x60] sm:$0xff]
      %v2493 = vld [vmem:[#allocation3 + $0x68] sm:$0xff]
      %v2494 = vld [vmem:[#allocation3 + $0x70] sm:$0xff]
      %v2495 = vld [vmem:[#allocation3 + $0x78] sm:$0xff]
      %v2496 = vld [vmem:[#allocation3 + $0x80] sm:$0xff]
      %v2497 = vld [vmem:[#allocation3 + $0x88] sm:$0xff]
      %v2498 = vld [vmem:[#allocation3 + $0x90] sm:$0xff]
      %v2499 = vld [vmem:[#allocation3 + $0x98] sm:$0xff]
      %v2500 = vld [vmem:[#allocation3 + $0xa0] sm:$0xff]
      %v2501 = vld [vmem:[#allocation3 + $0xa8] sm:$0xff]
      %v2502 = vld [vmem:[#allocation3 + $0xb0] sm:$0xff]
      %v2503 = vld [vmem:[#allocation3 + $0xb8] sm:$0xf]
      %v2504 = vld [vmem:[#allocation2] sm:$0xff]
      %v2505 = vld [vmem:[#allocation2 + $0x8] sm:$0xff]
      %v2506 = vld [vmem:[#allocation2 + $0x10] sm:$0xff]
      %v2507 = vld [vmem:[#allocation2 + $0x18] sm:$0xff]
      %v2508 = vld [vmem:[#allocation2 + $0x20] sm:$0xff]
      %v2509 = vld [vmem:[#allocation2 + $0x28] sm:$0xff]
      %v2510 = vld [vmem:[#allocation2 + $0x30] sm:$0xff]
      %v2511 = vld [vmem:[#allocation2 + $0x38] sm:$0xff]
      %v2512 = vld [vmem:[#allocation2 + $0x40] sm:$0xff]
      %v2513 = vld [vmem:[#allocation2 + $0x48] sm:$0xff]
      %v2514 = vld [vmem:[#allocation2 + $0x50] sm:$0xff]
      %v2515 = vld [vmem:[#allocation2 + $0x58] sm:$0xff]
      %v2516 = vld [vmem:[#allocation2 + $0x60] sm:$0xff]
      %v2517 = vld [vmem:[#allocation2 + $0x68] sm:$0xff]
      %v2518 = vld [vmem:[#allocation2 + $0x70] sm:$0xff]
      %v2519 = vld [vmem:[#allocation2 + $0x78] sm:$0xff]
      %v2520 = vld [vmem:[#allocation2 + $0x80] sm:$0xff]
      %v2521 = vld [vmem:[#allocation2 + $0x88] sm:$0xff]
      %v2522 = vld [vmem:[#allocation2 + $0x90] sm:$0xff]
      %v2523 = vld [vmem:[#allocation2 + $0x98] sm:$0xff]
      %v2524 = vld [vmem:[#allocation2 + $0xa0] sm:$0xff]
      %v2525 = vld [vmem:[#allocation2 + $0xa8] sm:$0xff]
      %v2526 = vld [vmem:[#allocation2 + $0xb0] sm:$0xff]
      %v2527 = vld [vmem:[#allocation2 + $0xb8] sm:$0xf]
      %v2528 = vld [vmem:[%s3] sm:$0xff]
      %v2529 = vld [vmem:[%s3 + $0x8] sm:$0xff]
      %v2530 = vld [vmem:[%s3 + $0x10] sm:$0xff]
      %v2531 = vld [vmem:[%s3 + $0x18] sm:$0xff]
      %v2532 = vld [vmem:[%s3 + $0x20] sm:$0xff]
      %v2533 = vld [vmem:[%s3 + $0x28] sm:$0xff]
      %v2534 = vld [vmem:[%s3 + $0x30] sm:$0xff]
      %v2535 = vld [vmem:[%s3 + $0x38] sm:$0xff]
      %v2536 = vld [vmem:[%s3 + $0x40] sm:$0xff]
      %v2537 = vld [vmem:[%s3 + $0x48] sm:$0xff]
      %v2538 = vld [vmem:[%s3 + $0x50] sm:$0xff]
      %v2539 = vld [vmem:[%s3 + $0x58] sm:$0xff]
      %v2540 = vld [vmem:[%s3 + $0x60] sm:$0xff]
      %v2541 = vld [vmem:[%s3 + $0x68] sm:$0xff]
      %v2542 = vld [vmem:[%s3 + $0x70] sm:$0xff]
      %v2543 = vld [vmem:[%s3 + $0x78] sm:$0xff]
      %2544 = vmatpush.msra.mxu0 %v2543
      %2545 = vmatpush.msra.mxu0 %v2542
      %2546 = vmatpush.msra.mxu0 %v2541
      %2547 = vmatpush.msra.mxu0 %v2540
      %2548 = vmatpush.msra.mxu0 %v2539
      %2549 = vmatpush.msra.mxu0 %v2538
      %2550 = vmatpush.msra.mxu0 %v2537
      %2551 = vmatpush.msra.mxu0 %v2536
      %2552 = vmatpush.msra.mxu0 %v2535
      %2553 = vmatpush.msra.mxu0 %v2534
      %2554 = vmatpush.msra.mxu0 %v2533
      %2555 = vmatpush.msra.mxu0 %v2532
      %2556 = vmatpush.msra.mxu0 %v2531
      %2557 = vmatpush.msra.mxu0 %v2530
      %2558 = vmatpush.msra.mxu0 %v2529
      %2559 = vmatpush.msra.mxu0 %v2528
      %2560 = vmatmul.f32.gmra.mxu0 %v2504
      %v2561 = vpop.f32.mrf.mxu0
      %v2562 = vadd.f32 0.0, %v2561
      %2563 = vmatmul.f32.gmra.mxu0 %v2505
      %v2564 = vpop.f32.mrf.mxu0
      %v2565 = vadd.f32 0.0, %v2564
      %2566 = vmatmul.f32.gmra.mxu0 %v2506
      %v2567 = vpop.f32.mrf.mxu0
      %v2568 = vadd.f32 0.0, %v2567
      %2569 = vmatmul.f32.gmra.mxu0 %v2507
      %v2570 = vpop.f32.mrf.mxu0
      %v2571 = vadd.f32 0.0, %v2570
      %2572 = vmatmul.f32.gmra.mxu0 %v2508
      %v2573 = vpop.f32.mrf.mxu0
      %v2574 = vadd.f32 0.0, %v2573
      %2575 = vmatmul.f32.gmra.mxu0 %v2509
      %v2576 = vpop.f32.mrf.mxu0
      %v2577 = vadd.f32 0.0, %v2576
      %2578 = vmatmul.f32.gmra.mxu0 %v2510
      %v2579 = vpop.f32.mrf.mxu0
      %v2580 = vadd.f32 0.0, %v2579
      %2581 = vmatmul.f32.gmra.mxu0 %v2511
      %v2582 = vpop.f32.mrf.mxu0
      %v2583 = vadd.f32 0.0, %v2582
      %2584 = vmatmul.f32.gmra.mxu0 %v2512
      %v2585 = vpop.f32.mrf.mxu0
      %v2586 = vadd.f32 0.0, %v2585
      %2587 = vmatmul.f32.gmra.mxu0 %v2513
      %v2588 = vpop.f32.mrf.mxu0
      %v2589 = vadd.f32 0.0, %v2588
      %2590 = vmatmul.f32.gmra.mxu0 %v2514
      %v2591 = vpop.f32.mrf.mxu0
      %v2592 = vadd.f32 0.0, %v2591
      %2593 = vmatmul.f32.gmra.mxu0 %v2515
      %v2594 = vpop.f32.mrf.mxu0
      %v2595 = vadd.f32 0.0, %v2594
      %2596 = vmatmul.f32.gmra.mxu0 %v2516
      %v2597 = vpop.f32.mrf.mxu0
      %v2598 = vadd.f32 0.0, %v2597
      %2599 = vmatmul.f32.gmra.mxu0 %v2517
      %v2600 = vpop.f32.mrf.mxu0
      %v2601 = vadd.f32 0.0, %v2600
      %2602 = vmatmul.f32.gmra.mxu0 %v2518
      %v2603 = vpop.f32.mrf.mxu0
      %v2604 = vadd.f32 0.0, %v2603
      %2605 = vmatmul.f32.gmra.mxu0 %v2519
      %v2606 = vpop.f32.mrf.mxu0
      %v2607 = vadd.f32 0.0, %v2606
      %2608 = vmatmul.f32.gmra.mxu0 %v2520
      %v2609 = vpop.f32.mrf.mxu0
      %v2610 = vadd.f32 0.0, %v2609
      %2611 = vmatmul.f32.gmra.mxu0 %v2521
      %v2612 = vpop.f32.mrf.mxu0
      %v2613 = vadd.f32 0.0, %v2612
      %2614 = vmatmul.f32.gmra.mxu0 %v2522
      %v2615 = vpop.f32.mrf.mxu0
      %v2616 = vadd.f32 0.0, %v2615
      %2617 = vmatmul.f32.gmra.mxu0 %v2523
      %v2618 = vpop.f32.mrf.mxu0
      %v2619 = vadd.f32 0.0, %v2618
      %2620 = vmatmul.f32.gmra.mxu0 %v2524
      %v2621 = vpop.f32.mrf.mxu0
      %v2622 = vadd.f32 0.0, %v2621
      %2623 = vmatmul.f32.gmra.mxu0 %v2525
      %v2624 = vpop.f32.mrf.mxu0
      %v2625 = vadd.f32 0.0, %v2624
      %2626 = vmatmul.f32.gmra.mxu0 %v2526
      %v2627 = vpop.f32.mrf.mxu0
      %v2628 = vadd.f32 0.0, %v2627
      %2629 = vmatmul.f32.gmra.mxu0 %v2527
      %v2630 = vpop.f32.mrf.mxu0
      %v2631 = vadd.f32 0.0, %v2630
      %2632 = vdwg.mxu0
      %v2633 = vadd.f32 %v2480, %v2562
      %v2634 = vadd.f32 %v2481, %v2565
      %v2635 = vadd.f32 %v2482, %v2568
      %v2636 = vadd.f32 %v2483, %v2571
      %v2637 = vadd.f32 %v2484, %v2574
      %v2638 = vadd.f32 %v2485, %v2577
      %v2639 = vadd.f32 %v2486, %v2580
      %v2640 = vadd.f32 %v2487, %v2583
      %v2641 = vadd.f32 %v2488, %v2586
      %v2642 = vadd.f32 %v2489, %v2589
      %v2643 = vadd.f32 %v2490, %v2592
      %v2644 = vadd.f32 %v2491, %v2595
      %v2645 = vadd.f32 %v2492, %v2598
      %v2646 = vadd.f32 %v2493, %v2601
      %v2647 = vadd.f32 %v2494, %v2604
      %v2648 = vadd.f32 %v2495, %v2607
      %v2649 = vadd.f32 %v2496, %v2610
      %v2650 = vadd.f32 %v2497, %v2613
      %v2651 = vadd.f32 %v2498, %v2616
      %v2652 = vadd.f32 %v2499, %v2619
      %v2653 = vadd.f32 %v2500, %v2622
      %v2654 = vadd.f32 %v2501, %v2625
      %v2655 = vadd.f32 %v2502, %v2628
      %v2656 = vadd.f32 %v2503, %v2631
      %2657 = vst [vmem:[#allocation3] sm:$0xff] %v2633
      %2658 = vst [vmem:[#allocation3 + $0x8] sm:$0xff] %v2634
      %2659 = vst [vmem:[#allocation3 + $0x10] sm:$0xff] %v2635
      %2660 = vst [vmem:[#allocation3 + $0x18] sm:$0xff] %v2636
      %2661 = vst [vmem:[#allocation3 + $0x20] sm:$0xff] %v2637
      %2662 = vst [vmem:[#allocation3 + $0x28] sm:$0xff] %v2638
      %2663 = vst [vmem:[#allocation3 + $0x30] sm:$0xff] %v2639
      %2664 = vst [vmem:[#allocation3 + $0x38] sm:$0xff] %v2640
      %2665 = vst [vmem:[#allocation3 + $0x40] sm:$0xff] %v2641
      %2666 = vst [vmem:[#allocation3 + $0x48] sm:$0xff] %v2642
      %2667 = vst [vmem:[#allocation3 + $0x50] sm:$0xff] %v2643
      %2668 = vst [vmem:[#allocation3 + $0x58] sm:$0xff] %v2644
      %2669 = vst [vmem:[#allocation3 + $0x60] sm:$0xff] %v2645
      %2670 = vst [vmem:[#allocation3 + $0x68] sm:$0xff] %v2646
      %2671 = vst [vmem:[#allocation3 + $0x70] sm:$0xff] %v2647
      %2672 = vst [vmem:[#allocation3 + $0x78] sm:$0xff] %v2648
      %2673 = vst [vmem:[#allocation3 + $0x80] sm:$0xff] %v2649
      %2674 = vst [vmem:[#allocation3 + $0x88] sm:$0xff] %v2650
      %2675 = vst [vmem:[#allocation3 + $0x90] sm:$0xff] %v2651
      %2676 = vst [vmem:[#allocation3 + $0x98] sm:$0xff] %v2652
      %2677 = vst [vmem:[#allocation3 + $0xa0] sm:$0xff] %v2653
      %2678 = vst [vmem:[#allocation3 + $0xa8] sm:$0xff] %v2654
      %2679 = vst [vmem:[#allocation3 + $0xb0] sm:$0xff] %v2655
      %2680 = vst [vmem:[#allocation3 + $0xb8] sm:$0xf] %v2656
      %v2681 = vld [vmem:[#allocation3] sm:$0xff]
      %v2682 = vld [vmem:[#allocation3 + $0x8] sm:$0xff]
      %v2683 = vld [vmem:[#allocation3 + $0x10] sm:$0xff]
      %v2684 = vld [vmem:[#allocation3 + $0x18] sm:$0xff]
      %v2685 = vld [vmem:[#allocation3 + $0x20] sm:$0xff]
      %v2686 = vld [vmem:[#allocation3 + $0x28] sm:$0xff]
      %v2687 = vld [vmem:[#allocation3 + $0x30] sm:$0xff]
      %v2688 = vld [vmem:[#allocation3 + $0x38] sm:$0xff]
      %v2689 = vld [vmem:[#allocation3 + $0x40] sm:$0xff]
      %v2690 = vld [vmem:[#allocation3 + $0x48] sm:$0xff]
      %v2691 = vld [vmem:[#allocation3 + $0x50] sm:$0xff]
      %v2692 = vld [vmem:[#allocation3 + $0x58] sm:$0xff]
      %v2693 = vld [vmem:[#allocation3 + $0x60] sm:$0xff]
      %v2694 = vld [vmem:[#allocation3 + $0x68] sm:$0xff]
      %v2695 = vld [vmem:[#allocation3 + $0x70] sm:$0xff]
      %v2696 = vld [vmem:[#allocation3 + $0x78] sm:$0xff]
      %v2697 = vld [vmem:[#allocation3 + $0x80] sm:$0xff]
      %v2698 = vld [vmem:[#allocation3 + $0x88] sm:$0xff]
      %v2699 = vld [vmem:[#allocation3 + $0x90] sm:$0xff]
      %v2700 = vld [vmem:[#allocation3 + $0x98] sm:$0xff]
      %v2701 = vld [vmem:[#allocation3 + $0xa0] sm:$0xff]
      %v2702 = vld [vmem:[#allocation3 + $0xa8] sm:$0xff]
      %v2703 = vld [vmem:[#allocation3 + $0xb0] sm:$0xff]
      %v2704 = vld [vmem:[#allocation3 + $0xb8] sm:$0xf]
      %v2705 = vld [vmem:[#allocation2 + $0x1] sm:$0xff]
      %v2706 = vld [vmem:[#allocation2 + $0x9] sm:$0xff]
      %v2707 = vld [vmem:[#allocation2 + $0x11] sm:$0xff]
      %v2708 = vld [vmem:[#allocation2 + $0x19] sm:$0xff]
      %v2709 = vld [vmem:[#allocation2 + $0x21] sm:$0xff]
      %v2710 = vld [vmem:[#allocation2 + $0x29] sm:$0xff]
      %v2711 = vld [vmem:[#allocation2 + $0x31] sm:$0xff]
      %v2712 = vld [vmem:[#allocation2 + $0x39] sm:$0xff]
      %v2713 = vld [vmem:[#allocation2 + $0x41] sm:$0xff]
      %v2714 = vld [vmem:[#allocation2 + $0x49] sm:$0xff]
      %v2715 = vld [vmem:[#allocation2 + $0x51] sm:$0xff]
      %v2716 = vld [vmem:[#allocation2 + $0x59] sm:$0xff]
      %v2717 = vld [vmem:[#allocation2 + $0x61] sm:$0xff]
      %v2718 = vld [vmem:[#allocation2 + $0x69] sm:$0xff]
      %v2719 = vld [vmem:[#allocation2 + $0x71] sm:$0xff]
      %v2720 = vld [vmem:[#allocation2 + $0x79] sm:$0xff]
      %v2721 = vld [vmem:[#allocation2 + $0x81] sm:$0xff]
      %v2722 = vld [vmem:[#allocation2 + $0x89] sm:$0xff]
      %v2723 = vld [vmem:[#allocation2 + $0x91] sm:$0xff]
      %v2724 = vld [vmem:[#allocation2 + $0x99] sm:$0xff]
      %v2725 = vld [vmem:[#allocation2 + $0xa1] sm:$0xff]
      %v2726 = vld [vmem:[#allocation2 + $0xa9] sm:$0xff]
      %v2727 = vld [vmem:[#allocation2 + $0xb1] sm:$0xff]
      %v2728 = vld [vmem:[#allocation2 + $0xb9] sm:$0xf]
      %s2729 = scalar_lea.vmem %s3, 128
      %v2730 = vld [vmem:[%s2729] sm:$0xff]
      %v2731 = vld [vmem:[%s2729 + $0x8] sm:$0xff]
      %v2732 = vld [vmem:[%s2729 + $0x10] sm:$0xff]
      %v2733 = vld [vmem:[%s2729 + $0x18] sm:$0xff]
      %v2734 = vld [vmem:[%s2729 + $0x20] sm:$0xff]
      %v2735 = vld [vmem:[%s2729 + $0x28] sm:$0xff]
      %v2736 = vld [vmem:[%s2729 + $0x30] sm:$0xff]
      %v2737 = vld [vmem:[%s2729 + $0x38] sm:$0xff]
      %v2738 = vld [vmem:[%s2729 + $0x40] sm:$0xff]
      %v2739 = vld [vmem:[%s2729 + $0x48] sm:$0xff]
      %v2740 = vld [vmem:[%s2729 + $0x50] sm:$0xff]
      %v2741 = vld [vmem:[%s2729 + $0x58] sm:$0xff]
      %v2742 = vld [vmem:[%s2729 + $0x60] sm:$0xff]
      %v2743 = vld [vmem:[%s2729 + $0x68] sm:$0xff]
      %v2744 = vld [vmem:[%s2729 + $0x70] sm:$0xff]
      %v2745 = vld [vmem:[%s2729 + $0x78] sm:$0xff]
      %2746 = vmatpush.msra.mxu0 %v2745
      %2747 = vmatpush.msra.mxu0 %v2744
      %2748 = vmatpush.msra.mxu0 %v2743
      %2749 = vmatpush.msra.mxu0 %v2742
      %2750 = vmatpush.msra.mxu0 %v2741
      %2751 = vmatpush.msra.mxu0 %v2740
      %2752 = vmatpush.msra.mxu0 %v2739
      %2753 = vmatpush.msra.mxu0 %v2738
      %2754 = vmatpush.msra.mxu0 %v2737
      %2755 = vmatpush.msra.mxu0 %v2736
      %2756 = vmatpush.msra.mxu0 %v2735
      %2757 = vmatpush.msra.mxu0 %v2734
      %2758 = vmatpush.msra.mxu0 %v2733
      %2759 = vmatpush.msra.mxu0 %v2732
      %2760 = vmatpush.msra.mxu0 %v2731
      %2761 = vmatpush.msra.mxu0 %v2730
      %2762 = vmatmul.f32.gmra.mxu0 %v2705
      %v2763 = vpop.f32.mrf.mxu0
      %v2764 = vadd.f32 0.0, %v2763
      %2765 = vmatmul.f32.gmra.mxu0 %v2706
      %v2766 = vpop.f32.mrf.mxu0
      %v2767 = vadd.f32 0.0, %v2766
      %2768 = vmatmul.f32.gmra.mxu0 %v2707
      %v2769 = vpop.f32.mrf.mxu0
      %v2770 = vadd.f32 0.0, %v2769
      %2771 = vmatmul.f32.gmra.mxu0 %v2708
      %v2772 = vpop.f32.mrf.mxu0
      %v2773 = vadd.f32 0.0, %v2772
      %2774 = vmatmul.f32.gmra.mxu0 %v2709
      %v2775 = vpop.f32.mrf.mxu0
      %v2776 = vadd.f32 0.0, %v2775
      %2777 = vmatmul.f32.gmra.mxu0 %v2710
      %v2778 = vpop.f32.mrf.mxu0
      %v2779 = vadd.f32 0.0, %v2778
      %2780 = vmatmul.f32.gmra.mxu0 %v2711
      %v2781 = vpop.f32.mrf.mxu0
      %v2782 = vadd.f32 0.0, %v2781
      %2783 = vmatmul.f32.gmra.mxu0 %v2712
      %v2784 = vpop.f32.mrf.mxu0
      %v2785 = vadd.f32 0.0, %v2784
      %2786 = vmatmul.f32.gmra.mxu0 %v2713
      %v2787 = vpop.f32.mrf.mxu0
      %v2788 = vadd.f32 0.0, %v2787
      %2789 = vmatmul.f32.gmra.mxu0 %v2714
      %v2790 = vpop.f32.mrf.mxu0
      %v2791 = vadd.f32 0.0, %v2790
      %2792 = vmatmul.f32.gmra.mxu0 %v2715
      %v2793 = vpop.f32.mrf.mxu0
      %v2794 = vadd.f32 0.0, %v2793
      %2795 = vmatmul.f32.gmra.mxu0 %v2716
      %v2796 = vpop.f32.mrf.mxu0
      %v2797 = vadd.f32 0.0, %v2796
      %2798 = vmatmul.f32.gmra.mxu0 %v2717
      %v2799 = vpop.f32.mrf.mxu0
      %v2800 = vadd.f32 0.0, %v2799
      %2801 = vmatmul.f32.gmra.mxu0 %v2718
      %v2802 = vpop.f32.mrf.mxu0
      %v2803 = vadd.f32 0.0, %v2802
      %2804 = vmatmul.f32.gmra.mxu0 %v2719
      %v2805 = vpop.f32.mrf.mxu0
      %v2806 = vadd.f32 0.0, %v2805
      %2807 = vmatmul.f32.gmra.mxu0 %v2720
      %v2808 = vpop.f32.mrf.mxu0
      %v2809 = vadd.f32 0.0, %v2808
      %2810 = vmatmul.f32.gmra.mxu0 %v2721
      %v2811 = vpop.f32.mrf.mxu0
      %v2812 = vadd.f32 0.0, %v2811
      %2813 = vmatmul.f32.gmra.mxu0 %v2722
      %v2814 = vpop.f32.mrf.mxu0
      %v2815 = vadd.f32 0.0, %v2814
      %2816 = vmatmul.f32.gmra.mxu0 %v2723
      %v2817 = vpop.f32.mrf.mxu0
      %v2818 = vadd.f32 0.0, %v2817
      %2819 = vmatmul.f32.gmra.mxu0 %v2724
      %v2820 = vpop.f32.mrf.mxu0
      %v2821 = vadd.f32 0.0, %v2820
      %2822 = vmatmul.f32.gmra.mxu0 %v2725
      %v2823 = vpop.f32.mrf.mxu0
      %v2824 = vadd.f32 0.0, %v2823
      %2825 = vmatmul.f32.gmra.mxu0 %v2726
      %v2826 = vpop.f32.mrf.mxu0
      %v2827 = vadd.f32 0.0, %v2826
      %2828 = vmatmul.f32.gmra.mxu0 %v2727
      %v2829 = vpop.f32.mrf.mxu0
      %v2830 = vadd.f32 0.0, %v2829
      %2831 = vmatmul.f32.gmra.mxu0 %v2728
      %v2832 = vpop.f32.mrf.mxu0
      %v2833 = vadd.f32 0.0, %v2832
      %2834 = vdwg.mxu0
      %v2835 = vadd.f32 %v2681, %v2764
      %v2836 = vadd.f32 %v2682, %v2767
      %v2837 = vadd.f32 %v2683, %v2770
      %v2838 = vadd.f32 %v2684, %v2773
      %v2839 = vadd.f32 %v2685, %v2776
      %v2840 = vadd.f32 %v2686, %v2779
      %v2841 = vadd.f32 %v2687, %v2782
      %v2842 = vadd.f32 %v2688, %v2785
      %v2843 = vadd.f32 %v2689, %v2788
      %v2844 = vadd.f32 %v2690, %v2791
      %v2845 = vadd.f32 %v2691, %v2794
      %v2846 = vadd.f32 %v2692, %v2797
      %v2847 = vadd.f32 %v2693, %v2800
      %v2848 = vadd.f32 %v2694, %v2803
      %v2849 = vadd.f32 %v2695, %v2806
      %v2850 = vadd.f32 %v2696, %v2809
      %v2851 = vadd.f32 %v2697, %v2812
      %v2852 = vadd.f32 %v2698, %v2815
      %v2853 = vadd.f32 %v2699, %v2818
      %v2854 = vadd.f32 %v2700, %v2821
      %v2855 = vadd.f32 %v2701, %v2824
      %v2856 = vadd.f32 %v2702, %v2827
      %v2857 = vadd.f32 %v2703, %v2830
      %v2858 = vadd.f32 %v2704, %v2833
      %2859 = vst [vmem:[#allocation3] sm:$0xff] %v2835
      %2860 = vst [vmem:[#allocation3 + $0x8] sm:$0xff] %v2836
      %2861 = vst [vmem:[#allocation3 + $0x10] sm:$0xff] %v2837
      %2862 = vst [vmem:[#allocation3 + $0x18] sm:$0xff] %v2838
      %2863 = vst [vmem:[#allocation3 + $0x20] sm:$0xff] %v2839
      %2864 = vst [vmem:[#allocation3 + $0x28] sm:$0xff] %v2840
      %2865 = vst [vmem:[#allocation3 + $0x30] sm:$0xff] %v2841
      %2866 = vst [vmem:[#allocation3 + $0x38] sm:$0xff] %v2842
      %2867 = vst [vmem:[#allocation3 + $0x40] sm:$0xff] %v2843
      %2868 = vst [vmem:[#allocation3 + $0x48] sm:$0xff] %v2844
      %2869 = vst [vmem:[#allocation3 + $0x50] sm:$0xff] %v2845
      %2870 = vst [vmem:[#allocation3 + $0x58] sm:$0xff] %v2846
      %2871 = vst [vmem:[#allocation3 + $0x60] sm:$0xff] %v2847
      %2872 = vst [vmem:[#allocation3 + $0x68] sm:$0xff] %v2848
      %2873 = vst [vmem:[#allocation3 + $0x70] sm:$0xff] %v2849
      %2874 = vst [vmem:[#allocation3 + $0x78] sm:$0xff] %v2850
      %2875 = vst [vmem:[#allocation3 + $0x80] sm:$0xff] %v2851
      %2876 = vst [vmem:[#allocation3 + $0x88] sm:$0xff] %v2852
      %2877 = vst [vmem:[#allocation3 + $0x90] sm:$0xff] %v2853
      %2878 = vst [vmem:[#allocation3 + $0x98] sm:$0xff] %v2854
      %2879 = vst [vmem:[#allocation3 + $0xa0] sm:$0xff] %v2855
      %2880 = vst [vmem:[#allocation3 + $0xa8] sm:$0xff] %v2856
      %2881 = vst [vmem:[#allocation3 + $0xb0] sm:$0xff] %v2857
      %2882 = vst [vmem:[#allocation3 + $0xb8] sm:$0xf] %v2858
      %v2883 = vld [vmem:[#allocation3] sm:$0xff]
      %v2884 = vld [vmem:[#allocation3 + $0x8] sm:$0xff]
      %v2885 = vld [vmem:[#allocation3 + $0x10] sm:$0xff]
      %v2886 = vld [vmem:[#allocation3 + $0x18] sm:$0xff]
      %v2887 = vld [vmem:[#allocation3 + $0x20] sm:$0xff]
      %v2888 = vld [vmem:[#allocation3 + $0x28] sm:$0xff]
      %v2889 = vld [vmem:[#allocation3 + $0x30] sm:$0xff]
      %v2890 = vld [vmem:[#allocation3 + $0x38] sm:$0xff]
      %v2891 = vld [vmem:[#allocation3 + $0x40] sm:$0xff]
      %v2892 = vld [vmem:[#allocation3 + $0x48] sm:$0xff]
      %v2893 = vld [vmem:[#allocation3 + $0x50] sm:$0xff]
      %v2894 = vld [vmem:[#allocation3 + $0x58] sm:$0xff]
      %v2895 = vld [vmem:[#allocation3 + $0x60] sm:$0xff]
      %v2896 = vld [vmem:[#allocation3 + $0x68] sm:$0xff]
      %v2897 = vld [vmem:[#allocation3 + $0x70] sm:$0xff]
      %v2898 = vld [vmem:[#allocation3 + $0x78] sm:$0xff]
      %v2899 = vld [vmem:[#allocation3 + $0x80] sm:$0xff]
      %v2900 = vld [vmem:[#allocation3 + $0x88] sm:$0xff]
      %v2901 = vld [vmem:[#allocation3 + $0x90] sm:$0xff]
      %v2902 = vld [vmem:[#allocation3 + $0x98] sm:$0xff]
      %v2903 = vld [vmem:[#allocation3 + $0xa0] sm:$0xff]
      %v2904 = vld [vmem:[#allocation3 + $0xa8] sm:$0xff]
      %v2905 = vld [vmem:[#allocation3 + $0xb0] sm:$0xff]
      %v2906 = vld [vmem:[#allocation3 + $0xb8] sm:$0xf]
      %v2907 = vld [vmem:[#allocation2 + $0x2] sm:$0xff]
      %v2908 = vld [vmem:[#allocation2 + $0xa] sm:$0xff]
      %v2909 = vld [vmem:[#allocation2 + $0x12] sm:$0xff]
      %v2910 = vld [vmem:[#allocation2 + $0x1a] sm:$0xff]
      %v2911 = vld [vmem:[#allocation2 + $0x22] sm:$0xff]
      %v2912 = vld [vmem:[#allocation2 + $0x2a] sm:$0xff]
      %v2913 = vld [vmem:[#allocation2 + $0x32] sm:$0xff]
      %v2914 = vld [vmem:[#allocation2 + $0x3a] sm:$0xff]
      %v2915 = vld [vmem:[#allocation2 + $0x42] sm:$0xff]
      %v2916 = vld [vmem:[#allocation2 + $0x4a] sm:$0xff]
      %v2917 = vld [vmem:[#allocation2 + $0x52] sm:$0xff]
      %v2918 = vld [vmem:[#allocation2 + $0x5a] sm:$0xff]
      %v2919 = vld [vmem:[#allocation2 + $0x62] sm:$0xff]
      %v2920 = vld [vmem:[#allocation2 + $0x6a] sm:$0xff]
      %v2921 = vld [vmem:[#allocation2 + $0x72] sm:$0xff]
      %v2922 = vld [vmem:[#allocation2 + $0x7a] sm:$0xff]
      %v2923 = vld [vmem:[#allocation2 + $0x82] sm:$0xff]
      %v2924 = vld [vmem:[#allocation2 + $0x8a] sm:$0xff]
      %v2925 = vld [vmem:[#allocation2 + $0x92] sm:$0xff]
      %v2926 = vld [vmem:[#allocation2 + $0x9a] sm:$0xff]
      %v2927 = vld [vmem:[#allocation2 + $0xa2] sm:$0xff]
      %v2928 = vld [vmem:[#allocation2 + $0xaa] sm:$0xff]
      %v2929 = vld [vmem:[#allocation2 + $0xb2] sm:$0xff]
      %v2930 = vld [vmem:[#allocation2 + $0xba] sm:$0xf]
      %s2931 = scalar_lea.vmem %s3, 256
      %v2932 = vld [vmem:[%s2931] sm:$0xff]
      %v2933 = vld [vmem:[%s2931 + $0x8] sm:$0xff]
      %v2934 = vld [vmem:[%s2931 + $0x10] sm:$0xff]
      %v2935 = vld [vmem:[%s2931 + $0x18] sm:$0xff]
      %v2936 = vld [vmem:[%s2931 + $0x20] sm:$0xff]
      %v2937 = vld [vmem:[%s2931 + $0x28] sm:$0xff]
      %v2938 = vld [vmem:[%s2931 + $0x30] sm:$0xff]
      %v2939 = vld [vmem:[%s2931 + $0x38] sm:$0xff]
      %v2940 = vld [vmem:[%s2931 + $0x40] sm:$0xff]
      %v2941 = vld [vmem:[%s2931 + $0x48] sm:$0xff]
      %v2942 = vld [vmem:[%s2931 + $0x50] sm:$0xff]
      %v2943 = vld [vmem:[%s2931 + $0x58] sm:$0xff]
      %v2944 = vld [vmem:[%s2931 + $0x60] sm:$0xff]
      %v2945 = vld [vmem:[%s2931 + $0x68] sm:$0xff]
      %v2946 = vld [vmem:[%s2931 + $0x70] sm:$0xff]
      %v2947 = vld [vmem:[%s2931 + $0x78] sm:$0xff]
      %2948 = vmatpush.msra.mxu0 %v2947
      %2949 = vmatpush.msra.mxu0 %v2946
      %2950 = vmatpush.msra.mxu0 %v2945
      %2951 = vmatpush.msra.mxu0 %v2944
      %2952 = vmatpush.msra.mxu0 %v2943
      %2953 = vmatpush.msra.mxu0 %v2942
      %2954 = vmatpush.msra.mxu0 %v2941
      %2955 = vmatpush.msra.mxu0 %v2940
      %2956 = vmatpush.msra.mxu0 %v2939
      %2957 = vmatpush.msra.mxu0 %v2938
      %2958 = vmatpush.msra.mxu0 %v2937
      %2959 = vmatpush.msra.mxu0 %v2936
      %2960 = vmatpush.msra.mxu0 %v2935
      %2961 = vmatpush.msra.mxu0 %v2934
      %2962 = vmatpush.msra.mxu0 %v2933
      %2963 = vmatpush.msra.mxu0 %v2932
      %2964 = vmatmul.f32.gmra.mxu0 %v2907
      %v2965 = vpop.f32.mrf.mxu0
      %v2966 = vadd.f32 0.0, %v2965
      %2967 = vmatmul.f32.gmra.mxu0 %v2908
      %v2968 = vpop.f32.mrf.mxu0
      %v2969 = vadd.f32 0.0, %v2968
      %2970 = vmatmul.f32.gmra.mxu0 %v2909
      %v2971 = vpop.f32.mrf.mxu0
      %v2972 = vadd.f32 0.0, %v2971
      %2973 = vmatmul.f32.gmra.mxu0 %v2910
      %v2974 = vpop.f32.mrf.mxu0
      %v2975 = vadd.f32 0.0, %v2974
      %2976 = vmatmul.f32.gmra.mxu0 %v2911
      %v2977 = vpop.f32.mrf.mxu0
      %v2978 = vadd.f32 0.0, %v2977
      %2979 = vmatmul.f32.gmra.mxu0 %v2912
      %v2980 = vpop.f32.mrf.mxu0
      %v2981 = vadd.f32 0.0, %v2980
      %2982 = vmatmul.f32.gmra.mxu0 %v2913
      %v2983 = vpop.f32.mrf.mxu0
      %v2984 = vadd.f32 0.0, %v2983
      %2985 = vmatmul.f32.gmra.mxu0 %v2914
      %v2986 = vpop.f32.mrf.mxu0
      %v2987 = vadd.f32 0.0, %v2986
      %2988 = vmatmul.f32.gmra.mxu0 %v2915
      %v2989 = vpop.f32.mrf.mxu0
      %v2990 = vadd.f32 0.0, %v2989
      %2991 = vmatmul.f32.gmra.mxu0 %v2916
      %v2992 = vpop.f32.mrf.mxu0
      %v2993 = vadd.f32 0.0, %v2992
      %2994 = vmatmul.f32.gmra.mxu0 %v2917
      %v2995 = vpop.f32.mrf.mxu0
      %v2996 = vadd.f32 0.0, %v2995
      %2997 = vmatmul.f32.gmra.mxu0 %v2918
      %v2998 = vpop.f32.mrf.mxu0
      %v2999 = vadd.f32 0.0, %v2998
      %3000 = vmatmul.f32.gmra.mxu0 %v2919
      %v3001 = vpop.f32.mrf.mxu0
      %v3002 = vadd.f32 0.0, %v3001
      %3003 = vmatmul.f32.gmra.mxu0 %v2920
      %v3004 = vpop.f32.mrf.mxu0
      %v3005 = vadd.f32 0.0, %v3004
      %3006 = vmatmul.f32.gmra.mxu0 %v2921
      %v3007 = vpop.f32.mrf.mxu0
      %v3008 = vadd.f32 0.0, %v3007
      %3009 = vmatmul.f32.gmra.mxu0 %v2922
      %v3010 = vpop.f32.mrf.mxu0
      %v3011 = vadd.f32 0.0, %v3010
      %3012 = vmatmul.f32.gmra.mxu0 %v2923
      %v3013 = vpop.f32.mrf.mxu0
      %v3014 = vadd.f32 0.0, %v3013
      %3015 = vmatmul.f32.gmra.mxu0 %v2924
      %v3016 = vpop.f32.mrf.mxu0
      %v3017 = vadd.f32 0.0, %v3016
      %3018 = vmatmul.f32.gmra.mxu0 %v2925
      %v3019 = vpop.f32.mrf.mxu0
      %v3020 = vadd.f32 0.0, %v3019
      %3021 = vmatmul.f32.gmra.mxu0 %v2926
      %v3022 = vpop.f32.mrf.mxu0
      %v3023 = vadd.f32 0.0, %v3022
      %3024 = vmatmul.f32.gmra.mxu0 %v2927
      %v3025 = vpop.f32.mrf.mxu0
      %v3026 = vadd.f32 0.0, %v3025
      %3027 = vmatmul.f32.gmra.mxu0 %v2928
      %v3028 = vpop.f32.mrf.mxu0
      %v3029 = vadd.f32 0.0, %v3028
      %3030 = vmatmul.f32.gmra.mxu0 %v2929
      %v3031 = vpop.f32.mrf.mxu0
      %v3032 = vadd.f32 0.0, %v3031
      %3033 = vmatmul.f32.gmra.mxu0 %v2930
      %v3034 = vpop.f32.mrf.mxu0
      %v3035 = vadd.f32 0.0, %v3034
      %3036 = vdwg.mxu0
      %v3037 = vadd.f32 %v2883, %v2966
      %v3038 = vadd.f32 %v2884, %v2969
      %v3039 = vadd.f32 %v2885, %v2972
      %v3040 = vadd.f32 %v2886, %v2975
      %v3041 = vadd.f32 %v2887, %v2978
      %v3042 = vadd.f32 %v2888, %v2981
      %v3043 = vadd.f32 %v2889, %v2984
      %v3044 = vadd.f32 %v2890, %v2987
      %v3045 = vadd.f32 %v2891, %v2990
      %v3046 = vadd.f32 %v2892, %v2993
      %v3047 = vadd.f32 %v2893, %v2996
      %v3048 = vadd.f32 %v2894, %v2999
      %v3049 = vadd.f32 %v2895, %v3002
      %v3050 = vadd.f32 %v2896, %v3005
      %v3051 = vadd.f32 %v2897, %v3008
      %v3052 = vadd.f32 %v2898, %v3011
      %v3053 = vadd.f32 %v2899, %v3014
      %v3054 = vadd.f32 %v2900, %v3017
      %v3055 = vadd.f32 %v2901, %v3020
      %v3056 = vadd.f32 %v2902, %v3023
      %v3057 = vadd.f32 %v2903, %v3026
      %v3058 = vadd.f32 %v2904, %v3029
      %v3059 = vadd.f32 %v2905, %v3032
      %v3060 = vadd.f32 %v2906, %v3035
      %3061 = vst [vmem:[#allocation3] sm:$0xff] %v3037
      %3062 = vst [vmem:[#allocation3 + $0x8] sm:$0xff] %v3038
      %3063 = vst [vmem:[#allocation3 + $0x10] sm:$0xff] %v3039
      %3064 = vst [vmem:[#allocation3 + $0x18] sm:$0xff] %v3040
      %3065 = vst [vmem:[#allocation3 + $0x20] sm:$0xff] %v3041
      %3066 = vst [vmem:[#allocation3 + $0x28] sm:$0xff] %v3042
      %3067 = vst [vmem:[#allocation3 + $0x30] sm:$0xff] %v3043
      %3068 = vst [vmem:[#allocation3 + $0x38] sm:$0xff] %v3044
      %3069 = vst [vmem:[#allocation3 + $0x40] sm:$0xff] %v3045
      %3070 = vst [vmem:[#allocation3 + $0x48] sm:$0xff] %v3046
      %3071 = vst [vmem:[#allocation3 + $0x50] sm:$0xff] %v3047
      %3072 = vst [vmem:[#allocation3 + $0x58] sm:$0xff] %v3048
      %3073 = vst [vmem:[#allocation3 + $0x60] sm:$0xff] %v3049
      %3074 = vst [vmem:[#allocation3 + $0x68] sm:$0xff] %v3050
      %3075 = vst [vmem:[#allocation3 + $0x70] sm:$0xff] %v3051
      %3076 = vst [vmem:[#allocation3 + $0x78] sm:$0xff] %v3052
      %3077 = vst [vmem:[#allocation3 + $0x80] sm:$0xff] %v3053
      %3078 = vst [vmem:[#allocation3 + $0x88] sm:$0xff] %v3054
      %3079 = vst [vmem:[#allocation3 + $0x90] sm:$0xff] %v3055
      %3080 = vst [vmem:[#allocation3 + $0x98] sm:$0xff] %v3056
      %3081 = vst [vmem:[#allocation3 + $0xa0] sm:$0xff] %v3057
      %3082 = vst [vmem:[#allocation3 + $0xa8] sm:$0xff] %v3058
      %3083 = vst [vmem:[#allocation3 + $0xb0] sm:$0xff] %v3059
      %3084 = vst [vmem:[#allocation3 + $0xb8] sm:$0xf] %v3060
      %v3085 = vld [vmem:[#allocation3] sm:$0xff]
      %v3086 = vld [vmem:[#allocation3 + $0x8] sm:$0xff]
      %v3087 = vld [vmem:[#allocation3 + $0x10] sm:$0xff]
      %v3088 = vld [vmem:[#allocation3 + $0x18] sm:$0xff]
      %v3089 = vld [vmem:[#allocation3 + $0x20] sm:$0xff]
      %v3090 = vld [vmem:[#allocation3 + $0x28] sm:$0xff]
      %v3091 = vld [vmem:[#allocation3 + $0x30] sm:$0xff]
      %v3092 = vld [vmem:[#allocation3 + $0x38] sm:$0xff]
      %v3093 = vld [vmem:[#allocation3 + $0x40] sm:$0xff]
      %v3094 = vld [vmem:[#allocation3 + $0x48] sm:$0xff]
      %v3095 = vld [vmem:[#allocation3 + $0x50] sm:$0xff]
      %v3096 = vld [vmem:[#allocation3 + $0x58] sm:$0xff]
      %v3097 = vld [vmem:[#allocation3 + $0x60] sm:$0xff]
      %v3098 = vld [vmem:[#allocation3 + $0x68] sm:$0xff]
      %v3099 = vld [vmem:[#allocation3 + $0x70] sm:$0xff]
      %v3100 = vld [vmem:[#allocation3 + $0x78] sm:$0xff]
      %v3101 = vld [vmem:[#allocation3 + $0x80] sm:$0xff]
      %v3102 = vld [vmem:[#allocation3 + $0x88] sm:$0xff]
      %v3103 = vld [vmem:[#allocation3 + $0x90] sm:$0xff]
      %v3104 = vld [vmem:[#allocation3 + $0x98] sm:$0xff]
      %v3105 = vld [vmem:[#allocation3 + $0xa0] sm:$0xff]
      %v3106 = vld [vmem:[#allocation3 + $0xa8] sm:$0xff]
      %v3107 = vld [vmem:[#allocation3 + $0xb0] sm:$0xff]
      %v3108 = vld [vmem:[#allocation3 + $0xb8] sm:$0xf]
      %v3109 = vld [vmem:[#allocation2 + $0x10] sm:$0xff]
      %v3110 = vld [vmem:[#allocation2 + $0x18] sm:$0xff]
      %v3111 = vld [vmem:[#allocation2 + $0x20] sm:$0xff]
      %v3112 = vld [vmem:[#allocation2 + $0x28] sm:$0xff]
      %v3113 = vld [vmem:[#allocation2 + $0x30] sm:$0xff]
      %v3114 = vld [vmem:[#allocation2 + $0x38] sm:$0xff]
      %v3115 = vld [vmem:[#allocation2 + $0x40] sm:$0xff]
      %v3116 = vld [vmem:[#allocation2 + $0x48] sm:$0xff]
      %v3117 = vld [vmem:[#allocation2 + $0x50] sm:$0xff]
      %v3118 = vld [vmem:[#allocation2 + $0x58] sm:$0xff]
      %v3119 = vld [vmem:[#allocation2 + $0x60] sm:$0xff]
      %v3120 = vld [vmem:[#allocation2 + $0x68] sm:$0xff]
      %v3121 = vld [vmem:[#allocation2 + $0x70] sm:$0xff]
      %v3122 = vld [vmem:[#allocation2 + $0x78] sm:$0xff]
      %v3123 = vld [vmem:[#allocation2 + $0x80] sm:$0xff]
      %v3124 = vld [vmem:[#allocation2 + $0x88] sm:$0xff]
      %v3125 = vld [vmem:[#allocation2 + $0x90] sm:$0xff]
      %v3126 = vld [vmem:[#allocation2 + $0x98] sm:$0xff]
      %v3127 = vld [vmem:[#allocation2 + $0xa0] sm:$0xff]
      %v3128 = vld [vmem:[#allocation2 + $0xa8] sm:$0xff]
      %v3129 = vld [vmem:[#allocation2 + $0xb0] sm:$0xff]
      %v3130 = vld [vmem:[#allocation2 + $0xb8] sm:$0xff]
      %v3131 = vld [vmem:[#allocation2 + $0xc0] sm:$0xff]
      %v3132 = vld [vmem:[#allocation2 + $0xc8] sm:$0xf]
      %s3133 = scalar_lea.vmem %s3, 384
      %v3134 = vld [vmem:[%s3133] sm:$0xff]
      %v3135 = vld [vmem:[%s3133 + $0x8] sm:$0xff]
      %v3136 = vld [vmem:[%s3133 + $0x10] sm:$0xff]
      %v3137 = vld [vmem:[%s3133 + $0x18] sm:$0xff]
      %v3138 = vld [vmem:[%s3133 + $0x20] sm:$0xff]
      %v3139 = vld [vmem:[%s3133 + $0x28] sm:$0xff]
      %v3140 = vld [vmem:[%s3133 + $0x30] sm:$0xff]
      %v3141 = vld [vmem:[%s3133 + $0x38] sm:$0xff]
      %v3142 = vld [vmem:[%s3133 + $0x40] sm:$0xff]
      %v3143 = vld [vmem:[%s3133 + $0x48] sm:$0xff]
      %v3144 = vld [vmem:[%s3133 + $0x50] sm:$0xff]
      %v3145 = vld [vmem:[%s3133 + $0x58] sm:$0xff]
      %v3146 = vld [vmem:[%s3133 + $0x60] sm:$0xff]
      %v3147 = vld [vmem:[%s3133 + $0x68] sm:$0xff]
      %v3148 = vld [vmem:[%s3133 + $0x70] sm:$0xff]
      %v3149 = vld [vmem:[%s3133 + $0x78] sm:$0xff]
      %3150 = vmatpush.msra.mxu0 %v3149
      %3151 = vmatpush.msra.mxu0 %v3148
      %3152 = vmatpush.msra.mxu0 %v3147
      %3153 = vmatpush.msra.mxu0 %v3146
      %3154 = vmatpush.msra.mxu0 %v3145
      %3155 = vmatpush.msra.mxu0 %v3144
      %3156 = vmatpush.msra.mxu0 %v3143
      %3157 = vmatpush.msra.mxu0 %v3142
      %3158 = vmatpush.msra.mxu0 %v3141
      %3159 = vmatpush.msra.mxu0 %v3140
      %3160 = vmatpush.msra.mxu0 %v3139
      %3161 = vmatpush.msra.mxu0 %v3138
      %3162 = vmatpush.msra.mxu0 %v3137
      %3163 = vmatpush.msra.mxu0 %v3136
      %3164 = vmatpush.msra.mxu0 %v3135
      %3165 = vmatpush.msra.mxu0 %v3134
      %3166 = vmatmul.f32.gmra.mxu0 %v3109
      %v3167 = vpop.f32.mrf.mxu0
      %v3168 = vadd.f32 0.0, %v3167
      %3169 = vmatmul.f32.gmra.mxu0 %v3110
      %v3170 = vpop.f32.mrf.mxu0
      %v3171 = vadd.f32 0.0, %v3170
      %3172 = vmatmul.f32.gmra.mxu0 %v3111
      %v3173 = vpop.f32.mrf.mxu0
      %v3174 = vadd.f32 0.0, %v3173
      %3175 = vmatmul.f32.gmra.mxu0 %v3112
      %v3176 = vpop.f32.mrf.mxu0
      %v3177 = vadd.f32 0.0, %v3176
      %3178 = vmatmul.f32.gmra.mxu0 %v3113
      %v3179 = vpop.f32.mrf.mxu0
      %v3180 = vadd.f32 0.0, %v3179
      %3181 = vmatmul.f32.gmra.mxu0 %v3114
      %v3182 = vpop.f32.mrf.mxu0
      %v3183 = vadd.f32 0.0, %v3182
      %3184 = vmatmul.f32.gmra.mxu0 %v3115
      %v3185 = vpop.f32.mrf.mxu0
      %v3186 = vadd.f32 0.0, %v3185
      %3187 = vmatmul.f32.gmra.mxu0 %v3116
      %v3188 = vpop.f32.mrf.mxu0
      %v3189 = vadd.f32 0.0, %v3188
      %3190 = vmatmul.f32.gmra.mxu0 %v3117
      %v3191 = vpop.f32.mrf.mxu0
      %v3192 = vadd.f32 0.0, %v3191
      %3193 = vmatmul.f32.gmra.mxu0 %v3118
      %v3194 = vpop.f32.mrf.mxu0
      %v3195 = vadd.f32 0.0, %v3194
      %3196 = vmatmul.f32.gmra.mxu0 %v3119
      %v3197 = vpop.f32.mrf.mxu0
      %v3198 = vadd.f32 0.0, %v3197
      %3199 = vmatmul.f32.gmra.mxu0 %v3120
      %v3200 = vpop.f32.mrf.mxu0
      %v3201 = vadd.f32 0.0, %v3200
      %3202 = vmatmul.f32.gmra.mxu0 %v3121
      %v3203 = vpop.f32.mrf.mxu0
      %v3204 = vadd.f32 0.0, %v3203
      %3205 = vmatmul.f32.gmra.mxu0 %v3122
      %v3206 = vpop.f32.mrf.mxu0
      %v3207 = vadd.f32 0.0, %v3206
      %3208 = vmatmul.f32.gmra.mxu0 %v3123
      %v3209 = vpop.f32.mrf.mxu0
      %v3210 = vadd.f32 0.0, %v3209
      %3211 = vmatmul.f32.gmra.mxu0 %v3124
      %v3212 = vpop.f32.mrf.mxu0
      %v3213 = vadd.f32 0.0, %v3212
      %3214 = vmatmul.f32.gmra.mxu0 %v3125
      %v3215 = vpop.f32.mrf.mxu0
      %v3216 = vadd.f32 0.0, %v3215
      %3217 = vmatmul.f32.gmra.mxu0 %v3126
      %v3218 = vpop.f32.mrf.mxu0
      %v3219 = vadd.f32 0.0, %v3218
      %3220 = vmatmul.f32.gmra.mxu0 %v3127
      %v3221 = vpop.f32.mrf.mxu0
      %v3222 = vadd.f32 0.0, %v3221
      %3223 = vmatmul.f32.gmra.mxu0 %v3128
      %v3224 = vpop.f32.mrf.mxu0
      %v3225 = vadd.f32 0.0, %v3224
      %3226 = vmatmul.f32.gmra.mxu0 %v3129
      %v3227 = vpop.f32.mrf.mxu0
      %v3228 = vadd.f32 0.0, %v3227
      %3229 = vmatmul.f32.gmra.mxu0 %v3130
      %v3230 = vpop.f32.mrf.mxu0
      %v3231 = vadd.f32 0.0, %v3230
      %3232 = vmatmul.f32.gmra.mxu0 %v3131
      %v3233 = vpop.f32.mrf.mxu0
      %v3234 = vadd.f32 0.0, %v3233
      %3235 = vmatmul.f32.gmra.mxu0 %v3132
      %v3236 = vpop.f32.mrf.mxu0
      %v3237 = vadd.f32 0.0, %v3236
      %3238 = vdwg.mxu0
      %v3239 = vadd.f32 %v3085, %v3168
      %v3240 = vadd.f32 %v3086, %v3171
      %v3241 = vadd.f32 %v3087, %v3174
      %v3242 = vadd.f32 %v3088, %v3177
      %v3243 = vadd.f32 %v3089, %v3180
      %v3244 = vadd.f32 %v3090, %v3183
      %v3245 = vadd.f32 %v3091, %v3186
      %v3246 = vadd.f32 %v3092, %v3189
      %v3247 = vadd.f32 %v3093, %v3192
      %v3248 = vadd.f32 %v3094, %v3195
      %v3249 = vadd.f32 %v3095, %v3198
      %v3250 = vadd.f32 %v3096, %v3201
      %v3251 = vadd.f32 %v3097, %v3204
      %v3252 = vadd.f32 %v3098, %v3207
      %v3253 = vadd.f32 %v3099, %v3210
      %v3254 = vadd.f32 %v3100, %v3213
      %v3255 = vadd.f32 %v3101, %v3216
      %v3256 = vadd.f32 %v3102, %v3219
      %v3257 = vadd.f32 %v3103, %v3222
      %v3258 = vadd.f32 %v3104, %v3225
      %v3259 = vadd.f32 %v3105, %v3228
      %v3260 = vadd.f32 %v3106, %v3231
      %v3261 = vadd.f32 %v3107, %v3234
      %v3262 = vadd.f32 %v3108, %v3237
      %3263 = vst [vmem:[#allocation3] sm:$0xff] %v3239
      %3264 = vst [vmem:[#allocation3 + $0x8] sm:$0xff] %v3240
      %3265 = vst [vmem:[#allocation3 + $0x10] sm:$0xff] %v3241
      %3266 = vst [vmem:[#allocation3 + $0x18] sm:$0xff] %v3242
      %3267 = vst [vmem:[#allocation3 + $0x20] sm:$0xff] %v3243
      %3268 = vst [vmem:[#allocation3 + $0x28] sm:$0xff] %v3244
      %3269 = vst [vmem:[#allocation3 + $0x30] sm:$0xff] %v3245
      %3270 = vst [vmem:[#allocation3 + $0x38] sm:$0xff] %v3246
      %3271 = vst [vmem:[#allocation3 + $0x40] sm:$0xff] %v3247
      %3272 = vst [vmem:[#allocation3 + $0x48] sm:$0xff] %v3248
      %3273 = vst [vmem:[#allocation3 + $0x50] sm:$0xff] %v3249
      %3274 = vst [vmem:[#allocation3 + $0x58] sm:$0xff] %v3250
      %3275 = vst [vmem:[#allocation3 + $0x60] sm:$0xff] %v3251
      %3276 = vst [vmem:[#allocation3 + $0x68] sm:$0xff] %v3252
      %3277 = vst [vmem:[#allocation3 + $0x70] sm:$0xff] %v3253
      %3278 = vst [vmem:[#allocation3 + $0x78] sm:$0xff] %v3254
      %3279 = vst [vmem:[#allocation3 + $0x80] sm:$0xff] %v3255
      %3280 = vst [vmem:[#allocation3 + $0x88] sm:$0xff] %v3256
      %3281 = vst [vmem:[#allocation3 + $0x90] sm:$0xff] %v3257
      %3282 = vst [vmem:[#allocation3 + $0x98] sm:$0xff] %v3258
      %3283 = vst [vmem:[#allocation3 + $0xa0] sm:$0xff] %v3259
      %3284 = vst [vmem:[#allocation3 + $0xa8] sm:$0xff] %v3260
      %3285 = vst [vmem:[#allocation3 + $0xb0] sm:$0xff] %v3261
      %3286 = vst [vmem:[#allocation3 + $0xb8] sm:$0xf] %v3262
      %v3287 = vld [vmem:[#allocation3] sm:$0xff]
      %v3288 = vld [vmem:[#allocation3 + $0x8] sm:$0xff]
      %v3289 = vld [vmem:[#allocation3 + $0x10] sm:$0xff]
      %v3290 = vld [vmem:[#allocation3 + $0x18] sm:$0xff]
      %v3291 = vld [vmem:[#allocation3 + $0x20] sm:$0xff]
      %v3292 = vld [vmem:[#allocation3 + $0x28] sm:$0xff]
      %v3293 = vld [vmem:[#allocation3 + $0x30] sm:$0xff]
      %v3294 = vld [vmem:[#allocation3 + $0x38] sm:$0xff]
      %v3295 = vld [vmem:[#allocation3 + $0x40] sm:$0xff]
      %v3296 = vld [vmem:[#allocation3 + $0x48] sm:$0xff]
      %v3297 = vld [vmem:[#allocation3 + $0x50] sm:$0xff]
      %v3298 = vld [vmem:[#allocation3 + $0x58] sm:$0xff]
      %v3299 = vld [vmem:[#allocation3 + $0x60] sm:$0xff]
      %v3300 = vld [vmem:[#allocation3 + $0x68] sm:$0xff]
      %v3301 = vld [vmem:[#allocation3 + $0x70] sm:$0xff]
      %v3302 = vld [vmem:[#allocation3 + $0x78] sm:$0xff]
      %v3303 = vld [vmem:[#allocation3 + $0x80] sm:$0xff]
      %v3304 = vld [vmem:[#allocation3 + $0x88] sm:$0xff]
      %v3305 = vld [vmem:[#allocation3 + $0x90] sm:$0xff]
      %v3306 = vld [vmem:[#allocation3 + $0x98] sm:$0xff]
      %v3307 = vld [vmem:[#allocation3 + $0xa0] sm:$0xff]
      %v3308 = vld [vmem:[#allocation3 + $0xa8] sm:$0xff]
      %v3309 = vld [vmem:[#allocation3 + $0xb0] sm:$0xff]
      %v3310 = vld [vmem:[#allocation3 + $0xb8] sm:$0xf]
      %v3311 = vld [vmem:[#allocation2 + $0x11] sm:$0xff]
      %v3312 = vld [vmem:[#allocation2 + $0x19] sm:$0xff]
      %v3313 = vld [vmem:[#allocation2 + $0x21] sm:$0xff]
      %v3314 = vld [vmem:[#allocation2 + $0x29] sm:$0xff]
      %v3315 = vld [vmem:[#allocation2 + $0x31] sm:$0xff]
      %v3316 = vld [vmem:[#allocation2 + $0x39] sm:$0xff]
      %v3317 = vld [vmem:[#allocation2 + $0x41] sm:$0xff]
      %v3318 = vld [vmem:[#allocation2 + $0x49] sm:$0xff]
      %v3319 = vld [vmem:[#allocation2 + $0x51] sm:$0xff]
      %v3320 = vld [vmem:[#allocation2 + $0x59] sm:$0xff]
      %v3321 = vld [vmem:[#allocation2 + $0x61] sm:$0xff]
      %v3322 = vld [vmem:[#allocation2 + $0x69] sm:$0xff]
      %v3323 = vld [vmem:[#allocation2 + $0x71] sm:$0xff]
      %v3324 = vld [vmem:[#allocation2 + $0x79] sm:$0xff]
      %v3325 = vld [vmem:[#allocation2 + $0x81] sm:$0xff]
      %v3326 = vld [vmem:[#allocation2 + $0x89] sm:$0xff]
      %v3327 = vld [vmem:[#allocation2 + $0x91] sm:$0xff]
      %v3328 = vld [vmem:[#allocation2 + $0x99] sm:$0xff]
      %v3329 = vld [vmem:[#allocation2 + $0xa1] sm:$0xff]
      %v3330 = vld [vmem:[#allocation2 + $0xa9] sm:$0xff]
      %v3331 = vld [vmem:[#allocation2 + $0xb1] sm:$0xff]
      %v3332 = vld [vmem:[#allocation2 + $0xb9] sm:$0xff]
      %v3333 = vld [vmem:[#allocation2 + $0xc1] sm:$0xff]
      %v3334 = vld [vmem:[#allocation2 + $0xc9] sm:$0xf]
      %s3335 = scalar_lea.vmem %s3, 512
      %v3336 = vld [vmem:[%s3335] sm:$0xff]
      %v3337 = vld [vmem:[%s3335 + $0x8] sm:$0xff]
      %v3338 = vld [vmem:[%s3335 + $0x10] sm:$0xff]
      %v3339 = vld [vmem:[%s3335 + $0x18] sm:$0xff]
      %v3340 = vld [vmem:[%s3335 + $0x20] sm:$0xff]
      %v3341 = vld [vmem:[%s3335 + $0x28] sm:$0xff]
      %v3342 = vld [vmem:[%s3335 + $0x30] sm:$0xff]
      %v3343 = vld [vmem:[%s3335 + $0x38] sm:$0xff]
      %v3344 = vld [vmem:[%s3335 + $0x40] sm:$0xff]
      %v3345 = vld [vmem:[%s3335 + $0x48] sm:$0xff]
      %v3346 = vld [vmem:[%s3335 + $0x50] sm:$0xff]
      %v3347 = vld [vmem:[%s3335 + $0x58] sm:$0xff]
      %v3348 = vld [vmem:[%s3335 + $0x60] sm:$0xff]
      %v3349 = vld [vmem:[%s3335 + $0x68] sm:$0xff]
      %v3350 = vld [vmem:[%s3335 + $0x70] sm:$0xff]
      %v3351 = vld [vmem:[%s3335 + $0x78] sm:$0xff]
      %3352 = vmatpush.msra.mxu0 %v3351
      %3353 = vmatpush.msra.mxu0 %v3350
      %3354 = vmatpush.msra.mxu0 %v3349
      %3355 = vmatpush.msra.mxu0 %v3348
      %3356 = vmatpush.msra.mxu0 %v3347
      %3357 = vmatpush.msra.mxu0 %v3346
      %3358 = vmatpush.msra.mxu0 %v3345
      %3359 = vmatpush.msra.mxu0 %v3344
      %3360 = vmatpush.msra.mxu0 %v3343
      %3361 = vmatpush.msra.mxu0 %v3342
      %3362 = vmatpush.msra.mxu0 %v3341
      %3363 = vmatpush.msra.mxu0 %v3340
      %3364 = vmatpush.msra.mxu0 %v3339
      %3365 = vmatpush.msra.mxu0 %v3338
      %3366 = vmatpush.msra.mxu0 %v3337
      %3367 = vmatpush.msra.mxu0 %v3336
      %3368 = vmatmul.f32.gmra.mxu0 %v3311
      %v3369 = vpop.f32.mrf.mxu0
      %v3370 = vadd.f32 0.0, %v3369
      %3371 = vmatmul.f32.gmra.mxu0 %v3312
      %v3372 = vpop.f32.mrf.mxu0
      %v3373 = vadd.f32 0.0, %v3372
      %3374 = vmatmul.f32.gmra.mxu0 %v3313
      %v3375 = vpop.f32.mrf.mxu0
      %v3376 = vadd.f32 0.0, %v3375
      %3377 = vmatmul.f32.gmra.mxu0 %v3314
      %v3378 = vpop.f32.mrf.mxu0
      %v3379 = vadd.f32 0.0, %v3378
      %3380 = vmatmul.f32.gmra.mxu0 %v3315
      %v3381 = vpop.f32.mrf.mxu0
      %v3382 = vadd.f32 0.0, %v3381
      %3383 = vmatmul.f32.gmra.mxu0 %v3316
      %v3384 = vpop.f32.mrf.mxu0
      %v3385 = vadd.f32 0.0, %v3384
      %3386 = vmatmul.f32.gmra.mxu0 %v3317
      %v3387 = vpop.f32.mrf.mxu0
      %v3388 = vadd.f32 0.0, %v3387
      %3389 = vmatmul.f32.gmra.mxu0 %v3318
      %v3390 = vpop.f32.mrf.mxu0
      %v3391 = vadd.f32 0.0, %v3390
      %3392 = vmatmul.f32.gmra.mxu0 %v3319
      %v3393 = vpop.f32.mrf.mxu0
      %v3394 = vadd.f32 0.0, %v3393
      %3395 = vmatmul.f32.gmra.mxu0 %v3320
      %v3396 = vpop.f32.mrf.mxu0
      %v3397 = vadd.f32 0.0, %v3396
      %3398 = vmatmul.f32.gmra.mxu0 %v3321
      %v3399 = vpop.f32.mrf.mxu0
      %v3400 = vadd.f32 0.0, %v3399
      %3401 = vmatmul.f32.gmra.mxu0 %v3322
      %v3402 = vpop.f32.mrf.mxu0
      %v3403 = vadd.f32 0.0, %v3402
      %3404 = vmatmul.f32.gmra.mxu0 %v3323
      %v3405 = vpop.f32.mrf.mxu0
      %v3406 = vadd.f32 0.0, %v3405
      %3407 = vmatmul.f32.gmra.mxu0 %v3324
      %v3408 = vpop.f32.mrf.mxu0
      %v3409 = vadd.f32 0.0, %v3408
      %3410 = vmatmul.f32.gmra.mxu0 %v3325
      %v3411 = vpop.f32.mrf.mxu0
      %v3412 = vadd.f32 0.0, %v3411
      %3413 = vmatmul.f32.gmra.mxu0 %v3326
      %v3414 = vpop.f32.mrf.mxu0
      %v3415 = vadd.f32 0.0, %v3414
      %3416 = vmatmul.f32.gmra.mxu0 %v3327
      %v3417 = vpop.f32.mrf.mxu0
      %v3418 = vadd.f32 0.0, %v3417
      %3419 = vmatmul.f32.gmra.mxu0 %v3328
      %v3420 = vpop.f32.mrf.mxu0
      %v3421 = vadd.f32 0.0, %v3420
      %3422 = vmatmul.f32.gmra.mxu0 %v3329
      %v3423 = vpop.f32.mrf.mxu0
      %v3424 = vadd.f32 0.0, %v3423
      %3425 = vmatmul.f32.gmra.mxu0 %v3330
      %v3426 = vpop.f32.mrf.mxu0
      %v3427 = vadd.f32 0.0, %v3426
      %3428 = vmatmul.f32.gmra.mxu0 %v3331
      %v3429 = vpop.f32.mrf.mxu0
      %v3430 = vadd.f32 0.0, %v3429
      %3431 = vmatmul.f32.gmra.mxu0 %v3332
      %v3432 = vpop.f32.mrf.mxu0
      %v3433 = vadd.f32 0.0, %v3432
      %3434 = vmatmul.f32.gmra.mxu0 %v3333
      %v3435 = vpop.f32.mrf.mxu0
      %v3436 = vadd.f32 0.0, %v3435
      %3437 = vmatmul.f32.gmra.mxu0 %v3334
      %v3438 = vpop.f32.mrf.mxu0
      %v3439 = vadd.f32 0.0, %v3438
      %3440 = vdwg.mxu0
      %v3441 = vadd.f32 %v3287, %v3370
      %v3442 = vadd.f32 %v3288, %v3373
      %v3443 = vadd.f32 %v3289, %v3376
      %v3444 = vadd.f32 %v3290, %v3379
      %v3445 = vadd.f32 %v3291, %v3382
      %v3446 = vadd.f32 %v3292, %v3385
      %v3447 = vadd.f32 %v3293, %v3388
      %v3448 = vadd.f32 %v3294, %v3391
      %v3449 = vadd.f32 %v3295, %v3394
      %v3450 = vadd.f32 %v3296, %v3397
      %v3451 = vadd.f32 %v3297, %v3400
      %v3452 = vadd.f32 %v3298, %v3403
      %v3453 = vadd.f32 %v3299, %v3406
      %v3454 = vadd.f32 %v3300, %v3409
      %v3455 = vadd.f32 %v3301, %v3412
      %v3456 = vadd.f32 %v3302, %v3415
      %v3457 = vadd.f32 %v3303, %v3418
      %v3458 = vadd.f32 %v3304, %v3421
      %v3459 = vadd.f32 %v3305, %v3424
      %v3460 = vadd.f32 %v3306, %v3427
      %v3461 = vadd.f32 %v3307, %v3430
      %v3462 = vadd.f32 %v3308, %v3433
      %v3463 = vadd.f32 %v3309, %v3436
      %v3464 = vadd.f32 %v3310, %v3439
      %3465 = vst [vmem:[#allocation3] sm:$0xff] %v3441
      %3466 = vst [vmem:[#allocation3 + $0x8] sm:$0xff] %v3442
      %3467 = vst [vmem:[#allocation3 + $0x10] sm:$0xff] %v3443
      %3468 = vst [vmem:[#allocation3 + $0x18] sm:$0xff] %v3444
      %3469 = vst [vmem:[#allocation3 + $0x20] sm:$0xff] %v3445
      %3470 = vst [vmem:[#allocation3 + $0x28] sm:$0xff] %v3446
      %3471 = vst [vmem:[#allocation3 + $0x30] sm:$0xff] %v3447
      %3472 = vst [vmem:[#allocation3 + $0x38] sm:$0xff] %v3448
      %3473 = vst [vmem:[#allocation3 + $0x40] sm:$0xff] %v3449
      %3474 = vst [vmem:[#allocation3 + $0x48] sm:$0xff] %v3450
      %3475 = vst [vmem:[#allocation3 + $0x50] sm:$0xff] %v3451
      %3476 = vst [vmem:[#allocation3 + $0x58] sm:$0xff] %v3452
      %3477 = vst [vmem:[#allocation3 + $0x60] sm:$0xff] %v3453
      %3478 = vst [vmem:[#allocation3 + $0x68] sm:$0xff] %v3454
      %3479 = vst [vmem:[#allocation3 + $0x70] sm:$0xff] %v3455
      %3480 = vst [vmem:[#allocation3 + $0x78] sm:$0xff] %v3456
      %3481 = vst [vmem:[#allocation3 + $0x80] sm:$0xff] %v3457
      %3482 = vst [vmem:[#allocation3 + $0x88] sm:$0xff] %v3458
      %3483 = vst [vmem:[#allocation3 + $0x90] sm:$0xff] %v3459
      %3484 = vst [vmem:[#allocation3 + $0x98] sm:$0xff] %v3460
      %3485 = vst [vmem:[#allocation3 + $0xa0] sm:$0xff] %v3461
      %3486 = vst [vmem:[#allocation3 + $0xa8] sm:$0xff] %v3462
      %3487 = vst [vmem:[#allocation3 + $0xb0] sm:$0xff] %v3463
      %3488 = vst [vmem:[#allocation3 + $0xb8] sm:$0xf] %v3464
      %v3489 = vld [vmem:[#allocation3] sm:$0xff]
      %v3490 = vld [vmem:[#allocation3 + $0x8] sm:$0xff]
      %v3491 = vld [vmem:[#allocation3 + $0x10] sm:$0xff]
      %v3492 = vld [vmem:[#allocation3 + $0x18] sm:$0xff]
      %v3493 = vld [vmem:[#allocation3 + $0x20] sm:$0xff]
      %v3494 = vld [vmem:[#allocation3 + $0x28] sm:$0xff]
      %v3495 = vld [vmem:[#allocation3 + $0x30] sm:$0xff]
      %v3496 = vld [vmem:[#allocation3 + $0x38] sm:$0xff]
      %v3497 = vld [vmem:[#allocation3 + $0x40] sm:$0xff]
      %v3498 = vld [vmem:[#allocation3 + $0x48] sm:$0xff]
      %v3499 = vld [vmem:[#allocation3 + $0x50] sm:$0xff]
      %v3500 = vld [vmem:[#allocation3 + $0x58] sm:$0xff]
      %v3501 = vld [vmem:[#allocation3 + $0x60] sm:$0xff]
      %v3502 = vld [vmem:[#allocation3 + $0x68] sm:$0xff]
      %v3503 = vld [vmem:[#allocation3 + $0x70] sm:$0xff]
      %v3504 = vld [vmem:[#allocation3 + $0x78] sm:$0xff]
      %v3505 = vld [vmem:[#allocation3 + $0x80] sm:$0xff]
      %v3506 = vld [vmem:[#allocation3 + $0x88] sm:$0xff]
      %v3507 = vld [vmem:[#allocation3 + $0x90] sm:$0xff]
      %v3508 = vld [vmem:[#allocation3 + $0x98] sm:$0xff]
      %v3509 = vld [vmem:[#allocation3 + $0xa0] sm:$0xff]
      %v3510 = vld [vmem:[#allocation3 + $0xa8] sm:$0xff]
      %v3511 = vld [vmem:[#allocation3 + $0xb0] sm:$0xff]
      %v3512 = vld [vmem:[#allocation3 + $0xb8] sm:$0xf]
      %v3513 = vld [vmem:[#allocation2 + $0x12] sm:$0xff]
      %v3514 = vld [vmem:[#allocation2 + $0x1a] sm:$0xff]
      %v3515 = vld [vmem:[#allocation2 + $0x22] sm:$0xff]
      %v3516 = vld [vmem:[#allocation2 + $0x2a] sm:$0xff]
      %v3517 = vld [vmem:[#allocation2 + $0x32] sm:$0xff]
      %v3518 = vld [vmem:[#allocation2 + $0x3a] sm:$0xff]
      %v3519 = vld [vmem:[#allocation2 + $0x42] sm:$0xff]
      %v3520 = vld [vmem:[#allocation2 + $0x4a] sm:$0xff]
      %v3521 = vld [vmem:[#allocation2 + $0x52] sm:$0xff]
      %v3522 = vld [vmem:[#allocation2 + $0x5a] sm:$0xff]
      %v3523 = vld [vmem:[#allocation2 + $0x62] sm:$0xff]
      %v3524 = vld [vmem:[#allocation2 + $0x6a] sm:$0xff]
      %v3525 = vld [vmem:[#allocation2 + $0x72] sm:$0xff]
      %v3526 = vld [vmem:[#allocation2 + $0x7a] sm:$0xff]
      %v3527 = vld [vmem:[#allocation2 + $0x82] sm:$0xff]
      %v3528 = vld [vmem:[#allocation2 + $0x8a] sm:$0xff]
      %v3529 = vld [vmem:[#allocation2 + $0x92] sm:$0xff]
      %v3530 = vld [vmem:[#allocation2 + $0x9a] sm:$0xff]
      %v3531 = vld [vmem:[#allocation2 + $0xa2] sm:$0xff]
      %v3532 = vld [vmem:[#allocation2 + $0xaa] sm:$0xff]
      %v3533 = vld [vmem:[#allocation2 + $0xb2] sm:$0xff]
      %v3534 = vld [vmem:[#allocation2 + $0xba] sm:$0xff]
      %v3535 = vld [vmem:[#allocation2 + $0xc2] sm:$0xff]
      %v3536 = vld [vmem:[#allocation2 + $0xca] sm:$0xf]
      %s3537 = scalar_lea.vmem %s3, 640
      %v3538 = vld [vmem:[%s3537] sm:$0xff]
      %v3539 = vld [vmem:[%s3537 + $0x8] sm:$0xff]
      %v3540 = vld [vmem:[%s3537 + $0x10] sm:$0xff]
      %v3541 = vld [vmem:[%s3537 + $0x18] sm:$0xff]
      %v3542 = vld [vmem:[%s3537 + $0x20] sm:$0xff]
      %v3543 = vld [vmem:[%s3537 + $0x28] sm:$0xff]
      %v3544 = vld [vmem:[%s3537 + $0x30] sm:$0xff]
      %v3545 = vld [vmem:[%s3537 + $0x38] sm:$0xff]
      %v3546 = vld [vmem:[%s3537 + $0x40] sm:$0xff]
      %v3547 = vld [vmem:[%s3537 + $0x48] sm:$0xff]
      %v3548 = vld [vmem:[%s3537 + $0x50] sm:$0xff]
      %v3549 = vld [vmem:[%s3537 + $0x58] sm:$0xff]
      %v3550 = vld [vmem:[%s3537 + $0x60] sm:$0xff]
      %v3551 = vld [vmem:[%s3537 + $0x68] sm:$0xff]
      %v3552 = vld [vmem:[%s3537 + $0x70] sm:$0xff]
      %v3553 = vld [vmem:[%s3537 + $0x78] sm:$0xff]
      %3554 = vmatpush.msra.mxu0 %v3553
      %3555 = vmatpush.msra.mxu0 %v3552
      %3556 = vmatpush.msra.mxu0 %v3551
      %3557 = vmatpush.msra.mxu0 %v3550
      %3558 = vmatpush.msra.mxu0 %v3549
      %3559 = vmatpush.msra.mxu0 %v3548
      %3560 = vmatpush.msra.mxu0 %v3547
      %3561 = vmatpush.msra.mxu0 %v3546
      %3562 = vmatpush.msra.mxu0 %v3545
      %3563 = vmatpush.msra.mxu0 %v3544
      %3564 = vmatpush.msra.mxu0 %v3543
      %3565 = vmatpush.msra.mxu0 %v3542
      %3566 = vmatpush.msra.mxu0 %v3541
      %3567 = vmatpush.msra.mxu0 %v3540
      %3568 = vmatpush.msra.mxu0 %v3539
      %3569 = vmatpush.msra.mxu0 %v3538
      %3570 = vmatmul.f32.gmra.mxu0 %v3513
      %v3571 = vpop.f32.mrf.mxu0
      %v3572 = vadd.f32 0.0, %v3571
      %3573 = vmatmul.f32.gmra.mxu0 %v3514
      %v3574 = vpop.f32.mrf.mxu0
      %v3575 = vadd.f32 0.0, %v3574
      %3576 = vmatmul.f32.gmra.mxu0 %v3515
      %v3577 = vpop.f32.mrf.mxu0
      %v3578 = vadd.f32 0.0, %v3577
      %3579 = vmatmul.f32.gmra.mxu0 %v3516
      %v3580 = vpop.f32.mrf.mxu0
      %v3581 = vadd.f32 0.0, %v3580
      %3582 = vmatmul.f32.gmra.mxu0 %v3517
      %v3583 = vpop.f32.mrf.mxu0
      %v3584 = vadd.f32 0.0, %v3583
      %3585 = vmatmul.f32.gmra.mxu0 %v3518
      %v3586 = vpop.f32.mrf.mxu0
      %v3587 = vadd.f32 0.0, %v3586
      %3588 = vmatmul.f32.gmra.mxu0 %v3519
      %v3589 = vpop.f32.mrf.mxu0
      %v3590 = vadd.f32 0.0, %v3589
      %3591 = vmatmul.f32.gmra.mxu0 %v3520
      %v3592 = vpop.f32.mrf.mxu0
      %v3593 = vadd.f32 0.0, %v3592
      %3594 = vmatmul.f32.gmra.mxu0 %v3521
      %v3595 = vpop.f32.mrf.mxu0
      %v3596 = vadd.f32 0.0, %v3595
      %3597 = vmatmul.f32.gmra.mxu0 %v3522
      %v3598 = vpop.f32.mrf.mxu0
      %v3599 = vadd.f32 0.0, %v3598
      %3600 = vmatmul.f32.gmra.mxu0 %v3523
      %v3601 = vpop.f32.mrf.mxu0
      %v3602 = vadd.f32 0.0, %v3601
      %3603 = vmatmul.f32.gmra.mxu0 %v3524
      %v3604 = vpop.f32.mrf.mxu0
      %v3605 = vadd.f32 0.0, %v3604
      %3606 = vmatmul.f32.gmra.mxu0 %v3525
      %v3607 = vpop.f32.mrf.mxu0
      %v3608 = vadd.f32 0.0, %v3607
      %3609 = vmatmul.f32.gmra.mxu0 %v3526
      %v3610 = vpop.f32.mrf.mxu0
      %v3611 = vadd.f32 0.0, %v3610
      %3612 = vmatmul.f32.gmra.mxu0 %v3527
      %v3613 = vpop.f32.mrf.mxu0
      %v3614 = vadd.f32 0.0, %v3613
      %3615 = vmatmul.f32.gmra.mxu0 %v3528
      %v3616 = vpop.f32.mrf.mxu0
      %v3617 = vadd.f32 0.0, %v3616
      %3618 = vmatmul.f32.gmra.mxu0 %v3529
      %v3619 = vpop.f32.mrf.mxu0
      %v3620 = vadd.f32 0.0, %v3619
      %3621 = vmatmul.f32.gmra.mxu0 %v3530
      %v3622 = vpop.f32.mrf.mxu0
      %v3623 = vadd.f32 0.0, %v3622
      %3624 = vmatmul.f32.gmra.mxu0 %v3531
      %v3625 = vpop.f32.mrf.mxu0
      %v3626 = vadd.f32 0.0, %v3625
      %3627 = vmatmul.f32.gmra.mxu0 %v3532
      %v3628 = vpop.f32.mrf.mxu0
      %v3629 = vadd.f32 0.0, %v3628
      %3630 = vmatmul.f32.gmra.mxu0 %v3533
      %v3631 = vpop.f32.mrf.mxu0
      %v3632 = vadd.f32 0.0, %v3631
      %3633 = vmatmul.f32.gmra.mxu0 %v3534
      %v3634 = vpop.f32.mrf.mxu0
      %v3635 = vadd.f32 0.0, %v3634
      %3636 = vmatmul.f32.gmra.mxu0 %v3535
      %v3637 = vpop.f32.mrf.mxu0
      %v3638 = vadd.f32 0.0, %v3637
      %3639 = vmatmul.f32.gmra.mxu0 %v3536
      %v3640 = vpop.f32.mrf.mxu0
      %v3641 = vadd.f32 0.0, %v3640
      %3642 = vdwg.mxu0
      %v3643 = vadd.f32 %v3489, %v3572
      %v3644 = vadd.f32 %v3490, %v3575
      %v3645 = vadd.f32 %v3491, %v3578
      %v3646 = vadd.f32 %v3492, %v3581
      %v3647 = vadd.f32 %v3493, %v3584
      %v3648 = vadd.f32 %v3494, %v3587
      %v3649 = vadd.f32 %v3495, %v3590
      %v3650 = vadd.f32 %v3496, %v3593
      %v3651 = vadd.f32 %v3497, %v3596
      %v3652 = vadd.f32 %v3498, %v3599
      %v3653 = vadd.f32 %v3499, %v3602
      %v3654 = vadd.f32 %v3500, %v3605
      %v3655 = vadd.f32 %v3501, %v3608
      %v3656 = vadd.f32 %v3502, %v3611
      %v3657 = vadd.f32 %v3503, %v3614
      %v3658 = vadd.f32 %v3504, %v3617
      %v3659 = vadd.f32 %v3505, %v3620
      %v3660 = vadd.f32 %v3506, %v3623
      %v3661 = vadd.f32 %v3507, %v3626
      %v3662 = vadd.f32 %v3508, %v3629
      %v3663 = vadd.f32 %v3509, %v3632
      %v3664 = vadd.f32 %v3510, %v3635
      %v3665 = vadd.f32 %v3511, %v3638
      %v3666 = vadd.f32 %v3512, %v3641
      %3667 = vst [vmem:[#allocation3] sm:$0xff] %v3643
      %3668 = vst [vmem:[#allocation3 + $0x8] sm:$0xff] %v3644
      %3669 = vst [vmem:[#allocation3 + $0x10] sm:$0xff] %v3645
      %3670 = vst [vmem:[#allocation3 + $0x18] sm:$0xff] %v3646
      %3671 = vst [vmem:[#allocation3 + $0x20] sm:$0xff] %v3647
      %3672 = vst [vmem:[#allocation3 + $0x28] sm:$0xff] %v3648
      %3673 = vst [vmem:[#allocation3 + $0x30] sm:$0xff] %v3649
      %3674 = vst [vmem:[#allocation3 + $0x38] sm:$0xff] %v3650
      %3675 = vst [vmem:[#allocation3 + $0x40] sm:$0xff] %v3651
      %3676 = vst [vmem:[#allocation3 + $0x48] sm:$0xff] %v3652
      %3677 = vst [vmem:[#allocation3 + $0x50] sm:$0xff] %v3653
      %3678 = vst [vmem:[#allocation3 + $0x58] sm:$0xff] %v3654
      %3679 = vst [vmem:[#allocation3 + $0x60] sm:$0xff] %v3655
      %3680 = vst [vmem:[#allocation3 + $0x68] sm:$0xff] %v3656
      %3681 = vst [vmem:[#allocation3 + $0x70] sm:$0xff] %v3657
      %3682 = vst [vmem:[#allocation3 + $0x78] sm:$0xff] %v3658
      %3683 = vst [vmem:[#allocation3 + $0x80] sm:$0xff] %v3659
      %3684 = vst [vmem:[#allocation3 + $0x88] sm:$0xff] %v3660
      %3685 = vst [vmem:[#allocation3 + $0x90] sm:$0xff] %v3661
      %3686 = vst [vmem:[#allocation3 + $0x98] sm:$0xff] %v3662
      %3687 = vst [vmem:[#allocation3 + $0xa0] sm:$0xff] %v3663
      %3688 = vst [vmem:[#allocation3 + $0xa8] sm:$0xff] %v3664
      %3689 = vst [vmem:[#allocation3 + $0xb0] sm:$0xff] %v3665
      %3690 = vst [vmem:[#allocation3 + $0xb8] sm:$0xf] %v3666
      %v3691 = vld [vmem:[#allocation3] sm:$0xff]
      %v3692 = vld [vmem:[#allocation3 + $0x8] sm:$0xff]
      %v3693 = vld [vmem:[#allocation3 + $0x10] sm:$0xff]
      %v3694 = vld [vmem:[#allocation3 + $0x18] sm:$0xff]
      %v3695 = vld [vmem:[#allocation3 + $0x20] sm:$0xff]
      %v3696 = vld [vmem:[#allocation3 + $0x28] sm:$0xff]
      %v3697 = vld [vmem:[#allocation3 + $0x30] sm:$0xff]
      %v3698 = vld [vmem:[#allocation3 + $0x38] sm:$0xff]
      %v3699 = vld [vmem:[#allocation3 + $0x40] sm:$0xff]
      %v3700 = vld [vmem:[#allocation3 + $0x48] sm:$0xff]
      %v3701 = vld [vmem:[#allocation3 + $0x50] sm:$0xff]
      %v3702 = vld [vmem:[#allocation3 + $0x58] sm:$0xff]
      %v3703 = vld [vmem:[#allocation3 + $0x60] sm:$0xff]
      %v3704 = vld [vmem:[#allocation3 + $0x68] sm:$0xff]
      %v3705 = vld [vmem:[#allocation3 + $0x70] sm:$0xff]
      %v3706 = vld [vmem:[#allocation3 + $0x78] sm:$0xff]
      %v3707 = vld [vmem:[#allocation3 + $0x80] sm:$0xff]
      %v3708 = vld [vmem:[#allocation3 + $0x88] sm:$0xff]
      %v3709 = vld [vmem:[#allocation3 + $0x90] sm:$0xff]
      %v3710 = vld [vmem:[#allocation3 + $0x98] sm:$0xff]
      %v3711 = vld [vmem:[#allocation3 + $0xa0] sm:$0xff]
      %v3712 = vld [vmem:[#allocation3 + $0xa8] sm:$0xff]
      %v3713 = vld [vmem:[#allocation3 + $0xb0] sm:$0xff]
      %v3714 = vld [vmem:[#allocation3 + $0xb8] sm:$0xf]
      %v3715 = vld [vmem:[#allocation2 + $0x20] sm:$0xff]
      %v3716 = vld [vmem:[#allocation2 + $0x28] sm:$0xff]
      %v3717 = vld [vmem:[#allocation2 + $0x30] sm:$0xff]
      %v3718 = vld [vmem:[#allocation2 + $0x38] sm:$0xff]
      %v3719 = vld [vmem:[#allocation2 + $0x40] sm:$0xff]
      %v3720 = vld [vmem:[#allocation2 + $0x48] sm:$0xff]
      %v3721 = vld [vmem:[#allocation2 + $0x50] sm:$0xff]
      %v3722 = vld [vmem:[#allocation2 + $0x58] sm:$0xff]
      %v3723 = vld [vmem:[#allocation2 + $0x60] sm:$0xff]
      %v3724 = vld [vmem:[#allocation2 + $0x68] sm:$0xff]
      %v3725 = vld [vmem:[#allocation2 + $0x70] sm:$0xff]
      %v3726 = vld [vmem:[#allocation2 + $0x78] sm:$0xff]
      %v3727 = vld [vmem:[#allocation2 + $0x80] sm:$0xff]
      %v3728 = vld [vmem:[#allocation2 + $0x88] sm:$0xff]
      %v3729 = vld [vmem:[#allocation2 + $0x90] sm:$0xff]
      %v3730 = vld [vmem:[#allocation2 + $0x98] sm:$0xff]
      %v3731 = vld [vmem:[#allocation2 + $0xa0] sm:$0xff]
      %v3732 = vld [vmem:[#allocation2 + $0xa8] sm:$0xff]
      %v3733 = vld [vmem:[#allocation2 + $0xb0] sm:$0xff]
      %v3734 = vld [vmem:[#allocation2 + $0xb8] sm:$0xff]
      %v3735 = vld [vmem:[#allocation2 + $0xc0] sm:$0xff]
      %v3736 = vld [vmem:[#allocation2 + $0xc8] sm:$0xff]
      %v3737 = vld [vmem:[#allocation2 + $0xd0] sm:$0xff]
      %v3738 = vld [vmem:[#allocation2 + $0xd8] sm:$0xf]
      %s3739 = scalar_lea.vmem %s3, 768
      %v3740 = vld [vmem:[%s3739] sm:$0xff]
      %v3741 = vld [vmem:[%s3739 + $0x8] sm:$0xff]
      %v3742 = vld [vmem:[%s3739 + $0x10] sm:$0xff]
      %v3743 = vld [vmem:[%s3739 + $0x18] sm:$0xff]
      %v3744 = vld [vmem:[%s3739 + $0x20] sm:$0xff]
      %v3745 = vld [vmem:[%s3739 + $0x28] sm:$0xff]
      %v3746 = vld [vmem:[%s3739 + $0x30] sm:$0xff]
      %v3747 = vld [vmem:[%s3739 + $0x38] sm:$0xff]
      %v3748 = vld [vmem:[%s3739 + $0x40] sm:$0xff]
      %v3749 = vld [vmem:[%s3739 + $0x48] sm:$0xff]
      %v3750 = vld [vmem:[%s3739 + $0x50] sm:$0xff]
      %v3751 = vld [vmem:[%s3739 + $0x58] sm:$0xff]
      %v3752 = vld [vmem:[%s3739 + $0x60] sm:$0xff]
      %v3753 = vld [vmem:[%s3739 + $0x68] sm:$0xff]
      %v3754 = vld [vmem:[%s3739 + $0x70] sm:$0xff]
      %v3755 = vld [vmem:[%s3739 + $0x78] sm:$0xff]
      %3756 = vmatpush.msra.mxu0 %v3755
      %3757 = vmatpush.msra.mxu0 %v3754
      %3758 = vmatpush.msra.mxu0 %v3753
      %3759 = vmatpush.msra.mxu0 %v3752
      %3760 = vmatpush.msra.mxu0 %v3751
      %3761 = vmatpush.msra.mxu0 %v3750
      %3762 = vmatpush.msra.mxu0 %v3749
      %3763 = vmatpush.msra.mxu0 %v3748
      %3764 = vmatpush.msra.mxu0 %v3747
      %3765 = vmatpush.msra.mxu0 %v3746
      %3766 = vmatpush.msra.mxu0 %v3745
      %3767 = vmatpush.msra.mxu0 %v3744
      %3768 = vmatpush.msra.mxu0 %v3743
      %3769 = vmatpush.msra.mxu0 %v3742
      %3770 = vmatpush.msra.mxu0 %v3741
      %3771 = vmatpush.msra.mxu0 %v3740
      %3772 = vmatmul.f32.gmra.mxu0 %v3715
      %v3773 = vpop.f32.mrf.mxu0
      %v3774 = vadd.f32 0.0, %v3773
      %3775 = vmatmul.f32.gmra.mxu0 %v3716
      %v3776 = vpop.f32.mrf.mxu0
      %v3777 = vadd.f32 0.0, %v3776
      %3778 = vmatmul.f32.gmra.mxu0 %v3717
      %v3779 = vpop.f32.mrf.mxu0
      %v3780 = vadd.f32 0.0, %v3779
      %3781 = vmatmul.f32.gmra.mxu0 %v3718
      %v3782 = vpop.f32.mrf.mxu0
      %v3783 = vadd.f32 0.0, %v3782
      %3784 = vmatmul.f32.gmra.mxu0 %v3719
      %v3785 = vpop.f32.mrf.mxu0
      %v3786 = vadd.f32 0.0, %v3785
      %3787 = vmatmul.f32.gmra.mxu0 %v3720
      %v3788 = vpop.f32.mrf.mxu0
      %v3789 = vadd.f32 0.0, %v3788
      %3790 = vmatmul.f32.gmra.mxu0 %v3721
      %v3791 = vpop.f32.mrf.mxu0
      %v3792 = vadd.f32 0.0, %v3791
      %3793 = vmatmul.f32.gmra.mxu0 %v3722
      %v3794 = vpop.f32.mrf.mxu0
      %v3795 = vadd.f32 0.0, %v3794
      %3796 = vmatmul.f32.gmra.mxu0 %v3723
      %v3797 = vpop.f32.mrf.mxu0
      %v3798 = vadd.f32 0.0, %v3797
      %3799 = vmatmul.f32.gmra.mxu0 %v3724
      %v3800 = vpop.f32.mrf.mxu0
      %v3801 = vadd.f32 0.0, %v3800
      %3802 = vmatmul.f32.gmra.mxu0 %v3725
      %v3803 = vpop.f32.mrf.mxu0
      %v3804 = vadd.f32 0.0, %v3803
      %3805 = vmatmul.f32.gmra.mxu0 %v3726
      %v3806 = vpop.f32.mrf.mxu0
      %v3807 = vadd.f32 0.0, %v3806
      %3808 = vmatmul.f32.gmra.mxu0 %v3727
      %v3809 = vpop.f32.mrf.mxu0
      %v3810 = vadd.f32 0.0, %v3809
      %3811 = vmatmul.f32.gmra.mxu0 %v3728
      %v3812 = vpop.f32.mrf.mxu0
      %v3813 = vadd.f32 0.0, %v3812
      %3814 = vmatmul.f32.gmra.mxu0 %v3729
      %v3815 = vpop.f32.mrf.mxu0
      %v3816 = vadd.f32 0.0, %v3815
      %3817 = vmatmul.f32.gmra.mxu0 %v3730
      %v3818 = vpop.f32.mrf.mxu0
      %v3819 = vadd.f32 0.0, %v3818
      %3820 = vmatmul.f32.gmra.mxu0 %v3731
      %v3821 = vpop.f32.mrf.mxu0
      %v3822 = vadd.f32 0.0, %v3821
      %3823 = vmatmul.f32.gmra.mxu0 %v3732
      %v3824 = vpop.f32.mrf.mxu0
      %v3825 = vadd.f32 0.0, %v3824
      %3826 = vmatmul.f32.gmra.mxu0 %v3733
      %v3827 = vpop.f32.mrf.mxu0
      %v3828 = vadd.f32 0.0, %v3827
      %3829 = vmatmul.f32.gmra.mxu0 %v3734
      %v3830 = vpop.f32.mrf.mxu0
      %v3831 = vadd.f32 0.0, %v3830
      %3832 = vmatmul.f32.gmra.mxu0 %v3735
      %v3833 = vpop.f32.mrf.mxu0
      %v3834 = vadd.f32 0.0, %v3833
      %3835 = vmatmul.f32.gmra.mxu0 %v3736
      %v3836 = vpop.f32.mrf.mxu0
      %v3837 = vadd.f32 0.0, %v3836
      %3838 = vmatmul.f32.gmra.mxu0 %v3737
      %v3839 = vpop.f32.mrf.mxu0
      %v3840 = vadd.f32 0.0, %v3839
      %3841 = vmatmul.f32.gmra.mxu0 %v3738
      %v3842 = vpop.f32.mrf.mxu0
      %v3843 = vadd.f32 0.0, %v3842
      %3844 = vdwg.mxu0
      %v3845 = vadd.f32 %v3691, %v3774
      %v3846 = vadd.f32 %v3692, %v3777
      %v3847 = vadd.f32 %v3693, %v3780
      %v3848 = vadd.f32 %v3694, %v3783
      %v3849 = vadd.f32 %v3695, %v3786
      %v3850 = vadd.f32 %v3696, %v3789
      %v3851 = vadd.f32 %v3697, %v3792
      %v3852 = vadd.f32 %v3698, %v3795
      %v3853 = vadd.f32 %v3699, %v3798
      %v3854 = vadd.f32 %v3700, %v3801
      %v3855 = vadd.f32 %v3701, %v3804
      %v3856 = vadd.f32 %v3702, %v3807
      %v3857 = vadd.f32 %v3703, %v3810
      %v3858 = vadd.f32 %v3704, %v3813
      %v3859 = vadd.f32 %v3705, %v3816
      %v3860 = vadd.f32 %v3706, %v3819
      %v3861 = vadd.f32 %v3707, %v3822
      %v3862 = vadd.f32 %v3708, %v3825
      %v3863 = vadd.f32 %v3709, %v3828
      %v3864 = vadd.f32 %v3710, %v3831
      %v3865 = vadd.f32 %v3711, %v3834
      %v3866 = vadd.f32 %v3712, %v3837
      %v3867 = vadd.f32 %v3713, %v3840
      %v3868 = vadd.f32 %v3714, %v3843
      %3869 = vst [vmem:[#allocation3] sm:$0xff] %v3845
      %3870 = vst [vmem:[#allocation3 + $0x8] sm:$0xff] %v3846
      %3871 = vst [vmem:[#allocation3 + $0x10] sm:$0xff] %v3847
      %3872 = vst [vmem:[#allocation3 + $0x18] sm:$0xff] %v3848
      %3873 = vst [vmem:[#allocation3 + $0x20] sm:$0xff] %v3849
      %3874 = vst [vmem:[#allocation3 + $0x28] sm:$0xff] %v3850
      %3875 = vst [vmem:[#allocation3 + $0x30] sm:$0xff] %v3851
      %3876 = vst [vmem:[#allocation3 + $0x38] sm:$0xff] %v3852
      %3877 = vst [vmem:[#allocation3 + $0x40] sm:$0xff] %v3853
      %3878 = vst [vmem:[#allocation3 + $0x48] sm:$0xff] %v3854
      %3879 = vst [vmem:[#allocation3 + $0x50] sm:$0xff] %v3855
      %3880 = vst [vmem:[#allocation3 + $0x58] sm:$0xff] %v3856
      %3881 = vst [vmem:[#allocation3 + $0x60] sm:$0xff] %v3857
      %3882 = vst [vmem:[#allocation3 + $0x68] sm:$0xff] %v3858
      %3883 = vst [vmem:[#allocation3 + $0x70] sm:$0xff] %v3859
      %3884 = vst [vmem:[#allocation3 + $0x78] sm:$0xff] %v3860
      %3885 = vst [vmem:[#allocation3 + $0x80] sm:$0xff] %v3861
      %3886 = vst [vmem:[#allocation3 + $0x88] sm:$0xff] %v3862
      %3887 = vst [vmem:[#allocation3 + $0x90] sm:$0xff] %v3863
      %3888 = vst [vmem:[#allocation3 + $0x98] sm:$0xff] %v3864
      %3889 = vst [vmem:[#allocation3 + $0xa0] sm:$0xff] %v3865
      %3890 = vst [vmem:[#allocation3 + $0xa8] sm:$0xff] %v3866
      %3891 = vst [vmem:[#allocation3 + $0xb0] sm:$0xff] %v3867
      %3892 = vst [vmem:[#allocation3 + $0xb8] sm:$0xf] %v3868
      %v3893 = vld [vmem:[#allocation3] sm:$0xff]
      %v3894 = vld [vmem:[#allocation3 + $0x8] sm:$0xff]
      %v3895 = vld [vmem:[#allocation3 + $0x10] sm:$0xff]
      %v3896 = vld [vmem:[#allocation3 + $0x18] sm:$0xff]
      %v3897 = vld [vmem:[#allocation3 + $0x20] sm:$0xff]
      %v3898 = vld [vmem:[#allocation3 + $0x28] sm:$0xff]
      %v3899 = vld [vmem:[#allocation3 + $0x30] sm:$0xff]
      %v3900 = vld [vmem:[#allocation3 + $0x38] sm:$0xff]
      %v3901 = vld [vmem:[#allocation3 + $0x40] sm:$0xff]
      %v3902 = vld [vmem:[#allocation3 + $0x48] sm:$0xff]
      %v3903 = vld [vmem:[#allocation3 + $0x50] sm:$0xff]
      %v3904 = vld [vmem:[#allocation3 + $0x58] sm:$0xff]
      %v3905 = vld [vmem:[#allocation3 + $0x60] sm:$0xff]
      %v3906 = vld [vmem:[#allocation3 + $0x68] sm:$0xff]
      %v3907 = vld [vmem:[#allocation3 + $0x70] sm:$0xff]
      %v3908 = vld [vmem:[#allocation3 + $0x78] sm:$0xff]
      %v3909 = vld [vmem:[#allocation3 + $0x80] sm:$0xff]
      %v3910 = vld [vmem:[#allocation3 + $0x88] sm:$0xff]
      %v3911 = vld [vmem:[#allocation3 + $0x90] sm:$0xff]
      %v3912 = vld [vmem:[#allocation3 + $0x98] sm:$0xff]
      %v3913 = vld [vmem:[#allocation3 + $0xa0] sm:$0xff]
      %v3914 = vld [vmem:[#allocation3 + $0xa8] sm:$0xff]
      %v3915 = vld [vmem:[#allocation3 + $0xb0] sm:$0xff]
      %v3916 = vld [vmem:[#allocation3 + $0xb8] sm:$0xf]
      %v3917 = vld [vmem:[#allocation2 + $0x21] sm:$0xff]
      %v3918 = vld [vmem:[#allocation2 + $0x29] sm:$0xff]
      %v3919 = vld [vmem:[#allocation2 + $0x31] sm:$0xff]
      %v3920 = vld [vmem:[#allocation2 + $0x39] sm:$0xff]
      %v3921 = vld [vmem:[#allocation2 + $0x41] sm:$0xff]
      %v3922 = vld [vmem:[#allocation2 + $0x49] sm:$0xff]
      %v3923 = vld [vmem:[#allocation2 + $0x51] sm:$0xff]
      %v3924 = vld [vmem:[#allocation2 + $0x59] sm:$0xff]
      %v3925 = vld [vmem:[#allocation2 + $0x61] sm:$0xff]
      %v3926 = vld [vmem:[#allocation2 + $0x69] sm:$0xff]
      %v3927 = vld [vmem:[#allocation2 + $0x71] sm:$0xff]
      %v3928 = vld [vmem:[#allocation2 + $0x79] sm:$0xff]
      %v3929 = vld [vmem:[#allocation2 + $0x81] sm:$0xff]
      %v3930 = vld [vmem:[#allocation2 + $0x89] sm:$0xff]
      %v3931 = vld [vmem:[#allocation2 + $0x91] sm:$0xff]
      %v3932 = vld [vmem:[#allocation2 + $0x99] sm:$0xff]
      %v3933 = vld [vmem:[#allocation2 + $0xa1] sm:$0xff]
      %v3934 = vld [vmem:[#allocation2 + $0xa9] sm:$0xff]
      %v3935 = vld [vmem:[#allocation2 + $0xb1] sm:$0xff]
      %v3936 = vld [vmem:[#allocation2 + $0xb9] sm:$0xff]
      %v3937 = vld [vmem:[#allocation2 + $0xc1] sm:$0xff]
      %v3938 = vld [vmem:[#allocation2 + $0xc9] sm:$0xff]
      %v3939 = vld [vmem:[#allocation2 + $0xd1] sm:$0xff]
      %v3940 = vld [vmem:[#allocation2 + $0xd9] sm:$0xf]
      %s3941 = scalar_lea.vmem %s3, 896
      %v3942 = vld [vmem:[%s3941] sm:$0xff]
      %v3943 = vld [vmem:[%s3941 + $0x8] sm:$0xff]
      %v3944 = vld [vmem:[%s3941 + $0x10] sm:$0xff]
      %v3945 = vld [vmem:[%s3941 + $0x18] sm:$0xff]
      %v3946 = vld [vmem:[%s3941 + $0x20] sm:$0xff]
      %v3947 = vld [vmem:[%s3941 + $0x28] sm:$0xff]
      %v3948 = vld [vmem:[%s3941 + $0x30] sm:$0xff]
      %v3949 = vld [vmem:[%s3941 + $0x38] sm:$0xff]
      %v3950 = vld [vmem:[%s3941 + $0x40] sm:$0xff]
      %v3951 = vld [vmem:[%s3941 + $0x48] sm:$0xff]
      %v3952 = vld [vmem:[%s3941 + $0x50] sm:$0xff]
      %v3953 = vld [vmem:[%s3941 + $0x58] sm:$0xff]
      %v3954 = vld [vmem:[%s3941 + $0x60] sm:$0xff]
      %v3955 = vld [vmem:[%s3941 + $0x68] sm:$0xff]
      %v3956 = vld [vmem:[%s3941 + $0x70] sm:$0xff]
      %v3957 = vld [vmem:[%s3941 + $0x78] sm:$0xff]
      %3958 = vmatpush.msra.mxu0 %v3957
      %3959 = vmatpush.msra.mxu0 %v3956
      %3960 = vmatpush.msra.mxu0 %v3955
      %3961 = vmatpush.msra.mxu0 %v3954
      %3962 = vmatpush.msra.mxu0 %v3953
      %3963 = vmatpush.msra.mxu0 %v3952
      %3964 = vmatpush.msra.mxu0 %v3951
      %3965 = vmatpush.msra.mxu0 %v3950
      %3966 = vmatpush.msra.mxu0 %v3949
      %3967 = vmatpush.msra.mxu0 %v3948
      %3968 = vmatpush.msra.mxu0 %v3947
      %3969 = vmatpush.msra.mxu0 %v3946
      %3970 = vmatpush.msra.mxu0 %v3945
      %3971 = vmatpush.msra.mxu0 %v3944
      %3972 = vmatpush.msra.mxu0 %v3943
      %3973 = vmatpush.msra.mxu0 %v3942
      %3974 = vmatmul.f32.gmra.mxu0 %v3917
      %v3975 = vpop.f32.mrf.mxu0
      %v3976 = vadd.f32 0.0, %v3975
      %3977 = vmatmul.f32.gmra.mxu0 %v3918
      %v3978 = vpop.f32.mrf.mxu0
      %v3979 = vadd.f32 0.0, %v3978
      %3980 = vmatmul.f32.gmra.mxu0 %v3919
      %v3981 = vpop.f32.mrf.mxu0
      %v3982 = vadd.f32 0.0, %v3981
      %3983 = vmatmul.f32.gmra.mxu0 %v3920
      %v3984 = vpop.f32.mrf.mxu0
      %v3985 = vadd.f32 0.0, %v3984
      %3986 = vmatmul.f32.gmra.mxu0 %v3921
      %v3987 = vpop.f32.mrf.mxu0
      %v3988 = vadd.f32 0.0, %v3987
      %3989 = vmatmul.f32.gmra.mxu0 %v3922
      %v3990 = vpop.f32.mrf.mxu0
      %v3991 = vadd.f32 0.0, %v3990
      %3992 = vmatmul.f32.gmra.mxu0 %v3923
      %v3993 = vpop.f32.mrf.mxu0
      %v3994 = vadd.f32 0.0, %v3993
      %3995 = vmatmul.f32.gmra.mxu0 %v3924
      %v3996 = vpop.f32.mrf.mxu0
      %v3997 = vadd.f32 0.0, %v3996
      %3998 = vmatmul.f32.gmra.mxu0 %v3925
      %v3999 = vpop.f32.mrf.mxu0
      %v4000 = vadd.f32 0.0, %v3999
      %4001 = vmatmul.f32.gmra.mxu0 %v3926
      %v4002 = vpop.f32.mrf.mxu0
      %v4003 = vadd.f32 0.0, %v4002
      %4004 = vmatmul.f32.gmra.mxu0 %v3927
      %v4005 = vpop.f32.mrf.mxu0
      %v4006 = vadd.f32 0.0, %v4005
      %4007 = vmatmul.f32.gmra.mxu0 %v3928
      %v4008 = vpop.f32.mrf.mxu0
      %v4009 = vadd.f32 0.0, %v4008
      %4010 = vmatmul.f32.gmra.mxu0 %v3929
      %v4011 = vpop.f32.mrf.mxu0
      %v4012 = vadd.f32 0.0, %v4011
      %4013 = vmatmul.f32.gmra.mxu0 %v3930
      %v4014 = vpop.f32.mrf.mxu0
      %v4015 = vadd.f32 0.0, %v4014
      %4016 = vmatmul.f32.gmra.mxu0 %v3931
      %v4017 = vpop.f32.mrf.mxu0
      %v4018 = vadd.f32 0.0, %v4017
      %4019 = vmatmul.f32.gmra.mxu0 %v3932
      %v4020 = vpop.f32.mrf.mxu0
      %v4021 = vadd.f32 0.0, %v4020
      %4022 = vmatmul.f32.gmra.mxu0 %v3933
      %v4023 = vpop.f32.mrf.mxu0
      %v4024 = vadd.f32 0.0, %v4023
      %4025 = vmatmul.f32.gmra.mxu0 %v3934
      %v4026 = vpop.f32.mrf.mxu0
      %v4027 = vadd.f32 0.0, %v4026
      %4028 = vmatmul.f32.gmra.mxu0 %v3935
      %v4029 = vpop.f32.mrf.mxu0
      %v4030 = vadd.f32 0.0, %v4029
      %4031 = vmatmul.f32.gmra.mxu0 %v3936
      %v4032 = vpop.f32.mrf.mxu0
      %v4033 = vadd.f32 0.0, %v4032
      %4034 = vmatmul.f32.gmra.mxu0 %v3937
      %v4035 = vpop.f32.mrf.mxu0
      %v4036 = vadd.f32 0.0, %v4035
      %4037 = vmatmul.f32.gmra.mxu0 %v3938
      %v4038 = vpop.f32.mrf.mxu0
      %v4039 = vadd.f32 0.0, %v4038
      %4040 = vmatmul.f32.gmra.mxu0 %v3939
      %v4041 = vpop.f32.mrf.mxu0
      %v4042 = vadd.f32 0.0, %v4041
      %4043 = vmatmul.f32.gmra.mxu0 %v3940
      %v4044 = vpop.f32.mrf.mxu0
      %v4045 = vadd.f32 0.0, %v4044
      %4046 = vdwg.mxu0
      %v4047 = vadd.f32 %v3893, %v3976
      %v4048 = vadd.f32 %v3894, %v3979
      %v4049 = vadd.f32 %v3895, %v3982
      %v4050 = vadd.f32 %v3896, %v3985
      %v4051 = vadd.f32 %v3897, %v3988
      %v4052 = vadd.f32 %v3898, %v3991
      %v4053 = vadd.f32 %v3899, %v3994
      %v4054 = vadd.f32 %v3900, %v3997
      %v4055 = vadd.f32 %v3901, %v4000
      %v4056 = vadd.f32 %v3902, %v4003
      %v4057 = vadd.f32 %v3903, %v4006
      %v4058 = vadd.f32 %v3904, %v4009
      %v4059 = vadd.f32 %v3905, %v4012
      %v4060 = vadd.f32 %v3906, %v4015
      %v4061 = vadd.f32 %v3907, %v4018
      %v4062 = vadd.f32 %v3908, %v4021
      %v4063 = vadd.f32 %v3909, %v4024
      %v4064 = vadd.f32 %v3910, %v4027
      %v4065 = vadd.f32 %v3911, %v4030
      %v4066 = vadd.f32 %v3912, %v4033
      %v4067 = vadd.f32 %v3913, %v4036
      %v4068 = vadd.f32 %v3914, %v4039
      %v4069 = vadd.f32 %v3915, %v4042
      %v4070 = vadd.f32 %v3916, %v4045
      %4071 = vst [vmem:[#allocation3] sm:$0xff] %v4047
      %4072 = vst [vmem:[#allocation3 + $0x8] sm:$0xff] %v4048
      %4073 = vst [vmem:[#allocation3 + $0x10] sm:$0xff] %v4049
      %4074 = vst [vmem:[#allocation3 + $0x18] sm:$0xff] %v4050
      %4075 = vst [vmem:[#allocation3 + $0x20] sm:$0xff] %v4051
      %4076 = vst [vmem:[#allocation3 + $0x28] sm:$0xff] %v4052
      %4077 = vst [vmem:[#allocation3 + $0x30] sm:$0xff] %v4053
      %4078 = vst [vmem:[#allocation3 + $0x38] sm:$0xff] %v4054
      %4079 = vst [vmem:[#allocation3 + $0x40] sm:$0xff] %v4055
      %4080 = vst [vmem:[#allocation3 + $0x48] sm:$0xff] %v4056
      %4081 = vst [vmem:[#allocation3 + $0x50] sm:$0xff] %v4057
      %4082 = vst [vmem:[#allocation3 + $0x58] sm:$0xff] %v4058
      %4083 = vst [vmem:[#allocation3 + $0x60] sm:$0xff] %v4059
      %4084 = vst [vmem:[#allocation3 + $0x68] sm:$0xff] %v4060
      %4085 = vst [vmem:[#allocation3 + $0x70] sm:$0xff] %v4061
      %4086 = vst [vmem:[#allocation3 + $0x78] sm:$0xff] %v4062
      %4087 = vst [vmem:[#allocation3 + $0x80] sm:$0xff] %v4063
      %4088 = vst [vmem:[#allocation3 + $0x88] sm:$0xff] %v4064
      %4089 = vst [vmem:[#allocation3 + $0x90] sm:$0xff] %v4065
      %4090 = vst [vmem:[#allocation3 + $0x98] sm:$0xff] %v4066
      %4091 = vst [vmem:[#allocation3 + $0xa0] sm:$0xff] %v4067
      %4092 = vst [vmem:[#allocation3 + $0xa8] sm:$0xff] %v4068
      %4093 = vst [vmem:[#allocation3 + $0xb0] sm:$0xff] %v4069
      %4094 = vst [vmem:[#allocation3 + $0xb8] sm:$0xf] %v4070
      %v4095 = vld [vmem:[#allocation3] sm:$0xff]
      %v4096 = vld [vmem:[#allocation3 + $0x8] sm:$0xff]
      %v4097 = vld [vmem:[#allocation3 + $0x10] sm:$0xff]
      %v4098 = vld [vmem:[#allocation3 + $0x18] sm:$0xff]
      %v4099 = vld [vmem:[#allocation3 + $0x20] sm:$0xff]
      %v4100 = vld [vmem:[#allocation3 + $0x28] sm:$0xff]
      %v4101 = vld [vmem:[#allocation3 + $0x30] sm:$0xff]
      %v4102 = vld [vmem:[#allocation3 + $0x38] sm:$0xff]
      %v4103 = vld [vmem:[#allocation3 + $0x40] sm:$0xff]
      %v4104 = vld [vmem:[#allocation3 + $0x48] sm:$0xff]
      %v4105 = vld [vmem:[#allocation3 + $0x50] sm:$0xff]
      %v4106 = vld [vmem:[#allocation3 + $0x58] sm:$0xff]
      %v4107 = vld [vmem:[#allocation3 + $0x60] sm:$0xff]
      %v4108 = vld [vmem:[#allocation3 + $0x68] sm:$0xff]
      %v4109 = vld [vmem:[#allocation3 + $0x70] sm:$0xff]
      %v4110 = vld [vmem:[#allocation3 + $0x78] sm:$0xff]
      %v4111 = vld [vmem:[#allocation3 + $0x80] sm:$0xff]
      %v4112 = vld [vmem:[#allocation3 + $0x88] sm:$0xff]
      %v4113 = vld [vmem:[#allocation3 + $0x90] sm:$0xff]
      %v4114 = vld [vmem:[#allocation3 + $0x98] sm:$0xff]
      %v4115 = vld [vmem:[#allocation3 + $0xa0] sm:$0xff]
      %v4116 = vld [vmem:[#allocation3 + $0xa8] sm:$0xff]
      %v4117 = vld [vmem:[#allocation3 + $0xb0] sm:$0xff]
      %v4118 = vld [vmem:[#allocation3 + $0xb8] sm:$0xf]
      %v4119 = vld [vmem:[#allocation2 + $0x22] sm:$0xff]
      %v4120 = vld [vmem:[#allocation2 + $0x2a] sm:$0xff]
      %v4121 = vld [vmem:[#allocation2 + $0x32] sm:$0xff]
      %v4122 = vld [vmem:[#allocation2 + $0x3a] sm:$0xff]
      %v4123 = vld [vmem:[#allocation2 + $0x42] sm:$0xff]
      %v4124 = vld [vmem:[#allocation2 + $0x4a] sm:$0xff]
      %v4125 = vld [vmem:[#allocation2 + $0x52] sm:$0xff]
      %v4126 = vld [vmem:[#allocation2 + $0x5a] sm:$0xff]
      %v4127 = vld [vmem:[#allocation2 + $0x62] sm:$0xff]
      %v4128 = vld [vmem:[#allocation2 + $0x6a] sm:$0xff]
      %v4129 = vld [vmem:[#allocation2 + $0x72] sm:$0xff]
      %v4130 = vld [vmem:[#allocation2 + $0x7a] sm:$0xff]
      %v4131 = vld [vmem:[#allocation2 + $0x82] sm:$0xff]
      %v4132 = vld [vmem:[#allocation2 + $0x8a] sm:$0xff]
      %v4133 = vld [vmem:[#allocation2 + $0x92] sm:$0xff]
      %v4134 = vld [vmem:[#allocation2 + $0x9a] sm:$0xff]
      %v4135 = vld [vmem:[#allocation2 + $0xa2] sm:$0xff]
      %v4136 = vld [vmem:[#allocation2 + $0xaa] sm:$0xff]
      %v4137 = vld [vmem:[#allocation2 + $0xb2] sm:$0xff]
      %v4138 = vld [vmem:[#allocation2 + $0xba] sm:$0xff]
      %v4139 = vld [vmem:[#allocation2 + $0xc2] sm:$0xff]
      %v4140 = vld [vmem:[#allocation2 + $0xca] sm:$0xff]
      %v4141 = vld [vmem:[#allocation2 + $0xd2] sm:$0xff]
      %v4142 = vld [vmem:[#allocation2 + $0xda] sm:$0xf]
      %s4143 = scalar_lea.vmem %s3, 1024
      %v4144 = vld [vmem:[%s4143] sm:$0xff]
      %v4145 = vld [vmem:[%s4143 + $0x8] sm:$0xff]
      %v4146 = vld [vmem:[%s4143 + $0x10] sm:$0xff]
      %v4147 = vld [vmem:[%s4143 + $0x18] sm:$0xff]
      %v4148 = vld [vmem:[%s4143 + $0x20] sm:$0xff]
      %v4149 = vld [vmem:[%s4143 + $0x28] sm:$0xff]
      %v4150 = vld [vmem:[%s4143 + $0x30] sm:$0xff]
      %v4151 = vld [vmem:[%s4143 + $0x38] sm:$0xff]
      %v4152 = vld [vmem:[%s4143 + $0x40] sm:$0xff]
      %v4153 = vld [vmem:[%s4143 + $0x48] sm:$0xff]
      %v4154 = vld [vmem:[%s4143 + $0x50] sm:$0xff]
      %v4155 = vld [vmem:[%s4143 + $0x58] sm:$0xff]
      %v4156 = vld [vmem:[%s4143 + $0x60] sm:$0xff]
      %v4157 = vld [vmem:[%s4143 + $0x68] sm:$0xff]
      %v4158 = vld [vmem:[%s4143 + $0x70] sm:$0xff]
      %v4159 = vld [vmem:[%s4143 + $0x78] sm:$0xff]
      %4160 = vmatpush.msra.mxu0 %v4159
      %4161 = vmatpush.msra.mxu0 %v4158
      %4162 = vmatpush.msra.mxu0 %v4157
      %4163 = vmatpush.msra.mxu0 %v4156
      %4164 = vmatpush.msra.mxu0 %v4155
      %4165 = vmatpush.msra.mxu0 %v4154
      %4166 = vmatpush.msra.mxu0 %v4153
      %4167 = vmatpush.msra.mxu0 %v4152
      %4168 = vmatpush.msra.mxu0 %v4151
      %4169 = vmatpush.msra.mxu0 %v4150
      %4170 = vmatpush.msra.mxu0 %v4149
      %4171 = vmatpush.msra.mxu0 %v4148
      %4172 = vmatpush.msra.mxu0 %v4147
      %4173 = vmatpush.msra.mxu0 %v4146
      %4174 = vmatpush.msra.mxu0 %v4145
      %4175 = vmatpush.msra.mxu0 %v4144
      %4176 = vmatmul.f32.gmra.mxu0 %v4119
      %v4177 = vpop.f32.mrf.mxu0
      %v4178 = vadd.f32 0.0, %v4177
      %4179 = vmatmul.f32.gmra.mxu0 %v4120
      %v4180 = vpop.f32.mrf.mxu0
      %v4181 = vadd.f32 0.0, %v4180
      %4182 = vmatmul.f32.gmra.mxu0 %v4121
      %v4183 = vpop.f32.mrf.mxu0
      %v4184 = vadd.f32 0.0, %v4183
      %4185 = vmatmul.f32.gmra.mxu0 %v4122
      %v4186 = vpop.f32.mrf.mxu0
      %v4187 = vadd.f32 0.0, %v4186
      %4188 = vmatmul.f32.gmra.mxu0 %v4123
      %v4189 = vpop.f32.mrf.mxu0
      %v4190 = vadd.f32 0.0, %v4189
      %4191 = vmatmul.f32.gmra.mxu0 %v4124
      %v4192 = vpop.f32.mrf.mxu0
      %v4193 = vadd.f32 0.0, %v4192
      %4194 = vmatmul.f32.gmra.mxu0 %v4125
      %v4195 = vpop.f32.mrf.mxu0
      %v4196 = vadd.f32 0.0, %v4195
      %4197 = vmatmul.f32.gmra.mxu0 %v4126
      %v4198 = vpop.f32.mrf.mxu0
      %v4199 = vadd.f32 0.0, %v4198
      %4200 = vmatmul.f32.gmra.mxu0 %v4127
      %v4201 = vpop.f32.mrf.mxu0
      %v4202 = vadd.f32 0.0, %v4201
      %4203 = vmatmul.f32.gmra.mxu0 %v4128
      %v4204 = vpop.f32.mrf.mxu0
      %v4205 = vadd.f32 0.0, %v4204
      %4206 = vmatmul.f32.gmra.mxu0 %v4129
      %v4207 = vpop.f32.mrf.mxu0
      %v4208 = vadd.f32 0.0, %v4207
      %4209 = vmatmul.f32.gmra.mxu0 %v4130
      %v4210 = vpop.f32.mrf.mxu0
      %v4211 = vadd.f32 0.0, %v4210
      %4212 = vmatmul.f32.gmra.mxu0 %v4131
      %v4213 = vpop.f32.mrf.mxu0
      %v4214 = vadd.f32 0.0, %v4213
      %4215 = vmatmul.f32.gmra.mxu0 %v4132
      %v4216 = vpop.f32.mrf.mxu0
      %v4217 = vadd.f32 0.0, %v4216
      %4218 = vmatmul.f32.gmra.mxu0 %v4133
      %v4219 = vpop.f32.mrf.mxu0
      %v4220 = vadd.f32 0.0, %v4219
      %4221 = vmatmul.f32.gmra.mxu0 %v4134
      %v4222 = vpop.f32.mrf.mxu0
      %v4223 = vadd.f32 0.0, %v4222
      %4224 = vmatmul.f32.gmra.mxu0 %v4135
      %v4225 = vpop.f32.mrf.mxu0
      %v4226 = vadd.f32 0.0, %v4225
      %4227 = vmatmul.f32.gmra.mxu0 %v4136
      %v4228 = vpop.f32.mrf.mxu0
      %v4229 = vadd.f32 0.0, %v4228
      %4230 = vmatmul.f32.gmra.mxu0 %v4137
      %v4231 = vpop.f32.mrf.mxu0
      %v4232 = vadd.f32 0.0, %v4231
      %4233 = vmatmul.f32.gmra.mxu0 %v4138
      %v4234 = vpop.f32.mrf.mxu0
      %v4235 = vadd.f32 0.0, %v4234
      %4236 = vmatmul.f32.gmra.mxu0 %v4139
      %v4237 = vpop.f32.mrf.mxu0
      %v4238 = vadd.f32 0.0, %v4237
      %4239 = vmatmul.f32.gmra.mxu0 %v4140
      %v4240 = vpop.f32.mrf.mxu0
      %v4241 = vadd.f32 0.0, %v4240
      %4242 = vmatmul.f32.gmra.mxu0 %v4141
      %v4243 = vpop.f32.mrf.mxu0
      %v4244 = vadd.f32 0.0, %v4243
      %4245 = vmatmul.f32.gmra.mxu0 %v4142
      %v4246 = vpop.f32.mrf.mxu0
      %v4247 = vadd.f32 0.0, %v4246
      %4248 = vdwg.mxu0
      %v4249 = vadd.f32 %v4095, %v4178
      %v4250 = vadd.f32 %v4096, %v4181
      %v4251 = vadd.f32 %v4097, %v4184
      %v4252 = vadd.f32 %v4098, %v4187
      %v4253 = vadd.f32 %v4099, %v4190
      %v4254 = vadd.f32 %v4100, %v4193
      %v4255 = vadd.f32 %v4101, %v4196
      %v4256 = vadd.f32 %v4102, %v4199
      %v4257 = vadd.f32 %v4103, %v4202
      %v4258 = vadd.f32 %v4104, %v4205
      %v4259 = vadd.f32 %v4105, %v4208
      %v4260 = vadd.f32 %v4106, %v4211
      %v4261 = vadd.f32 %v4107, %v4214
      %v4262 = vadd.f32 %v4108, %v4217
      %v4263 = vadd.f32 %v4109, %v4220
      %v4264 = vadd.f32 %v4110, %v4223
      %v4265 = vadd.f32 %v4111, %v4226
      %v4266 = vadd.f32 %v4112, %v4229
      %v4267 = vadd.f32 %v4113, %v4232
      %v4268 = vadd.f32 %v4114, %v4235
      %v4269 = vadd.f32 %v4115, %v4238
      %v4270 = vadd.f32 %v4116, %v4241
      %v4271 = vadd.f32 %v4117, %v4244
      %v4272 = vadd.f32 %v4118, %v4247
      %4273 = vst [vmem:[#allocation3] sm:$0xff] %v4249
      %4274 = vst [vmem:[#allocation3 + $0x8] sm:$0xff] %v4250
      %4275 = vst [vmem:[#allocation3 + $0x10] sm:$0xff] %v4251
      %4276 = vst [vmem:[#allocation3 + $0x18] sm:$0xff] %v4252
      %4277 = vst [vmem:[#allocation3 + $0x20] sm:$0xff] %v4253
      %4278 = vst [vmem:[#allocation3 + $0x28] sm:$0xff] %v4254
      %4279 = vst [vmem:[#allocation3 + $0x30] sm:$0xff] %v4255
      %4280 = vst [vmem:[#allocation3 + $0x38] sm:$0xff] %v4256
      %4281 = vst [vmem:[#allocation3 + $0x40] sm:$0xff] %v4257
      %4282 = vst [vmem:[#allocation3 + $0x48] sm:$0xff] %v4258
      %4283 = vst [vmem:[#allocation3 + $0x50] sm:$0xff] %v4259
      %4284 = vst [vmem:[#allocation3 + $0x58] sm:$0xff] %v4260
      %4285 = vst [vmem:[#allocation3 + $0x60] sm:$0xff] %v4261
      %4286 = vst [vmem:[#allocation3 + $0x68] sm:$0xff] %v4262
      %4287 = vst [vmem:[#allocation3 + $0x70] sm:$0xff] %v4263
      %4288 = vst [vmem:[#allocation3 + $0x78] sm:$0xff] %v4264
      %4289 = vst [vmem:[#allocation3 + $0x80] sm:$0xff] %v4265
      %4290 = vst [vmem:[#allocation3 + $0x88] sm:$0xff] %v4266
      %4291 = vst [vmem:[#allocation3 + $0x90] sm:$0xff] %v4267
      %4292 = vst [vmem:[#allocation3 + $0x98] sm:$0xff] %v4268
      %4293 = vst [vmem:[#allocation3 + $0xa0] sm:$0xff] %v4269
      %4294 = vst [vmem:[#allocation3 + $0xa8] sm:$0xff] %v4270
      %4295 = vst [vmem:[#allocation3 + $0xb0] sm:$0xff] %v4271
      %4296 = vst [vmem:[#allocation3 + $0xb8] sm:$0xf] %v4272
      %v4297 = vld [vmem:[#allocation3] sm:$0xff]
      %v4298 = vld [vmem:[#allocation3 + $0x8] sm:$0xff]
      %v4299 = vld [vmem:[#allocation3 + $0x10] sm:$0xff]
      %v4300 = vld [vmem:[#allocation3 + $0x18] sm:$0xff]
      %v4301 = vld [vmem:[#allocation3 + $0x20] sm:$0xff]
      %v4302 = vld [vmem:[#allocation3 + $0x28] sm:$0xff]
      %v4303 = vld [vmem:[#allocation3 + $0x30] sm:$0xff]
      %v4304 = vld [vmem:[#allocation3 + $0x38] sm:$0xff]
      %v4305 = vld [vmem:[#allocation3 + $0x40] sm:$0xff]
      %v4306 = vld [vmem:[#allocation3 + $0x48] sm:$0xff]
      %v4307 = vld [vmem:[#allocation3 + $0x50] sm:$0xff]
      %v4308 = vld [vmem:[#allocation3 + $0x58] sm:$0xff]
      %v4309 = vld [vmem:[#allocation3 + $0x60] sm:$0xff]
      %v4310 = vld [vmem:[#allocation3 + $0x68] sm:$0xff]
      %v4311 = vld [vmem:[#allocation3 + $0x70] sm:$0xff]
      %v4312 = vld [vmem:[#allocation3 + $0x78] sm:$0xff]
      %v4313 = vld [vmem:[#allocation3 + $0x80] sm:$0xff]
      %v4314 = vld [vmem:[#allocation3 + $0x88] sm:$0xff]
      %v4315 = vld [vmem:[#allocation3 + $0x90] sm:$0xff]
      %v4316 = vld [vmem:[#allocation3 + $0x98] sm:$0xff]
      %v4317 = vld [vmem:[#allocation3 + $0xa0] sm:$0xff]
      %v4318 = vld [vmem:[#allocation3 + $0xa8] sm:$0xff]
      %v4319 = vld [vmem:[#allocation3 + $0xb0] sm:$0xff]
      %v4320 = vld [vmem:[#allocation3 + $0xb8] sm:$0xf]
      %4321 = vst [vmem:[%s259] sm:$0xff] %v4297
      %4322 = vst [vmem:[%s259 + $0x8] sm:$0xff] %v4298
      %4323 = vst [vmem:[%s259 + $0x10] sm:$0xff] %v4299
      %4324 = vst [vmem:[%s259 + $0x18] sm:$0xff] %v4300
      %4325 = vst [vmem:[%s259 + $0x20] sm:$0xff] %v4301
      %4326 = vst [vmem:[%s259 + $0x28] sm:$0xff] %v4302
      %4327 = vst [vmem:[%s259 + $0x30] sm:$0xff] %v4303
      %4328 = vst [vmem:[%s259 + $0x38] sm:$0xff] %v4304
      %4329 = vst [vmem:[%s259 + $0x40] sm:$0xff] %v4305
      %4330 = vst [vmem:[%s259 + $0x48] sm:$0xff] %v4306
      %4331 = vst [vmem:[%s259 + $0x50] sm:$0xff] %v4307
      %4332 = vst [vmem:[%s259 + $0x58] sm:$0xff] %v4308
      %4333 = vst [vmem:[%s259 + $0x60] sm:$0xff] %v4309
      %4334 = vst [vmem:[%s259 + $0x68] sm:$0xff] %v4310
      %4335 = vst [vmem:[%s259 + $0x70] sm:$0xff] %v4311
      %4336 = vst [vmem:[%s259 + $0x78] sm:$0xff] %v4312
      %4337 = vst [vmem:[%s259 + $0x80] sm:$0xff] %v4313
      %4338 = vst [vmem:[%s259 + $0x88] sm:$0xff] %v4314
      %4339 = vst [vmem:[%s259 + $0x90] sm:$0xff] %v4315
      %4340 = vst [vmem:[%s259 + $0x98] sm:$0xff] %v4316
      %4341 = vst [vmem:[%s259 + $0xa0] sm:$0xff] %v4317
      %4342 = vst [vmem:[%s259 + $0xa8] sm:$0xff] %v4318
      %4343 = vst [vmem:[%s259 + $0xb0] sm:$0xff] %v4319
      %4344 = vst [vmem:[%s259 + $0xb8] sm:$0xf] %v4320
      %v4345 = vld [vmem:[#allocation3] ss:$2 sm:$0x3f]
      %s4346 = scalar_lea.vmem [#allocation3], 1
      %v4347 = vld [vmem:[%s4346] ss:$2 sm:$0x3f]
      %v4348 = vmax.f32 %v4345, %v4347
      %s4349 = scalar_lea.vmem [#allocation3], 16
      %v4350 = vld [vmem:[%s4349] ss:$2 sm:$0x3f]
      %s4351 = scalar_lea.vmem [#allocation3], 17
      %v4352 = vld [vmem:[%s4351] ss:$2 sm:$0x3f]
      %v4353 = vmax.f32 %v4350, %v4352
      %v4354 = vmax.f32 %v4348, %v4353
      %4355 = vst [vmem:[%s264] sm:$0x3f] %v4354
      %s4356 = scalar_lea.vmem [#allocation3], 32
      %v4357 = vld [vmem:[%s4356] ss:$2 sm:$0x3f]
      %s4358 = scalar_lea.vmem [#allocation3], 33
      %v4359 = vld [vmem:[%s4358] ss:$2 sm:$0x3f]
      %v4360 = vmax.f32 %v4357, %v4359
      %s4361 = scalar_lea.vmem [#allocation3], 48
      %v4362 = vld [vmem:[%s4361] ss:$2 sm:$0x3f]
      %s4363 = scalar_lea.vmem [#allocation3], 49
      %v4364 = vld [vmem:[%s4363] ss:$2 sm:$0x3f]
      %v4365 = vmax.f32 %v4362, %v4364
      %v4366 = vmax.f32 %v4360, %v4365
      %4367 = vst [vmem:[%s264 + $0x6] sm:$0x3f] %v4366
      %s4368 = scalar_lea.vmem [#allocation3], 64
      %v4369 = vld [vmem:[%s4368] ss:$2 sm:$0x3f]
      %s4370 = scalar_lea.vmem [#allocation3], 65
      %v4371 = vld [vmem:[%s4370] ss:$2 sm:$0x3f]
      %v4372 = vmax.f32 %v4369, %v4371
      %s4373 = scalar_lea.vmem [#allocation3], 80
      %v4374 = vld [vmem:[%s4373] ss:$2 sm:$0x3f]
      %s4375 = scalar_lea.vmem [#allocation3], 81
      %v4376 = vld [vmem:[%s4375] ss:$2 sm:$0x3f]
      %v4377 = vmax.f32 %v4374, %v4376
      %v4378 = vmax.f32 %v4372, %v4377
      %4379 = vst [vmem:[%s264 + $0xc] sm:$0x3f] %v4378
      %s4380 = scalar_lea.vmem [#allocation3], 96
      %v4381 = vld [vmem:[%s4380] ss:$2 sm:$0x3f]
      %s4382 = scalar_lea.vmem [#allocation3], 97
      %v4383 = vld [vmem:[%s4382] ss:$2 sm:$0x3f]
      %v4384 = vmax.f32 %v4381, %v4383
      %s4385 = scalar_lea.vmem [#allocation3], 112
      %v4386 = vld [vmem:[%s4385] ss:$2 sm:$0x3f]
      %s4387 = scalar_lea.vmem [#allocation3], 113
      %v4388 = vld [vmem:[%s4387] ss:$2 sm:$0x3f]
      %v4389 = vmax.f32 %v4386, %v4388
      %v4390 = vmax.f32 %v4384, %v4389
      %4391 = vst [vmem:[%s264 + $0x12] sm:$0x3f] %v4390
      %s4392 = scalar_lea.vmem [#allocation3], 128
      %v4393 = vld [vmem:[%s4392] ss:$2 sm:$0x3f]
      %s4394 = scalar_lea.vmem [#allocation3], 129
      %v4395 = vld [vmem:[%s4394] ss:$2 sm:$0x3f]
      %v4396 = vmax.f32 %v4393, %v4395
      %s4397 = scalar_lea.vmem [#allocation3], 144
      %v4398 = vld [vmem:[%s4397] ss:$2 sm:$0x3f]
      %s4399 = scalar_lea.vmem [#allocation3], 145
      %v4400 = vld [vmem:[%s4399] ss:$2 sm:$0x3f]
      %v4401 = vmax.f32 %v4398, %v4400
      %v4402 = vmax.f32 %v4396, %v4401
      %4403 = vst [vmem:[%s264 + $0x18] sm:$0x3f] %v4402
      %s4404 = scalar_lea.vmem [#allocation3], 160
      %v4405 = vld [vmem:[%s4404] ss:$2 sm:$0x3f]
      %s4406 = scalar_lea.vmem [#allocation3], 161
      %v4407 = vld [vmem:[%s4406] ss:$2 sm:$0x3f]
      %v4408 = vmax.f32 %v4405, %v4407
      %s4409 = scalar_lea.vmem [#allocation3], 176
      %v4410 = vld [vmem:[%s4409] ss:$2 sm:$0x3f]
      %s4411 = scalar_lea.vmem [#allocation3], 177
      %v4412 = vld [vmem:[%s4411] ss:$2 sm:$0x3f]
      %v4413 = vmax.f32 %v4410, %v4412
      %v4414 = vmax.f32 %v4408, %v4413
      %4415 = vst [vmem:[%s264 + $0x1e] sm:$0x3f] %v4414
      %p4416 = scmp.lt.s32.totalorder %s18, 1
      %s4417 = scalar_select %p4416, %s18, 1
      %s4418 = smul.addr %s4417, 24
      %s4419 = smul.addr %s4418, 8
      %s4420 = scalar_lea.vmem %s5, %s4419
      %p4421 = scmp.lt.s32.totalorder %s18, 1
      %s4422 = scalar_select %p4421, %s18, 1
      %s4423 = smul.addr %s4422, 5
      %s4424 = smul.addr %s4423, 8
      %s4425 = scalar_lea.vmem %s6, %s4424
      // Predicated region
      $region41: #{encoder_forward.2} parent=39 // pred_check
        %p4426 = pneg %p146
      $region42: #{encoder_forward.2} parent=39 // pred_check_branch
        %4428 = sbr.rel (%p4426) target = $region44
      $region43: #{encoder_forward.2} parent=39 // pred_region
        _
      $region44: #{encoder_forward.2} parent=39 // pred_fallthru
        _
      // Predicated region
      $region45: #{encoder_forward.2} parent=39 // pred_check
        %p4429 = pneg %p172
      $region46: #{encoder_forward.2} parent=39 // pred_check_branch
        %4431 = sbr.rel (%p4429) target = $region48
      $region47: #{encoder_forward.2} parent=39 // pred_region
        _
      $region48: #{encoder_forward.2} parent=39 // pred_fallthru
        _
    $region40: #{encoder_forward.2} parent=5 // pred_fallthru
      _
    %p4432 = scmp.le.s32.totalorder 2, %s13
    // Predicated region
    $region49: #{encoder_forward.2} parent=5 // pred_check
      %p4433 = pneg %p4432
    $region50: #{encoder_forward.2} parent=5 // pred_check_branch
      %4435 = sbr.rel (%p4433) target = $region52
    $region51: #{encoder_forward.2} parent=5 // pred_region
      %s4436 = ssub.s32 %s13, 2
      // Predicated region
      $region53: #{encoder_forward.2} parent=51 // pred_check
        %p4437 = pneg %p152
      $region54: #{encoder_forward.2} parent=51 // pred_check_branch
        %4439 = sbr.rel (%p4437) target = $region56
      $region55: #{encoder_forward.2} parent=51 // pred_region
        %p4440 = scmp.lt.s32.totalorder %s19, 1
        %s4441 = scalar_select %p4440, %s19, 1
        %s4442 = smul.addr %s4441, 24
        %s4443 = smul.addr %s4442, 8
        %s4444 = scalar_lea.vmem %s5, %s4443
      $region56: #{encoder_forward.2} parent=51 // pred_fallthru
        _
      // Predicated region
      $region57: #{encoder_forward.2} parent=51 // pred_check
        %p4445 = pneg %p178
      $region58: #{encoder_forward.2} parent=51 // pred_check_branch
        %4447 = sbr.rel (%p4445) target = $region60
      $region59: #{encoder_forward.2} parent=51 // pred_region
        %p4448 = scmp.lt.s32.totalorder %s19, 1
        %s4449 = scalar_select %p4448, %s19, 1
        %s4450 = smul.addr %s4449, 5
        %s4451 = smul.addr %s4450, 8
        %s4452 = scalar_lea.vmem %s6, %s4451
      $region60: #{encoder_forward.2} parent=51 // pred_fallthru
        _
    $region52: #{encoder_forward.2} parent=5 // pred_fallthru
      _
  $region6: #{encoder_forward.2} parent=0 // loop_footer
    %s17 = sadd.s32 1, %s13
  $region7: #{encoder_forward.2} parent=0 // loop_footer_branch
    %12 = sbr.rel target = $region3
  $region8: #{encoder_forward.2} parent=0 // loop_exit
    _

</llo_original>
